<compile_context>
chip_gen: v7x
topology: tpu7x:2x2x1
jax: 0.10.0
libtpu: 0.0.40
codegen_flags: <defaults>
</compile_context>

<pallas_src>
import functools

import jax
import jax.numpy as jnp
import numpy as np
from jax.experimental import pallas as pl
from jax.experimental.pallas import tpu as pltpu


# ----------------------------- module helpers --------------------------------

def solve_factor(num):
    list_factor = []
    i = 1
    if num > 2:
        while i <= num:
            i += 1
            if num % i == 0:
                list_factor.append(i)
    return list(np.sort(list(set(list_factor))))


def _shuffle_perm(channels, group):
    # torch: x.reshape(B, gc, g, H, W).permute(0, 2, 1, 3, 4).reshape(B, C, H, W)
    # => out channel j takes pre-shuffle channel (j % gc) * g + j // gc
    gc = channels // group
    return np.array([(j % gc) * group + j // gc for j in range(channels)],
                    dtype=np.int64)


def channel_shuffle(x_nchw, group):
    B, C, H, W = x_nchw.shape
    gc = C // group
    x = x_nchw.reshape(B, gc, group, H, W)
    x = jnp.transpose(x, (0, 2, 1, 3, 4))
    return x.reshape(B, C, H, W)


def _choose_tile_rows(H, W, max_rows=1024):
    """Largest divisor of H giving <= max_rows pixels per tile and a
    sublane-friendly (multiple of 8) row count."""
    cands = [t for t in range(1, H + 1)
             if H % t == 0 and t % 8 == 0 and t * W <= max_rows]
    if cands:
        return max(cands)
    return H  # fall back to whole-image tiles


# ------------------------------ Pallas kernels --------------------------------

def _build_cols(xw_ref, cols_ref, d, TH, W, Cs):
    """im2col into VMEM scratch: 9 dilated-branch taps then 9 unit-dilation
    taps, each Cs lanes wide -> (TH*W, 18*Cs).  A single reflection pad of
    width d serves both branches (3x3 taps live at offsets d-1 .. d+1)."""
    i = 0
    for dil in (d, 1):
        base = d - dil
        for ky in range(3):
            for kx in range(3):
                oy = base + ky * dil
                ox = base + kx * dil
                cols_ref[:, i * Cs:(i + 1) * Cs] = (
                    xw_ref[:, oy:oy + TH, ox:ox + W, :].reshape(TH * W, Cs))
                i += 1


def _conv_stats_kernel(d, TH, W, Cs,
                       xw_ref, wc_ref, bc_ref, stat_ref, cols_ref):
    """Phase 1: both conv branches as one GEMM; emit per-tile sum / sumsq."""
    _build_cols(xw_ref, cols_ref, d, TH, W, Cs)
    z = jnp.dot(cols_ref[...], wc_ref[...],
                preferred_element_type=jnp.float32) + bc_ref[...]
    # single-pass BatchNorm statistics per packed channel (2*Cs lanes)
    stat_ref[:, 0:1, :] = jnp.sum(z, axis=0, keepdims=True)[None]
    stat_ref[:, 1:2, :] = jnp.sum(z * z, axis=0, keepdims=True)[None]


def _apply_kernel(d, TH, W, Cs,
                  xw_ref, xi_ref, wc_ref, bc_ref, ss_ref, pmat_ref,
                  out_ref, cols_ref):
    """Phase 2: recompute conv, apply BN scale/shift + LeakyReLU, residual add,
    and fuse the channel shuffle as a permutation matmul."""
    _build_cols(xw_ref, cols_ref, d, TH, W, Cs)
    cols = cols_ref[...]
    z = jnp.dot(cols, wc_ref[...],
                preferred_element_type=jnp.float32) + bc_ref[...]
    ss = ss_ref[...]
    y = z * ss[0:1, :] + ss[1:2, :]            # fused BatchNorm
    y = jnp.where(y > 0, y, 0.2 * y)            # LeakyReLU(0.2)
    # residual input = conv half itself = tap #13 (3x3 branch, ky=kx=1 -> (d,d))
    xc = cols[:, 13 * Cs:14 * Cs]
    conv_out = xc + y[:, :Cs] + y[:, Cs:]
    # fused channel shuffle: out[:, j] = pre[:, perm[j]], pre = [identity|conv]
    pmat = pmat_ref[...]
    shuf = (jnp.dot(xi_ref[...], pmat[:Cs, :],
                    preferred_element_type=jnp.float32)
            + jnp.dot(conv_out, pmat[Cs:, :],
                      preferred_element_type=jnp.float32))
    out_ref[...] = shuf.astype(out_ref.dtype)


# ------------------------------ module wrapper --------------------------------

def init_semiconv_params(key, channels):
    cs = channels // 2
    ks = jax.random.split(key, 8)
    return {
        "wd": 0.1 * jax.random.normal(ks[0], (3, 3, cs, cs), jnp.float32),
        "bd": 0.1 * jax.random.normal(ks[1], (1, cs), jnp.float32),
        "gd": 1.0 + 0.1 * jax.random.normal(ks[2], (1, cs), jnp.float32),
        "betad": 0.1 * jax.random.normal(ks[3], (1, cs), jnp.float32),
        "w3": 0.1 * jax.random.normal(ks[4], (3, 3, cs, cs), jnp.float32),
        "b3": 0.1 * jax.random.normal(ks[5], (1, cs), jnp.float32),
        "g3": 1.0 + 0.1 * jax.random.normal(ks[6], (1, cs), jnp.float32),
        "beta3": 0.1 * jax.random.normal(ks[7], (1, cs), jnp.float32),
    }


def semiconv_forward(x_nchw, params, channels, mid_dilation=2):
    B, C, H, W = x_nchw.shape
    assert C == channels and C % 2 == 0
    cs = C // 2
    d = int(mid_dilation)
    assert 1 <= d < min(H, W)

    lf = solve_factor(C)
    group = int(lf[int(len(lf) / 2) - 1])

    # layout glue: NCHW -> NHWC, one reflection pad of width d for both branches
    xc = jnp.transpose(x_nchw[:, :cs], (0, 2, 3, 1)).astype(jnp.float32)
    xi = jnp.transpose(x_nchw[:, cs:], (0, 2, 3, 1)).astype(jnp.float32)
    xpad = jnp.pad(xc, ((0, 0), (d, d), (d, d), (0, 0)), mode="reflect")

    # row tiling: overlapping windows carry the conv halo
    TH = _choose_tile_rows(H, W)
    n_t = H // TH
    THp, Wp = TH + 2 * d, W + 2 * d
    assert (TH * W) % 8 == 0
    row_idx = (np.arange(n_t) * TH)[:, None] + np.arange(THp)[None, :]
    windows = xpad[:, row_idx].reshape(B * n_t, THp, Wp, cs)

    N = B * H * W
    T = B * n_t
    rows = TH * W
    xi2 = xi.reshape(N, cs)

    # block-diagonal combined weights: cols [0:cs]=dilated branch, [cs:2cs]=3x3
    wc = jnp.zeros((18 * cs, 2 * cs), jnp.float32)
    wc = wc.at[:9 * cs, :cs].set(params["wd"].reshape(9 * cs, cs))
    wc = wc.at[9 * cs:, cs:].set(params["w3"].reshape(9 * cs, cs))
    bc = jnp.concatenate([params["bd"], params["b3"]], axis=1)      # (1, 2cs)

    const2 = lambda t: (0, 0)
    cparams = pltpu.CompilerParams(dimension_semantics=("parallel",))

    # phase 1: conv + per-tile single-pass BN statistics
    stats = pl.pallas_call(
        functools.partial(_conv_stats_kernel, d, TH, W, cs),
        out_shape=jax.ShapeDtypeStruct((T, 2, 2 * cs), jnp.float32),
        grid=(T,),
        in_specs=[pl.BlockSpec((1, THp, Wp, cs), lambda t: (t, 0, 0, 0)),
                  pl.BlockSpec((18 * cs, 2 * cs), const2),
                  pl.BlockSpec((1, 2 * cs), const2)],
        out_specs=pl.BlockSpec((1, 2, 2 * cs), lambda t: (t, 0, 0)),
        scratch_shapes=[pltpu.VMEM((rows, 18 * cs), jnp.float32)],
        compiler_params=cparams,
    )(windows, wc, bc)

    # tiny global reduction + BN fold (scale/shift) in plain JAX
    tot = jnp.sum(stats, axis=0)                      # (2, 2cs)
    inv_n = 1.0 / float(N)
    mean = tot[0] * inv_n
    var = jnp.maximum(tot[1] * inv_n - mean * mean, 0.0)   # biased, as torch BN
    gamma = jnp.concatenate([params["gd"], params["g3"]], axis=1)[0]
    beta = jnp.concatenate([params["betad"], params["beta3"]], axis=1)[0]
    scale = gamma * jax.lax.rsqrt(var + 1e-5)
    shift = beta - mean * scale
    ss = jnp.stack([scale, shift], axis=0)            # (2, 2cs)

    # channel shuffle as a permutation matrix (fused into phase 2)
    perm = _shuffle_perm(C, group)
    pmat_np = np.zeros((C, C), np.float32)
    pmat_np[perm, np.arange(C)] = 1.0
    pmat = jnp.asarray(pmat_np)

    # phase 2: conv (recompute) + BN + LeakyReLU + residual + shuffle
    out2d = pl.pallas_call(
        functools.partial(_apply_kernel, d, TH, W, cs),
        out_shape=jax.ShapeDtypeStruct((N, C), jnp.float32),
        grid=(T,),
        in_specs=[pl.BlockSpec((1, THp, Wp, cs), lambda t: (t, 0, 0, 0)),
                  pl.BlockSpec((rows, cs), lambda t: (t, 0)),
                  pl.BlockSpec((18 * cs, 2 * cs), const2),
                  pl.BlockSpec((1, 2 * cs), const2),
                  pl.BlockSpec((2, 2 * cs), const2),
                  pl.BlockSpec((C, C), const2)],
        out_specs=pl.BlockSpec((rows, C), lambda t: (t, 0)),
        scratch_shapes=[pltpu.VMEM((rows, 18 * cs), jnp.float32)],
        compiler_params=cparams,
    )(windows, xi2, wc, bc, ss, pmat)

    # channels are already shuffled; only the NHWC -> NCHW transpose remains
    out_nhwc = out2d.reshape(B, H, W, C)
    return jnp.transpose(out_nhwc, (0, 3, 1, 2))


# ------------------------------ pure-JAX reference ----------------------------

def _ref_conv_bn_lrelu(xpad, w, b, g, be, d, H, W):
    cs = xpad.shape[-1]
    acc = jnp.zeros((xpad.shape[0], H, W, cs), jnp.float32)
    for ky in range(3):
        for kx in range(3):
            patch = xpad[:, ky * d:ky * d + H, kx * d:kx * d + W, :]
            acc = acc + jnp.einsum("bhwc,co->bhwo", patch, w[ky, kx])
    acc = acc + b.reshape(1, 1, 1, cs)
    mean = jnp.mean(acc, axis=(0, 1, 2), keepdims=True)
    var = jnp.mean((acc - mean) ** 2, axis=(0, 1, 2), keepdims=True)
    y = (acc - mean) * jax.lax.rsqrt(var + 1e-5)
    y = y * g.reshape(1, 1, 1, cs) + be.reshape(1, 1, 1, cs)
    return jnp.where(y > 0, y, 0.2 * y)


def semiconv_reference(x_nchw, params, channels, mid_dilation=2):
    B, C, H, W = x_nchw.shape
    cs = channels // 2
    lf = solve_factor(channels)
    group = int(lf[int(len(lf) / 2) - 1])
    xc = jnp.transpose(x_nchw[:, :cs], (0, 2, 3, 1)).astype(jnp.float32)
    xi = jnp.transpose(x_nchw[:, cs:], (0, 2, 3, 1)).astype(jnp.float32)
    d = mid_dilation
    xpd = jnp.pad(xc, ((0, 0), (d, d), (d, d), (0, 0)), mode="reflect")
    xp1 = jnp.pad(xc, ((0, 0), (1, 1), (1, 1), (0, 0)), mode="reflect")
    y_d = _ref_conv_bn_lrelu(xpd, params["wd"], params["bd"], params["gd"],
                             params["betad"], d, H, W)
    y_3 = _ref_conv_bn_lrelu(xp1, params["w3"], params["b3"], params["g3"],
                             params["beta3"], 1, H, W)
    out_conv = xc + y_d + y_3
    out = jnp.concatenate([xi, out_conv], axis=-1)
    out = jnp.transpose(out, (0, 3, 1, 2))
    return channel_shuffle(out, group)


# ----------------------------------- main -------------------------------------

if __name__ == "__main__":
    channels = 8          # -> split_channels = 4, group = 2
    B, H, W = 2, 16, 16
    mid_dilation = 2

    key = jax.random.PRNGKey(0)
    kx_, kp = jax.random.split(key)
    x = jax.random.normal(kx_, (B, channels, H, W), jnp.float32)
    params = init_semiconv_params(kp, channels)

    fwd = jax.jit(lambda xx, pp: semiconv_forward(xx, pp, channels, mid_dilation))
    out = jax.block_until_ready(fwd(x, params))

    ref = jax.block_until_ready(
        semiconv_reference(x, params, channels, mid_dilation))
    np.testing.assert_allclose(np.asarray(out), np.asarray(ref),
                               rtol=1e-4, atol=1e-4)
    assert out.shape == (B, channels, H, W)
    print("KERNEL_OK")
</pallas_src>

<mosaic_0001>
module attributes {stable_mosaic.version = 11 : i64} {
  func.func @_conv_stats_kernel(%arg0: i32, %arg1: memref<1x20x20x4xf32, #tpu.memory_space<vmem>>, %arg2: memref<72x8xf32, #tpu.memory_space<vmem>>, %arg3: memref<1x8xf32, #tpu.memory_space<vmem>>, %arg4: memref<1x2x8xf32, #tpu.memory_space<vmem>>, %arg5: memref<256x72xf32, #tpu.memory_space<vmem>>) attributes {dimension_semantics = [#tpu.dimension_semantics<parallel>], iteration_bounds = array<i64: 2>, scalar_prefetch = 0 : i64, scratch_operands = 1 : i64, tpu.core_type = #tpu.core_type<tc>, window_params = [{transform_indices = @transform_0, window_bounds = array<i64: 1, 20, 20, 4>}, {pipeline_mode = #tpu.pipeline_mode<synchronous>, transform_indices = @transform_1, window_bounds = array<i64: 72, 8>}, {pipeline_mode = #tpu.pipeline_mode<synchronous>, transform_indices = @transform_2, window_bounds = array<i64: 1, 8>}, {transform_indices = @transform_3, window_bounds = array<i64: 1, 2, 8>}]} {
    %c0 = arith.constant 0 : index
    %c0_0 = arith.constant 0 : index
    %c0_1 = arith.constant 0 : index
    %c0_2 = arith.constant 0 : index
    %0 = vector.load %arg1[%c0, %c0_0, %c0_1, %c0_2] : memref<1x20x20x4xf32, #tpu.memory_space<vmem>>, vector<1x16x16x4xf32>
    %1 = vector.shape_cast %0 : vector<1x16x16x4xf32> to vector<256x4xf32>
    %c0_3 = arith.constant 0 : index
    %c0_4 = arith.constant 0 : index
    %2 = vector.load %arg5[%c0_3, %c0_4] : memref<256x72xf32, #tpu.memory_space<vmem>>, vector<256x4xf32>
    tpu.vector_store %arg5[%c0_3, %c0_4], %1 {strides = array<i32>} : memref<256x72xf32, #tpu.memory_space<vmem>>, vector<256x4xf32>,
    %c0_5 = arith.constant 0 : index
    %c0_6 = arith.constant 0 : index
    %c2 = arith.constant 2 : index
    %c0_7 = arith.constant 0 : index
    %3 = vector.load %arg1[%c0_5, %c0_6, %c2, %c0_7] : memref<1x20x20x4xf32, #tpu.memory_space<vmem>>, vector<1x16x16x4xf32>
    %4 = vector.shape_cast %3 : vector<1x16x16x4xf32> to vector<256x4xf32>
    %c0_8 = arith.constant 0 : index
    %c4 = arith.constant 4 : index
    %5 = vector.load %arg5[%c0_8, %c4] : memref<256x72xf32, #tpu.memory_space<vmem>>, vector<256x4xf32>
    tpu.vector_store %arg5[%c0_8, %c4], %4 {strides = array<i32>} : memref<256x72xf32, #tpu.memory_space<vmem>>, vector<256x4xf32>,
    %c0_9 = arith.constant 0 : index
    %c0_10 = arith.constant 0 : index
    %c4_11 = arith.constant 4 : index
    %c0_12 = arith.constant 0 : index
    %6 = vector.load %arg1[%c0_9, %c0_10, %c4_11, %c0_12] : memref<1x20x20x4xf32, #tpu.memory_space<vmem>>, vector<1x16x16x4xf32>
    %7 = vector.shape_cast %6 : vector<1x16x16x4xf32> to vector<256x4xf32>
    %c0_13 = arith.constant 0 : index
    %c8 = arith.constant 8 : index
    %8 = vector.load %arg5[%c0_13, %c8] : memref<256x72xf32, #tpu.memory_space<vmem>>, vector<256x4xf32>
    tpu.vector_store %arg5[%c0_13, %c8], %7 {strides = array<i32>} : memref<256x72xf32, #tpu.memory_space<vmem>>, vector<256x4xf32>,
    %c0_14 = arith.constant 0 : index
    %c2_15 = arith.constant 2 : index
    %c0_16 = arith.constant 0 : index
    %c0_17 = arith.constant 0 : index
    %9 = vector.load %arg1[%c0_14, %c2_15, %c0_16, %c0_17] : memref<1x20x20x4xf32, #tpu.memory_space<vmem>>, vector<1x16x16x4xf32>
    %10 = vector.shape_cast %9 : vector<1x16x16x4xf32> to vector<256x4xf32>
    %c0_18 = arith.constant 0 : index
    %c12 = arith.constant 12 : index
    %11 = vector.load %arg5[%c0_18, %c12] : memref<256x72xf32, #tpu.memory_space<vmem>>, vector<256x4xf32>
    tpu.vector_store %arg5[%c0_18, %c12], %10 {strides = array<i32>} : memref<256x72xf32, #tpu.memory_space<vmem>>, vector<256x4xf32>,
    %c0_19 = arith.constant 0 : index
    %c2_20 = arith.constant 2 : index
    %c2_21 = arith.constant 2 : index
    %c0_22 = arith.constant 0 : index
    %12 = vector.load %arg1[%c0_19, %c2_20, %c2_21, %c0_22] : memref<1x20x20x4xf32, #tpu.memory_space<vmem>>, vector<1x16x16x4xf32>
    %13 = vector.shape_cast %12 : vector<1x16x16x4xf32> to vector<256x4xf32>
    %c0_23 = arith.constant 0 : index
    %c16 = arith.constant 16 : index
    %14 = vector.load %arg5[%c0_23, %c16] : memref<256x72xf32, #tpu.memory_space<vmem>>, vector<256x4xf32>
    tpu.vector_store %arg5[%c0_23, %c16], %13 {strides = array<i32>} : memref<256x72xf32, #tpu.memory_space<vmem>>, vector<256x4xf32>,
    %c0_24 = arith.constant 0 : index
    %c2_25 = arith.constant 2 : index
    %c4_26 = arith.constant 4 : index
    %c0_27 = arith.constant 0 : index
    %15 = vector.load %arg1[%c0_24, %c2_25, %c4_26, %c0_27] : memref<1x20x20x4xf32, #tpu.memory_space<vmem>>, vector<1x16x16x4xf32>
    %16 = vector.shape_cast %15 : vector<1x16x16x4xf32> to vector<256x4xf32>
    %c0_28 = arith.constant 0 : index
    %c20 = arith.constant 20 : index
    %17 = vector.load %arg5[%c0_28, %c20] : memref<256x72xf32, #tpu.memory_space<vmem>>, vector<256x4xf32>
    tpu.vector_store %arg5[%c0_28, %c20], %16 {strides = array<i32>} : memref<256x72xf32, #tpu.memory_space<vmem>>, vector<256x4xf32>,
    %c0_29 = arith.constant 0 : index
    %c4_30 = arith.constant 4 : index
    %c0_31 = arith.constant 0 : index
    %c0_32 = arith.constant 0 : index
    %18 = vector.load %arg1[%c0_29, %c4_30, %c0_31, %c0_32] : memref<1x20x20x4xf32, #tpu.memory_space<vmem>>, vector<1x16x16x4xf32>
    %19 = vector.shape_cast %18 : vector<1x16x16x4xf32> to vector<256x4xf32>
    %c0_33 = arith.constant 0 : index
    %c24 = arith.constant 24 : index
    %20 = vector.load %arg5[%c0_33, %c24] : memref<256x72xf32, #tpu.memory_space<vmem>>, vector<256x4xf32>
    tpu.vector_store %arg5[%c0_33, %c24], %19 {strides = array<i32>} : memref<256x72xf32, #tpu.memory_space<vmem>>, vector<256x4xf32>,
    %c0_34 = arith.constant 0 : index
    %c4_35 = arith.constant 4 : index
    %c2_36 = arith.constant 2 : index
    %c0_37 = arith.constant 0 : index
    %21 = vector.load %arg1[%c0_34, %c4_35, %c2_36, %c0_37] : memref<1x20x20x4xf32, #tpu.memory_space<vmem>>, vector<1x16x16x4xf32>
    %22 = vector.shape_cast %21 : vector<1x16x16x4xf32> to vector<256x4xf32>
    %c0_38 = arith.constant 0 : index
    %c28 = arith.constant 28 : index
    %23 = vector.load %arg5[%c0_38, %c28] : memref<256x72xf32, #tpu.memory_space<vmem>>, vector<256x4xf32>
    tpu.vector_store %arg5[%c0_38, %c28], %22 {strides = array<i32>} : memref<256x72xf32, #tpu.memory_space<vmem>>, vector<256x4xf32>,
    %c0_39 = arith.constant 0 : index
    %c4_40 = arith.constant 4 : index
    %c4_41 = arith.constant 4 : index
    %c0_42 = arith.constant 0 : index
    %24 = vector.load %arg1[%c0_39, %c4_40, %c4_41, %c0_42] : memref<1x20x20x4xf32, #tpu.memory_space<vmem>>, vector<1x16x16x4xf32>
    %25 = vector.shape_cast %24 : vector<1x16x16x4xf32> to vector<256x4xf32>
    %c0_43 = arith.constant 0 : index
    %c32 = arith.constant 32 : index
    %26 = vector.load %arg5[%c0_43, %c32] : memref<256x72xf32, #tpu.memory_space<vmem>>, vector<256x4xf32>
    tpu.vector_store %arg5[%c0_43, %c32], %25 {strides = array<i32>} : memref<256x72xf32, #tpu.memory_space<vmem>>, vector<256x4xf32>,
    %c0_44 = arith.constant 0 : index
    %c1 = arith.constant 1 : index
    %c1_45 = arith.constant 1 : index
    %c0_46 = arith.constant 0 : index
    %27 = vector.load %arg1[%c0_44, %c1, %c1_45, %c0_46] : memref<1x20x20x4xf32, #tpu.memory_space<vmem>>, vector<1x16x16x4xf32>
    %28 = vector.shape_cast %27 : vector<1x16x16x4xf32> to vector<256x4xf32>
    %c0_47 = arith.constant 0 : index
    %c36 = arith.constant 36 : index
    %29 = vector.load %arg5[%c0_47, %c36] : memref<256x72xf32, #tpu.memory_space<vmem>>, vector<256x4xf32>
    tpu.vector_store %arg5[%c0_47, %c36], %28 {strides = array<i32>} : memref<256x72xf32, #tpu.memory_space<vmem>>, vector<256x4xf32>,
    %c0_48 = arith.constant 0 : index
    %c1_49 = arith.constant 1 : index
    %c2_50 = arith.constant 2 : index
    %c0_51 = arith.constant 0 : index
    %30 = vector.load %arg1[%c0_48, %c1_49, %c2_50, %c0_51] : memref<1x20x20x4xf32, #tpu.memory_space<vmem>>, vector<1x16x16x4xf32>
    %31 = vector.shape_cast %30 : vector<1x16x16x4xf32> to vector<256x4xf32>
    %c0_52 = arith.constant 0 : index
    %c40 = arith.constant 40 : index
    %32 = vector.load %arg5[%c0_52, %c40] : memref<256x72xf32, #tpu.memory_space<vmem>>, vector<256x4xf32>
    tpu.vector_store %arg5[%c0_52, %c40], %31 {strides = array<i32>} : memref<256x72xf32, #tpu.memory_space<vmem>>, vector<256x4xf32>,
    %c0_53 = arith.constant 0 : index
    %c1_54 = arith.constant 1 : index
    %c3 = arith.constant 3 : index
    %c0_55 = arith.constant 0 : index
    %33 = vector.load %arg1[%c0_53, %c1_54, %c3, %c0_55] : memref<1x20x20x4xf32, #tpu.memory_space<vmem>>, vector<1x16x16x4xf32>
    %34 = vector.shape_cast %33 : vector<1x16x16x4xf32> to vector<256x4xf32>
    %c0_56 = arith.constant 0 : index
    %c44 = arith.constant 44 : index
    %35 = vector.load %arg5[%c0_56, %c44] : memref<256x72xf32, #tpu.memory_space<vmem>>, vector<256x4xf32>
    tpu.vector_store %arg5[%c0_56, %c44], %34 {strides = array<i32>} : memref<256x72xf32, #tpu.memory_space<vmem>>, vector<256x4xf32>,
    %c0_57 = arith.constant 0 : index
    %c2_58 = arith.constant 2 : index
    %c1_59 = arith.constant 1 : index
    %c0_60 = arith.constant 0 : index
    %36 = vector.load %arg1[%c0_57, %c2_58, %c1_59, %c0_60] : memref<1x20x20x4xf32, #tpu.memory_space<vmem>>, vector<1x16x16x4xf32>
    %37 = vector.shape_cast %36 : vector<1x16x16x4xf32> to vector<256x4xf32>
    %c0_61 = arith.constant 0 : index
    %c48 = arith.constant 48 : index
    %38 = vector.load %arg5[%c0_61, %c48] : memref<256x72xf32, #tpu.memory_space<vmem>>, vector<256x4xf32>
    tpu.vector_store %arg5[%c0_61, %c48], %37 {strides = array<i32>} : memref<256x72xf32, #tpu.memory_space<vmem>>, vector<256x4xf32>,
    %c0_62 = arith.constant 0 : index
    %c2_63 = arith.constant 2 : index
    %c2_64 = arith.constant 2 : index
    %c0_65 = arith.constant 0 : index
    %39 = vector.load %arg1[%c0_62, %c2_63, %c2_64, %c0_65] : memref<1x20x20x4xf32, #tpu.memory_space<vmem>>, vector<1x16x16x4xf32>
    %40 = vector.shape_cast %39 : vector<1x16x16x4xf32> to vector<256x4xf32>
    %c0_66 = arith.constant 0 : index
    %c52 = arith.constant 52 : index
    %41 = vector.load %arg5[%c0_66, %c52] : memref<256x72xf32, #tpu.memory_space<vmem>>, vector<256x4xf32>
    tpu.vector_store %arg5[%c0_66, %c52], %40 {strides = array<i32>} : memref<256x72xf32, #tpu.memory_space<vmem>>, vector<256x4xf32>,
    %c0_67 = arith.constant 0 : index
    %c2_68 = arith.constant 2 : index
    %c3_69 = arith.constant 3 : index
    %c0_70 = arith.constant 0 : index
    %42 = vector.load %arg1[%c0_67, %c2_68, %c3_69, %c0_70] : memref<1x20x20x4xf32, #tpu.memory_space<vmem>>, vector<1x16x16x4xf32>
    %43 = vector.shape_cast %42 : vector<1x16x16x4xf32> to vector<256x4xf32>
    %c0_71 = arith.constant 0 : index
    %c56 = arith.constant 56 : index
    %44 = vector.load %arg5[%c0_71, %c56] : memref<256x72xf32, #tpu.memory_space<vmem>>, vector<256x4xf32>
    tpu.vector_store %arg5[%c0_71, %c56], %43 {strides = array<i32>} : memref<256x72xf32, #tpu.memory_space<vmem>>, vector<256x4xf32>,
    %c0_72 = arith.constant 0 : index
    %c3_73 = arith.constant 3 : index
    %c1_74 = arith.constant 1 : index
    %c0_75 = arith.constant 0 : index
    %45 = vector.load %arg1[%c0_72, %c3_73, %c1_74, %c0_75] : memref<1x20x20x4xf32, #tpu.memory_space<vmem>>, vector<1x16x16x4xf32>
    %46 = vector.shape_cast %45 : vector<1x16x16x4xf32> to vector<256x4xf32>
    %c0_76 = arith.constant 0 : index
    %c60 = arith.constant 60 : index
    %47 = vector.load %arg5[%c0_76, %c60] : memref<256x72xf32, #tpu.memory_space<vmem>>, vector<256x4xf32>
    tpu.vector_store %arg5[%c0_76, %c60], %46 {strides = array<i32>} : memref<256x72xf32, #tpu.memory_space<vmem>>, vector<256x4xf32>,
    %c0_77 = arith.constant 0 : index
    %c3_78 = arith.constant 3 : index
    %c2_79 = arith.constant 2 : index
    %c0_80 = arith.constant 0 : index
    %48 = vector.load %arg1[%c0_77, %c3_78, %c2_79, %c0_80] : memref<1x20x20x4xf32, #tpu.memory_space<vmem>>, vector<1x16x16x4xf32>
    %49 = vector.shape_cast %48 : vector<1x16x16x4xf32> to vector<256x4xf32>
    %c0_81 = arith.constant 0 : index
    %c64 = arith.constant 64 : index
    %50 = vector.load %arg5[%c0_81, %c64] : memref<256x72xf32, #tpu.memory_space<vmem>>, vector<256x4xf32>
    tpu.vector_store %arg5[%c0_81, %c64], %49 {strides = array<i32>} : memref<256x72xf32, #tpu.memory_space<vmem>>, vector<256x4xf32>,
    %c0_82 = arith.constant 0 : index
    %c3_83 = arith.constant 3 : index
    %c3_84 = arith.constant 3 : index
    %c0_85 = arith.constant 0 : index
    %51 = vector.load %arg1[%c0_82, %c3_83, %c3_84, %c0_85] : memref<1x20x20x4xf32, #tpu.memory_space<vmem>>, vector<1x16x16x4xf32>
    %52 = vector.shape_cast %51 : vector<1x16x16x4xf32> to vector<256x4xf32>
    %c0_86 = arith.constant 0 : index
    %c68 = arith.constant 68 : index
    %53 = vector.load %arg5[%c0_86, %c68] : memref<256x72xf32, #tpu.memory_space<vmem>>, vector<256x4xf32>
    tpu.vector_store %arg5[%c0_86, %c68], %52 {strides = array<i32>} : memref<256x72xf32, #tpu.memory_space<vmem>>, vector<256x4xf32>,
    %c0_87 = arith.constant 0 : index
    %c0_88 = arith.constant 0 : index
    %54 = vector.load %arg5[%c0_87, %c0_88] : memref<256x72xf32, #tpu.memory_space<vmem>>, vector<256x72xf32>
    %c0_89 = arith.constant 0 : index
    %c0_90 = arith.constant 0 : index
    %55 = vector.load %arg2[%c0_89, %c0_90] : memref<72x8xf32, #tpu.memory_space<vmem>>, vector<72x8xf32>
    %cst = arith.constant dense<0.000000e+00> : vector<256x8xf32>
    %56 = tpu.matmul %54, %55, %cst {dimension_numbers = #tpu.dot_dimension_numbers<[1], [0], [0], [1], [0, 0, 1, 1], [], []>} : vector<256x72xf32>, vector<72x8xf32>, vector<256x8xf32> -> vector<256x8xf32>
    %c0_91 = arith.constant 0 : index
    %c0_92 = arith.constant 0 : index
    %57 = vector.load %arg3[%c0_91, %c0_92] : memref<1x8xf32, #tpu.memory_space<vmem>>, vector<1x8xf32>
    %58 = vector.broadcast %57 : vector<1x8xf32> to vector<256x8xf32>
    %59 = arith.addf %56, %58 : vector<256x8xf32>
    %cst_93 = arith.constant dense<0.000000e+00> : vector<8xf32>
    %60 = vector.multi_reduction <add>, %59, %cst_93 [0] : vector<256x8xf32> to vector<8xf32>
    %61 = vector.shape_cast %60 : vector<8xf32> to vector<1x8xf32>
    %62 = vector.shape_cast %61 : vector<1x8xf32> to vector<1x1x8xf32>
    %c0_94 = arith.constant 0 : index
    %c0_95 = arith.constant 0 : index
    %c0_96 = arith.constant 0 : index
    %63 = vector.load %arg4[%c0_94, %c0_95, %c0_96] : memref<1x2x8xf32, #tpu.memory_space<vmem>>, vector<1x1x8xf32>
    tpu.vector_store %arg4[%c0_94, %c0_95, %c0_96], %62 {strides = array<i32>} : memref<1x2x8xf32, #tpu.memory_space<vmem>>, vector<1x1x8xf32>,
    %64 = arith.mulf %59, %59 : vector<256x8xf32>
    %cst_97 = arith.constant dense<0.000000e+00> : vector<8xf32>
    %65 = vector.multi_reduction <add>, %64, %cst_97 [0] : vector<256x8xf32> to vector<8xf32>
    %66 = vector.shape_cast %65 : vector<8xf32> to vector<1x8xf32>
    %67 = vector.shape_cast %66 : vector<1x8xf32> to vector<1x1x8xf32>
    %c0_98 = arith.constant 0 : index
    %c1_99 = arith.constant 1 : index
    %c0_100 = arith.constant 0 : index
    %68 = vector.load %arg4[%c0_98, %c1_99, %c0_100] : memref<1x2x8xf32, #tpu.memory_space<vmem>>, vector<1x1x8xf32>
    tpu.vector_store %arg4[%c0_98, %c1_99, %c0_100], %67 {strides = array<i32>} : memref<1x2x8xf32, #tpu.memory_space<vmem>>, vector<1x1x8xf32>,
    return
  }
  func.func @transform_0(%arg0: i32) -> (i32, i32, i32, i32) {
    %c0_i32 = arith.constant 0 : i32
    %c0_i32_0 = arith.constant 0 : i32
    %c0_i32_1 = arith.constant 0 : i32
    %c0_i32_2 = arith.constant 0 : i32
    return %arg0, %c0_i32, %c0_i32_0, %c0_i32_1 : i32, i32, i32, i32
  }
  func.func @transform_1(%arg0: i32) -> (i32, i32) {
    %c0_i32 = arith.constant 0 : i32
    %c0_i32_0 = arith.constant 0 : i32
    %c0_i32_1 = arith.constant 0 : i32
    return %c0_i32, %c0_i32_0 : i32, i32
  }
  func.func @transform_2(%arg0: i32) -> (i32, i32) {
    %c0_i32 = arith.constant 0 : i32
    %c0_i32_0 = arith.constant 0 : i32
    %c0_i32_1 = arith.constant 0 : i32
    return %c0_i32, %c0_i32_0 : i32, i32
  }
  func.func @transform_3(%arg0: i32) -> (i32, i32, i32) {
    %c0_i32 = arith.constant 0 : i32
    %c0_i32_0 = arith.constant 0 : i32
    %c0_i32_1 = arith.constant 0 : i32
    return %arg0, %c0_i32, %c0_i32_0 : i32, i32, i32
  }
}

module attributes {stable_mosaic.version = 11 : i64} {
  func.func @_apply_kernel(%arg0: i32, %arg1: memref<1x20x20x4xf32, #tpu.memory_space<vmem>>, %arg2: memref<256x4xf32, #tpu.memory_space<vmem>>, %arg3: memref<72x8xf32, #tpu.memory_space<vmem>>, %arg4: memref<1x8xf32, #tpu.memory_space<vmem>>, %arg5: memref<2x8xf32, #tpu.memory_space<vmem>>, %arg6: memref<8x8xf32, #tpu.memory_space<vmem>>, %arg7: memref<256x8xf32, #tpu.memory_space<vmem>>, %arg8: memref<256x72xf32, #tpu.memory_space<vmem>>) attributes {dimension_semantics = [#tpu.dimension_semantics<parallel>], iteration_bounds = array<i64: 2>, scalar_prefetch = 0 : i64, scratch_operands = 1 : i64, tpu.core_type = #tpu.core_type<tc>, window_params = [{transform_indices = @transform_0, window_bounds = array<i64: 1, 20, 20, 4>}, {transform_indices = @transform_1, window_bounds = array<i64: 256, 4>}, {pipeline_mode = #tpu.pipeline_mode<synchronous>, transform_indices = @transform_2, window_bounds = array<i64: 72, 8>}, {pipeline_mode = #tpu.pipeline_mode<synchronous>, transform_indices = @transform_3, window_bounds = array<i64: 1, 8>}, {pipeline_mode = #tpu.pipeline_mode<synchronous>, transform_indices = @transform_4, window_bounds = array<i64: 2, 8>}, {pipeline_mode = #tpu.pipeline_mode<synchronous>, transform_indices = @transform_5, window_bounds = array<i64: 8, 8>}, {transform_indices = @transform_6, window_bounds = array<i64: 256, 8>}]} {
    %c0 = arith.constant 0 : index
    %c0_0 = arith.constant 0 : index
    %c0_1 = arith.constant 0 : index
    %c0_2 = arith.constant 0 : index
    %0 = vector.load %arg1[%c0, %c0_0, %c0_1, %c0_2] : memref<1x20x20x4xf32, #tpu.memory_space<vmem>>, vector<1x16x16x4xf32>
    %1 = vector.shape_cast %0 : vector<1x16x16x4xf32> to vector<256x4xf32>
    %c0_3 = arith.constant 0 : index
    %c0_4 = arith.constant 0 : index
    %2 = vector.load %arg8[%c0_3, %c0_4] : memref<256x72xf32, #tpu.memory_space<vmem>>, vector<256x4xf32>
    tpu.vector_store %arg8[%c0_3, %c0_4], %1 {strides = array<i32>} : memref<256x72xf32, #tpu.memory_space<vmem>>, vector<256x4xf32>,
    %c0_5 = arith.constant 0 : index
    %c0_6 = arith.constant 0 : index
    %c2 = arith.constant 2 : index
    %c0_7 = arith.constant 0 : index
    %3 = vector.load %arg1[%c0_5, %c0_6, %c2, %c0_7] : memref<1x20x20x4xf32, #tpu.memory_space<vmem>>, vector<1x16x16x4xf32>
    %4 = vector.shape_cast %3 : vector<1x16x16x4xf32> to vector<256x4xf32>
    %c0_8 = arith.constant 0 : index
    %c4 = arith.constant 4 : index
    %5 = vector.load %arg8[%c0_8, %c4] : memref<256x72xf32, #tpu.memory_space<vmem>>, vector<256x4xf32>
    tpu.vector_store %arg8[%c0_8, %c4], %4 {strides = array<i32>} : memref<256x72xf32, #tpu.memory_space<vmem>>, vector<256x4xf32>,
    %c0_9 = arith.constant 0 : index
    %c0_10 = arith.constant 0 : index
    %c4_11 = arith.constant 4 : index
    %c0_12 = arith.constant 0 : index
    %6 = vector.load %arg1[%c0_9, %c0_10, %c4_11, %c0_12] : memref<1x20x20x4xf32, #tpu.memory_space<vmem>>, vector<1x16x16x4xf32>
    %7 = vector.shape_cast %6 : vector<1x16x16x4xf32> to vector<256x4xf32>
    %c0_13 = arith.constant 0 : index
    %c8 = arith.constant 8 : index
    %8 = vector.load %arg8[%c0_13, %c8] : memref<256x72xf32, #tpu.memory_space<vmem>>, vector<256x4xf32>
    tpu.vector_store %arg8[%c0_13, %c8], %7 {strides = array<i32>} : memref<256x72xf32, #tpu.memory_space<vmem>>, vector<256x4xf32>,
    %c0_14 = arith.constant 0 : index
    %c2_15 = arith.constant 2 : index
    %c0_16 = arith.constant 0 : index
    %c0_17 = arith.constant 0 : index
    %9 = vector.load %arg1[%c0_14, %c2_15, %c0_16, %c0_17] : memref<1x20x20x4xf32, #tpu.memory_space<vmem>>, vector<1x16x16x4xf32>
    %10 = vector.shape_cast %9 : vector<1x16x16x4xf32> to vector<256x4xf32>
    %c0_18 = arith.constant 0 : index
    %c12 = arith.constant 12 : index
    %11 = vector.load %arg8[%c0_18, %c12] : memref<256x72xf32, #tpu.memory_space<vmem>>, vector<256x4xf32>
    tpu.vector_store %arg8[%c0_18, %c12], %10 {strides = array<i32>} : memref<256x72xf32, #tpu.memory_space<vmem>>, vector<256x4xf32>,
    %c0_19 = arith.constant 0 : index
    %c2_20 = arith.constant 2 : index
    %c2_21 = arith.constant 2 : index
    %c0_22 = arith.constant 0 : index
    %12 = vector.load %arg1[%c0_19, %c2_20, %c2_21, %c0_22] : memref<1x20x20x4xf32, #tpu.memory_space<vmem>>, vector<1x16x16x4xf32>
    %13 = vector.shape_cast %12 : vector<1x16x16x4xf32> to vector<256x4xf32>
    %c0_23 = arith.constant 0 : index
    %c16 = arith.constant 16 : index
    %14 = vector.load %arg8[%c0_23, %c16] : memref<256x72xf32, #tpu.memory_space<vmem>>, vector<256x4xf32>
    tpu.vector_store %arg8[%c0_23, %c16], %13 {strides = array<i32>} : memref<256x72xf32, #tpu.memory_space<vmem>>, vector<256x4xf32>,
    %c0_24 = arith.constant 0 : index
    %c2_25 = arith.constant 2 : index
    %c4_26 = arith.constant 4 : index
    %c0_27 = arith.constant 0 : index
    %15 = vector.load %arg1[%c0_24, %c2_25, %c4_26, %c0_27] : memref<1x20x20x4xf32, #tpu.memory_space<vmem>>, vector<1x16x16x4xf32>
    %16 = vector.shape_cast %15 : vector<1x16x16x4xf32> to vector<256x4xf32>
    %c0_28 = arith.constant 0 : index
    %c20 = arith.constant 20 : index
    %17 = vector.load %arg8[%c0_28, %c20] : memref<256x72xf32, #tpu.memory_space<vmem>>, vector<256x4xf32>
    tpu.vector_store %arg8[%c0_28, %c20], %16 {strides = array<i32>} : memref<256x72xf32, #tpu.memory_space<vmem>>, vector<256x4xf32>,
    %c0_29 = arith.constant 0 : index
    %c4_30 = arith.constant 4 : index
    %c0_31 = arith.constant 0 : index
    %c0_32 = arith.constant 0 : index
    %18 = vector.load %arg1[%c0_29, %c4_30, %c0_31, %c0_32] : memref<1x20x20x4xf32, #tpu.memory_space<vmem>>, vector<1x16x16x4xf32>
    %19 = vector.shape_cast %18 : vector<1x16x16x4xf32> to vector<256x4xf32>
    %c0_33 = arith.constant 0 : index
    %c24 = arith.constant 24 : index
    %20 = vector.load %arg8[%c0_33, %c24] : memref<256x72xf32, #tpu.memory_space<vmem>>, vector<256x4xf32>
    tpu.vector_store %arg8[%c0_33, %c24], %19 {strides = array<i32>} : memref<256x72xf32, #tpu.memory_space<vmem>>, vector<256x4xf32>,
    %c0_34 = arith.constant 0 : index
    %c4_35 = arith.constant 4 : index
    %c2_36 = arith.constant 2 : index
    %c0_37 = arith.constant 0 : index
    %21 = vector.load %arg1[%c0_34, %c4_35, %c2_36, %c0_37] : memref<1x20x20x4xf32, #tpu.memory_space<vmem>>, vector<1x16x16x4xf32>
    %22 = vector.shape_cast %21 : vector<1x16x16x4xf32> to vector<256x4xf32>
    %c0_38 = arith.constant 0 : index
    %c28 = arith.constant 28 : index
    %23 = vector.load %arg8[%c0_38, %c28] : memref<256x72xf32, #tpu.memory_space<vmem>>, vector<256x4xf32>
    tpu.vector_store %arg8[%c0_38, %c28], %22 {strides = array<i32>} : memref<256x72xf32, #tpu.memory_space<vmem>>, vector<256x4xf32>,
    %c0_39 = arith.constant 0 : index
    %c4_40 = arith.constant 4 : index
    %c4_41 = arith.constant 4 : index
    %c0_42 = arith.constant 0 : index
    %24 = vector.load %arg1[%c0_39, %c4_40, %c4_41, %c0_42] : memref<1x20x20x4xf32, #tpu.memory_space<vmem>>, vector<1x16x16x4xf32>
    %25 = vector.shape_cast %24 : vector<1x16x16x4xf32> to vector<256x4xf32>
    %c0_43 = arith.constant 0 : index
    %c32 = arith.constant 32 : index
    %26 = vector.load %arg8[%c0_43, %c32] : memref<256x72xf32, #tpu.memory_space<vmem>>, vector<256x4xf32>
    tpu.vector_store %arg8[%c0_43, %c32], %25 {strides = array<i32>} : memref<256x72xf32, #tpu.memory_space<vmem>>, vector<256x4xf32>,
    %c0_44 = arith.constant 0 : index
    %c1 = arith.constant 1 : index
    %c1_45 = arith.constant 1 : index
    %c0_46 = arith.constant 0 : index
    %27 = vector.load %arg1[%c0_44, %c1, %c1_45, %c0_46] : memref<1x20x20x4xf32, #tpu.memory_space<vmem>>, vector<1x16x16x4xf32>
    %28 = vector.shape_cast %27 : vector<1x16x16x4xf32> to vector<256x4xf32>
    %c0_47 = arith.constant 0 : index
    %c36 = arith.constant 36 : index
    %29 = vector.load %arg8[%c0_47, %c36] : memref<256x72xf32, #tpu.memory_space<vmem>>, vector<256x4xf32>
    tpu.vector_store %arg8[%c0_47, %c36], %28 {strides = array<i32>} : memref<256x72xf32, #tpu.memory_space<vmem>>, vector<256x4xf32>,
    %c0_48 = arith.constant 0 : index
    %c1_49 = arith.constant 1 : index
    %c2_50 = arith.constant 2 : index
    %c0_51 = arith.constant 0 : index
    %30 = vector.load %arg1[%c0_48, %c1_49, %c2_50, %c0_51] : memref<1x20x20x4xf32, #tpu.memory_space<vmem>>, vector<1x16x16x4xf32>
    %31 = vector.shape_cast %30 : vector<1x16x16x4xf32> to vector<256x4xf32>
    %c0_52 = arith.constant 0 : index
    %c40 = arith.constant 40 : index
    %32 = vector.load %arg8[%c0_52, %c40] : memref<256x72xf32, #tpu.memory_space<vmem>>, vector<256x4xf32>
    tpu.vector_store %arg8[%c0_52, %c40], %31 {strides = array<i32>} : memref<256x72xf32, #tpu.memory_space<vmem>>, vector<256x4xf32>,
    %c0_53 = arith.constant 0 : index
    %c1_54 = arith.constant 1 : index
    %c3 = arith.constant 3 : index
    %c0_55 = arith.constant 0 : index
    %33 = vector.load %arg1[%c0_53, %c1_54, %c3, %c0_55] : memref<1x20x20x4xf32, #tpu.memory_space<vmem>>, vector<1x16x16x4xf32>
    %34 = vector.shape_cast %33 : vector<1x16x16x4xf32> to vector<256x4xf32>
    %c0_56 = arith.constant 0 : index
    %c44 = arith.constant 44 : index
    %35 = vector.load %arg8[%c0_56, %c44] : memref<256x72xf32, #tpu.memory_space<vmem>>, vector<256x4xf32>
    tpu.vector_store %arg8[%c0_56, %c44], %34 {strides = array<i32>} : memref<256x72xf32, #tpu.memory_space<vmem>>, vector<256x4xf32>,
    %c0_57 = arith.constant 0 : index
    %c2_58 = arith.constant 2 : index
    %c1_59 = arith.constant 1 : index
    %c0_60 = arith.constant 0 : index
    %36 = vector.load %arg1[%c0_57, %c2_58, %c1_59, %c0_60] : memref<1x20x20x4xf32, #tpu.memory_space<vmem>>, vector<1x16x16x4xf32>
    %37 = vector.shape_cast %36 : vector<1x16x16x4xf32> to vector<256x4xf32>
    %c0_61 = arith.constant 0 : index
    %c48 = arith.constant 48 : index
    %38 = vector.load %arg8[%c0_61, %c48] : memref<256x72xf32, #tpu.memory_space<vmem>>, vector<256x4xf32>
    tpu.vector_store %arg8[%c0_61, %c48], %37 {strides = array<i32>} : memref<256x72xf32, #tpu.memory_space<vmem>>, vector<256x4xf32>,
    %c0_62 = arith.constant 0 : index
    %c2_63 = arith.constant 2 : index
    %c2_64 = arith.constant 2 : index
    %c0_65 = arith.constant 0 : index
    %39 = vector.load %arg1[%c0_62, %c2_63, %c2_64, %c0_65] : memref<1x20x20x4xf32, #tpu.memory_space<vmem>>, vector<1x16x16x4xf32>
    %40 = vector.shape_cast %39 : vector<1x16x16x4xf32> to vector<256x4xf32>
    %c0_66 = arith.constant 0 : index
    %c52 = arith.constant 52 : index
    %41 = vector.load %arg8[%c0_66, %c52] : memref<256x72xf32, #tpu.memory_space<vmem>>, vector<256x4xf32>
    tpu.vector_store %arg8[%c0_66, %c52], %40 {strides = array<i32>} : memref<256x72xf32, #tpu.memory_space<vmem>>, vector<256x4xf32>,
    %c0_67 = arith.constant 0 : index
    %c2_68 = arith.constant 2 : index
    %c3_69 = arith.constant 3 : index
    %c0_70 = arith.constant 0 : index
    %42 = vector.load %arg1[%c0_67, %c2_68, %c3_69, %c0_70] : memref<1x20x20x4xf32, #tpu.memory_space<vmem>>, vector<1x16x16x4xf32>
    %43 = vector.shape_cast %42 : vector<1x16x16x4xf32> to vector<256x4xf32>
    %c0_71 = arith.constant 0 : index
    %c56 = arith.constant 56 : index
    %44 = vector.load %arg8[%c0_71, %c56] : memref<256x72xf32, #tpu.memory_space<vmem>>, vector<256x4xf32>
    tpu.vector_store %arg8[%c0_71, %c56], %43 {strides = array<i32>} : memref<256x72xf32, #tpu.memory_space<vmem>>, vector<256x4xf32>,
    %c0_72 = arith.constant 0 : index
    %c3_73 = arith.constant 3 : index
    %c1_74 = arith.constant 1 : index
    %c0_75 = arith.constant 0 : index
    %45 = vector.load %arg1[%c0_72, %c3_73, %c1_74, %c0_75] : memref<1x20x20x4xf32, #tpu.memory_space<vmem>>, vector<1x16x16x4xf32>
    %46 = vector.shape_cast %45 : vector<1x16x16x4xf32> to vector<256x4xf32>
    %c0_76 = arith.constant 0 : index
    %c60 = arith.constant 60 : index
    %47 = vector.load %arg8[%c0_76, %c60] : memref<256x72xf32, #tpu.memory_space<vmem>>, vector<256x4xf32>
    tpu.vector_store %arg8[%c0_76, %c60], %46 {strides = array<i32>} : memref<256x72xf32, #tpu.memory_space<vmem>>, vector<256x4xf32>,
    %c0_77 = arith.constant 0 : index
    %c3_78 = arith.constant 3 : index
    %c2_79 = arith.constant 2 : index
    %c0_80 = arith.constant 0 : index
    %48 = vector.load %arg1[%c0_77, %c3_78, %c2_79, %c0_80] : memref<1x20x20x4xf32, #tpu.memory_space<vmem>>, vector<1x16x16x4xf32>
    %49 = vector.shape_cast %48 : vector<1x16x16x4xf32> to vector<256x4xf32>
    %c0_81 = arith.constant 0 : index
    %c64 = arith.constant 64 : index
    %50 = vector.load %arg8[%c0_81, %c64] : memref<256x72xf32, #tpu.memory_space<vmem>>, vector<256x4xf32>
    tpu.vector_store %arg8[%c0_81, %c64], %49 {strides = array<i32>} : memref<256x72xf32, #tpu.memory_space<vmem>>, vector<256x4xf32>,
    %c0_82 = arith.constant 0 : index
    %c3_83 = arith.constant 3 : index
    %c3_84 = arith.constant 3 : index
    %c0_85 = arith.constant 0 : index
    %51 = vector.load %arg1[%c0_82, %c3_83, %c3_84, %c0_85] : memref<1x20x20x4xf32, #tpu.memory_space<vmem>>, vector<1x16x16x4xf32>
    %52 = vector.shape_cast %51 : vector<1x16x16x4xf32> to vector<256x4xf32>
    %c0_86 = arith.constant 0 : index
    %c68 = arith.constant 68 : index
    %53 = vector.load %arg8[%c0_86, %c68] : memref<256x72xf32, #tpu.memory_space<vmem>>, vector<256x4xf32>
    tpu.vector_store %arg8[%c0_86, %c68], %52 {strides = array<i32>} : memref<256x72xf32, #tpu.memory_space<vmem>>, vector<256x4xf32>,
    %c0_87 = arith.constant 0 : index
    %c0_88 = arith.constant 0 : index
    %54 = vector.load %arg8[%c0_87, %c0_88] : memref<256x72xf32, #tpu.memory_space<vmem>>, vector<256x72xf32>
    %c0_89 = arith.constant 0 : index
    %c0_90 = arith.constant 0 : index
    %55 = vector.load %arg3[%c0_89, %c0_90] : memref<72x8xf32, #tpu.memory_space<vmem>>, vector<72x8xf32>
    %cst = arith.constant dense<0.000000e+00> : vector<256x8xf32>
    %56 = tpu.matmul %54, %55, %cst {dimension_numbers = #tpu.dot_dimension_numbers<[1], [0], [0], [1], [0, 0, 1, 1], [], []>} : vector<256x72xf32>, vector<72x8xf32>, vector<256x8xf32> -> vector<256x8xf32>
    %c0_91 = arith.constant 0 : index
    %c0_92 = arith.constant 0 : index
    %57 = vector.load %arg4[%c0_91, %c0_92] : memref<1x8xf32, #tpu.memory_space<vmem>>, vector<1x8xf32>
    %58 = vector.broadcast %57 : vector<1x8xf32> to vector<256x8xf32>
    %59 = arith.addf %56, %58 : vector<256x8xf32>
    %c0_93 = arith.constant 0 : index
    %c0_94 = arith.constant 0 : index
    %60 = vector.load %arg5[%c0_93, %c0_94] : memref<2x8xf32, #tpu.memory_space<vmem>>, vector<2x8xf32>
    %61 = vector.extract_strided_slice %60 {offsets = [0, 0], sizes = [1, 8], strides = [1, 1]} : vector<2x8xf32> to vector<1x8xf32>
    %62 = vector.broadcast %61 : vector<1x8xf32> to vector<256x8xf32>
    %63 = arith.mulf %59, %62 : vector<256x8xf32>
    %64 = vector.extract_strided_slice %60 {offsets = [1, 0], sizes = [1, 8], strides = [1, 1]} : vector<2x8xf32> to vector<1x8xf32>
    %65 = vector.broadcast %64 : vector<1x8xf32> to vector<256x8xf32>
    %66 = arith.addf %63, %65 : vector<256x8xf32>
    %cst_95 = arith.constant 0.000000e+00 : f32
    %67 = vector.broadcast %cst_95 : f32 to vector<256x8xf32>
    %68 = arith.cmpf ogt, %66, %67 : vector<256x8xf32>
    %cst_96 = arith.constant 2.000000e-01 : f32
    %69 = vector.broadcast %cst_96 : f32 to vector<256x8xf32>
    %70 = arith.mulf %69, %66 : vector<256x8xf32>
    %71 = arith.select %68, %66, %70 : vector<256x8xi1>, vector<256x8xf32>
    %72 = vector.extract_strided_slice %54 {offsets = [0, 52], sizes = [256, 4], strides = [1, 1]} : vector<256x72xf32> to vector<256x4xf32>
    %73 = vector.extract_strided_slice %71 {offsets = [0, 0], sizes = [256, 4], strides = [1, 1]} : vector<256x8xf32> to vector<256x4xf32>
    %74 = arith.addf %72, %73 : vector<256x4xf32>
    %75 = vector.extract_strided_slice %71 {offsets = [0, 4], sizes = [256, 4], strides = [1, 1]} : vector<256x8xf32> to vector<256x4xf32>
    %76 = arith.addf %74, %75 : vector<256x4xf32>
    %c0_97 = arith.constant 0 : index
    %c0_98 = arith.constant 0 : index
    %77 = vector.load %arg6[%c0_97, %c0_98] : memref<8x8xf32, #tpu.memory_space<vmem>>, vector<8x8xf32>
    %c0_99 = arith.constant 0 : index
    %c0_100 = arith.constant 0 : index
    %78 = vector.load %arg2[%c0_99, %c0_100] : memref<256x4xf32, #tpu.memory_space<vmem>>, vector<256x4xf32>
    %79 = vector.extract_strided_slice %77 {offsets = [0, 0], sizes = [4, 8], strides = [1, 1]} : vector<8x8xf32> to vector<4x8xf32>
    %cst_101 = arith.constant dense<0.000000e+00> : vector<256x8xf32>
    %80 = tpu.matmul %78, %79, %cst_101 {dimension_numbers = #tpu.dot_dimension_numbers<[1], [0], [0], [1], [0, 0, 1, 1], [], []>} : vector<256x4xf32>, vector<4x8xf32>, vector<256x8xf32> -> vector<256x8xf32>
    %81 = vector.extract_strided_slice %77 {offsets = [4, 0], sizes = [4, 8], strides = [1, 1]} : vector<8x8xf32> to vector<4x8xf32>
    %cst_102 = arith.constant dense<0.000000e+00> : vector<256x8xf32>
    %82 = tpu.matmul %76, %81, %cst_102 {dimension_numbers = #tpu.dot_dimension_numbers<[1], [0], [0], [1], [0, 0, 1, 1], [], []>} : vector<256x4xf32>, vector<4x8xf32>, vector<256x8xf32> -> vector<256x8xf32>
    %83 = arith.addf %80, %82 : vector<256x8xf32>
    %c0_103 = arith.constant 0 : index
    %c0_104 = arith.constant 0 : index
    %84 = vector.load %arg7[%c0_103, %c0_104] : memref<256x8xf32, #tpu.memory_space<vmem>>, vector<256x8xf32>
    tpu.vector_store %arg7[%c0_103, %c0_104], %83 {strides = array<i32>} : memref<256x8xf32, #tpu.memory_space<vmem>>, vector<256x8xf32>,
    return
  }
  func.func @transform_0(%arg0: i32) -> (i32, i32, i32, i32) {
    %c0_i32 = arith.constant 0 : i32
    %c0_i32_0 = arith.constant 0 : i32
    %c0_i32_1 = arith.constant 0 : i32
    %c0_i32_2 = arith.constant 0 : i32
    return %arg0, %c0_i32, %c0_i32_0, %c0_i32_1 : i32, i32, i32, i32
  }
  func.func @transform_1(%arg0: i32) -> (i32, i32) {
    %c0_i32 = arith.constant 0 : i32
    %c0_i32_0 = arith.constant 0 : i32
    return %arg0, %c0_i32 : i32, i32
  }
  func.func @transform_2(%arg0: i32) -> (i32, i32) {
    %c0_i32 = arith.constant 0 : i32
    %c0_i32_0 = arith.constant 0 : i32
    %c0_i32_1 = arith.constant 0 : i32
    return %c0_i32, %c0_i32_0 : i32, i32
  }
  func.func @transform_3(%arg0: i32) -> (i32, i32) {
    %c0_i32 = arith.constant 0 : i32
    %c0_i32_0 = arith.constant 0 : i32
    %c0_i32_1 = arith.constant 0 : i32
    return %c0_i32, %c0_i32_0 : i32, i32
  }
  func.func @transform_4(%arg0: i32) -> (i32, i32) {
    %c0_i32 = arith.constant 0 : i32
    %c0_i32_0 = arith.constant 0 : i32
    %c0_i32_1 = arith.constant 0 : i32
    return %c0_i32, %c0_i32_0 : i32, i32
  }
  func.func @transform_5(%arg0: i32) -> (i32, i32) {
    %c0_i32 = arith.constant 0 : i32
    %c0_i32_0 = arith.constant 0 : i32
    %c0_i32_1 = arith.constant 0 : i32
    return %c0_i32, %c0_i32_0 : i32, i32
  }
  func.func @transform_6(%arg0: i32) -> (i32, i32) {
    %c0_i32 = arith.constant 0 : i32
    %c0_i32_0 = arith.constant 0 : i32
    return %arg0, %c0_i32 : i32, i32
  }
}

</mosaic_0001>

<llo_original>
// kernel: _lambda_.2
$region0: #{_lambda_.2}
  #allocation0 [shape = 'u32[]', space=smem, size = 0x4, offset = 0x4, fixed_abs, tag = 'smem constant byte address 0x4 - core index']
  #allocation1 [shape = 'u32[144,128]{1,0:T(1,128)}', space=vmem, size = 0x12000, scoped, tag = 'internal scratch']
  #allocation2 [shape = 'f32[256,72]{1,0:T(8,128)}', space=vmem, size = 0x20000, scoped, tag = 'scratch operand']
  %s0 = inlined_call_operand.vmem [shape: f32[2,20,20,4], index: 0, kind: input, shape index: {}]
  %s1 = inlined_call_operand.vmem [shape: f32[72,8], index: 1, kind: input, shape index: {}]
  %s2 = inlined_call_operand.vmem [shape: f32[1,8], index: 2, kind: input, shape index: {}]
  %s3 = inlined_call_operand.vmem [shape: f32[2,2,8], index: 3, kind: output, shape index: {}]
  %s4 = sld [smem:[#allocation0]]
  $region45: #{_lambda_.2} parent=0
    _
  %s6 = ssub.s32 1, %s4
  %s7 = scalar_select 0, %s6, %s4
  loop: start=0, step=1, limit=4
  $region2: #{_lambda_.2} parent=0 // loop_pre_header
    _
  $region3: #{_lambda_.2} parent=0 // loop_header
    %s9 = sphi 0, %s13
    %p10 = scmp.ge.s32.totalorder %s9, 4
    %s19 = sphi 0, %s21
    %s22 = sphi 0, %s19
    %s23 = sphi 0, %s22
    %s39 = sphi 0, %s23
    %s43 = sphi 0, %s43
    %s45 = sphi 0, %s43
    %s46 = sphi 0, %s45
    %s60 = sphi 0, %s46
    %s64 = sphi 0, %s64
    %s66 = sphi 0, %s64
    %s67 = sphi 0, %s66
    %s81 = sphi 0, %s67
    %s87 = sphi 0, %s89
    %s90 = sphi 0, %s87
    %s91 = sphi 0, %s90
    %s107 = sphi 0, %s91
  $region4: #{_lambda_.2} parent=0 // loop_header_branch
    %12 = sbr.rel (%p10) target = $region8
  $region5: #{_lambda_.2} parent=0 // loop_body
    %s14 = ssub.s32 %s9, 1
    %s15 = ssub.s32 %s9, 2
    %s16 = sadd.s32 %s9, 1
    %s17 = ssub.s32 %s9, %s16
    %p18 = scmp.eq.s32.totalorder %s17, 0
    %s20 = sadd.s32 %s19, 1
    %s21 = scalar_select %p18, %s19, %s20
    %p24 = pneg %p18
    %p25 = scmp.eq.s32.totalorder %s9, 1
    %p26 = por %p24, %p25
    %p27 = scmp.ne.s32.totalorder %s19, %s22
    %p28 = scmp.eq.s32.totalorder %s9, 0
    %p29 = por %p27, %p28
    %p30 = scmp.ne.s32.totalorder %s19, %s22
    %p31 = scmp.eq.s32.totalorder %s14, 1
    %p32 = por %p30, %p31
    %p33 = scmp.ne.s32.totalorder %s22, %s23
    %p34 = scmp.eq.s32.totalorder %s14, 0
    %p35 = por %p33, %p34
    %p36 = scmp.ne.s32.totalorder %s22, %s23
    %p37 = scmp.eq.s32.totalorder %s15, 1
    %p38 = por %p36, %p37
    %p40 = scmp.ne.s32.totalorder %s23, %s39
    %p41 = scmp.eq.s32.totalorder %s15, 0
    %p42 = por %p40, %p41
    %s44 = sadd.s32 %s43, 1
    %p47 = scmp.eq.s32.totalorder %s9, 1
    %p48 = scmp.ne.s32.totalorder %s43, %s45
    %p49 = scmp.eq.s32.totalorder %s9, 0
    %p50 = por %p48, %p49
    %p51 = scmp.ne.s32.totalorder %s43, %s45
    %p52 = scmp.eq.s32.totalorder %s14, 1
    %p53 = por %p51, %p52
    %p54 = scmp.ne.s32.totalorder %s45, %s46
    %p55 = scmp.eq.s32.totalorder %s14, 0
    %p56 = por %p54, %p55
    %p57 = scmp.ne.s32.totalorder %s45, %s46
    %p58 = scmp.eq.s32.totalorder %s15, 1
    %p59 = por %p57, %p58
    %p61 = scmp.ne.s32.totalorder %s46, %s60
    %p62 = scmp.eq.s32.totalorder %s15, 0
    %p63 = por %p61, %p62
    %s65 = sadd.s32 %s64, 1
    %p68 = scmp.eq.s32.totalorder %s9, 1
    %p69 = scmp.ne.s32.totalorder %s64, %s66
    %p70 = scmp.eq.s32.totalorder %s9, 0
    %p71 = por %p69, %p70
    %p72 = scmp.ne.s32.totalorder %s64, %s66
    %p73 = scmp.eq.s32.totalorder %s14, 1
    %p74 = por %p72, %p73
    %p75 = scmp.ne.s32.totalorder %s66, %s67
    %p76 = scmp.eq.s32.totalorder %s14, 0
    %p77 = por %p75, %p76
    %p78 = scmp.ne.s32.totalorder %s66, %s67
    %p79 = scmp.eq.s32.totalorder %s15, 1
    %p80 = por %p78, %p79
    %p82 = scmp.ne.s32.totalorder %s67, %s81
    %p83 = scmp.eq.s32.totalorder %s15, 0
    %p84 = por %p82, %p83
    %s85 = ssub.s32 %s9, %s16
    %p86 = scmp.eq.s32.totalorder %s85, 0
    %s88 = sadd.s32 %s87, 1
    %s89 = scalar_select %p86, %s87, %s88
    %p92 = pneg %p86
    %p93 = scmp.eq.s32.totalorder %s9, 1
    %p94 = por %p92, %p93
    %p95 = scmp.ne.s32.totalorder %s87, %s90
    %p96 = scmp.eq.s32.totalorder %s9, 0
    %p97 = por %p95, %p96
    %p98 = scmp.ne.s32.totalorder %s87, %s90
    %p99 = scmp.eq.s32.totalorder %s14, 1
    %p100 = por %p98, %p99
    %p101 = scmp.ne.s32.totalorder %s90, %s91
    %p102 = scmp.eq.s32.totalorder %s14, 0
    %p103 = por %p101, %p102
    %p104 = scmp.ne.s32.totalorder %s90, %s91
    %p105 = scmp.eq.s32.totalorder %s15, 1
    %p106 = por %p104, %p105
    %p108 = scmp.ne.s32.totalorder %s91, %s107
    %p109 = scmp.eq.s32.totalorder %s15, 0
    %p110 = por %p108, %p109
    %p111 = scmp.le.s32.totalorder 1, %s9
    %p112 = scmp.lt.s32.totalorder %s9, 3
    %p113 = pnand %p111, %p112
    %p114 = pneg %p113
    // Predicated region
    $region9: #{_lambda_.2} parent=5 // pred_check
      _
    $region10: #{_lambda_.2} parent=5 // pred_check_branch
      %116 = sbr.rel (%p113) target = $region12
    $region11: #{_lambda_.2} parent=5 // pred_region
      %s117 = ssub.s32 %s9, 1
      // Predicated region
      $region13: #{_lambda_.2} parent=11 // pred_check
        %p118 = pneg %p56
      $region14: #{_lambda_.2} parent=11 // pred_check_branch
        %120 = sbr.rel (%p118) target = $region16
      $region15: #{_lambda_.2} parent=11 // pred_region
        _
      $region16: #{_lambda_.2} parent=11 // pred_fallthru
        _
      // Predicated region
      $region17: #{_lambda_.2} parent=11 // pred_check
        %p121 = pneg %p77
      $region18: #{_lambda_.2} parent=11 // pred_check_branch
        %123 = sbr.rel (%p121) target = $region20
      $region19: #{_lambda_.2} parent=11 // pred_region
        _
      $region20: #{_lambda_.2} parent=11 // pred_fallthru
        _
    $region12: #{_lambda_.2} parent=5 // pred_fallthru
      _
    %p124 = scmp.lt.s32.totalorder %s9, 2
    // Predicated region
    $region21: #{_lambda_.2} parent=5 // pred_check
      %p125 = pneg %p124
    $region22: #{_lambda_.2} parent=5 // pred_check_branch
      %127 = sbr.rel (%p125) target = $region24
    $region23: #{_lambda_.2} parent=5 // pred_region
      // Predicated region
      $region25: #{_lambda_.2} parent=23 // pred_check
        %p128 = pneg %p29
      $region26: #{_lambda_.2} parent=23 // pred_check_branch
        %130 = sbr.rel (%p128) target = $region28
      $region27: #{_lambda_.2} parent=23 // pred_region
        %p131 = scmp.lt.s32.totalorder %s9, 1
        %s132 = scalar_select %p131, %s9, 1
        %s133 = smul.addr %s132, 60
        %s134 = smul.addr %s133, 8
        %s135 = scalar_lea.vmem %s0, %s134
      $region28: #{_lambda_.2} parent=23 // pred_fallthru
        _
    $region24: #{_lambda_.2} parent=5 // pred_fallthru
      _
    %p136 = scmp.le.s32.totalorder 1, %s9
    %p137 = scmp.lt.s32.totalorder %s9, 3
    %p138 = pnand %p136, %p137
    %p139 = pneg %p138
    // Predicated region
    $region29: #{_lambda_.2} parent=5 // pred_check
      _
    $region30: #{_lambda_.2} parent=5 // pred_check_branch
      %141 = sbr.rel (%p138) target = $region32
    $region31: #{_lambda_.2} parent=5 // pred_region
      %s142 = ssub.s32 %s9, 1
      %p143 = scmp.lt.s32.totalorder %s14, 1
      %s144 = scalar_select %p143, %s14, 1
      %s145 = smul.addr %s144, 60
      %s146 = smul.addr %s145, 8
      %s147 = scalar_lea.vmem %s0, %s146
      %p148 = pneg %p35
      %p149 = pneg %p32
      %p150 = pneg %p56
      %p151 = pneg %p53
      %p152 = pneg %p77
      %p153 = pneg %p74
      %p154 = pneg %p103
      %p155 = pneg %p100
      %p156 = scmp.lt.s32.totalorder %s14, 1
      %s157 = scalar_select %p156, %s14, 1
      %s158 = smul.addr %s157, 2
      %s159 = scalar_lea.vmem %s3, %s158
      %p160 = scmp.lt.s32.totalorder %s14, 1
      %s161 = scalar_select %p160, %s14, 1
      %s162 = smul.addr %s161, 60
      %s163 = smul.addr %s162, 8
      %s164 = scalar_lea.vmem %s0, %s163
      %p165 = scmp.lt.s32.totalorder %s14, 1
      %s166 = scalar_select %p165, %s14, 1
      %s167 = smul.addr %s166, 2
      %s168 = scalar_lea.vmem %s3, %s167
      %v169 = vld [vmem:[%s164] sm:$0xff]
      %v170 = vld [vmem:[%s164 + $0x8] sm:$0xff]
      %v171 = vld [vmem:[%s164 + $0x18] sm:$0xff]
      %v172 = vld [vmem:[%s164 + $0x20] sm:$0xff]
      %v173 = vld [vmem:[%s164 + $0x30] sm:$0xff]
      %v174 = vld [vmem:[%s164 + $0x38] sm:$0xff]
      %v175 = vld [vmem:[%s164 + $0x48] sm:$0xff]
      %v176 = vld [vmem:[%s164 + $0x50] sm:$0xff]
      %v177 = vld [vmem:[%s164 + $0x60] sm:$0xff]
      %v178 = vld [vmem:[%s164 + $0x68] sm:$0xff]
      %v179 = vld [vmem:[%s164 + $0x78] sm:$0xff]
      %v180 = vld [vmem:[%s164 + $0x80] sm:$0xff]
      %v181 = vld [vmem:[%s164 + $0x90] sm:$0xff]
      %v182 = vld [vmem:[%s164 + $0x98] sm:$0xff]
      %v183 = vld [vmem:[%s164 + $0xa8] sm:$0xff]
      %v184 = vld [vmem:[%s164 + $0xb0] sm:$0xff]
      %v185 = vld [vmem:[%s164 + $0xc0] sm:$0xff]
      %v186 = vld [vmem:[%s164 + $0xc8] sm:$0xff]
      %v187 = vld [vmem:[%s164 + $0xd8] sm:$0xff]
      %v188 = vld [vmem:[%s164 + $0xe0] sm:$0xff]
      %v189 = vld [vmem:[%s164 + $0xf0] sm:$0xff]
      %v190 = vld [vmem:[%s164 + $0xf8] sm:$0xff]
      %v191 = vld [vmem:[%s164 + $0x108] sm:$0xff]
      %v192 = vld [vmem:[%s164 + $0x110] sm:$0xff]
      %v193 = vld [vmem:[%s164 + $0x120] sm:$0xff]
      %v194 = vld [vmem:[%s164 + $0x128] sm:$0xff]
      %v195 = vld [vmem:[%s164 + $0x138] sm:$0xff]
      %v196 = vld [vmem:[%s164 + $0x140] sm:$0xff]
      %v197 = vld [vmem:[%s164 + $0x150] sm:$0xff]
      %v198 = vld [vmem:[%s164 + $0x158] sm:$0xff]
      %v199 = vld [vmem:[%s164 + $0x168] sm:$0xff]
      %v200 = vld [vmem:[%s164 + $0x170] sm:$0xff]
      %vm201 = vcmask 31744
      %202 = vst.msk [vmem:[#allocation2] sm:$0xff] %vm201, %v169
      %203 = vst.msk [vmem:[#allocation2 + $0x8] sm:$0xff] %vm201, %v170
      %204 = vst.msk [vmem:[#allocation2 + $0x10] sm:$0xff] %vm201, %v171
      %205 = vst.msk [vmem:[#allocation2 + $0x18] sm:$0xff] %vm201, %v172
      %206 = vst.msk [vmem:[#allocation2 + $0x20] sm:$0xff] %vm201, %v173
      %207 = vst.msk [vmem:[#allocation2 + $0x28] sm:$0xff] %vm201, %v174
      %208 = vst.msk [vmem:[#allocation2 + $0x30] sm:$0xff] %vm201, %v175
      %209 = vst.msk [vmem:[#allocation2 + $0x38] sm:$0xff] %vm201, %v176
      %210 = vst.msk [vmem:[#allocation2 + $0x40] sm:$0xff] %vm201, %v177
      %211 = vst.msk [vmem:[#allocation2 + $0x48] sm:$0xff] %vm201, %v178
      %212 = vst.msk [vmem:[#allocation2 + $0x50] sm:$0xff] %vm201, %v179
      %213 = vst.msk [vmem:[#allocation2 + $0x58] sm:$0xff] %vm201, %v180
      %214 = vst.msk [vmem:[#allocation2 + $0x60] sm:$0xff] %vm201, %v181
      %215 = vst.msk [vmem:[#allocation2 + $0x68] sm:$0xff] %vm201, %v182
      %216 = vst.msk [vmem:[#allocation2 + $0x70] sm:$0xff] %vm201, %v183
      %217 = vst.msk [vmem:[#allocation2 + $0x78] sm:$0xff] %vm201, %v184
      %218 = vst.msk [vmem:[#allocation2 + $0x80] sm:$0xff] %vm201, %v185
      %219 = vst.msk [vmem:[#allocation2 + $0x88] sm:$0xff] %vm201, %v186
      %220 = vst.msk [vmem:[#allocation2 + $0x90] sm:$0xff] %vm201, %v187
      %221 = vst.msk [vmem:[#allocation2 + $0x98] sm:$0xff] %vm201, %v188
      %222 = vst.msk [vmem:[#allocation2 + $0xa0] sm:$0xff] %vm201, %v189
      %223 = vst.msk [vmem:[#allocation2 + $0xa8] sm:$0xff] %vm201, %v190
      %224 = vst.msk [vmem:[#allocation2 + $0xb0] sm:$0xff] %vm201, %v191
      %225 = vst.msk [vmem:[#allocation2 + $0xb8] sm:$0xff] %vm201, %v192
      %226 = vst.msk [vmem:[#allocation2 + $0xc0] sm:$0xff] %vm201, %v193
      %227 = vst.msk [vmem:[#allocation2 + $0xc8] sm:$0xff] %vm201, %v194
      %228 = vst.msk [vmem:[#allocation2 + $0xd0] sm:$0xff] %vm201, %v195
      %229 = vst.msk [vmem:[#allocation2 + $0xd8] sm:$0xff] %vm201, %v196
      %230 = vst.msk [vmem:[#allocation2 + $0xe0] sm:$0xff] %vm201, %v197
      %231 = vst.msk [vmem:[#allocation2 + $0xe8] sm:$0xff] %vm201, %v198
      %232 = vst.msk [vmem:[#allocation2 + $0xf0] sm:$0xff] %vm201, %v199
      %233 = vst.msk [vmem:[#allocation2 + $0xf8] sm:$0xff] %vm201, %v200
      %v234 = vld [vmem:[%s164 + $0x2] sm:$0xff]
      %v235 = vld [vmem:[%s164 + $0xa] sm:$0xff]
      %v236 = vld [vmem:[%s164 + $0x1a] sm:$0xff]
      %v237 = vld [vmem:[%s164 + $0x22] sm:$0xff]
      %v238 = vld [vmem:[%s164 + $0x32] sm:$0xff]
      %v239 = vld [vmem:[%s164 + $0x3a] sm:$0xff]
      %v240 = vld [vmem:[%s164 + $0x4a] sm:$0xff]
      %v241 = vld [vmem:[%s164 + $0x52] sm:$0xff]
      %v242 = vld [vmem:[%s164 + $0x62] sm:$0xff]
      %v243 = vld [vmem:[%s164 + $0x6a] sm:$0xff]
      %v244 = vld [vmem:[%s164 + $0x7a] sm:$0xff]
      %v245 = vld [vmem:[%s164 + $0x82] sm:$0xff]
      %v246 = vld [vmem:[%s164 + $0x92] sm:$0xff]
      %v247 = vld [vmem:[%s164 + $0x9a] sm:$0xff]
      %v248 = vld [vmem:[%s164 + $0xaa] sm:$0xff]
      %v249 = vld [vmem:[%s164 + $0xb2] sm:$0xff]
      %v250 = vld [vmem:[%s164 + $0xc2] sm:$0xff]
      %v251 = vld [vmem:[%s164 + $0xca] sm:$0xff]
      %v252 = vld [vmem:[%s164 + $0xda] sm:$0xff]
      %v253 = vld [vmem:[%s164 + $0xe2] sm:$0xff]
      %v254 = vld [vmem:[%s164 + $0xf2] sm:$0xff]
      %v255 = vld [vmem:[%s164 + $0xfa] sm:$0xff]
      %v256 = vld [vmem:[%s164 + $0x10a] sm:$0xff]
      %v257 = vld [vmem:[%s164 + $0x112] sm:$0xff]
      %v258 = vld [vmem:[%s164 + $0x122] sm:$0xff]
      %v259 = vld [vmem:[%s164 + $0x12a] sm:$0xff]
      %v260 = vld [vmem:[%s164 + $0x13a] sm:$0xff]
      %v261 = vld [vmem:[%s164 + $0x142] sm:$0xff]
      %v262 = vld [vmem:[%s164 + $0x152] sm:$0xff]
      %v263 = vld [vmem:[%s164 + $0x15a] sm:$0xff]
      %v264 = vld [vmem:[%s164 + $0x16a] sm:$0xff]
      %v265 = vld [vmem:[%s164 + $0x172] sm:$0xff]
      %298 = vrot.lane.b32.xlu0 %v234, 4
      %v299 = vpop.permute.xlu0 %298
      %300 = vrot.lane.b32.xlu0 %v235, 4
      %v301 = vpop.permute.xlu0 %300
      %302 = vrot.lane.b32.xlu0 %v236, 4
      %v303 = vpop.permute.xlu0 %302
      %304 = vrot.lane.b32.xlu0 %v237, 4
      %v305 = vpop.permute.xlu0 %304
      %306 = vrot.lane.b32.xlu0 %v238, 4
      %v307 = vpop.permute.xlu0 %306
      %308 = vrot.lane.b32.xlu0 %v239, 4
      %v309 = vpop.permute.xlu0 %308
      %310 = vrot.lane.b32.xlu0 %v240, 4
      %v311 = vpop.permute.xlu0 %310
      %312 = vrot.lane.b32.xlu0 %v241, 4
      %v313 = vpop.permute.xlu0 %312
      %314 = vrot.lane.b32.xlu0 %v242, 4
      %v315 = vpop.permute.xlu0 %314
      %316 = vrot.lane.b32.xlu0 %v243, 4
      %v317 = vpop.permute.xlu0 %316
      %318 = vrot.lane.b32.xlu0 %v244, 4
      %v319 = vpop.permute.xlu0 %318
      %320 = vrot.lane.b32.xlu0 %v245, 4
      %v321 = vpop.permute.xlu0 %320
      %322 = vrot.lane.b32.xlu0 %v246, 4
      %v323 = vpop.permute.xlu0 %322
      %324 = vrot.lane.b32.xlu0 %v247, 4
      %v325 = vpop.permute.xlu0 %324
      %326 = vrot.lane.b32.xlu0 %v248, 4
      %v327 = vpop.permute.xlu0 %326
      %328 = vrot.lane.b32.xlu0 %v249, 4
      %v329 = vpop.permute.xlu0 %328
      %330 = vrot.lane.b32.xlu0 %v250, 4
      %v331 = vpop.permute.xlu0 %330
      %332 = vrot.lane.b32.xlu0 %v251, 4
      %v333 = vpop.permute.xlu0 %332
      %334 = vrot.lane.b32.xlu0 %v252, 4
      %v335 = vpop.permute.xlu0 %334
      %336 = vrot.lane.b32.xlu0 %v253, 4
      %v337 = vpop.permute.xlu0 %336
      %338 = vrot.lane.b32.xlu0 %v254, 4
      %v339 = vpop.permute.xlu0 %338
      %340 = vrot.lane.b32.xlu0 %v255, 4
      %v341 = vpop.permute.xlu0 %340
      %342 = vrot.lane.b32.xlu0 %v256, 4
      %v343 = vpop.permute.xlu0 %342
      %344 = vrot.lane.b32.xlu0 %v257, 4
      %v345 = vpop.permute.xlu0 %344
      %346 = vrot.lane.b32.xlu0 %v258, 4
      %v347 = vpop.permute.xlu0 %346
      %348 = vrot.lane.b32.xlu0 %v259, 4
      %v349 = vpop.permute.xlu0 %348
      %350 = vrot.lane.b32.xlu0 %v260, 4
      %v351 = vpop.permute.xlu0 %350
      %352 = vrot.lane.b32.xlu0 %v261, 4
      %v353 = vpop.permute.xlu0 %352
      %354 = vrot.lane.b32.xlu0 %v262, 4
      %v355 = vpop.permute.xlu0 %354
      %356 = vrot.lane.b32.xlu0 %v263, 4
      %v357 = vpop.permute.xlu0 %356
      %358 = vrot.lane.b32.xlu0 %v264, 4
      %v359 = vpop.permute.xlu0 %358
      %360 = vrot.lane.b32.xlu0 %v265, 4
      %v361 = vpop.permute.xlu0 %360
      %vm394 = vcmask 64544
      %395 = vst.msk [vmem:[#allocation2] sm:$0xff] %vm394, %v299
      %396 = vst.msk [vmem:[#allocation2 + $0x8] sm:$0xff] %vm394, %v301
      %397 = vst.msk [vmem:[#allocation2 + $0x10] sm:$0xff] %vm394, %v303
      %398 = vst.msk [vmem:[#allocation2 + $0x18] sm:$0xff] %vm394, %v305
      %399 = vst.msk [vmem:[#allocation2 + $0x20] sm:$0xff] %vm394, %v307
      %400 = vst.msk [vmem:[#allocation2 + $0x28] sm:$0xff] %vm394, %v309
      %401 = vst.msk [vmem:[#allocation2 + $0x30] sm:$0xff] %vm394, %v311
      %402 = vst.msk [vmem:[#allocation2 + $0x38] sm:$0xff] %vm394, %v313
      %403 = vst.msk [vmem:[#allocation2 + $0x40] sm:$0xff] %vm394, %v315
      %404 = vst.msk [vmem:[#allocation2 + $0x48] sm:$0xff] %vm394, %v317
      %405 = vst.msk [vmem:[#allocation2 + $0x50] sm:$0xff] %vm394, %v319
      %406 = vst.msk [vmem:[#allocation2 + $0x58] sm:$0xff] %vm394, %v321
      %407 = vst.msk [vmem:[#allocation2 + $0x60] sm:$0xff] %vm394, %v323
      %408 = vst.msk [vmem:[#allocation2 + $0x68] sm:$0xff] %vm394, %v325
      %409 = vst.msk [vmem:[#allocation2 + $0x70] sm:$0xff] %vm394, %v327
      %410 = vst.msk [vmem:[#allocation2 + $0x78] sm:$0xff] %vm394, %v329
      %411 = vst.msk [vmem:[#allocation2 + $0x80] sm:$0xff] %vm394, %v331
      %412 = vst.msk [vmem:[#allocation2 + $0x88] sm:$0xff] %vm394, %v333
      %413 = vst.msk [vmem:[#allocation2 + $0x90] sm:$0xff] %vm394, %v335
      %414 = vst.msk [vmem:[#allocation2 + $0x98] sm:$0xff] %vm394, %v337
      %415 = vst.msk [vmem:[#allocation2 + $0xa0] sm:$0xff] %vm394, %v339
      %416 = vst.msk [vmem:[#allocation2 + $0xa8] sm:$0xff] %vm394, %v341
      %417 = vst.msk [vmem:[#allocation2 + $0xb0] sm:$0xff] %vm394, %v343
      %418 = vst.msk [vmem:[#allocation2 + $0xb8] sm:$0xff] %vm394, %v345
      %419 = vst.msk [vmem:[#allocation2 + $0xc0] sm:$0xff] %vm394, %v347
      %420 = vst.msk [vmem:[#allocation2 + $0xc8] sm:$0xff] %vm394, %v349
      %421 = vst.msk [vmem:[#allocation2 + $0xd0] sm:$0xff] %vm394, %v351
      %422 = vst.msk [vmem:[#allocation2 + $0xd8] sm:$0xff] %vm394, %v353
      %423 = vst.msk [vmem:[#allocation2 + $0xe0] sm:$0xff] %vm394, %v355
      %424 = vst.msk [vmem:[#allocation2 + $0xe8] sm:$0xff] %vm394, %v357
      %425 = vst.msk [vmem:[#allocation2 + $0xf0] sm:$0xff] %vm394, %v359
      %426 = vst.msk [vmem:[#allocation2 + $0xf8] sm:$0xff] %vm394, %v361
      %v427 = vld [vmem:[%s164 + $0x4] sm:$0xff]
      %v428 = vld [vmem:[%s164 + $0xc] sm:$0xff]
      %v429 = vld [vmem:[%s164 + $0x1c] sm:$0xff]
      %v430 = vld [vmem:[%s164 + $0x24] sm:$0xff]
      %v431 = vld [vmem:[%s164 + $0x34] sm:$0xff]
      %v432 = vld [vmem:[%s164 + $0x3c] sm:$0xff]
      %v433 = vld [vmem:[%s164 + $0x4c] sm:$0xff]
      %v434 = vld [vmem:[%s164 + $0x54] sm:$0xff]
      %v435 = vld [vmem:[%s164 + $0x64] sm:$0xff]
      %v436 = vld [vmem:[%s164 + $0x6c] sm:$0xff]
      %v437 = vld [vmem:[%s164 + $0x7c] sm:$0xff]
      %v438 = vld [vmem:[%s164 + $0x84] sm:$0xff]
      %v439 = vld [vmem:[%s164 + $0x94] sm:$0xff]
      %v440 = vld [vmem:[%s164 + $0x9c] sm:$0xff]
      %v441 = vld [vmem:[%s164 + $0xac] sm:$0xff]
      %v442 = vld [vmem:[%s164 + $0xb4] sm:$0xff]
      %v443 = vld [vmem:[%s164 + $0xc4] sm:$0xff]
      %v444 = vld [vmem:[%s164 + $0xcc] sm:$0xff]
      %v445 = vld [vmem:[%s164 + $0xdc] sm:$0xff]
      %v446 = vld [vmem:[%s164 + $0xe4] sm:$0xff]
      %v447 = vld [vmem:[%s164 + $0xf4] sm:$0xff]
      %v448 = vld [vmem:[%s164 + $0xfc] sm:$0xff]
      %v449 = vld [vmem:[%s164 + $0x10c] sm:$0xff]
      %v450 = vld [vmem:[%s164 + $0x114] sm:$0xff]
      %v451 = vld [vmem:[%s164 + $0x124] sm:$0xff]
      %v452 = vld [vmem:[%s164 + $0x12c] sm:$0xff]
      %v453 = vld [vmem:[%s164 + $0x13c] sm:$0xff]
      %v454 = vld [vmem:[%s164 + $0x144] sm:$0xff]
      %v455 = vld [vmem:[%s164 + $0x154] sm:$0xff]
      %v456 = vld [vmem:[%s164 + $0x15c] sm:$0xff]
      %v457 = vld [vmem:[%s164 + $0x16c] sm:$0xff]
      %v458 = vld [vmem:[%s164 + $0x174] sm:$0xff]
      %491 = vrot.lane.b32.xlu0 %v427, 8
      %v492 = vpop.permute.xlu0 %491
      %493 = vrot.lane.b32.xlu0 %v428, 8
      %v494 = vpop.permute.xlu0 %493
      %495 = vrot.lane.b32.xlu0 %v429, 8
      %v496 = vpop.permute.xlu0 %495
      %497 = vrot.lane.b32.xlu0 %v430, 8
      %v498 = vpop.permute.xlu0 %497
      %499 = vrot.lane.b32.xlu0 %v431, 8
      %v500 = vpop.permute.xlu0 %499
      %501 = vrot.lane.b32.xlu0 %v432, 8
      %v502 = vpop.permute.xlu0 %501
      %503 = vrot.lane.b32.xlu0 %v433, 8
      %v504 = vpop.permute.xlu0 %503
      %505 = vrot.lane.b32.xlu0 %v434, 8
      %v506 = vpop.permute.xlu0 %505
      %507 = vrot.lane.b32.xlu0 %v435, 8
      %v508 = vpop.permute.xlu0 %507
      %509 = vrot.lane.b32.xlu0 %v436, 8
      %v510 = vpop.permute.xlu0 %509
      %511 = vrot.lane.b32.xlu0 %v437, 8
      %v512 = vpop.permute.xlu0 %511
      %513 = vrot.lane.b32.xlu0 %v438, 8
      %v514 = vpop.permute.xlu0 %513
      %515 = vrot.lane.b32.xlu0 %v439, 8
      %v516 = vpop.permute.xlu0 %515
      %517 = vrot.lane.b32.xlu0 %v440, 8
      %v518 = vpop.permute.xlu0 %517
      %519 = vrot.lane.b32.xlu0 %v441, 8
      %v520 = vpop.permute.xlu0 %519
      %521 = vrot.lane.b32.xlu0 %v442, 8
      %v522 = vpop.permute.xlu0 %521
      %523 = vrot.lane.b32.xlu0 %v443, 8
      %v524 = vpop.permute.xlu0 %523
      %525 = vrot.lane.b32.xlu0 %v444, 8
      %v526 = vpop.permute.xlu0 %525
      %527 = vrot.lane.b32.xlu0 %v445, 8
      %v528 = vpop.permute.xlu0 %527
      %529 = vrot.lane.b32.xlu0 %v446, 8
      %v530 = vpop.permute.xlu0 %529
      %531 = vrot.lane.b32.xlu0 %v447, 8
      %v532 = vpop.permute.xlu0 %531
      %533 = vrot.lane.b32.xlu0 %v448, 8
      %v534 = vpop.permute.xlu0 %533
      %535 = vrot.lane.b32.xlu0 %v449, 8
      %v536 = vpop.permute.xlu0 %535
      %537 = vrot.lane.b32.xlu0 %v450, 8
      %v538 = vpop.permute.xlu0 %537
      %539 = vrot.lane.b32.xlu0 %v451, 8
      %v540 = vpop.permute.xlu0 %539
      %541 = vrot.lane.b32.xlu0 %v452, 8
      %v542 = vpop.permute.xlu0 %541
      %543 = vrot.lane.b32.xlu0 %v453, 8
      %v544 = vpop.permute.xlu0 %543
      %545 = vrot.lane.b32.xlu0 %v454, 8
      %v546 = vpop.permute.xlu0 %545
      %547 = vrot.lane.b32.xlu0 %v455, 8
      %v548 = vpop.permute.xlu0 %547
      %549 = vrot.lane.b32.xlu0 %v456, 8
      %v550 = vpop.permute.xlu0 %549
      %551 = vrot.lane.b32.xlu0 %v457, 8
      %v552 = vpop.permute.xlu0 %551
      %553 = vrot.lane.b32.xlu0 %v458, 8
      %v554 = vpop.permute.xlu0 %553
      %vm587 = vcmask 97344
      %588 = vst.msk [vmem:[#allocation2] sm:$0xff] %vm587, %v492
      %589 = vst.msk [vmem:[#allocation2 + $0x8] sm:$0xff] %vm587, %v494
      %590 = vst.msk [vmem:[#allocation2 + $0x10] sm:$0xff] %vm587, %v496
      %591 = vst.msk [vmem:[#allocation2 + $0x18] sm:$0xff] %vm587, %v498
      %592 = vst.msk [vmem:[#allocation2 + $0x20] sm:$0xff] %vm587, %v500
      %593 = vst.msk [vmem:[#allocation2 + $0x28] sm:$0xff] %vm587, %v502
      %594 = vst.msk [vmem:[#allocation2 + $0x30] sm:$0xff] %vm587, %v504
      %595 = vst.msk [vmem:[#allocation2 + $0x38] sm:$0xff] %vm587, %v506
      %596 = vst.msk [vmem:[#allocation2 + $0x40] sm:$0xff] %vm587, %v508
      %597 = vst.msk [vmem:[#allocation2 + $0x48] sm:$0xff] %vm587, %v510
      %598 = vst.msk [vmem:[#allocation2 + $0x50] sm:$0xff] %vm587, %v512
      %599 = vst.msk [vmem:[#allocation2 + $0x58] sm:$0xff] %vm587, %v514
      %600 = vst.msk [vmem:[#allocation2 + $0x60] sm:$0xff] %vm587, %v516
      %601 = vst.msk [vmem:[#allocation2 + $0x68] sm:$0xff] %vm587, %v518
      %602 = vst.msk [vmem:[#allocation2 + $0x70] sm:$0xff] %vm587, %v520
      %603 = vst.msk [vmem:[#allocation2 + $0x78] sm:$0xff] %vm587, %v522
      %604 = vst.msk [vmem:[#allocation2 + $0x80] sm:$0xff] %vm587, %v524
      %605 = vst.msk [vmem:[#allocation2 + $0x88] sm:$0xff] %vm587, %v526
      %606 = vst.msk [vmem:[#allocation2 + $0x90] sm:$0xff] %vm587, %v528
      %607 = vst.msk [vmem:[#allocation2 + $0x98] sm:$0xff] %vm587, %v530
      %608 = vst.msk [vmem:[#allocation2 + $0xa0] sm:$0xff] %vm587, %v532
      %609 = vst.msk [vmem:[#allocation2 + $0xa8] sm:$0xff] %vm587, %v534
      %610 = vst.msk [vmem:[#allocation2 + $0xb0] sm:$0xff] %vm587, %v536
      %611 = vst.msk [vmem:[#allocation2 + $0xb8] sm:$0xff] %vm587, %v538
      %612 = vst.msk [vmem:[#allocation2 + $0xc0] sm:$0xff] %vm587, %v540
      %613 = vst.msk [vmem:[#allocation2 + $0xc8] sm:$0xff] %vm587, %v542
      %614 = vst.msk [vmem:[#allocation2 + $0xd0] sm:$0xff] %vm587, %v544
      %615 = vst.msk [vmem:[#allocation2 + $0xd8] sm:$0xff] %vm587, %v546
      %616 = vst.msk [vmem:[#allocation2 + $0xe0] sm:$0xff] %vm587, %v548
      %617 = vst.msk [vmem:[#allocation2 + $0xe8] sm:$0xff] %vm587, %v550
      %618 = vst.msk [vmem:[#allocation2 + $0xf0] sm:$0xff] %vm587, %v552
      %619 = vst.msk [vmem:[#allocation2 + $0xf8] sm:$0xff] %vm587, %v554
      %s620 = scalar_lea.vmem %s164, 48
      %v621 = vld [vmem:[%s620] sm:$0xff]
      %v622 = vld [vmem:[%s620 + $0x8] sm:$0xff]
      %v623 = vld [vmem:[%s620 + $0x18] sm:$0xff]
      %v624 = vld [vmem:[%s620 + $0x20] sm:$0xff]
      %v625 = vld [vmem:[%s620 + $0x30] sm:$0xff]
      %v626 = vld [vmem:[%s620 + $0x38] sm:$0xff]
      %v627 = vld [vmem:[%s620 + $0x48] sm:$0xff]
      %v628 = vld [vmem:[%s620 + $0x50] sm:$0xff]
      %v629 = vld [vmem:[%s620 + $0x60] sm:$0xff]
      %v630 = vld [vmem:[%s620 + $0x68] sm:$0xff]
      %v631 = vld [vmem:[%s620 + $0x78] sm:$0xff]
      %v632 = vld [vmem:[%s620 + $0x80] sm:$0xff]
      %v633 = vld [vmem:[%s620 + $0x90] sm:$0xff]
      %v634 = vld [vmem:[%s620 + $0x98] sm:$0xff]
      %v635 = vld [vmem:[%s620 + $0xa8] sm:$0xff]
      %v636 = vld [vmem:[%s620 + $0xb0] sm:$0xff]
      %v637 = vld [vmem:[%s620 + $0xc0] sm:$0xff]
      %v638 = vld [vmem:[%s620 + $0xc8] sm:$0xff]
      %v639 = vld [vmem:[%s620 + $0xd8] sm:$0xff]
      %v640 = vld [vmem:[%s620 + $0xe0] sm:$0xff]
      %v641 = vld [vmem:[%s620 + $0xf0] sm:$0xff]
      %v642 = vld [vmem:[%s620 + $0xf8] sm:$0xff]
      %v643 = vld [vmem:[%s620 + $0x108] sm:$0xff]
      %v644 = vld [vmem:[%s620 + $0x110] sm:$0xff]
      %v645 = vld [vmem:[%s620 + $0x120] sm:$0xff]
      %v646 = vld [vmem:[%s620 + $0x128] sm:$0xff]
      %v647 = vld [vmem:[%s620 + $0x138] sm:$0xff]
      %v648 = vld [vmem:[%s620 + $0x140] sm:$0xff]
      %v649 = vld [vmem:[%s620 + $0x150] sm:$0xff]
      %v650 = vld [vmem:[%s620 + $0x158] sm:$0xff]
      %v651 = vld [vmem:[%s620 + $0x168] sm:$0xff]
      %v652 = vld [vmem:[%s620 + $0x170] sm:$0xff]
      %685 = vrot.lane.b32.xlu0 %v621, 12
      %v686 = vpop.permute.xlu0 %685
      %687 = vrot.lane.b32.xlu0 %v622, 12
      %v688 = vpop.permute.xlu0 %687
      %689 = vrot.lane.b32.xlu0 %v623, 12
      %v690 = vpop.permute.xlu0 %689
      %691 = vrot.lane.b32.xlu0 %v624, 12
      %v692 = vpop.permute.xlu0 %691
      %693 = vrot.lane.b32.xlu0 %v625, 12
      %v694 = vpop.permute.xlu0 %693
      %695 = vrot.lane.b32.xlu0 %v626, 12
      %v696 = vpop.permute.xlu0 %695
      %697 = vrot.lane.b32.xlu0 %v627, 12
      %v698 = vpop.permute.xlu0 %697
      %699 = vrot.lane.b32.xlu0 %v628, 12
      %v700 = vpop.permute.xlu0 %699
      %701 = vrot.lane.b32.xlu0 %v629, 12
      %v702 = vpop.permute.xlu0 %701
      %703 = vrot.lane.b32.xlu0 %v630, 12
      %v704 = vpop.permute.xlu0 %703
      %705 = vrot.lane.b32.xlu0 %v631, 12
      %v706 = vpop.permute.xlu0 %705
      %707 = vrot.lane.b32.xlu0 %v632, 12
      %v708 = vpop.permute.xlu0 %707
      %709 = vrot.lane.b32.xlu0 %v633, 12
      %v710 = vpop.permute.xlu0 %709
      %711 = vrot.lane.b32.xlu0 %v634, 12
      %v712 = vpop.permute.xlu0 %711
      %713 = vrot.lane.b32.xlu0 %v635, 12
      %v714 = vpop.permute.xlu0 %713
      %715 = vrot.lane.b32.xlu0 %v636, 12
      %v716 = vpop.permute.xlu0 %715
      %717 = vrot.lane.b32.xlu0 %v637, 12
      %v718 = vpop.permute.xlu0 %717
      %719 = vrot.lane.b32.xlu0 %v638, 12
      %v720 = vpop.permute.xlu0 %719
      %721 = vrot.lane.b32.xlu0 %v639, 12
      %v722 = vpop.permute.xlu0 %721
      %723 = vrot.lane.b32.xlu0 %v640, 12
      %v724 = vpop.permute.xlu0 %723
      %725 = vrot.lane.b32.xlu0 %v641, 12
      %v726 = vpop.permute.xlu0 %725
      %727 = vrot.lane.b32.xlu0 %v642, 12
      %v728 = vpop.permute.xlu0 %727
      %729 = vrot.lane.b32.xlu0 %v643, 12
      %v730 = vpop.permute.xlu0 %729
      %731 = vrot.lane.b32.xlu0 %v644, 12
      %v732 = vpop.permute.xlu0 %731
      %733 = vrot.lane.b32.xlu0 %v645, 12
      %v734 = vpop.permute.xlu0 %733
      %735 = vrot.lane.b32.xlu0 %v646, 12
      %v736 = vpop.permute.xlu0 %735
      %737 = vrot.lane.b32.xlu0 %v647, 12
      %v738 = vpop.permute.xlu0 %737
      %739 = vrot.lane.b32.xlu0 %v648, 12
      %v740 = vpop.permute.xlu0 %739
      %741 = vrot.lane.b32.xlu0 %v649, 12
      %v742 = vpop.permute.xlu0 %741
      %743 = vrot.lane.b32.xlu0 %v650, 12
      %v744 = vpop.permute.xlu0 %743
      %745 = vrot.lane.b32.xlu0 %v651, 12
      %v746 = vpop.permute.xlu0 %745
      %747 = vrot.lane.b32.xlu0 %v652, 12
      %v748 = vpop.permute.xlu0 %747
      %vm781 = vcmask 130144
      %782 = vst.msk [vmem:[#allocation2] sm:$0xff] %vm781, %v686
      %783 = vst.msk [vmem:[#allocation2 + $0x8] sm:$0xff] %vm781, %v688
      %784 = vst.msk [vmem:[#allocation2 + $0x10] sm:$0xff] %vm781, %v690
      %785 = vst.msk [vmem:[#allocation2 + $0x18] sm:$0xff] %vm781, %v692
      %786 = vst.msk [vmem:[#allocation2 + $0x20] sm:$0xff] %vm781, %v694
      %787 = vst.msk [vmem:[#allocation2 + $0x28] sm:$0xff] %vm781, %v696
      %788 = vst.msk [vmem:[#allocation2 + $0x30] sm:$0xff] %vm781, %v698
      %789 = vst.msk [vmem:[#allocation2 + $0x38] sm:$0xff] %vm781, %v700
      %790 = vst.msk [vmem:[#allocation2 + $0x40] sm:$0xff] %vm781, %v702
      %791 = vst.msk [vmem:[#allocation2 + $0x48] sm:$0xff] %vm781, %v704
      %792 = vst.msk [vmem:[#allocation2 + $0x50] sm:$0xff] %vm781, %v706
      %793 = vst.msk [vmem:[#allocation2 + $0x58] sm:$0xff] %vm781, %v708
      %794 = vst.msk [vmem:[#allocation2 + $0x60] sm:$0xff] %vm781, %v710
      %795 = vst.msk [vmem:[#allocation2 + $0x68] sm:$0xff] %vm781, %v712
      %796 = vst.msk [vmem:[#allocation2 + $0x70] sm:$0xff] %vm781, %v714
      %797 = vst.msk [vmem:[#allocation2 + $0x78] sm:$0xff] %vm781, %v716
      %798 = vst.msk [vmem:[#allocation2 + $0x80] sm:$0xff] %vm781, %v718
      %799 = vst.msk [vmem:[#allocation2 + $0x88] sm:$0xff] %vm781, %v720
      %800 = vst.msk [vmem:[#allocation2 + $0x90] sm:$0xff] %vm781, %v722
      %801 = vst.msk [vmem:[#allocation2 + $0x98] sm:$0xff] %vm781, %v724
      %802 = vst.msk [vmem:[#allocation2 + $0xa0] sm:$0xff] %vm781, %v726
      %803 = vst.msk [vmem:[#allocation2 + $0xa8] sm:$0xff] %vm781, %v728
      %804 = vst.msk [vmem:[#allocation2 + $0xb0] sm:$0xff] %vm781, %v730
      %805 = vst.msk [vmem:[#allocation2 + $0xb8] sm:$0xff] %vm781, %v732
      %806 = vst.msk [vmem:[#allocation2 + $0xc0] sm:$0xff] %vm781, %v734
      %807 = vst.msk [vmem:[#allocation2 + $0xc8] sm:$0xff] %vm781, %v736
      %808 = vst.msk [vmem:[#allocation2 + $0xd0] sm:$0xff] %vm781, %v738
      %809 = vst.msk [vmem:[#allocation2 + $0xd8] sm:$0xff] %vm781, %v740
      %810 = vst.msk [vmem:[#allocation2 + $0xe0] sm:$0xff] %vm781, %v742
      %811 = vst.msk [vmem:[#allocation2 + $0xe8] sm:$0xff] %vm781, %v744
      %812 = vst.msk [vmem:[#allocation2 + $0xf0] sm:$0xff] %vm781, %v746
      %813 = vst.msk [vmem:[#allocation2 + $0xf8] sm:$0xff] %vm781, %v748
      %v814 = vld [vmem:[%s620 + $0x2] sm:$0xff]
      %v815 = vld [vmem:[%s620 + $0xa] sm:$0xff]
      %v816 = vld [vmem:[%s620 + $0x1a] sm:$0xff]
      %v817 = vld [vmem:[%s620 + $0x22] sm:$0xff]
      %v818 = vld [vmem:[%s620 + $0x32] sm:$0xff]
      %v819 = vld [vmem:[%s620 + $0x3a] sm:$0xff]
      %v820 = vld [vmem:[%s620 + $0x4a] sm:$0xff]
      %v821 = vld [vmem:[%s620 + $0x52] sm:$0xff]
      %v822 = vld [vmem:[%s620 + $0x62] sm:$0xff]
      %v823 = vld [vmem:[%s620 + $0x6a] sm:$0xff]
      %v824 = vld [vmem:[%s620 + $0x7a] sm:$0xff]
      %v825 = vld [vmem:[%s620 + $0x82] sm:$0xff]
      %v826 = vld [vmem:[%s620 + $0x92] sm:$0xff]
      %v827 = vld [vmem:[%s620 + $0x9a] sm:$0xff]
      %v828 = vld [vmem:[%s620 + $0xaa] sm:$0xff]
      %v829 = vld [vmem:[%s620 + $0xb2] sm:$0xff]
      %v830 = vld [vmem:[%s620 + $0xc2] sm:$0xff]
      %v831 = vld [vmem:[%s620 + $0xca] sm:$0xff]
      %v832 = vld [vmem:[%s620 + $0xda] sm:$0xff]
      %v833 = vld [vmem:[%s620 + $0xe2] sm:$0xff]
      %v834 = vld [vmem:[%s620 + $0xf2] sm:$0xff]
      %v835 = vld [vmem:[%s620 + $0xfa] sm:$0xff]
      %v836 = vld [vmem:[%s620 + $0x10a] sm:$0xff]
      %v837 = vld [vmem:[%s620 + $0x112] sm:$0xff]
      %v838 = vld [vmem:[%s620 + $0x122] sm:$0xff]
      %v839 = vld [vmem:[%s620 + $0x12a] sm:$0xff]
      %v840 = vld [vmem:[%s620 + $0x13a] sm:$0xff]
      %v841 = vld [vmem:[%s620 + $0x142] sm:$0xff]
      %v842 = vld [vmem:[%s620 + $0x152] sm:$0xff]
      %v843 = vld [vmem:[%s620 + $0x15a] sm:$0xff]
      %v844 = vld [vmem:[%s620 + $0x16a] sm:$0xff]
      %v845 = vld [vmem:[%s620 + $0x172] sm:$0xff]
      %878 = vrot.lane.b32.xlu0 %v814, 16
      %v879 = vpop.permute.xlu0 %878
      %880 = vrot.lane.b32.xlu0 %v815, 16
      %v881 = vpop.permute.xlu0 %880
      %882 = vrot.lane.b32.xlu0 %v816, 16
      %v883 = vpop.permute.xlu0 %882
      %884 = vrot.lane.b32.xlu0 %v817, 16
      %v885 = vpop.permute.xlu0 %884
      %886 = vrot.lane.b32.xlu0 %v818, 16
      %v887 = vpop.permute.xlu0 %886
      %888 = vrot.lane.b32.xlu0 %v819, 16
      %v889 = vpop.permute.xlu0 %888
      %890 = vrot.lane.b32.xlu0 %v820, 16
      %v891 = vpop.permute.xlu0 %890
      %892 = vrot.lane.b32.xlu0 %v821, 16
      %v893 = vpop.permute.xlu0 %892
      %894 = vrot.lane.b32.xlu0 %v822, 16
      %v895 = vpop.permute.xlu0 %894
      %896 = vrot.lane.b32.xlu0 %v823, 16
      %v897 = vpop.permute.xlu0 %896
      %898 = vrot.lane.b32.xlu0 %v824, 16
      %v899 = vpop.permute.xlu0 %898
      %900 = vrot.lane.b32.xlu0 %v825, 16
      %v901 = vpop.permute.xlu0 %900
      %902 = vrot.lane.b32.xlu0 %v826, 16
      %v903 = vpop.permute.xlu0 %902
      %904 = vrot.lane.b32.xlu0 %v827, 16
      %v905 = vpop.permute.xlu0 %904
      %906 = vrot.lane.b32.xlu0 %v828, 16
      %v907 = vpop.permute.xlu0 %906
      %908 = vrot.lane.b32.xlu0 %v829, 16
      %v909 = vpop.permute.xlu0 %908
      %910 = vrot.lane.b32.xlu0 %v830, 16
      %v911 = vpop.permute.xlu0 %910
      %912 = vrot.lane.b32.xlu0 %v831, 16
      %v913 = vpop.permute.xlu0 %912
      %914 = vrot.lane.b32.xlu0 %v832, 16
      %v915 = vpop.permute.xlu0 %914
      %916 = vrot.lane.b32.xlu0 %v833, 16
      %v917 = vpop.permute.xlu0 %916
      %918 = vrot.lane.b32.xlu0 %v834, 16
      %v919 = vpop.permute.xlu0 %918
      %920 = vrot.lane.b32.xlu0 %v835, 16
      %v921 = vpop.permute.xlu0 %920
      %922 = vrot.lane.b32.xlu0 %v836, 16
      %v923 = vpop.permute.xlu0 %922
      %924 = vrot.lane.b32.xlu0 %v837, 16
      %v925 = vpop.permute.xlu0 %924
      %926 = vrot.lane.b32.xlu0 %v838, 16
      %v927 = vpop.permute.xlu0 %926
      %928 = vrot.lane.b32.xlu0 %v839, 16
      %v929 = vpop.permute.xlu0 %928
      %930 = vrot.lane.b32.xlu0 %v840, 16
      %v931 = vpop.permute.xlu0 %930
      %932 = vrot.lane.b32.xlu0 %v841, 16
      %v933 = vpop.permute.xlu0 %932
      %934 = vrot.lane.b32.xlu0 %v842, 16
      %v935 = vpop.permute.xlu0 %934
      %936 = vrot.lane.b32.xlu0 %v843, 16
      %v937 = vpop.permute.xlu0 %936
      %938 = vrot.lane.b32.xlu0 %v844, 16
      %v939 = vpop.permute.xlu0 %938
      %940 = vrot.lane.b32.xlu0 %v845, 16
      %v941 = vpop.permute.xlu0 %940
      %vm974 = vcmask 162944
      %975 = vst.msk [vmem:[#allocation2] sm:$0xff] %vm974, %v879
      %976 = vst.msk [vmem:[#allocation2 + $0x8] sm:$0xff] %vm974, %v881
      %977 = vst.msk [vmem:[#allocation2 + $0x10] sm:$0xff] %vm974, %v883
      %978 = vst.msk [vmem:[#allocation2 + $0x18] sm:$0xff] %vm974, %v885
      %979 = vst.msk [vmem:[#allocation2 + $0x20] sm:$0xff] %vm974, %v887
      %980 = vst.msk [vmem:[#allocation2 + $0x28] sm:$0xff] %vm974, %v889
      %981 = vst.msk [vmem:[#allocation2 + $0x30] sm:$0xff] %vm974, %v891
      %982 = vst.msk [vmem:[#allocation2 + $0x38] sm:$0xff] %vm974, %v893
      %983 = vst.msk [vmem:[#allocation2 + $0x40] sm:$0xff] %vm974, %v895
      %984 = vst.msk [vmem:[#allocation2 + $0x48] sm:$0xff] %vm974, %v897
      %985 = vst.msk [vmem:[#allocation2 + $0x50] sm:$0xff] %vm974, %v899
      %986 = vst.msk [vmem:[#allocation2 + $0x58] sm:$0xff] %vm974, %v901
      %987 = vst.msk [vmem:[#allocation2 + $0x60] sm:$0xff] %vm974, %v903
      %988 = vst.msk [vmem:[#allocation2 + $0x68] sm:$0xff] %vm974, %v905
      %989 = vst.msk [vmem:[#allocation2 + $0x70] sm:$0xff] %vm974, %v907
      %990 = vst.msk [vmem:[#allocation2 + $0x78] sm:$0xff] %vm974, %v909
      %991 = vst.msk [vmem:[#allocation2 + $0x80] sm:$0xff] %vm974, %v911
      %992 = vst.msk [vmem:[#allocation2 + $0x88] sm:$0xff] %vm974, %v913
      %993 = vst.msk [vmem:[#allocation2 + $0x90] sm:$0xff] %vm974, %v915
      %994 = vst.msk [vmem:[#allocation2 + $0x98] sm:$0xff] %vm974, %v917
      %995 = vst.msk [vmem:[#allocation2 + $0xa0] sm:$0xff] %vm974, %v919
      %996 = vst.msk [vmem:[#allocation2 + $0xa8] sm:$0xff] %vm974, %v921
      %997 = vst.msk [vmem:[#allocation2 + $0xb0] sm:$0xff] %vm974, %v923
      %998 = vst.msk [vmem:[#allocation2 + $0xb8] sm:$0xff] %vm974, %v925
      %999 = vst.msk [vmem:[#allocation2 + $0xc0] sm:$0xff] %vm974, %v927
      %1000 = vst.msk [vmem:[#allocation2 + $0xc8] sm:$0xff] %vm974, %v929
      %1001 = vst.msk [vmem:[#allocation2 + $0xd0] sm:$0xff] %vm974, %v931
      %1002 = vst.msk [vmem:[#allocation2 + $0xd8] sm:$0xff] %vm974, %v933
      %1003 = vst.msk [vmem:[#allocation2 + $0xe0] sm:$0xff] %vm974, %v935
      %1004 = vst.msk [vmem:[#allocation2 + $0xe8] sm:$0xff] %vm974, %v937
      %1005 = vst.msk [vmem:[#allocation2 + $0xf0] sm:$0xff] %vm974, %v939
      %1006 = vst.msk [vmem:[#allocation2 + $0xf8] sm:$0xff] %vm974, %v941
      %v1007 = vld [vmem:[%s620 + $0x4] sm:$0xff]
      %v1008 = vld [vmem:[%s620 + $0xc] sm:$0xff]
      %v1009 = vld [vmem:[%s620 + $0x1c] sm:$0xff]
      %v1010 = vld [vmem:[%s620 + $0x24] sm:$0xff]
      %v1011 = vld [vmem:[%s620 + $0x34] sm:$0xff]
      %v1012 = vld [vmem:[%s620 + $0x3c] sm:$0xff]
      %v1013 = vld [vmem:[%s620 + $0x4c] sm:$0xff]
      %v1014 = vld [vmem:[%s620 + $0x54] sm:$0xff]
      %v1015 = vld [vmem:[%s620 + $0x64] sm:$0xff]
      %v1016 = vld [vmem:[%s620 + $0x6c] sm:$0xff]
      %v1017 = vld [vmem:[%s620 + $0x7c] sm:$0xff]
      %v1018 = vld [vmem:[%s620 + $0x84] sm:$0xff]
      %v1019 = vld [vmem:[%s620 + $0x94] sm:$0xff]
      %v1020 = vld [vmem:[%s620 + $0x9c] sm:$0xff]
      %v1021 = vld [vmem:[%s620 + $0xac] sm:$0xff]
      %v1022 = vld [vmem:[%s620 + $0xb4] sm:$0xff]
      %v1023 = vld [vmem:[%s620 + $0xc4] sm:$0xff]
      %v1024 = vld [vmem:[%s620 + $0xcc] sm:$0xff]
      %v1025 = vld [vmem:[%s620 + $0xdc] sm:$0xff]
      %v1026 = vld [vmem:[%s620 + $0xe4] sm:$0xff]
      %v1027 = vld [vmem:[%s620 + $0xf4] sm:$0xff]
      %v1028 = vld [vmem:[%s620 + $0xfc] sm:$0xff]
      %v1029 = vld [vmem:[%s620 + $0x10c] sm:$0xff]
      %v1030 = vld [vmem:[%s620 + $0x114] sm:$0xff]
      %v1031 = vld [vmem:[%s620 + $0x124] sm:$0xff]
      %v1032 = vld [vmem:[%s620 + $0x12c] sm:$0xff]
      %v1033 = vld [vmem:[%s620 + $0x13c] sm:$0xff]
      %v1034 = vld [vmem:[%s620 + $0x144] sm:$0xff]
      %v1035 = vld [vmem:[%s620 + $0x154] sm:$0xff]
      %v1036 = vld [vmem:[%s620 + $0x15c] sm:$0xff]
      %v1037 = vld [vmem:[%s620 + $0x16c] sm:$0xff]
      %v1038 = vld [vmem:[%s620 + $0x174] sm:$0xff]
      %1071 = vrot.lane.b32.xlu0 %v1007, 20
      %v1072 = vpop.permute.xlu0 %1071
      %1073 = vrot.lane.b32.xlu0 %v1008, 20
      %v1074 = vpop.permute.xlu0 %1073
      %1075 = vrot.lane.b32.xlu0 %v1009, 20
      %v1076 = vpop.permute.xlu0 %1075
      %1077 = vrot.lane.b32.xlu0 %v1010, 20
      %v1078 = vpop.permute.xlu0 %1077
      %1079 = vrot.lane.b32.xlu0 %v1011, 20
      %v1080 = vpop.permute.xlu0 %1079
      %1081 = vrot.lane.b32.xlu0 %v1012, 20
      %v1082 = vpop.permute.xlu0 %1081
      %1083 = vrot.lane.b32.xlu0 %v1013, 20
      %v1084 = vpop.permute.xlu0 %1083
      %1085 = vrot.lane.b32.xlu0 %v1014, 20
      %v1086 = vpop.permute.xlu0 %1085
      %1087 = vrot.lane.b32.xlu0 %v1015, 20
      %v1088 = vpop.permute.xlu0 %1087
      %1089 = vrot.lane.b32.xlu0 %v1016, 20
      %v1090 = vpop.permute.xlu0 %1089
      %1091 = vrot.lane.b32.xlu0 %v1017, 20
      %v1092 = vpop.permute.xlu0 %1091
      %1093 = vrot.lane.b32.xlu0 %v1018, 20
      %v1094 = vpop.permute.xlu0 %1093
      %1095 = vrot.lane.b32.xlu0 %v1019, 20
      %v1096 = vpop.permute.xlu0 %1095
      %1097 = vrot.lane.b32.xlu0 %v1020, 20
      %v1098 = vpop.permute.xlu0 %1097
      %1099 = vrot.lane.b32.xlu0 %v1021, 20
      %v1100 = vpop.permute.xlu0 %1099
      %1101 = vrot.lane.b32.xlu0 %v1022, 20
      %v1102 = vpop.permute.xlu0 %1101
      %1103 = vrot.lane.b32.xlu0 %v1023, 20
      %v1104 = vpop.permute.xlu0 %1103
      %1105 = vrot.lane.b32.xlu0 %v1024, 20
      %v1106 = vpop.permute.xlu0 %1105
      %1107 = vrot.lane.b32.xlu0 %v1025, 20
      %v1108 = vpop.permute.xlu0 %1107
      %1109 = vrot.lane.b32.xlu0 %v1026, 20
      %v1110 = vpop.permute.xlu0 %1109
      %1111 = vrot.lane.b32.xlu0 %v1027, 20
      %v1112 = vpop.permute.xlu0 %1111
      %1113 = vrot.lane.b32.xlu0 %v1028, 20
      %v1114 = vpop.permute.xlu0 %1113
      %1115 = vrot.lane.b32.xlu0 %v1029, 20
      %v1116 = vpop.permute.xlu0 %1115
      %1117 = vrot.lane.b32.xlu0 %v1030, 20
      %v1118 = vpop.permute.xlu0 %1117
      %1119 = vrot.lane.b32.xlu0 %v1031, 20
      %v1120 = vpop.permute.xlu0 %1119
      %1121 = vrot.lane.b32.xlu0 %v1032, 20
      %v1122 = vpop.permute.xlu0 %1121
      %1123 = vrot.lane.b32.xlu0 %v1033, 20
      %v1124 = vpop.permute.xlu0 %1123
      %1125 = vrot.lane.b32.xlu0 %v1034, 20
      %v1126 = vpop.permute.xlu0 %1125
      %1127 = vrot.lane.b32.xlu0 %v1035, 20
      %v1128 = vpop.permute.xlu0 %1127
      %1129 = vrot.lane.b32.xlu0 %v1036, 20
      %v1130 = vpop.permute.xlu0 %1129
      %1131 = vrot.lane.b32.xlu0 %v1037, 20
      %v1132 = vpop.permute.xlu0 %1131
      %1133 = vrot.lane.b32.xlu0 %v1038, 20
      %v1134 = vpop.permute.xlu0 %1133
      %vm1167 = vcmask 195744
      %1168 = vst.msk [vmem:[#allocation2] sm:$0xff] %vm1167, %v1072
      %1169 = vst.msk [vmem:[#allocation2 + $0x8] sm:$0xff] %vm1167, %v1074
      %1170 = vst.msk [vmem:[#allocation2 + $0x10] sm:$0xff] %vm1167, %v1076
      %1171 = vst.msk [vmem:[#allocation2 + $0x18] sm:$0xff] %vm1167, %v1078
      %1172 = vst.msk [vmem:[#allocation2 + $0x20] sm:$0xff] %vm1167, %v1080
      %1173 = vst.msk [vmem:[#allocation2 + $0x28] sm:$0xff] %vm1167, %v1082
      %1174 = vst.msk [vmem:[#allocation2 + $0x30] sm:$0xff] %vm1167, %v1084
      %1175 = vst.msk [vmem:[#allocation2 + $0x38] sm:$0xff] %vm1167, %v1086
      %1176 = vst.msk [vmem:[#allocation2 + $0x40] sm:$0xff] %vm1167, %v1088
      %1177 = vst.msk [vmem:[#allocation2 + $0x48] sm:$0xff] %vm1167, %v1090
      %1178 = vst.msk [vmem:[#allocation2 + $0x50] sm:$0xff] %vm1167, %v1092
      %1179 = vst.msk [vmem:[#allocation2 + $0x58] sm:$0xff] %vm1167, %v1094
      %1180 = vst.msk [vmem:[#allocation2 + $0x60] sm:$0xff] %vm1167, %v1096
      %1181 = vst.msk [vmem:[#allocation2 + $0x68] sm:$0xff] %vm1167, %v1098
      %1182 = vst.msk [vmem:[#allocation2 + $0x70] sm:$0xff] %vm1167, %v1100
      %1183 = vst.msk [vmem:[#allocation2 + $0x78] sm:$0xff] %vm1167, %v1102
      %1184 = vst.msk [vmem:[#allocation2 + $0x80] sm:$0xff] %vm1167, %v1104
      %1185 = vst.msk [vmem:[#allocation2 + $0x88] sm:$0xff] %vm1167, %v1106
      %1186 = vst.msk [vmem:[#allocation2 + $0x90] sm:$0xff] %vm1167, %v1108
      %1187 = vst.msk [vmem:[#allocation2 + $0x98] sm:$0xff] %vm1167, %v1110
      %1188 = vst.msk [vmem:[#allocation2 + $0xa0] sm:$0xff] %vm1167, %v1112
      %1189 = vst.msk [vmem:[#allocation2 + $0xa8] sm:$0xff] %vm1167, %v1114
      %1190 = vst.msk [vmem:[#allocation2 + $0xb0] sm:$0xff] %vm1167, %v1116
      %1191 = vst.msk [vmem:[#allocation2 + $0xb8] sm:$0xff] %vm1167, %v1118
      %1192 = vst.msk [vmem:[#allocation2 + $0xc0] sm:$0xff] %vm1167, %v1120
      %1193 = vst.msk [vmem:[#allocation2 + $0xc8] sm:$0xff] %vm1167, %v1122
      %1194 = vst.msk [vmem:[#allocation2 + $0xd0] sm:$0xff] %vm1167, %v1124
      %1195 = vst.msk [vmem:[#allocation2 + $0xd8] sm:$0xff] %vm1167, %v1126
      %1196 = vst.msk [vmem:[#allocation2 + $0xe0] sm:$0xff] %vm1167, %v1128
      %1197 = vst.msk [vmem:[#allocation2 + $0xe8] sm:$0xff] %vm1167, %v1130
      %1198 = vst.msk [vmem:[#allocation2 + $0xf0] sm:$0xff] %vm1167, %v1132
      %1199 = vst.msk [vmem:[#allocation2 + $0xf8] sm:$0xff] %vm1167, %v1134
      %s1200 = scalar_lea.vmem %s164, 96
      %v1201 = vld [vmem:[%s1200] sm:$0xff]
      %v1202 = vld [vmem:[%s1200 + $0x8] sm:$0xff]
      %v1203 = vld [vmem:[%s1200 + $0x18] sm:$0xff]
      %v1204 = vld [vmem:[%s1200 + $0x20] sm:$0xff]
      %v1205 = vld [vmem:[%s1200 + $0x30] sm:$0xff]
      %v1206 = vld [vmem:[%s1200 + $0x38] sm:$0xff]
      %v1207 = vld [vmem:[%s1200 + $0x48] sm:$0xff]
      %v1208 = vld [vmem:[%s1200 + $0x50] sm:$0xff]
      %v1209 = vld [vmem:[%s1200 + $0x60] sm:$0xff]
      %v1210 = vld [vmem:[%s1200 + $0x68] sm:$0xff]
      %v1211 = vld [vmem:[%s1200 + $0x78] sm:$0xff]
      %v1212 = vld [vmem:[%s1200 + $0x80] sm:$0xff]
      %v1213 = vld [vmem:[%s1200 + $0x90] sm:$0xff]
      %v1214 = vld [vmem:[%s1200 + $0x98] sm:$0xff]
      %v1215 = vld [vmem:[%s1200 + $0xa8] sm:$0xff]
      %v1216 = vld [vmem:[%s1200 + $0xb0] sm:$0xff]
      %v1217 = vld [vmem:[%s1200 + $0xc0] sm:$0xff]
      %v1218 = vld [vmem:[%s1200 + $0xc8] sm:$0xff]
      %v1219 = vld [vmem:[%s1200 + $0xd8] sm:$0xff]
      %v1220 = vld [vmem:[%s1200 + $0xe0] sm:$0xff]
      %v1221 = vld [vmem:[%s1200 + $0xf0] sm:$0xff]
      %v1222 = vld [vmem:[%s1200 + $0xf8] sm:$0xff]
      %v1223 = vld [vmem:[%s1200 + $0x108] sm:$0xff]
      %v1224 = vld [vmem:[%s1200 + $0x110] sm:$0xff]
      %v1225 = vld [vmem:[%s1200 + $0x120] sm:$0xff]
      %v1226 = vld [vmem:[%s1200 + $0x128] sm:$0xff]
      %v1227 = vld [vmem:[%s1200 + $0x138] sm:$0xff]
      %v1228 = vld [vmem:[%s1200 + $0x140] sm:$0xff]
      %v1229 = vld [vmem:[%s1200 + $0x150] sm:$0xff]
      %v1230 = vld [vmem:[%s1200 + $0x158] sm:$0xff]
      %v1231 = vld [vmem:[%s1200 + $0x168] sm:$0xff]
      %v1232 = vld [vmem:[%s1200 + $0x170] sm:$0xff]
      %1265 = vrot.lane.b32.xlu0 %v1201, 24
      %v1266 = vpop.permute.xlu0 %1265
      %1267 = vrot.lane.b32.xlu0 %v1202, 24
      %v1268 = vpop.permute.xlu0 %1267
      %1269 = vrot.lane.b32.xlu0 %v1203, 24
      %v1270 = vpop.permute.xlu0 %1269
      %1271 = vrot.lane.b32.xlu0 %v1204, 24
      %v1272 = vpop.permute.xlu0 %1271
      %1273 = vrot.lane.b32.xlu0 %v1205, 24
      %v1274 = vpop.permute.xlu0 %1273
      %1275 = vrot.lane.b32.xlu0 %v1206, 24
      %v1276 = vpop.permute.xlu0 %1275
      %1277 = vrot.lane.b32.xlu0 %v1207, 24
      %v1278 = vpop.permute.xlu0 %1277
      %1279 = vrot.lane.b32.xlu0 %v1208, 24
      %v1280 = vpop.permute.xlu0 %1279
      %1281 = vrot.lane.b32.xlu0 %v1209, 24
      %v1282 = vpop.permute.xlu0 %1281
      %1283 = vrot.lane.b32.xlu0 %v1210, 24
      %v1284 = vpop.permute.xlu0 %1283
      %1285 = vrot.lane.b32.xlu0 %v1211, 24
      %v1286 = vpop.permute.xlu0 %1285
      %1287 = vrot.lane.b32.xlu0 %v1212, 24
      %v1288 = vpop.permute.xlu0 %1287
      %1289 = vrot.lane.b32.xlu0 %v1213, 24
      %v1290 = vpop.permute.xlu0 %1289
      %1291 = vrot.lane.b32.xlu0 %v1214, 24
      %v1292 = vpop.permute.xlu0 %1291
      %1293 = vrot.lane.b32.xlu0 %v1215, 24
      %v1294 = vpop.permute.xlu0 %1293
      %1295 = vrot.lane.b32.xlu0 %v1216, 24
      %v1296 = vpop.permute.xlu0 %1295
      %1297 = vrot.lane.b32.xlu0 %v1217, 24
      %v1298 = vpop.permute.xlu0 %1297
      %1299 = vrot.lane.b32.xlu0 %v1218, 24
      %v1300 = vpop.permute.xlu0 %1299
      %1301 = vrot.lane.b32.xlu0 %v1219, 24
      %v1302 = vpop.permute.xlu0 %1301
      %1303 = vrot.lane.b32.xlu0 %v1220, 24
      %v1304 = vpop.permute.xlu0 %1303
      %1305 = vrot.lane.b32.xlu0 %v1221, 24
      %v1306 = vpop.permute.xlu0 %1305
      %1307 = vrot.lane.b32.xlu0 %v1222, 24
      %v1308 = vpop.permute.xlu0 %1307
      %1309 = vrot.lane.b32.xlu0 %v1223, 24
      %v1310 = vpop.permute.xlu0 %1309
      %1311 = vrot.lane.b32.xlu0 %v1224, 24
      %v1312 = vpop.permute.xlu0 %1311
      %1313 = vrot.lane.b32.xlu0 %v1225, 24
      %v1314 = vpop.permute.xlu0 %1313
      %1315 = vrot.lane.b32.xlu0 %v1226, 24
      %v1316 = vpop.permute.xlu0 %1315
      %1317 = vrot.lane.b32.xlu0 %v1227, 24
      %v1318 = vpop.permute.xlu0 %1317
      %1319 = vrot.lane.b32.xlu0 %v1228, 24
      %v1320 = vpop.permute.xlu0 %1319
      %1321 = vrot.lane.b32.xlu0 %v1229, 24
      %v1322 = vpop.permute.xlu0 %1321
      %1323 = vrot.lane.b32.xlu0 %v1230, 24
      %v1324 = vpop.permute.xlu0 %1323
      %1325 = vrot.lane.b32.xlu0 %v1231, 24
      %v1326 = vpop.permute.xlu0 %1325
      %1327 = vrot.lane.b32.xlu0 %v1232, 24
      %v1328 = vpop.permute.xlu0 %1327
      %vm1361 = vcmask 228544
      %1362 = vst.msk [vmem:[#allocation2] sm:$0xff] %vm1361, %v1266
      %1363 = vst.msk [vmem:[#allocation2 + $0x8] sm:$0xff] %vm1361, %v1268
      %1364 = vst.msk [vmem:[#allocation2 + $0x10] sm:$0xff] %vm1361, %v1270
      %1365 = vst.msk [vmem:[#allocation2 + $0x18] sm:$0xff] %vm1361, %v1272
      %1366 = vst.msk [vmem:[#allocation2 + $0x20] sm:$0xff] %vm1361, %v1274
      %1367 = vst.msk [vmem:[#allocation2 + $0x28] sm:$0xff] %vm1361, %v1276
      %1368 = vst.msk [vmem:[#allocation2 + $0x30] sm:$0xff] %vm1361, %v1278
      %1369 = vst.msk [vmem:[#allocation2 + $0x38] sm:$0xff] %vm1361, %v1280
      %1370 = vst.msk [vmem:[#allocation2 + $0x40] sm:$0xff] %vm1361, %v1282
      %1371 = vst.msk [vmem:[#allocation2 + $0x48] sm:$0xff] %vm1361, %v1284
      %1372 = vst.msk [vmem:[#allocation2 + $0x50] sm:$0xff] %vm1361, %v1286
      %1373 = vst.msk [vmem:[#allocation2 + $0x58] sm:$0xff] %vm1361, %v1288
      %1374 = vst.msk [vmem:[#allocation2 + $0x60] sm:$0xff] %vm1361, %v1290
      %1375 = vst.msk [vmem:[#allocation2 + $0x68] sm:$0xff] %vm1361, %v1292
      %1376 = vst.msk [vmem:[#allocation2 + $0x70] sm:$0xff] %vm1361, %v1294
      %1377 = vst.msk [vmem:[#allocation2 + $0x78] sm:$0xff] %vm1361, %v1296
      %1378 = vst.msk [vmem:[#allocation2 + $0x80] sm:$0xff] %vm1361, %v1298
      %1379 = vst.msk [vmem:[#allocation2 + $0x88] sm:$0xff] %vm1361, %v1300
      %1380 = vst.msk [vmem:[#allocation2 + $0x90] sm:$0xff] %vm1361, %v1302
      %1381 = vst.msk [vmem:[#allocation2 + $0x98] sm:$0xff] %vm1361, %v1304
      %1382 = vst.msk [vmem:[#allocation2 + $0xa0] sm:$0xff] %vm1361, %v1306
      %1383 = vst.msk [vmem:[#allocation2 + $0xa8] sm:$0xff] %vm1361, %v1308
      %1384 = vst.msk [vmem:[#allocation2 + $0xb0] sm:$0xff] %vm1361, %v1310
      %1385 = vst.msk [vmem:[#allocation2 + $0xb8] sm:$0xff] %vm1361, %v1312
      %1386 = vst.msk [vmem:[#allocation2 + $0xc0] sm:$0xff] %vm1361, %v1314
      %1387 = vst.msk [vmem:[#allocation2 + $0xc8] sm:$0xff] %vm1361, %v1316
      %1388 = vst.msk [vmem:[#allocation2 + $0xd0] sm:$0xff] %vm1361, %v1318
      %1389 = vst.msk [vmem:[#allocation2 + $0xd8] sm:$0xff] %vm1361, %v1320
      %1390 = vst.msk [vmem:[#allocation2 + $0xe0] sm:$0xff] %vm1361, %v1322
      %1391 = vst.msk [vmem:[#allocation2 + $0xe8] sm:$0xff] %vm1361, %v1324
      %1392 = vst.msk [vmem:[#allocation2 + $0xf0] sm:$0xff] %vm1361, %v1326
      %1393 = vst.msk [vmem:[#allocation2 + $0xf8] sm:$0xff] %vm1361, %v1328
      %v1394 = vld [vmem:[%s1200 + $0x2] sm:$0xff]
      %v1395 = vld [vmem:[%s1200 + $0xa] sm:$0xff]
      %v1396 = vld [vmem:[%s1200 + $0x1a] sm:$0xff]
      %v1397 = vld [vmem:[%s1200 + $0x22] sm:$0xff]
      %v1398 = vld [vmem:[%s1200 + $0x32] sm:$0xff]
      %v1399 = vld [vmem:[%s1200 + $0x3a] sm:$0xff]
      %v1400 = vld [vmem:[%s1200 + $0x4a] sm:$0xff]
      %v1401 = vld [vmem:[%s1200 + $0x52] sm:$0xff]
      %v1402 = vld [vmem:[%s1200 + $0x62] sm:$0xff]
      %v1403 = vld [vmem:[%s1200 + $0x6a] sm:$0xff]
      %v1404 = vld [vmem:[%s1200 + $0x7a] sm:$0xff]
      %v1405 = vld [vmem:[%s1200 + $0x82] sm:$0xff]
      %v1406 = vld [vmem:[%s1200 + $0x92] sm:$0xff]
      %v1407 = vld [vmem:[%s1200 + $0x9a] sm:$0xff]
      %v1408 = vld [vmem:[%s1200 + $0xaa] sm:$0xff]
      %v1409 = vld [vmem:[%s1200 + $0xb2] sm:$0xff]
      %v1410 = vld [vmem:[%s1200 + $0xc2] sm:$0xff]
      %v1411 = vld [vmem:[%s1200 + $0xca] sm:$0xff]
      %v1412 = vld [vmem:[%s1200 + $0xda] sm:$0xff]
      %v1413 = vld [vmem:[%s1200 + $0xe2] sm:$0xff]
      %v1414 = vld [vmem:[%s1200 + $0xf2] sm:$0xff]
      %v1415 = vld [vmem:[%s1200 + $0xfa] sm:$0xff]
      %v1416 = vld [vmem:[%s1200 + $0x10a] sm:$0xff]
      %v1417 = vld [vmem:[%s1200 + $0x112] sm:$0xff]
      %v1418 = vld [vmem:[%s1200 + $0x122] sm:$0xff]
      %v1419 = vld [vmem:[%s1200 + $0x12a] sm:$0xff]
      %v1420 = vld [vmem:[%s1200 + $0x13a] sm:$0xff]
      %v1421 = vld [vmem:[%s1200 + $0x142] sm:$0xff]
      %v1422 = vld [vmem:[%s1200 + $0x152] sm:$0xff]
      %v1423 = vld [vmem:[%s1200 + $0x15a] sm:$0xff]
      %v1424 = vld [vmem:[%s1200 + $0x16a] sm:$0xff]
      %v1425 = vld [vmem:[%s1200 + $0x172] sm:$0xff]
      %1458 = vrot.lane.b32.xlu0 %v1394, 28
      %v1459 = vpop.permute.xlu0 %1458
      %1460 = vrot.lane.b32.xlu0 %v1395, 28
      %v1461 = vpop.permute.xlu0 %1460
      %1462 = vrot.lane.b32.xlu0 %v1396, 28
      %v1463 = vpop.permute.xlu0 %1462
      %1464 = vrot.lane.b32.xlu0 %v1397, 28
      %v1465 = vpop.permute.xlu0 %1464
      %1466 = vrot.lane.b32.xlu0 %v1398, 28
      %v1467 = vpop.permute.xlu0 %1466
      %1468 = vrot.lane.b32.xlu0 %v1399, 28
      %v1469 = vpop.permute.xlu0 %1468
      %1470 = vrot.lane.b32.xlu0 %v1400, 28
      %v1471 = vpop.permute.xlu0 %1470
      %1472 = vrot.lane.b32.xlu0 %v1401, 28
      %v1473 = vpop.permute.xlu0 %1472
      %1474 = vrot.lane.b32.xlu0 %v1402, 28
      %v1475 = vpop.permute.xlu0 %1474
      %1476 = vrot.lane.b32.xlu0 %v1403, 28
      %v1477 = vpop.permute.xlu0 %1476
      %1478 = vrot.lane.b32.xlu0 %v1404, 28
      %v1479 = vpop.permute.xlu0 %1478
      %1480 = vrot.lane.b32.xlu0 %v1405, 28
      %v1481 = vpop.permute.xlu0 %1480
      %1482 = vrot.lane.b32.xlu0 %v1406, 28
      %v1483 = vpop.permute.xlu0 %1482
      %1484 = vrot.lane.b32.xlu0 %v1407, 28
      %v1485 = vpop.permute.xlu0 %1484
      %1486 = vrot.lane.b32.xlu0 %v1408, 28
      %v1487 = vpop.permute.xlu0 %1486
      %1488 = vrot.lane.b32.xlu0 %v1409, 28
      %v1489 = vpop.permute.xlu0 %1488
      %1490 = vrot.lane.b32.xlu0 %v1410, 28
      %v1491 = vpop.permute.xlu0 %1490
      %1492 = vrot.lane.b32.xlu0 %v1411, 28
      %v1493 = vpop.permute.xlu0 %1492
      %1494 = vrot.lane.b32.xlu0 %v1412, 28
      %v1495 = vpop.permute.xlu0 %1494
      %1496 = vrot.lane.b32.xlu0 %v1413, 28
      %v1497 = vpop.permute.xlu0 %1496
      %1498 = vrot.lane.b32.xlu0 %v1414, 28
      %v1499 = vpop.permute.xlu0 %1498
      %1500 = vrot.lane.b32.xlu0 %v1415, 28
      %v1501 = vpop.permute.xlu0 %1500
      %1502 = vrot.lane.b32.xlu0 %v1416, 28
      %v1503 = vpop.permute.xlu0 %1502
      %1504 = vrot.lane.b32.xlu0 %v1417, 28
      %v1505 = vpop.permute.xlu0 %1504
      %1506 = vrot.lane.b32.xlu0 %v1418, 28
      %v1507 = vpop.permute.xlu0 %1506
      %1508 = vrot.lane.b32.xlu0 %v1419, 28
      %v1509 = vpop.permute.xlu0 %1508
      %1510 = vrot.lane.b32.xlu0 %v1420, 28
      %v1511 = vpop.permute.xlu0 %1510
      %1512 = vrot.lane.b32.xlu0 %v1421, 28
      %v1513 = vpop.permute.xlu0 %1512
      %1514 = vrot.lane.b32.xlu0 %v1422, 28
      %v1515 = vpop.permute.xlu0 %1514
      %1516 = vrot.lane.b32.xlu0 %v1423, 28
      %v1517 = vpop.permute.xlu0 %1516
      %1518 = vrot.lane.b32.xlu0 %v1424, 28
      %v1519 = vpop.permute.xlu0 %1518
      %1520 = vrot.lane.b32.xlu0 %v1425, 28
      %v1521 = vpop.permute.xlu0 %1520
      %vm1554 = vcmask 261344
      %1555 = vst.msk [vmem:[#allocation2] sm:$0xff] %vm1554, %v1459
      %1556 = vst.msk [vmem:[#allocation2 + $0x8] sm:$0xff] %vm1554, %v1461
      %1557 = vst.msk [vmem:[#allocation2 + $0x10] sm:$0xff] %vm1554, %v1463
      %1558 = vst.msk [vmem:[#allocation2 + $0x18] sm:$0xff] %vm1554, %v1465
      %1559 = vst.msk [vmem:[#allocation2 + $0x20] sm:$0xff] %vm1554, %v1467
      %1560 = vst.msk [vmem:[#allocation2 + $0x28] sm:$0xff] %vm1554, %v1469
      %1561 = vst.msk [vmem:[#allocation2 + $0x30] sm:$0xff] %vm1554, %v1471
      %1562 = vst.msk [vmem:[#allocation2 + $0x38] sm:$0xff] %vm1554, %v1473
      %1563 = vst.msk [vmem:[#allocation2 + $0x40] sm:$0xff] %vm1554, %v1475
      %1564 = vst.msk [vmem:[#allocation2 + $0x48] sm:$0xff] %vm1554, %v1477
      %1565 = vst.msk [vmem:[#allocation2 + $0x50] sm:$0xff] %vm1554, %v1479
      %1566 = vst.msk [vmem:[#allocation2 + $0x58] sm:$0xff] %vm1554, %v1481
      %1567 = vst.msk [vmem:[#allocation2 + $0x60] sm:$0xff] %vm1554, %v1483
      %1568 = vst.msk [vmem:[#allocation2 + $0x68] sm:$0xff] %vm1554, %v1485
      %1569 = vst.msk [vmem:[#allocation2 + $0x70] sm:$0xff] %vm1554, %v1487
      %1570 = vst.msk [vmem:[#allocation2 + $0x78] sm:$0xff] %vm1554, %v1489
      %1571 = vst.msk [vmem:[#allocation2 + $0x80] sm:$0xff] %vm1554, %v1491
      %1572 = vst.msk [vmem:[#allocation2 + $0x88] sm:$0xff] %vm1554, %v1493
      %1573 = vst.msk [vmem:[#allocation2 + $0x90] sm:$0xff] %vm1554, %v1495
      %1574 = vst.msk [vmem:[#allocation2 + $0x98] sm:$0xff] %vm1554, %v1497
      %1575 = vst.msk [vmem:[#allocation2 + $0xa0] sm:$0xff] %vm1554, %v1499
      %1576 = vst.msk [vmem:[#allocation2 + $0xa8] sm:$0xff] %vm1554, %v1501
      %1577 = vst.msk [vmem:[#allocation2 + $0xb0] sm:$0xff] %vm1554, %v1503
      %1578 = vst.msk [vmem:[#allocation2 + $0xb8] sm:$0xff] %vm1554, %v1505
      %1579 = vst.msk [vmem:[#allocation2 + $0xc0] sm:$0xff] %vm1554, %v1507
      %1580 = vst.msk [vmem:[#allocation2 + $0xc8] sm:$0xff] %vm1554, %v1509
      %1581 = vst.msk [vmem:[#allocation2 + $0xd0] sm:$0xff] %vm1554, %v1511
      %1582 = vst.msk [vmem:[#allocation2 + $0xd8] sm:$0xff] %vm1554, %v1513
      %1583 = vst.msk [vmem:[#allocation2 + $0xe0] sm:$0xff] %vm1554, %v1515
      %1584 = vst.msk [vmem:[#allocation2 + $0xe8] sm:$0xff] %vm1554, %v1517
      %1585 = vst.msk [vmem:[#allocation2 + $0xf0] sm:$0xff] %vm1554, %v1519
      %1586 = vst.msk [vmem:[#allocation2 + $0xf8] sm:$0xff] %vm1554, %v1521
      %v1587 = vld [vmem:[%s1200 + $0x4] sm:$0xff]
      %v1588 = vld [vmem:[%s1200 + $0xc] sm:$0xff]
      %v1589 = vld [vmem:[%s1200 + $0x1c] sm:$0xff]
      %v1590 = vld [vmem:[%s1200 + $0x24] sm:$0xff]
      %v1591 = vld [vmem:[%s1200 + $0x34] sm:$0xff]
      %v1592 = vld [vmem:[%s1200 + $0x3c] sm:$0xff]
      %v1593 = vld [vmem:[%s1200 + $0x4c] sm:$0xff]
      %v1594 = vld [vmem:[%s1200 + $0x54] sm:$0xff]
      %v1595 = vld [vmem:[%s1200 + $0x64] sm:$0xff]
      %v1596 = vld [vmem:[%s1200 + $0x6c] sm:$0xff]
      %v1597 = vld [vmem:[%s1200 + $0x7c] sm:$0xff]
      %v1598 = vld [vmem:[%s1200 + $0x84] sm:$0xff]
      %v1599 = vld [vmem:[%s1200 + $0x94] sm:$0xff]
      %v1600 = vld [vmem:[%s1200 + $0x9c] sm:$0xff]
      %v1601 = vld [vmem:[%s1200 + $0xac] sm:$0xff]
      %v1602 = vld [vmem:[%s1200 + $0xb4] sm:$0xff]
      %v1603 = vld [vmem:[%s1200 + $0xc4] sm:$0xff]
      %v1604 = vld [vmem:[%s1200 + $0xcc] sm:$0xff]
      %v1605 = vld [vmem:[%s1200 + $0xdc] sm:$0xff]
      %v1606 = vld [vmem:[%s1200 + $0xe4] sm:$0xff]
      %v1607 = vld [vmem:[%s1200 + $0xf4] sm:$0xff]
      %v1608 = vld [vmem:[%s1200 + $0xfc] sm:$0xff]
      %v1609 = vld [vmem:[%s1200 + $0x10c] sm:$0xff]
      %v1610 = vld [vmem:[%s1200 + $0x114] sm:$0xff]
      %v1611 = vld [vmem:[%s1200 + $0x124] sm:$0xff]
      %v1612 = vld [vmem:[%s1200 + $0x12c] sm:$0xff]
      %v1613 = vld [vmem:[%s1200 + $0x13c] sm:$0xff]
      %v1614 = vld [vmem:[%s1200 + $0x144] sm:$0xff]
      %v1615 = vld [vmem:[%s1200 + $0x154] sm:$0xff]
      %v1616 = vld [vmem:[%s1200 + $0x15c] sm:$0xff]
      %v1617 = vld [vmem:[%s1200 + $0x16c] sm:$0xff]
      %v1618 = vld [vmem:[%s1200 + $0x174] sm:$0xff]
      %1651 = vrot.lane.b32.xlu0 %v1587, 32
      %v1652 = vpop.permute.xlu0 %1651
      %1653 = vrot.lane.b32.xlu0 %v1588, 32
      %v1654 = vpop.permute.xlu0 %1653
      %1655 = vrot.lane.b32.xlu0 %v1589, 32
      %v1656 = vpop.permute.xlu0 %1655
      %1657 = vrot.lane.b32.xlu0 %v1590, 32
      %v1658 = vpop.permute.xlu0 %1657
      %1659 = vrot.lane.b32.xlu0 %v1591, 32
      %v1660 = vpop.permute.xlu0 %1659
      %1661 = vrot.lane.b32.xlu0 %v1592, 32
      %v1662 = vpop.permute.xlu0 %1661
      %1663 = vrot.lane.b32.xlu0 %v1593, 32
      %v1664 = vpop.permute.xlu0 %1663
      %1665 = vrot.lane.b32.xlu0 %v1594, 32
      %v1666 = vpop.permute.xlu0 %1665
      %1667 = vrot.lane.b32.xlu0 %v1595, 32
      %v1668 = vpop.permute.xlu0 %1667
      %1669 = vrot.lane.b32.xlu0 %v1596, 32
      %v1670 = vpop.permute.xlu0 %1669
      %1671 = vrot.lane.b32.xlu0 %v1597, 32
      %v1672 = vpop.permute.xlu0 %1671
      %1673 = vrot.lane.b32.xlu0 %v1598, 32
      %v1674 = vpop.permute.xlu0 %1673
      %1675 = vrot.lane.b32.xlu0 %v1599, 32
      %v1676 = vpop.permute.xlu0 %1675
      %1677 = vrot.lane.b32.xlu0 %v1600, 32
      %v1678 = vpop.permute.xlu0 %1677
      %1679 = vrot.lane.b32.xlu0 %v1601, 32
      %v1680 = vpop.permute.xlu0 %1679
      %1681 = vrot.lane.b32.xlu0 %v1602, 32
      %v1682 = vpop.permute.xlu0 %1681
      %1683 = vrot.lane.b32.xlu0 %v1603, 32
      %v1684 = vpop.permute.xlu0 %1683
      %1685 = vrot.lane.b32.xlu0 %v1604, 32
      %v1686 = vpop.permute.xlu0 %1685
      %1687 = vrot.lane.b32.xlu0 %v1605, 32
      %v1688 = vpop.permute.xlu0 %1687
      %1689 = vrot.lane.b32.xlu0 %v1606, 32
      %v1690 = vpop.permute.xlu0 %1689
      %1691 = vrot.lane.b32.xlu0 %v1607, 32
      %v1692 = vpop.permute.xlu0 %1691
      %1693 = vrot.lane.b32.xlu0 %v1608, 32
      %v1694 = vpop.permute.xlu0 %1693
      %1695 = vrot.lane.b32.xlu0 %v1609, 32
      %v1696 = vpop.permute.xlu0 %1695
      %1697 = vrot.lane.b32.xlu0 %v1610, 32
      %v1698 = vpop.permute.xlu0 %1697
      %1699 = vrot.lane.b32.xlu0 %v1611, 32
      %v1700 = vpop.permute.xlu0 %1699
      %1701 = vrot.lane.b32.xlu0 %v1612, 32
      %v1702 = vpop.permute.xlu0 %1701
      %1703 = vrot.lane.b32.xlu0 %v1613, 32
      %v1704 = vpop.permute.xlu0 %1703
      %1705 = vrot.lane.b32.xlu0 %v1614, 32
      %v1706 = vpop.permute.xlu0 %1705
      %1707 = vrot.lane.b32.xlu0 %v1615, 32
      %v1708 = vpop.permute.xlu0 %1707
      %1709 = vrot.lane.b32.xlu0 %v1616, 32
      %v1710 = vpop.permute.xlu0 %1709
      %1711 = vrot.lane.b32.xlu0 %v1617, 32
      %v1712 = vpop.permute.xlu0 %1711
      %1713 = vrot.lane.b32.xlu0 %v1618, 32
      %v1714 = vpop.permute.xlu0 %1713
      %vm1747 = vcmask 294144
      %1748 = vst.msk [vmem:[#allocation2] sm:$0xff] %vm1747, %v1652
      %1749 = vst.msk [vmem:[#allocation2 + $0x8] sm:$0xff] %vm1747, %v1654
      %1750 = vst.msk [vmem:[#allocation2 + $0x10] sm:$0xff] %vm1747, %v1656
      %1751 = vst.msk [vmem:[#allocation2 + $0x18] sm:$0xff] %vm1747, %v1658
      %1752 = vst.msk [vmem:[#allocation2 + $0x20] sm:$0xff] %vm1747, %v1660
      %1753 = vst.msk [vmem:[#allocation2 + $0x28] sm:$0xff] %vm1747, %v1662
      %1754 = vst.msk [vmem:[#allocation2 + $0x30] sm:$0xff] %vm1747, %v1664
      %1755 = vst.msk [vmem:[#allocation2 + $0x38] sm:$0xff] %vm1747, %v1666
      %1756 = vst.msk [vmem:[#allocation2 + $0x40] sm:$0xff] %vm1747, %v1668
      %1757 = vst.msk [vmem:[#allocation2 + $0x48] sm:$0xff] %vm1747, %v1670
      %1758 = vst.msk [vmem:[#allocation2 + $0x50] sm:$0xff] %vm1747, %v1672
      %1759 = vst.msk [vmem:[#allocation2 + $0x58] sm:$0xff] %vm1747, %v1674
      %1760 = vst.msk [vmem:[#allocation2 + $0x60] sm:$0xff] %vm1747, %v1676
      %1761 = vst.msk [vmem:[#allocation2 + $0x68] sm:$0xff] %vm1747, %v1678
      %1762 = vst.msk [vmem:[#allocation2 + $0x70] sm:$0xff] %vm1747, %v1680
      %1763 = vst.msk [vmem:[#allocation2 + $0x78] sm:$0xff] %vm1747, %v1682
      %1764 = vst.msk [vmem:[#allocation2 + $0x80] sm:$0xff] %vm1747, %v1684
      %1765 = vst.msk [vmem:[#allocation2 + $0x88] sm:$0xff] %vm1747, %v1686
      %1766 = vst.msk [vmem:[#allocation2 + $0x90] sm:$0xff] %vm1747, %v1688
      %1767 = vst.msk [vmem:[#allocation2 + $0x98] sm:$0xff] %vm1747, %v1690
      %1768 = vst.msk [vmem:[#allocation2 + $0xa0] sm:$0xff] %vm1747, %v1692
      %1769 = vst.msk [vmem:[#allocation2 + $0xa8] sm:$0xff] %vm1747, %v1694
      %1770 = vst.msk [vmem:[#allocation2 + $0xb0] sm:$0xff] %vm1747, %v1696
      %1771 = vst.msk [vmem:[#allocation2 + $0xb8] sm:$0xff] %vm1747, %v1698
      %1772 = vst.msk [vmem:[#allocation2 + $0xc0] sm:$0xff] %vm1747, %v1700
      %1773 = vst.msk [vmem:[#allocation2 + $0xc8] sm:$0xff] %vm1747, %v1702
      %1774 = vst.msk [vmem:[#allocation2 + $0xd0] sm:$0xff] %vm1747, %v1704
      %1775 = vst.msk [vmem:[#allocation2 + $0xd8] sm:$0xff] %vm1747, %v1706
      %1776 = vst.msk [vmem:[#allocation2 + $0xe0] sm:$0xff] %vm1747, %v1708
      %1777 = vst.msk [vmem:[#allocation2 + $0xe8] sm:$0xff] %vm1747, %v1710
      %1778 = vst.msk [vmem:[#allocation2 + $0xf0] sm:$0xff] %vm1747, %v1712
      %1779 = vst.msk [vmem:[#allocation2 + $0xf8] sm:$0xff] %vm1747, %v1714
      %s1780 = scalar_lea.vmem %s164, 24
      %v1781 = vld [vmem:[%s1780 + $0x1] sm:$0xff]
      %v1782 = vld [vmem:[%s1780 + $0x9] sm:$0xff]
      %v1783 = vld [vmem:[%s1780 + $0x19] sm:$0xff]
      %v1784 = vld [vmem:[%s1780 + $0x21] sm:$0xff]
      %v1785 = vld [vmem:[%s1780 + $0x31] sm:$0xff]
      %v1786 = vld [vmem:[%s1780 + $0x39] sm:$0xff]
      %v1787 = vld [vmem:[%s1780 + $0x49] sm:$0xff]
      %v1788 = vld [vmem:[%s1780 + $0x51] sm:$0xff]
      %v1789 = vld [vmem:[%s1780 + $0x61] sm:$0xff]
      %v1790 = vld [vmem:[%s1780 + $0x69] sm:$0xff]
      %v1791 = vld [vmem:[%s1780 + $0x79] sm:$0xff]
      %v1792 = vld [vmem:[%s1780 + $0x81] sm:$0xff]
      %v1793 = vld [vmem:[%s1780 + $0x91] sm:$0xff]
      %v1794 = vld [vmem:[%s1780 + $0x99] sm:$0xff]
      %v1795 = vld [vmem:[%s1780 + $0xa9] sm:$0xff]
      %v1796 = vld [vmem:[%s1780 + $0xb1] sm:$0xff]
      %v1797 = vld [vmem:[%s1780 + $0xc1] sm:$0xff]
      %v1798 = vld [vmem:[%s1780 + $0xc9] sm:$0xff]
      %v1799 = vld [vmem:[%s1780 + $0xd9] sm:$0xff]
      %v1800 = vld [vmem:[%s1780 + $0xe1] sm:$0xff]
      %v1801 = vld [vmem:[%s1780 + $0xf1] sm:$0xff]
      %v1802 = vld [vmem:[%s1780 + $0xf9] sm:$0xff]
      %v1803 = vld [vmem:[%s1780 + $0x109] sm:$0xff]
      %v1804 = vld [vmem:[%s1780 + $0x111] sm:$0xff]
      %v1805 = vld [vmem:[%s1780 + $0x121] sm:$0xff]
      %v1806 = vld [vmem:[%s1780 + $0x129] sm:$0xff]
      %v1807 = vld [vmem:[%s1780 + $0x139] sm:$0xff]
      %v1808 = vld [vmem:[%s1780 + $0x141] sm:$0xff]
      %v1809 = vld [vmem:[%s1780 + $0x151] sm:$0xff]
      %v1810 = vld [vmem:[%s1780 + $0x159] sm:$0xff]
      %v1811 = vld [vmem:[%s1780 + $0x169] sm:$0xff]
      %v1812 = vld [vmem:[%s1780 + $0x171] sm:$0xff]
      %1845 = vrot.lane.b32.xlu0 %v1781, 36
      %v1846 = vpop.permute.xlu0 %1845
      %1847 = vrot.lane.b32.xlu0 %v1782, 36
      %v1848 = vpop.permute.xlu0 %1847
      %1849 = vrot.lane.b32.xlu0 %v1783, 36
      %v1850 = vpop.permute.xlu0 %1849
      %1851 = vrot.lane.b32.xlu0 %v1784, 36
      %v1852 = vpop.permute.xlu0 %1851
      %1853 = vrot.lane.b32.xlu0 %v1785, 36
      %v1854 = vpop.permute.xlu0 %1853
      %1855 = vrot.lane.b32.xlu0 %v1786, 36
      %v1856 = vpop.permute.xlu0 %1855
      %1857 = vrot.lane.b32.xlu0 %v1787, 36
      %v1858 = vpop.permute.xlu0 %1857
      %1859 = vrot.lane.b32.xlu0 %v1788, 36
      %v1860 = vpop.permute.xlu0 %1859
      %1861 = vrot.lane.b32.xlu0 %v1789, 36
      %v1862 = vpop.permute.xlu0 %1861
      %1863 = vrot.lane.b32.xlu0 %v1790, 36
      %v1864 = vpop.permute.xlu0 %1863
      %1865 = vrot.lane.b32.xlu0 %v1791, 36
      %v1866 = vpop.permute.xlu0 %1865
      %1867 = vrot.lane.b32.xlu0 %v1792, 36
      %v1868 = vpop.permute.xlu0 %1867
      %1869 = vrot.lane.b32.xlu0 %v1793, 36
      %v1870 = vpop.permute.xlu0 %1869
      %1871 = vrot.lane.b32.xlu0 %v1794, 36
      %v1872 = vpop.permute.xlu0 %1871
      %1873 = vrot.lane.b32.xlu0 %v1795, 36
      %v1874 = vpop.permute.xlu0 %1873
      %1875 = vrot.lane.b32.xlu0 %v1796, 36
      %v1876 = vpop.permute.xlu0 %1875
      %1877 = vrot.lane.b32.xlu0 %v1797, 36
      %v1878 = vpop.permute.xlu0 %1877
      %1879 = vrot.lane.b32.xlu0 %v1798, 36
      %v1880 = vpop.permute.xlu0 %1879
      %1881 = vrot.lane.b32.xlu0 %v1799, 36
      %v1882 = vpop.permute.xlu0 %1881
      %1883 = vrot.lane.b32.xlu0 %v1800, 36
      %v1884 = vpop.permute.xlu0 %1883
      %1885 = vrot.lane.b32.xlu0 %v1801, 36
      %v1886 = vpop.permute.xlu0 %1885
      %1887 = vrot.lane.b32.xlu0 %v1802, 36
      %v1888 = vpop.permute.xlu0 %1887
      %1889 = vrot.lane.b32.xlu0 %v1803, 36
      %v1890 = vpop.permute.xlu0 %1889
      %1891 = vrot.lane.b32.xlu0 %v1804, 36
      %v1892 = vpop.permute.xlu0 %1891
      %1893 = vrot.lane.b32.xlu0 %v1805, 36
      %v1894 = vpop.permute.xlu0 %1893
      %1895 = vrot.lane.b32.xlu0 %v1806, 36
      %v1896 = vpop.permute.xlu0 %1895
      %1897 = vrot.lane.b32.xlu0 %v1807, 36
      %v1898 = vpop.permute.xlu0 %1897
      %1899 = vrot.lane.b32.xlu0 %v1808, 36
      %v1900 = vpop.permute.xlu0 %1899
      %1901 = vrot.lane.b32.xlu0 %v1809, 36
      %v1902 = vpop.permute.xlu0 %1901
      %1903 = vrot.lane.b32.xlu0 %v1810, 36
      %v1904 = vpop.permute.xlu0 %1903
      %1905 = vrot.lane.b32.xlu0 %v1811, 36
      %v1906 = vpop.permute.xlu0 %1905
      %1907 = vrot.lane.b32.xlu0 %v1812, 36
      %v1908 = vpop.permute.xlu0 %1907
      %vm1941 = vcmask 326944
      %1942 = vst.msk [vmem:[#allocation2] sm:$0xff] %vm1941, %v1846
      %1943 = vst.msk [vmem:[#allocation2 + $0x8] sm:$0xff] %vm1941, %v1848
      %1944 = vst.msk [vmem:[#allocation2 + $0x10] sm:$0xff] %vm1941, %v1850
      %1945 = vst.msk [vmem:[#allocation2 + $0x18] sm:$0xff] %vm1941, %v1852
      %1946 = vst.msk [vmem:[#allocation2 + $0x20] sm:$0xff] %vm1941, %v1854
      %1947 = vst.msk [vmem:[#allocation2 + $0x28] sm:$0xff] %vm1941, %v1856
      %1948 = vst.msk [vmem:[#allocation2 + $0x30] sm:$0xff] %vm1941, %v1858
      %1949 = vst.msk [vmem:[#allocation2 + $0x38] sm:$0xff] %vm1941, %v1860
      %1950 = vst.msk [vmem:[#allocation2 + $0x40] sm:$0xff] %vm1941, %v1862
      %1951 = vst.msk [vmem:[#allocation2 + $0x48] sm:$0xff] %vm1941, %v1864
      %1952 = vst.msk [vmem:[#allocation2 + $0x50] sm:$0xff] %vm1941, %v1866
      %1953 = vst.msk [vmem:[#allocation2 + $0x58] sm:$0xff] %vm1941, %v1868
      %1954 = vst.msk [vmem:[#allocation2 + $0x60] sm:$0xff] %vm1941, %v1870
      %1955 = vst.msk [vmem:[#allocation2 + $0x68] sm:$0xff] %vm1941, %v1872
      %1956 = vst.msk [vmem:[#allocation2 + $0x70] sm:$0xff] %vm1941, %v1874
      %1957 = vst.msk [vmem:[#allocation2 + $0x78] sm:$0xff] %vm1941, %v1876
      %1958 = vst.msk [vmem:[#allocation2 + $0x80] sm:$0xff] %vm1941, %v1878
      %1959 = vst.msk [vmem:[#allocation2 + $0x88] sm:$0xff] %vm1941, %v1880
      %1960 = vst.msk [vmem:[#allocation2 + $0x90] sm:$0xff] %vm1941, %v1882
      %1961 = vst.msk [vmem:[#allocation2 + $0x98] sm:$0xff] %vm1941, %v1884
      %1962 = vst.msk [vmem:[#allocation2 + $0xa0] sm:$0xff] %vm1941, %v1886
      %1963 = vst.msk [vmem:[#allocation2 + $0xa8] sm:$0xff] %vm1941, %v1888
      %1964 = vst.msk [vmem:[#allocation2 + $0xb0] sm:$0xff] %vm1941, %v1890
      %1965 = vst.msk [vmem:[#allocation2 + $0xb8] sm:$0xff] %vm1941, %v1892
      %1966 = vst.msk [vmem:[#allocation2 + $0xc0] sm:$0xff] %vm1941, %v1894
      %1967 = vst.msk [vmem:[#allocation2 + $0xc8] sm:$0xff] %vm1941, %v1896
      %1968 = vst.msk [vmem:[#allocation2 + $0xd0] sm:$0xff] %vm1941, %v1898
      %1969 = vst.msk [vmem:[#allocation2 + $0xd8] sm:$0xff] %vm1941, %v1900
      %1970 = vst.msk [vmem:[#allocation2 + $0xe0] sm:$0xff] %vm1941, %v1902
      %1971 = vst.msk [vmem:[#allocation2 + $0xe8] sm:$0xff] %vm1941, %v1904
      %1972 = vst.msk [vmem:[#allocation2 + $0xf0] sm:$0xff] %vm1941, %v1906
      %1973 = vst.msk [vmem:[#allocation2 + $0xf8] sm:$0xff] %vm1941, %v1908
      %v1974 = vld [vmem:[%s1780 + $0x2] sm:$0xff]
      %v1975 = vld [vmem:[%s1780 + $0xa] sm:$0xff]
      %v1976 = vld [vmem:[%s1780 + $0x1a] sm:$0xff]
      %v1977 = vld [vmem:[%s1780 + $0x22] sm:$0xff]
      %v1978 = vld [vmem:[%s1780 + $0x32] sm:$0xff]
      %v1979 = vld [vmem:[%s1780 + $0x3a] sm:$0xff]
      %v1980 = vld [vmem:[%s1780 + $0x4a] sm:$0xff]
      %v1981 = vld [vmem:[%s1780 + $0x52] sm:$0xff]
      %v1982 = vld [vmem:[%s1780 + $0x62] sm:$0xff]
      %v1983 = vld [vmem:[%s1780 + $0x6a] sm:$0xff]
      %v1984 = vld [vmem:[%s1780 + $0x7a] sm:$0xff]
      %v1985 = vld [vmem:[%s1780 + $0x82] sm:$0xff]
      %v1986 = vld [vmem:[%s1780 + $0x92] sm:$0xff]
      %v1987 = vld [vmem:[%s1780 + $0x9a] sm:$0xff]
      %v1988 = vld [vmem:[%s1780 + $0xaa] sm:$0xff]
      %v1989 = vld [vmem:[%s1780 + $0xb2] sm:$0xff]
      %v1990 = vld [vmem:[%s1780 + $0xc2] sm:$0xff]
      %v1991 = vld [vmem:[%s1780 + $0xca] sm:$0xff]
      %v1992 = vld [vmem:[%s1780 + $0xda] sm:$0xff]
      %v1993 = vld [vmem:[%s1780 + $0xe2] sm:$0xff]
      %v1994 = vld [vmem:[%s1780 + $0xf2] sm:$0xff]
      %v1995 = vld [vmem:[%s1780 + $0xfa] sm:$0xff]
      %v1996 = vld [vmem:[%s1780 + $0x10a] sm:$0xff]
      %v1997 = vld [vmem:[%s1780 + $0x112] sm:$0xff]
      %v1998 = vld [vmem:[%s1780 + $0x122] sm:$0xff]
      %v1999 = vld [vmem:[%s1780 + $0x12a] sm:$0xff]
      %v2000 = vld [vmem:[%s1780 + $0x13a] sm:$0xff]
      %v2001 = vld [vmem:[%s1780 + $0x142] sm:$0xff]
      %v2002 = vld [vmem:[%s1780 + $0x152] sm:$0xff]
      %v2003 = vld [vmem:[%s1780 + $0x15a] sm:$0xff]
      %v2004 = vld [vmem:[%s1780 + $0x16a] sm:$0xff]
      %v2005 = vld [vmem:[%s1780 + $0x172] sm:$0xff]
      %2038 = vrot.lane.b32.xlu0 %v1974, 40
      %v2039 = vpop.permute.xlu0 %2038
      %2040 = vrot.lane.b32.xlu0 %v1975, 40
      %v2041 = vpop.permute.xlu0 %2040
      %2042 = vrot.lane.b32.xlu0 %v1976, 40
      %v2043 = vpop.permute.xlu0 %2042
      %2044 = vrot.lane.b32.xlu0 %v1977, 40
      %v2045 = vpop.permute.xlu0 %2044
      %2046 = vrot.lane.b32.xlu0 %v1978, 40
      %v2047 = vpop.permute.xlu0 %2046
      %2048 = vrot.lane.b32.xlu0 %v1979, 40
      %v2049 = vpop.permute.xlu0 %2048
      %2050 = vrot.lane.b32.xlu0 %v1980, 40
      %v2051 = vpop.permute.xlu0 %2050
      %2052 = vrot.lane.b32.xlu0 %v1981, 40
      %v2053 = vpop.permute.xlu0 %2052
      %2054 = vrot.lane.b32.xlu0 %v1982, 40
      %v2055 = vpop.permute.xlu0 %2054
      %2056 = vrot.lane.b32.xlu0 %v1983, 40
      %v2057 = vpop.permute.xlu0 %2056
      %2058 = vrot.lane.b32.xlu0 %v1984, 40
      %v2059 = vpop.permute.xlu0 %2058
      %2060 = vrot.lane.b32.xlu0 %v1985, 40
      %v2061 = vpop.permute.xlu0 %2060
      %2062 = vrot.lane.b32.xlu0 %v1986, 40
      %v2063 = vpop.permute.xlu0 %2062
      %2064 = vrot.lane.b32.xlu0 %v1987, 40
      %v2065 = vpop.permute.xlu0 %2064
      %2066 = vrot.lane.b32.xlu0 %v1988, 40
      %v2067 = vpop.permute.xlu0 %2066
      %2068 = vrot.lane.b32.xlu0 %v1989, 40
      %v2069 = vpop.permute.xlu0 %2068
      %2070 = vrot.lane.b32.xlu0 %v1990, 40
      %v2071 = vpop.permute.xlu0 %2070
      %2072 = vrot.lane.b32.xlu0 %v1991, 40
      %v2073 = vpop.permute.xlu0 %2072
      %2074 = vrot.lane.b32.xlu0 %v1992, 40
      %v2075 = vpop.permute.xlu0 %2074
      %2076 = vrot.lane.b32.xlu0 %v1993, 40
      %v2077 = vpop.permute.xlu0 %2076
      %2078 = vrot.lane.b32.xlu0 %v1994, 40
      %v2079 = vpop.permute.xlu0 %2078
      %2080 = vrot.lane.b32.xlu0 %v1995, 40
      %v2081 = vpop.permute.xlu0 %2080
      %2082 = vrot.lane.b32.xlu0 %v1996, 40
      %v2083 = vpop.permute.xlu0 %2082
      %2084 = vrot.lane.b32.xlu0 %v1997, 40
      %v2085 = vpop.permute.xlu0 %2084
      %2086 = vrot.lane.b32.xlu0 %v1998, 40
      %v2087 = vpop.permute.xlu0 %2086
      %2088 = vrot.lane.b32.xlu0 %v1999, 40
      %v2089 = vpop.permute.xlu0 %2088
      %2090 = vrot.lane.b32.xlu0 %v2000, 40
      %v2091 = vpop.permute.xlu0 %2090
      %2092 = vrot.lane.b32.xlu0 %v2001, 40
      %v2093 = vpop.permute.xlu0 %2092
      %2094 = vrot.lane.b32.xlu0 %v2002, 40
      %v2095 = vpop.permute.xlu0 %2094
      %2096 = vrot.lane.b32.xlu0 %v2003, 40
      %v2097 = vpop.permute.xlu0 %2096
      %2098 = vrot.lane.b32.xlu0 %v2004, 40
      %v2099 = vpop.permute.xlu0 %2098
      %2100 = vrot.lane.b32.xlu0 %v2005, 40
      %v2101 = vpop.permute.xlu0 %2100
      %vm2134 = vcmask 359744
      %2135 = vst.msk [vmem:[#allocation2] sm:$0xff] %vm2134, %v2039
      %2136 = vst.msk [vmem:[#allocation2 + $0x8] sm:$0xff] %vm2134, %v2041
      %2137 = vst.msk [vmem:[#allocation2 + $0x10] sm:$0xff] %vm2134, %v2043
      %2138 = vst.msk [vmem:[#allocation2 + $0x18] sm:$0xff] %vm2134, %v2045
      %2139 = vst.msk [vmem:[#allocation2 + $0x20] sm:$0xff] %vm2134, %v2047
      %2140 = vst.msk [vmem:[#allocation2 + $0x28] sm:$0xff] %vm2134, %v2049
      %2141 = vst.msk [vmem:[#allocation2 + $0x30] sm:$0xff] %vm2134, %v2051
      %2142 = vst.msk [vmem:[#allocation2 + $0x38] sm:$0xff] %vm2134, %v2053
      %2143 = vst.msk [vmem:[#allocation2 + $0x40] sm:$0xff] %vm2134, %v2055
      %2144 = vst.msk [vmem:[#allocation2 + $0x48] sm:$0xff] %vm2134, %v2057
      %2145 = vst.msk [vmem:[#allocation2 + $0x50] sm:$0xff] %vm2134, %v2059
      %2146 = vst.msk [vmem:[#allocation2 + $0x58] sm:$0xff] %vm2134, %v2061
      %2147 = vst.msk [vmem:[#allocation2 + $0x60] sm:$0xff] %vm2134, %v2063
      %2148 = vst.msk [vmem:[#allocation2 + $0x68] sm:$0xff] %vm2134, %v2065
      %2149 = vst.msk [vmem:[#allocation2 + $0x70] sm:$0xff] %vm2134, %v2067
      %2150 = vst.msk [vmem:[#allocation2 + $0x78] sm:$0xff] %vm2134, %v2069
      %2151 = vst.msk [vmem:[#allocation2 + $0x80] sm:$0xff] %vm2134, %v2071
      %2152 = vst.msk [vmem:[#allocation2 + $0x88] sm:$0xff] %vm2134, %v2073
      %2153 = vst.msk [vmem:[#allocation2 + $0x90] sm:$0xff] %vm2134, %v2075
      %2154 = vst.msk [vmem:[#allocation2 + $0x98] sm:$0xff] %vm2134, %v2077
      %2155 = vst.msk [vmem:[#allocation2 + $0xa0] sm:$0xff] %vm2134, %v2079
      %2156 = vst.msk [vmem:[#allocation2 + $0xa8] sm:$0xff] %vm2134, %v2081
      %2157 = vst.msk [vmem:[#allocation2 + $0xb0] sm:$0xff] %vm2134, %v2083
      %2158 = vst.msk [vmem:[#allocation2 + $0xb8] sm:$0xff] %vm2134, %v2085
      %2159 = vst.msk [vmem:[#allocation2 + $0xc0] sm:$0xff] %vm2134, %v2087
      %2160 = vst.msk [vmem:[#allocation2 + $0xc8] sm:$0xff] %vm2134, %v2089
      %2161 = vst.msk [vmem:[#allocation2 + $0xd0] sm:$0xff] %vm2134, %v2091
      %2162 = vst.msk [vmem:[#allocation2 + $0xd8] sm:$0xff] %vm2134, %v2093
      %2163 = vst.msk [vmem:[#allocation2 + $0xe0] sm:$0xff] %vm2134, %v2095
      %2164 = vst.msk [vmem:[#allocation2 + $0xe8] sm:$0xff] %vm2134, %v2097
      %2165 = vst.msk [vmem:[#allocation2 + $0xf0] sm:$0xff] %vm2134, %v2099
      %2166 = vst.msk [vmem:[#allocation2 + $0xf8] sm:$0xff] %vm2134, %v2101
      %v2167 = vld [vmem:[%s1780 + $0x3] sm:$0xff]
      %v2168 = vld [vmem:[%s1780 + $0xb] sm:$0xff]
      %v2169 = vld [vmem:[%s1780 + $0x1b] sm:$0xff]
      %v2170 = vld [vmem:[%s1780 + $0x23] sm:$0xff]
      %v2171 = vld [vmem:[%s1780 + $0x33] sm:$0xff]
      %v2172 = vld [vmem:[%s1780 + $0x3b] sm:$0xff]
      %v2173 = vld [vmem:[%s1780 + $0x4b] sm:$0xff]
      %v2174 = vld [vmem:[%s1780 + $0x53] sm:$0xff]
      %v2175 = vld [vmem:[%s1780 + $0x63] sm:$0xff]
      %v2176 = vld [vmem:[%s1780 + $0x6b] sm:$0xff]
      %v2177 = vld [vmem:[%s1780 + $0x7b] sm:$0xff]
      %v2178 = vld [vmem:[%s1780 + $0x83] sm:$0xff]
      %v2179 = vld [vmem:[%s1780 + $0x93] sm:$0xff]
      %v2180 = vld [vmem:[%s1780 + $0x9b] sm:$0xff]
      %v2181 = vld [vmem:[%s1780 + $0xab] sm:$0xff]
      %v2182 = vld [vmem:[%s1780 + $0xb3] sm:$0xff]
      %v2183 = vld [vmem:[%s1780 + $0xc3] sm:$0xff]
      %v2184 = vld [vmem:[%s1780 + $0xcb] sm:$0xff]
      %v2185 = vld [vmem:[%s1780 + $0xdb] sm:$0xff]
      %v2186 = vld [vmem:[%s1780 + $0xe3] sm:$0xff]
      %v2187 = vld [vmem:[%s1780 + $0xf3] sm:$0xff]
      %v2188 = vld [vmem:[%s1780 + $0xfb] sm:$0xff]
      %v2189 = vld [vmem:[%s1780 + $0x10b] sm:$0xff]
      %v2190 = vld [vmem:[%s1780 + $0x113] sm:$0xff]
      %v2191 = vld [vmem:[%s1780 + $0x123] sm:$0xff]
      %v2192 = vld [vmem:[%s1780 + $0x12b] sm:$0xff]
      %v2193 = vld [vmem:[%s1780 + $0x13b] sm:$0xff]
      %v2194 = vld [vmem:[%s1780 + $0x143] sm:$0xff]
      %v2195 = vld [vmem:[%s1780 + $0x153] sm:$0xff]
      %v2196 = vld [vmem:[%s1780 + $0x15b] sm:$0xff]
      %v2197 = vld [vmem:[%s1780 + $0x16b] sm:$0xff]
      %v2198 = vld [vmem:[%s1780 + $0x173] sm:$0xff]
      %2231 = vrot.lane.b32.xlu0 %v2167, 44
      %v2232 = vpop.permute.xlu0 %2231
      %2233 = vrot.lane.b32.xlu0 %v2168, 44
      %v2234 = vpop.permute.xlu0 %2233
      %2235 = vrot.lane.b32.xlu0 %v2169, 44
      %v2236 = vpop.permute.xlu0 %2235
      %2237 = vrot.lane.b32.xlu0 %v2170, 44
      %v2238 = vpop.permute.xlu0 %2237
      %2239 = vrot.lane.b32.xlu0 %v2171, 44
      %v2240 = vpop.permute.xlu0 %2239
      %2241 = vrot.lane.b32.xlu0 %v2172, 44
      %v2242 = vpop.permute.xlu0 %2241
      %2243 = vrot.lane.b32.xlu0 %v2173, 44
      %v2244 = vpop.permute.xlu0 %2243
      %2245 = vrot.lane.b32.xlu0 %v2174, 44
      %v2246 = vpop.permute.xlu0 %2245
      %2247 = vrot.lane.b32.xlu0 %v2175, 44
      %v2248 = vpop.permute.xlu0 %2247
      %2249 = vrot.lane.b32.xlu0 %v2176, 44
      %v2250 = vpop.permute.xlu0 %2249
      %2251 = vrot.lane.b32.xlu0 %v2177, 44
      %v2252 = vpop.permute.xlu0 %2251
      %2253 = vrot.lane.b32.xlu0 %v2178, 44
      %v2254 = vpop.permute.xlu0 %2253
      %2255 = vrot.lane.b32.xlu0 %v2179, 44
      %v2256 = vpop.permute.xlu0 %2255
      %2257 = vrot.lane.b32.xlu0 %v2180, 44
      %v2258 = vpop.permute.xlu0 %2257
      %2259 = vrot.lane.b32.xlu0 %v2181, 44
      %v2260 = vpop.permute.xlu0 %2259
      %2261 = vrot.lane.b32.xlu0 %v2182, 44
      %v2262 = vpop.permute.xlu0 %2261
      %2263 = vrot.lane.b32.xlu0 %v2183, 44
      %v2264 = vpop.permute.xlu0 %2263
      %2265 = vrot.lane.b32.xlu0 %v2184, 44
      %v2266 = vpop.permute.xlu0 %2265
      %2267 = vrot.lane.b32.xlu0 %v2185, 44
      %v2268 = vpop.permute.xlu0 %2267
      %2269 = vrot.lane.b32.xlu0 %v2186, 44
      %v2270 = vpop.permute.xlu0 %2269
      %2271 = vrot.lane.b32.xlu0 %v2187, 44
      %v2272 = vpop.permute.xlu0 %2271
      %2273 = vrot.lane.b32.xlu0 %v2188, 44
      %v2274 = vpop.permute.xlu0 %2273
      %2275 = vrot.lane.b32.xlu0 %v2189, 44
      %v2276 = vpop.permute.xlu0 %2275
      %2277 = vrot.lane.b32.xlu0 %v2190, 44
      %v2278 = vpop.permute.xlu0 %2277
      %2279 = vrot.lane.b32.xlu0 %v2191, 44
      %v2280 = vpop.permute.xlu0 %2279
      %2281 = vrot.lane.b32.xlu0 %v2192, 44
      %v2282 = vpop.permute.xlu0 %2281
      %2283 = vrot.lane.b32.xlu0 %v2193, 44
      %v2284 = vpop.permute.xlu0 %2283
      %2285 = vrot.lane.b32.xlu0 %v2194, 44
      %v2286 = vpop.permute.xlu0 %2285
      %2287 = vrot.lane.b32.xlu0 %v2195, 44
      %v2288 = vpop.permute.xlu0 %2287
      %2289 = vrot.lane.b32.xlu0 %v2196, 44
      %v2290 = vpop.permute.xlu0 %2289
      %2291 = vrot.lane.b32.xlu0 %v2197, 44
      %v2292 = vpop.permute.xlu0 %2291
      %2293 = vrot.lane.b32.xlu0 %v2198, 44
      %v2294 = vpop.permute.xlu0 %2293
      %vm2327 = vcmask 392544
      %2328 = vst.msk [vmem:[#allocation2] sm:$0xff] %vm2327, %v2232
      %2329 = vst.msk [vmem:[#allocation2 + $0x8] sm:$0xff] %vm2327, %v2234
      %2330 = vst.msk [vmem:[#allocation2 + $0x10] sm:$0xff] %vm2327, %v2236
      %2331 = vst.msk [vmem:[#allocation2 + $0x18] sm:$0xff] %vm2327, %v2238
      %2332 = vst.msk [vmem:[#allocation2 + $0x20] sm:$0xff] %vm2327, %v2240
      %2333 = vst.msk [vmem:[#allocation2 + $0x28] sm:$0xff] %vm2327, %v2242
      %2334 = vst.msk [vmem:[#allocation2 + $0x30] sm:$0xff] %vm2327, %v2244
      %2335 = vst.msk [vmem:[#allocation2 + $0x38] sm:$0xff] %vm2327, %v2246
      %2336 = vst.msk [vmem:[#allocation2 + $0x40] sm:$0xff] %vm2327, %v2248
      %2337 = vst.msk [vmem:[#allocation2 + $0x48] sm:$0xff] %vm2327, %v2250
      %2338 = vst.msk [vmem:[#allocation2 + $0x50] sm:$0xff] %vm2327, %v2252
      %2339 = vst.msk [vmem:[#allocation2 + $0x58] sm:$0xff] %vm2327, %v2254
      %2340 = vst.msk [vmem:[#allocation2 + $0x60] sm:$0xff] %vm2327, %v2256
      %2341 = vst.msk [vmem:[#allocation2 + $0x68] sm:$0xff] %vm2327, %v2258
      %2342 = vst.msk [vmem:[#allocation2 + $0x70] sm:$0xff] %vm2327, %v2260
      %2343 = vst.msk [vmem:[#allocation2 + $0x78] sm:$0xff] %vm2327, %v2262
      %2344 = vst.msk [vmem:[#allocation2 + $0x80] sm:$0xff] %vm2327, %v2264
      %2345 = vst.msk [vmem:[#allocation2 + $0x88] sm:$0xff] %vm2327, %v2266
      %2346 = vst.msk [vmem:[#allocation2 + $0x90] sm:$0xff] %vm2327, %v2268
      %2347 = vst.msk [vmem:[#allocation2 + $0x98] sm:$0xff] %vm2327, %v2270
      %2348 = vst.msk [vmem:[#allocation2 + $0xa0] sm:$0xff] %vm2327, %v2272
      %2349 = vst.msk [vmem:[#allocation2 + $0xa8] sm:$0xff] %vm2327, %v2274
      %2350 = vst.msk [vmem:[#allocation2 + $0xb0] sm:$0xff] %vm2327, %v2276
      %2351 = vst.msk [vmem:[#allocation2 + $0xb8] sm:$0xff] %vm2327, %v2278
      %2352 = vst.msk [vmem:[#allocation2 + $0xc0] sm:$0xff] %vm2327, %v2280
      %2353 = vst.msk [vmem:[#allocation2 + $0xc8] sm:$0xff] %vm2327, %v2282
      %2354 = vst.msk [vmem:[#allocation2 + $0xd0] sm:$0xff] %vm2327, %v2284
      %2355 = vst.msk [vmem:[#allocation2 + $0xd8] sm:$0xff] %vm2327, %v2286
      %2356 = vst.msk [vmem:[#allocation2 + $0xe0] sm:$0xff] %vm2327, %v2288
      %2357 = vst.msk [vmem:[#allocation2 + $0xe8] sm:$0xff] %vm2327, %v2290
      %2358 = vst.msk [vmem:[#allocation2 + $0xf0] sm:$0xff] %vm2327, %v2292
      %2359 = vst.msk [vmem:[#allocation2 + $0xf8] sm:$0xff] %vm2327, %v2294
      %v2360 = vld [vmem:[%s620 + $0x1] sm:$0xff]
      %v2361 = vld [vmem:[%s620 + $0x9] sm:$0xff]
      %v2362 = vld [vmem:[%s620 + $0x19] sm:$0xff]
      %v2363 = vld [vmem:[%s620 + $0x21] sm:$0xff]
      %v2364 = vld [vmem:[%s620 + $0x31] sm:$0xff]
      %v2365 = vld [vmem:[%s620 + $0x39] sm:$0xff]
      %v2366 = vld [vmem:[%s620 + $0x49] sm:$0xff]
      %v2367 = vld [vmem:[%s620 + $0x51] sm:$0xff]
      %v2368 = vld [vmem:[%s620 + $0x61] sm:$0xff]
      %v2369 = vld [vmem:[%s620 + $0x69] sm:$0xff]
      %v2370 = vld [vmem:[%s620 + $0x79] sm:$0xff]
      %v2371 = vld [vmem:[%s620 + $0x81] sm:$0xff]
      %v2372 = vld [vmem:[%s620 + $0x91] sm:$0xff]
      %v2373 = vld [vmem:[%s620 + $0x99] sm:$0xff]
      %v2374 = vld [vmem:[%s620 + $0xa9] sm:$0xff]
      %v2375 = vld [vmem:[%s620 + $0xb1] sm:$0xff]
      %v2376 = vld [vmem:[%s620 + $0xc1] sm:$0xff]
      %v2377 = vld [vmem:[%s620 + $0xc9] sm:$0xff]
      %v2378 = vld [vmem:[%s620 + $0xd9] sm:$0xff]
      %v2379 = vld [vmem:[%s620 + $0xe1] sm:$0xff]
      %v2380 = vld [vmem:[%s620 + $0xf1] sm:$0xff]
      %v2381 = vld [vmem:[%s620 + $0xf9] sm:$0xff]
      %v2382 = vld [vmem:[%s620 + $0x109] sm:$0xff]
      %v2383 = vld [vmem:[%s620 + $0x111] sm:$0xff]
      %v2384 = vld [vmem:[%s620 + $0x121] sm:$0xff]
      %v2385 = vld [vmem:[%s620 + $0x129] sm:$0xff]
      %v2386 = vld [vmem:[%s620 + $0x139] sm:$0xff]
      %v2387 = vld [vmem:[%s620 + $0x141] sm:$0xff]
      %v2388 = vld [vmem:[%s620 + $0x151] sm:$0xff]
      %v2389 = vld [vmem:[%s620 + $0x159] sm:$0xff]
      %v2390 = vld [vmem:[%s620 + $0x169] sm:$0xff]
      %v2391 = vld [vmem:[%s620 + $0x171] sm:$0xff]
      %2424 = vrot.lane.b32.xlu0 %v2360, 48
      %v2425 = vpop.permute.xlu0 %2424
      %2426 = vrot.lane.b32.xlu0 %v2361, 48
      %v2427 = vpop.permute.xlu0 %2426
      %2428 = vrot.lane.b32.xlu0 %v2362, 48
      %v2429 = vpop.permute.xlu0 %2428
      %2430 = vrot.lane.b32.xlu0 %v2363, 48
      %v2431 = vpop.permute.xlu0 %2430
      %2432 = vrot.lane.b32.xlu0 %v2364, 48
      %v2433 = vpop.permute.xlu0 %2432
      %2434 = vrot.lane.b32.xlu0 %v2365, 48
      %v2435 = vpop.permute.xlu0 %2434
      %2436 = vrot.lane.b32.xlu0 %v2366, 48
      %v2437 = vpop.permute.xlu0 %2436
      %2438 = vrot.lane.b32.xlu0 %v2367, 48
      %v2439 = vpop.permute.xlu0 %2438
      %2440 = vrot.lane.b32.xlu0 %v2368, 48
      %v2441 = vpop.permute.xlu0 %2440
      %2442 = vrot.lane.b32.xlu0 %v2369, 48
      %v2443 = vpop.permute.xlu0 %2442
      %2444 = vrot.lane.b32.xlu0 %v2370, 48
      %v2445 = vpop.permute.xlu0 %2444
      %2446 = vrot.lane.b32.xlu0 %v2371, 48
      %v2447 = vpop.permute.xlu0 %2446
      %2448 = vrot.lane.b32.xlu0 %v2372, 48
      %v2449 = vpop.permute.xlu0 %2448
      %2450 = vrot.lane.b32.xlu0 %v2373, 48
      %v2451 = vpop.permute.xlu0 %2450
      %2452 = vrot.lane.b32.xlu0 %v2374, 48
      %v2453 = vpop.permute.xlu0 %2452
      %2454 = vrot.lane.b32.xlu0 %v2375, 48
      %v2455 = vpop.permute.xlu0 %2454
      %2456 = vrot.lane.b32.xlu0 %v2376, 48
      %v2457 = vpop.permute.xlu0 %2456
      %2458 = vrot.lane.b32.xlu0 %v2377, 48
      %v2459 = vpop.permute.xlu0 %2458
      %2460 = vrot.lane.b32.xlu0 %v2378, 48
      %v2461 = vpop.permute.xlu0 %2460
      %2462 = vrot.lane.b32.xlu0 %v2379, 48
      %v2463 = vpop.permute.xlu0 %2462
      %2464 = vrot.lane.b32.xlu0 %v2380, 48
      %v2465 = vpop.permute.xlu0 %2464
      %2466 = vrot.lane.b32.xlu0 %v2381, 48
      %v2467 = vpop.permute.xlu0 %2466
      %2468 = vrot.lane.b32.xlu0 %v2382, 48
      %v2469 = vpop.permute.xlu0 %2468
      %2470 = vrot.lane.b32.xlu0 %v2383, 48
      %v2471 = vpop.permute.xlu0 %2470
      %2472 = vrot.lane.b32.xlu0 %v2384, 48
      %v2473 = vpop.permute.xlu0 %2472
      %2474 = vrot.lane.b32.xlu0 %v2385, 48
      %v2475 = vpop.permute.xlu0 %2474
      %2476 = vrot.lane.b32.xlu0 %v2386, 48
      %v2477 = vpop.permute.xlu0 %2476
      %2478 = vrot.lane.b32.xlu0 %v2387, 48
      %v2479 = vpop.permute.xlu0 %2478
      %2480 = vrot.lane.b32.xlu0 %v2388, 48
      %v2481 = vpop.permute.xlu0 %2480
      %2482 = vrot.lane.b32.xlu0 %v2389, 48
      %v2483 = vpop.permute.xlu0 %2482
      %2484 = vrot.lane.b32.xlu0 %v2390, 48
      %v2485 = vpop.permute.xlu0 %2484
      %2486 = vrot.lane.b32.xlu0 %v2391, 48
      %v2487 = vpop.permute.xlu0 %2486
      %vm2520 = vcmask 425344
      %2521 = vst.msk [vmem:[#allocation2] sm:$0xff] %vm2520, %v2425
      %2522 = vst.msk [vmem:[#allocation2 + $0x8] sm:$0xff] %vm2520, %v2427
      %2523 = vst.msk [vmem:[#allocation2 + $0x10] sm:$0xff] %vm2520, %v2429
      %2524 = vst.msk [vmem:[#allocation2 + $0x18] sm:$0xff] %vm2520, %v2431
      %2525 = vst.msk [vmem:[#allocation2 + $0x20] sm:$0xff] %vm2520, %v2433
      %2526 = vst.msk [vmem:[#allocation2 + $0x28] sm:$0xff] %vm2520, %v2435
      %2527 = vst.msk [vmem:[#allocation2 + $0x30] sm:$0xff] %vm2520, %v2437
      %2528 = vst.msk [vmem:[#allocation2 + $0x38] sm:$0xff] %vm2520, %v2439
      %2529 = vst.msk [vmem:[#allocation2 + $0x40] sm:$0xff] %vm2520, %v2441
      %2530 = vst.msk [vmem:[#allocation2 + $0x48] sm:$0xff] %vm2520, %v2443
      %2531 = vst.msk [vmem:[#allocation2 + $0x50] sm:$0xff] %vm2520, %v2445
      %2532 = vst.msk [vmem:[#allocation2 + $0x58] sm:$0xff] %vm2520, %v2447
      %2533 = vst.msk [vmem:[#allocation2 + $0x60] sm:$0xff] %vm2520, %v2449
      %2534 = vst.msk [vmem:[#allocation2 + $0x68] sm:$0xff] %vm2520, %v2451
      %2535 = vst.msk [vmem:[#allocation2 + $0x70] sm:$0xff] %vm2520, %v2453
      %2536 = vst.msk [vmem:[#allocation2 + $0x78] sm:$0xff] %vm2520, %v2455
      %2537 = vst.msk [vmem:[#allocation2 + $0x80] sm:$0xff] %vm2520, %v2457
      %2538 = vst.msk [vmem:[#allocation2 + $0x88] sm:$0xff] %vm2520, %v2459
      %2539 = vst.msk [vmem:[#allocation2 + $0x90] sm:$0xff] %vm2520, %v2461
      %2540 = vst.msk [vmem:[#allocation2 + $0x98] sm:$0xff] %vm2520, %v2463
      %2541 = vst.msk [vmem:[#allocation2 + $0xa0] sm:$0xff] %vm2520, %v2465
      %2542 = vst.msk [vmem:[#allocation2 + $0xa8] sm:$0xff] %vm2520, %v2467
      %2543 = vst.msk [vmem:[#allocation2 + $0xb0] sm:$0xff] %vm2520, %v2469
      %2544 = vst.msk [vmem:[#allocation2 + $0xb8] sm:$0xff] %vm2520, %v2471
      %2545 = vst.msk [vmem:[#allocation2 + $0xc0] sm:$0xff] %vm2520, %v2473
      %2546 = vst.msk [vmem:[#allocation2 + $0xc8] sm:$0xff] %vm2520, %v2475
      %2547 = vst.msk [vmem:[#allocation2 + $0xd0] sm:$0xff] %vm2520, %v2477
      %2548 = vst.msk [vmem:[#allocation2 + $0xd8] sm:$0xff] %vm2520, %v2479
      %2549 = vst.msk [vmem:[#allocation2 + $0xe0] sm:$0xff] %vm2520, %v2481
      %2550 = vst.msk [vmem:[#allocation2 + $0xe8] sm:$0xff] %vm2520, %v2483
      %2551 = vst.msk [vmem:[#allocation2 + $0xf0] sm:$0xff] %vm2520, %v2485
      %2552 = vst.msk [vmem:[#allocation2 + $0xf8] sm:$0xff] %vm2520, %v2487
      %v2553 = vld [vmem:[%s620 + $0x2] sm:$0xff]
      %v2554 = vld [vmem:[%s620 + $0xa] sm:$0xff]
      %v2555 = vld [vmem:[%s620 + $0x1a] sm:$0xff]
      %v2556 = vld [vmem:[%s620 + $0x22] sm:$0xff]
      %v2557 = vld [vmem:[%s620 + $0x32] sm:$0xff]
      %v2558 = vld [vmem:[%s620 + $0x3a] sm:$0xff]
      %v2559 = vld [vmem:[%s620 + $0x4a] sm:$0xff]
      %v2560 = vld [vmem:[%s620 + $0x52] sm:$0xff]
      %v2561 = vld [vmem:[%s620 + $0x62] sm:$0xff]
      %v2562 = vld [vmem:[%s620 + $0x6a] sm:$0xff]
      %v2563 = vld [vmem:[%s620 + $0x7a] sm:$0xff]
      %v2564 = vld [vmem:[%s620 + $0x82] sm:$0xff]
      %v2565 = vld [vmem:[%s620 + $0x92] sm:$0xff]
      %v2566 = vld [vmem:[%s620 + $0x9a] sm:$0xff]
      %v2567 = vld [vmem:[%s620 + $0xaa] sm:$0xff]
      %v2568 = vld [vmem:[%s620 + $0xb2] sm:$0xff]
      %v2569 = vld [vmem:[%s620 + $0xc2] sm:$0xff]
      %v2570 = vld [vmem:[%s620 + $0xca] sm:$0xff]
      %v2571 = vld [vmem:[%s620 + $0xda] sm:$0xff]
      %v2572 = vld [vmem:[%s620 + $0xe2] sm:$0xff]
      %v2573 = vld [vmem:[%s620 + $0xf2] sm:$0xff]
      %v2574 = vld [vmem:[%s620 + $0xfa] sm:$0xff]
      %v2575 = vld [vmem:[%s620 + $0x10a] sm:$0xff]
      %v2576 = vld [vmem:[%s620 + $0x112] sm:$0xff]
      %v2577 = vld [vmem:[%s620 + $0x122] sm:$0xff]
      %v2578 = vld [vmem:[%s620 + $0x12a] sm:$0xff]
      %v2579 = vld [vmem:[%s620 + $0x13a] sm:$0xff]
      %v2580 = vld [vmem:[%s620 + $0x142] sm:$0xff]
      %v2581 = vld [vmem:[%s620 + $0x152] sm:$0xff]
      %v2582 = vld [vmem:[%s620 + $0x15a] sm:$0xff]
      %v2583 = vld [vmem:[%s620 + $0x16a] sm:$0xff]
      %v2584 = vld [vmem:[%s620 + $0x172] sm:$0xff]
      %2617 = vrot.lane.b32.xlu0 %v2553, 52
      %v2618 = vpop.permute.xlu0 %2617
      %2619 = vrot.lane.b32.xlu0 %v2554, 52
      %v2620 = vpop.permute.xlu0 %2619
      %2621 = vrot.lane.b32.xlu0 %v2555, 52
      %v2622 = vpop.permute.xlu0 %2621
      %2623 = vrot.lane.b32.xlu0 %v2556, 52
      %v2624 = vpop.permute.xlu0 %2623
      %2625 = vrot.lane.b32.xlu0 %v2557, 52
      %v2626 = vpop.permute.xlu0 %2625
      %2627 = vrot.lane.b32.xlu0 %v2558, 52
      %v2628 = vpop.permute.xlu0 %2627
      %2629 = vrot.lane.b32.xlu0 %v2559, 52
      %v2630 = vpop.permute.xlu0 %2629
      %2631 = vrot.lane.b32.xlu0 %v2560, 52
      %v2632 = vpop.permute.xlu0 %2631
      %2633 = vrot.lane.b32.xlu0 %v2561, 52
      %v2634 = vpop.permute.xlu0 %2633
      %2635 = vrot.lane.b32.xlu0 %v2562, 52
      %v2636 = vpop.permute.xlu0 %2635
      %2637 = vrot.lane.b32.xlu0 %v2563, 52
      %v2638 = vpop.permute.xlu0 %2637
      %2639 = vrot.lane.b32.xlu0 %v2564, 52
      %v2640 = vpop.permute.xlu0 %2639
      %2641 = vrot.lane.b32.xlu0 %v2565, 52
      %v2642 = vpop.permute.xlu0 %2641
      %2643 = vrot.lane.b32.xlu0 %v2566, 52
      %v2644 = vpop.permute.xlu0 %2643
      %2645 = vrot.lane.b32.xlu0 %v2567, 52
      %v2646 = vpop.permute.xlu0 %2645
      %2647 = vrot.lane.b32.xlu0 %v2568, 52
      %v2648 = vpop.permute.xlu0 %2647
      %2649 = vrot.lane.b32.xlu0 %v2569, 52
      %v2650 = vpop.permute.xlu0 %2649
      %2651 = vrot.lane.b32.xlu0 %v2570, 52
      %v2652 = vpop.permute.xlu0 %2651
      %2653 = vrot.lane.b32.xlu0 %v2571, 52
      %v2654 = vpop.permute.xlu0 %2653
      %2655 = vrot.lane.b32.xlu0 %v2572, 52
      %v2656 = vpop.permute.xlu0 %2655
      %2657 = vrot.lane.b32.xlu0 %v2573, 52
      %v2658 = vpop.permute.xlu0 %2657
      %2659 = vrot.lane.b32.xlu0 %v2574, 52
      %v2660 = vpop.permute.xlu0 %2659
      %2661 = vrot.lane.b32.xlu0 %v2575, 52
      %v2662 = vpop.permute.xlu0 %2661
      %2663 = vrot.lane.b32.xlu0 %v2576, 52
      %v2664 = vpop.permute.xlu0 %2663
      %2665 = vrot.lane.b32.xlu0 %v2577, 52
      %v2666 = vpop.permute.xlu0 %2665
      %2667 = vrot.lane.b32.xlu0 %v2578, 52
      %v2668 = vpop.permute.xlu0 %2667
      %2669 = vrot.lane.b32.xlu0 %v2579, 52
      %v2670 = vpop.permute.xlu0 %2669
      %2671 = vrot.lane.b32.xlu0 %v2580, 52
      %v2672 = vpop.permute.xlu0 %2671
      %2673 = vrot.lane.b32.xlu0 %v2581, 52
      %v2674 = vpop.permute.xlu0 %2673
      %2675 = vrot.lane.b32.xlu0 %v2582, 52
      %v2676 = vpop.permute.xlu0 %2675
      %2677 = vrot.lane.b32.xlu0 %v2583, 52
      %v2678 = vpop.permute.xlu0 %2677
      %2679 = vrot.lane.b32.xlu0 %v2584, 52
      %v2680 = vpop.permute.xlu0 %2679
      %vm2713 = vcmask 458144
      %2714 = vst.msk [vmem:[#allocation2] sm:$0xff] %vm2713, %v2618
      %2715 = vst.msk [vmem:[#allocation2 + $0x8] sm:$0xff] %vm2713, %v2620
      %2716 = vst.msk [vmem:[#allocation2 + $0x10] sm:$0xff] %vm2713, %v2622
      %2717 = vst.msk [vmem:[#allocation2 + $0x18] sm:$0xff] %vm2713, %v2624
      %2718 = vst.msk [vmem:[#allocation2 + $0x20] sm:$0xff] %vm2713, %v2626
      %2719 = vst.msk [vmem:[#allocation2 + $0x28] sm:$0xff] %vm2713, %v2628
      %2720 = vst.msk [vmem:[#allocation2 + $0x30] sm:$0xff] %vm2713, %v2630
      %2721 = vst.msk [vmem:[#allocation2 + $0x38] sm:$0xff] %vm2713, %v2632
      %2722 = vst.msk [vmem:[#allocation2 + $0x40] sm:$0xff] %vm2713, %v2634
      %2723 = vst.msk [vmem:[#allocation2 + $0x48] sm:$0xff] %vm2713, %v2636
      %2724 = vst.msk [vmem:[#allocation2 + $0x50] sm:$0xff] %vm2713, %v2638
      %2725 = vst.msk [vmem:[#allocation2 + $0x58] sm:$0xff] %vm2713, %v2640
      %2726 = vst.msk [vmem:[#allocation2 + $0x60] sm:$0xff] %vm2713, %v2642
      %2727 = vst.msk [vmem:[#allocation2 + $0x68] sm:$0xff] %vm2713, %v2644
      %2728 = vst.msk [vmem:[#allocation2 + $0x70] sm:$0xff] %vm2713, %v2646
      %2729 = vst.msk [vmem:[#allocation2 + $0x78] sm:$0xff] %vm2713, %v2648
      %2730 = vst.msk [vmem:[#allocation2 + $0x80] sm:$0xff] %vm2713, %v2650
      %2731 = vst.msk [vmem:[#allocation2 + $0x88] sm:$0xff] %vm2713, %v2652
      %2732 = vst.msk [vmem:[#allocation2 + $0x90] sm:$0xff] %vm2713, %v2654
      %2733 = vst.msk [vmem:[#allocation2 + $0x98] sm:$0xff] %vm2713, %v2656
      %2734 = vst.msk [vmem:[#allocation2 + $0xa0] sm:$0xff] %vm2713, %v2658
      %2735 = vst.msk [vmem:[#allocation2 + $0xa8] sm:$0xff] %vm2713, %v2660
      %2736 = vst.msk [vmem:[#allocation2 + $0xb0] sm:$0xff] %vm2713, %v2662
      %2737 = vst.msk [vmem:[#allocation2 + $0xb8] sm:$0xff] %vm2713, %v2664
      %2738 = vst.msk [vmem:[#allocation2 + $0xc0] sm:$0xff] %vm2713, %v2666
      %2739 = vst.msk [vmem:[#allocation2 + $0xc8] sm:$0xff] %vm2713, %v2668
      %2740 = vst.msk [vmem:[#allocation2 + $0xd0] sm:$0xff] %vm2713, %v2670
      %2741 = vst.msk [vmem:[#allocation2 + $0xd8] sm:$0xff] %vm2713, %v2672
      %2742 = vst.msk [vmem:[#allocation2 + $0xe0] sm:$0xff] %vm2713, %v2674
      %2743 = vst.msk [vmem:[#allocation2 + $0xe8] sm:$0xff] %vm2713, %v2676
      %2744 = vst.msk [vmem:[#allocation2 + $0xf0] sm:$0xff] %vm2713, %v2678
      %2745 = vst.msk [vmem:[#allocation2 + $0xf8] sm:$0xff] %vm2713, %v2680
      %v2746 = vld [vmem:[%s620 + $0x3] sm:$0xff]
      %v2747 = vld [vmem:[%s620 + $0xb] sm:$0xff]
      %v2748 = vld [vmem:[%s620 + $0x1b] sm:$0xff]
      %v2749 = vld [vmem:[%s620 + $0x23] sm:$0xff]
      %v2750 = vld [vmem:[%s620 + $0x33] sm:$0xff]
      %v2751 = vld [vmem:[%s620 + $0x3b] sm:$0xff]
      %v2752 = vld [vmem:[%s620 + $0x4b] sm:$0xff]
      %v2753 = vld [vmem:[%s620 + $0x53] sm:$0xff]
      %v2754 = vld [vmem:[%s620 + $0x63] sm:$0xff]
      %v2755 = vld [vmem:[%s620 + $0x6b] sm:$0xff]
      %v2756 = vld [vmem:[%s620 + $0x7b] sm:$0xff]
      %v2757 = vld [vmem:[%s620 + $0x83] sm:$0xff]
      %v2758 = vld [vmem:[%s620 + $0x93] sm:$0xff]
      %v2759 = vld [vmem:[%s620 + $0x9b] sm:$0xff]
      %v2760 = vld [vmem:[%s620 + $0xab] sm:$0xff]
      %v2761 = vld [vmem:[%s620 + $0xb3] sm:$0xff]
      %v2762 = vld [vmem:[%s620 + $0xc3] sm:$0xff]
      %v2763 = vld [vmem:[%s620 + $0xcb] sm:$0xff]
      %v2764 = vld [vmem:[%s620 + $0xdb] sm:$0xff]
      %v2765 = vld [vmem:[%s620 + $0xe3] sm:$0xff]
      %v2766 = vld [vmem:[%s620 + $0xf3] sm:$0xff]
      %v2767 = vld [vmem:[%s620 + $0xfb] sm:$0xff]
      %v2768 = vld [vmem:[%s620 + $0x10b] sm:$0xff]
      %v2769 = vld [vmem:[%s620 + $0x113] sm:$0xff]
      %v2770 = vld [vmem:[%s620 + $0x123] sm:$0xff]
      %v2771 = vld [vmem:[%s620 + $0x12b] sm:$0xff]
      %v2772 = vld [vmem:[%s620 + $0x13b] sm:$0xff]
      %v2773 = vld [vmem:[%s620 + $0x143] sm:$0xff]
      %v2774 = vld [vmem:[%s620 + $0x153] sm:$0xff]
      %v2775 = vld [vmem:[%s620 + $0x15b] sm:$0xff]
      %v2776 = vld [vmem:[%s620 + $0x16b] sm:$0xff]
      %v2777 = vld [vmem:[%s620 + $0x173] sm:$0xff]
      %2810 = vrot.lane.b32.xlu0 %v2746, 56
      %v2811 = vpop.permute.xlu0 %2810
      %2812 = vrot.lane.b32.xlu0 %v2747, 56
      %v2813 = vpop.permute.xlu0 %2812
      %2814 = vrot.lane.b32.xlu0 %v2748, 56
      %v2815 = vpop.permute.xlu0 %2814
      %2816 = vrot.lane.b32.xlu0 %v2749, 56
      %v2817 = vpop.permute.xlu0 %2816
      %2818 = vrot.lane.b32.xlu0 %v2750, 56
      %v2819 = vpop.permute.xlu0 %2818
      %2820 = vrot.lane.b32.xlu0 %v2751, 56
      %v2821 = vpop.permute.xlu0 %2820
      %2822 = vrot.lane.b32.xlu0 %v2752, 56
      %v2823 = vpop.permute.xlu0 %2822
      %2824 = vrot.lane.b32.xlu0 %v2753, 56
      %v2825 = vpop.permute.xlu0 %2824
      %2826 = vrot.lane.b32.xlu0 %v2754, 56
      %v2827 = vpop.permute.xlu0 %2826
      %2828 = vrot.lane.b32.xlu0 %v2755, 56
      %v2829 = vpop.permute.xlu0 %2828
      %2830 = vrot.lane.b32.xlu0 %v2756, 56
      %v2831 = vpop.permute.xlu0 %2830
      %2832 = vrot.lane.b32.xlu0 %v2757, 56
      %v2833 = vpop.permute.xlu0 %2832
      %2834 = vrot.lane.b32.xlu0 %v2758, 56
      %v2835 = vpop.permute.xlu0 %2834
      %2836 = vrot.lane.b32.xlu0 %v2759, 56
      %v2837 = vpop.permute.xlu0 %2836
      %2838 = vrot.lane.b32.xlu0 %v2760, 56
      %v2839 = vpop.permute.xlu0 %2838
      %2840 = vrot.lane.b32.xlu0 %v2761, 56
      %v2841 = vpop.permute.xlu0 %2840
      %2842 = vrot.lane.b32.xlu0 %v2762, 56
      %v2843 = vpop.permute.xlu0 %2842
      %2844 = vrot.lane.b32.xlu0 %v2763, 56
      %v2845 = vpop.permute.xlu0 %2844
      %2846 = vrot.lane.b32.xlu0 %v2764, 56
      %v2847 = vpop.permute.xlu0 %2846
      %2848 = vrot.lane.b32.xlu0 %v2765, 56
      %v2849 = vpop.permute.xlu0 %2848
      %2850 = vrot.lane.b32.xlu0 %v2766, 56
      %v2851 = vpop.permute.xlu0 %2850
      %2852 = vrot.lane.b32.xlu0 %v2767, 56
      %v2853 = vpop.permute.xlu0 %2852
      %2854 = vrot.lane.b32.xlu0 %v2768, 56
      %v2855 = vpop.permute.xlu0 %2854
      %2856 = vrot.lane.b32.xlu0 %v2769, 56
      %v2857 = vpop.permute.xlu0 %2856
      %2858 = vrot.lane.b32.xlu0 %v2770, 56
      %v2859 = vpop.permute.xlu0 %2858
      %2860 = vrot.lane.b32.xlu0 %v2771, 56
      %v2861 = vpop.permute.xlu0 %2860
      %2862 = vrot.lane.b32.xlu0 %v2772, 56
      %v2863 = vpop.permute.xlu0 %2862
      %2864 = vrot.lane.b32.xlu0 %v2773, 56
      %v2865 = vpop.permute.xlu0 %2864
      %2866 = vrot.lane.b32.xlu0 %v2774, 56
      %v2867 = vpop.permute.xlu0 %2866
      %2868 = vrot.lane.b32.xlu0 %v2775, 56
      %v2869 = vpop.permute.xlu0 %2868
      %2870 = vrot.lane.b32.xlu0 %v2776, 56
      %v2871 = vpop.permute.xlu0 %2870
      %2872 = vrot.lane.b32.xlu0 %v2777, 56
      %v2873 = vpop.permute.xlu0 %2872
      %vm2906 = vcmask 490944
      %2907 = vst.msk [vmem:[#allocation2] sm:$0xff] %vm2906, %v2811
      %2908 = vst.msk [vmem:[#allocation2 + $0x8] sm:$0xff] %vm2906, %v2813
      %2909 = vst.msk [vmem:[#allocation2 + $0x10] sm:$0xff] %vm2906, %v2815
      %2910 = vst.msk [vmem:[#allocation2 + $0x18] sm:$0xff] %vm2906, %v2817
      %2911 = vst.msk [vmem:[#allocation2 + $0x20] sm:$0xff] %vm2906, %v2819
      %2912 = vst.msk [vmem:[#allocation2 + $0x28] sm:$0xff] %vm2906, %v2821
      %2913 = vst.msk [vmem:[#allocation2 + $0x30] sm:$0xff] %vm2906, %v2823
      %2914 = vst.msk [vmem:[#allocation2 + $0x38] sm:$0xff] %vm2906, %v2825
      %2915 = vst.msk [vmem:[#allocation2 + $0x40] sm:$0xff] %vm2906, %v2827
      %2916 = vst.msk [vmem:[#allocation2 + $0x48] sm:$0xff] %vm2906, %v2829
      %2917 = vst.msk [vmem:[#allocation2 + $0x50] sm:$0xff] %vm2906, %v2831
      %2918 = vst.msk [vmem:[#allocation2 + $0x58] sm:$0xff] %vm2906, %v2833
      %2919 = vst.msk [vmem:[#allocation2 + $0x60] sm:$0xff] %vm2906, %v2835
      %2920 = vst.msk [vmem:[#allocation2 + $0x68] sm:$0xff] %vm2906, %v2837
      %2921 = vst.msk [vmem:[#allocation2 + $0x70] sm:$0xff] %vm2906, %v2839
      %2922 = vst.msk [vmem:[#allocation2 + $0x78] sm:$0xff] %vm2906, %v2841
      %2923 = vst.msk [vmem:[#allocation2 + $0x80] sm:$0xff] %vm2906, %v2843
      %2924 = vst.msk [vmem:[#allocation2 + $0x88] sm:$0xff] %vm2906, %v2845
      %2925 = vst.msk [vmem:[#allocation2 + $0x90] sm:$0xff] %vm2906, %v2847
      %2926 = vst.msk [vmem:[#allocation2 + $0x98] sm:$0xff] %vm2906, %v2849
      %2927 = vst.msk [vmem:[#allocation2 + $0xa0] sm:$0xff] %vm2906, %v2851
      %2928 = vst.msk [vmem:[#allocation2 + $0xa8] sm:$0xff] %vm2906, %v2853
      %2929 = vst.msk [vmem:[#allocation2 + $0xb0] sm:$0xff] %vm2906, %v2855
      %2930 = vst.msk [vmem:[#allocation2 + $0xb8] sm:$0xff] %vm2906, %v2857
      %2931 = vst.msk [vmem:[#allocation2 + $0xc0] sm:$0xff] %vm2906, %v2859
      %2932 = vst.msk [vmem:[#allocation2 + $0xc8] sm:$0xff] %vm2906, %v2861
      %2933 = vst.msk [vmem:[#allocation2 + $0xd0] sm:$0xff] %vm2906, %v2863
      %2934 = vst.msk [vmem:[#allocation2 + $0xd8] sm:$0xff] %vm2906, %v2865
      %2935 = vst.msk [vmem:[#allocation2 + $0xe0] sm:$0xff] %vm2906, %v2867
      %2936 = vst.msk [vmem:[#allocation2 + $0xe8] sm:$0xff] %vm2906, %v2869
      %2937 = vst.msk [vmem:[#allocation2 + $0xf0] sm:$0xff] %vm2906, %v2871
      %2938 = vst.msk [vmem:[#allocation2 + $0xf8] sm:$0xff] %vm2906, %v2873
      %s2939 = scalar_lea.vmem %s164, 72
      %v2940 = vld [vmem:[%s2939 + $0x1] sm:$0xff]
      %v2941 = vld [vmem:[%s2939 + $0x9] sm:$0xff]
      %v2942 = vld [vmem:[%s2939 + $0x19] sm:$0xff]
      %v2943 = vld [vmem:[%s2939 + $0x21] sm:$0xff]
      %v2944 = vld [vmem:[%s2939 + $0x31] sm:$0xff]
      %v2945 = vld [vmem:[%s2939 + $0x39] sm:$0xff]
      %v2946 = vld [vmem:[%s2939 + $0x49] sm:$0xff]
      %v2947 = vld [vmem:[%s2939 + $0x51] sm:$0xff]
      %v2948 = vld [vmem:[%s2939 + $0x61] sm:$0xff]
      %v2949 = vld [vmem:[%s2939 + $0x69] sm:$0xff]
      %v2950 = vld [vmem:[%s2939 + $0x79] sm:$0xff]
      %v2951 = vld [vmem:[%s2939 + $0x81] sm:$0xff]
      %v2952 = vld [vmem:[%s2939 + $0x91] sm:$0xff]
      %v2953 = vld [vmem:[%s2939 + $0x99] sm:$0xff]
      %v2954 = vld [vmem:[%s2939 + $0xa9] sm:$0xff]
      %v2955 = vld [vmem:[%s2939 + $0xb1] sm:$0xff]
      %v2956 = vld [vmem:[%s2939 + $0xc1] sm:$0xff]
      %v2957 = vld [vmem:[%s2939 + $0xc9] sm:$0xff]
      %v2958 = vld [vmem:[%s2939 + $0xd9] sm:$0xff]
      %v2959 = vld [vmem:[%s2939 + $0xe1] sm:$0xff]
      %v2960 = vld [vmem:[%s2939 + $0xf1] sm:$0xff]
      %v2961 = vld [vmem:[%s2939 + $0xf9] sm:$0xff]
      %v2962 = vld [vmem:[%s2939 + $0x109] sm:$0xff]
      %v2963 = vld [vmem:[%s2939 + $0x111] sm:$0xff]
      %v2964 = vld [vmem:[%s2939 + $0x121] sm:$0xff]
      %v2965 = vld [vmem:[%s2939 + $0x129] sm:$0xff]
      %v2966 = vld [vmem:[%s2939 + $0x139] sm:$0xff]
      %v2967 = vld [vmem:[%s2939 + $0x141] sm:$0xff]
      %v2968 = vld [vmem:[%s2939 + $0x151] sm:$0xff]
      %v2969 = vld [vmem:[%s2939 + $0x159] sm:$0xff]
      %v2970 = vld [vmem:[%s2939 + $0x169] sm:$0xff]
      %v2971 = vld [vmem:[%s2939 + $0x171] sm:$0xff]
      %3004 = vrot.lane.b32.xlu0 %v2940, 60
      %v3005 = vpop.permute.xlu0 %3004
      %3006 = vrot.lane.b32.xlu0 %v2941, 60
      %v3007 = vpop.permute.xlu0 %3006
      %3008 = vrot.lane.b32.xlu0 %v2942, 60
      %v3009 = vpop.permute.xlu0 %3008
      %3010 = vrot.lane.b32.xlu0 %v2943, 60
      %v3011 = vpop.permute.xlu0 %3010
      %3012 = vrot.lane.b32.xlu0 %v2944, 60
      %v3013 = vpop.permute.xlu0 %3012
      %3014 = vrot.lane.b32.xlu0 %v2945, 60
      %v3015 = vpop.permute.xlu0 %3014
      %3016 = vrot.lane.b32.xlu0 %v2946, 60
      %v3017 = vpop.permute.xlu0 %3016
      %3018 = vrot.lane.b32.xlu0 %v2947, 60
      %v3019 = vpop.permute.xlu0 %3018
      %3020 = vrot.lane.b32.xlu0 %v2948, 60
      %v3021 = vpop.permute.xlu0 %3020
      %3022 = vrot.lane.b32.xlu0 %v2949, 60
      %v3023 = vpop.permute.xlu0 %3022
      %3024 = vrot.lane.b32.xlu0 %v2950, 60
      %v3025 = vpop.permute.xlu0 %3024
      %3026 = vrot.lane.b32.xlu0 %v2951, 60
      %v3027 = vpop.permute.xlu0 %3026
      %3028 = vrot.lane.b32.xlu0 %v2952, 60
      %v3029 = vpop.permute.xlu0 %3028
      %3030 = vrot.lane.b32.xlu0 %v2953, 60
      %v3031 = vpop.permute.xlu0 %3030
      %3032 = vrot.lane.b32.xlu0 %v2954, 60
      %v3033 = vpop.permute.xlu0 %3032
      %3034 = vrot.lane.b32.xlu0 %v2955, 60
      %v3035 = vpop.permute.xlu0 %3034
      %3036 = vrot.lane.b32.xlu0 %v2956, 60
      %v3037 = vpop.permute.xlu0 %3036
      %3038 = vrot.lane.b32.xlu0 %v2957, 60
      %v3039 = vpop.permute.xlu0 %3038
      %3040 = vrot.lane.b32.xlu0 %v2958, 60
      %v3041 = vpop.permute.xlu0 %3040
      %3042 = vrot.lane.b32.xlu0 %v2959, 60
      %v3043 = vpop.permute.xlu0 %3042
      %3044 = vrot.lane.b32.xlu0 %v2960, 60
      %v3045 = vpop.permute.xlu0 %3044
      %3046 = vrot.lane.b32.xlu0 %v2961, 60
      %v3047 = vpop.permute.xlu0 %3046
      %3048 = vrot.lane.b32.xlu0 %v2962, 60
      %v3049 = vpop.permute.xlu0 %3048
      %3050 = vrot.lane.b32.xlu0 %v2963, 60
      %v3051 = vpop.permute.xlu0 %3050
      %3052 = vrot.lane.b32.xlu0 %v2964, 60
      %v3053 = vpop.permute.xlu0 %3052
      %3054 = vrot.lane.b32.xlu0 %v2965, 60
      %v3055 = vpop.permute.xlu0 %3054
      %3056 = vrot.lane.b32.xlu0 %v2966, 60
      %v3057 = vpop.permute.xlu0 %3056
      %3058 = vrot.lane.b32.xlu0 %v2967, 60
      %v3059 = vpop.permute.xlu0 %3058
      %3060 = vrot.lane.b32.xlu0 %v2968, 60
      %v3061 = vpop.permute.xlu0 %3060
      %3062 = vrot.lane.b32.xlu0 %v2969, 60
      %v3063 = vpop.permute.xlu0 %3062
      %3064 = vrot.lane.b32.xlu0 %v2970, 60
      %v3065 = vpop.permute.xlu0 %3064
      %3066 = vrot.lane.b32.xlu0 %v2971, 60
      %v3067 = vpop.permute.xlu0 %3066
      %vm3100 = vcmask 523744
      %3101 = vst.msk [vmem:[#allocation2] sm:$0xff] %vm3100, %v3005
      %3102 = vst.msk [vmem:[#allocation2 + $0x8] sm:$0xff] %vm3100, %v3007
      %3103 = vst.msk [vmem:[#allocation2 + $0x10] sm:$0xff] %vm3100, %v3009
      %3104 = vst.msk [vmem:[#allocation2 + $0x18] sm:$0xff] %vm3100, %v3011
      %3105 = vst.msk [vmem:[#allocation2 + $0x20] sm:$0xff] %vm3100, %v3013
      %3106 = vst.msk [vmem:[#allocation2 + $0x28] sm:$0xff] %vm3100, %v3015
      %3107 = vst.msk [vmem:[#allocation2 + $0x30] sm:$0xff] %vm3100, %v3017
      %3108 = vst.msk [vmem:[#allocation2 + $0x38] sm:$0xff] %vm3100, %v3019
      %3109 = vst.msk [vmem:[#allocation2 + $0x40] sm:$0xff] %vm3100, %v3021
      %3110 = vst.msk [vmem:[#allocation2 + $0x48] sm:$0xff] %vm3100, %v3023
      %3111 = vst.msk [vmem:[#allocation2 + $0x50] sm:$0xff] %vm3100, %v3025
      %3112 = vst.msk [vmem:[#allocation2 + $0x58] sm:$0xff] %vm3100, %v3027
      %3113 = vst.msk [vmem:[#allocation2 + $0x60] sm:$0xff] %vm3100, %v3029
      %3114 = vst.msk [vmem:[#allocation2 + $0x68] sm:$0xff] %vm3100, %v3031
      %3115 = vst.msk [vmem:[#allocation2 + $0x70] sm:$0xff] %vm3100, %v3033
      %3116 = vst.msk [vmem:[#allocation2 + $0x78] sm:$0xff] %vm3100, %v3035
      %3117 = vst.msk [vmem:[#allocation2 + $0x80] sm:$0xff] %vm3100, %v3037
      %3118 = vst.msk [vmem:[#allocation2 + $0x88] sm:$0xff] %vm3100, %v3039
      %3119 = vst.msk [vmem:[#allocation2 + $0x90] sm:$0xff] %vm3100, %v3041
      %3120 = vst.msk [vmem:[#allocation2 + $0x98] sm:$0xff] %vm3100, %v3043
      %3121 = vst.msk [vmem:[#allocation2 + $0xa0] sm:$0xff] %vm3100, %v3045
      %3122 = vst.msk [vmem:[#allocation2 + $0xa8] sm:$0xff] %vm3100, %v3047
      %3123 = vst.msk [vmem:[#allocation2 + $0xb0] sm:$0xff] %vm3100, %v3049
      %3124 = vst.msk [vmem:[#allocation2 + $0xb8] sm:$0xff] %vm3100, %v3051
      %3125 = vst.msk [vmem:[#allocation2 + $0xc0] sm:$0xff] %vm3100, %v3053
      %3126 = vst.msk [vmem:[#allocation2 + $0xc8] sm:$0xff] %vm3100, %v3055
      %3127 = vst.msk [vmem:[#allocation2 + $0xd0] sm:$0xff] %vm3100, %v3057
      %3128 = vst.msk [vmem:[#allocation2 + $0xd8] sm:$0xff] %vm3100, %v3059
      %3129 = vst.msk [vmem:[#allocation2 + $0xe0] sm:$0xff] %vm3100, %v3061
      %3130 = vst.msk [vmem:[#allocation2 + $0xe8] sm:$0xff] %vm3100, %v3063
      %3131 = vst.msk [vmem:[#allocation2 + $0xf0] sm:$0xff] %vm3100, %v3065
      %3132 = vst.msk [vmem:[#allocation2 + $0xf8] sm:$0xff] %vm3100, %v3067
      %v3133 = vld [vmem:[%s2939 + $0x2] sm:$0xff]
      %v3134 = vld [vmem:[%s2939 + $0xa] sm:$0xff]
      %v3135 = vld [vmem:[%s2939 + $0x1a] sm:$0xff]
      %v3136 = vld [vmem:[%s2939 + $0x22] sm:$0xff]
      %v3137 = vld [vmem:[%s2939 + $0x32] sm:$0xff]
      %v3138 = vld [vmem:[%s2939 + $0x3a] sm:$0xff]
      %v3139 = vld [vmem:[%s2939 + $0x4a] sm:$0xff]
      %v3140 = vld [vmem:[%s2939 + $0x52] sm:$0xff]
      %v3141 = vld [vmem:[%s2939 + $0x62] sm:$0xff]
      %v3142 = vld [vmem:[%s2939 + $0x6a] sm:$0xff]
      %v3143 = vld [vmem:[%s2939 + $0x7a] sm:$0xff]
      %v3144 = vld [vmem:[%s2939 + $0x82] sm:$0xff]
      %v3145 = vld [vmem:[%s2939 + $0x92] sm:$0xff]
      %v3146 = vld [vmem:[%s2939 + $0x9a] sm:$0xff]
      %v3147 = vld [vmem:[%s2939 + $0xaa] sm:$0xff]
      %v3148 = vld [vmem:[%s2939 + $0xb2] sm:$0xff]
      %v3149 = vld [vmem:[%s2939 + $0xc2] sm:$0xff]
      %v3150 = vld [vmem:[%s2939 + $0xca] sm:$0xff]
      %v3151 = vld [vmem:[%s2939 + $0xda] sm:$0xff]
      %v3152 = vld [vmem:[%s2939 + $0xe2] sm:$0xff]
      %v3153 = vld [vmem:[%s2939 + $0xf2] sm:$0xff]
      %v3154 = vld [vmem:[%s2939 + $0xfa] sm:$0xff]
      %v3155 = vld [vmem:[%s2939 + $0x10a] sm:$0xff]
      %v3156 = vld [vmem:[%s2939 + $0x112] sm:$0xff]
      %v3157 = vld [vmem:[%s2939 + $0x122] sm:$0xff]
      %v3158 = vld [vmem:[%s2939 + $0x12a] sm:$0xff]
      %v3159 = vld [vmem:[%s2939 + $0x13a] sm:$0xff]
      %v3160 = vld [vmem:[%s2939 + $0x142] sm:$0xff]
      %v3161 = vld [vmem:[%s2939 + $0x152] sm:$0xff]
      %v3162 = vld [vmem:[%s2939 + $0x15a] sm:$0xff]
      %v3163 = vld [vmem:[%s2939 + $0x16a] sm:$0xff]
      %v3164 = vld [vmem:[%s2939 + $0x172] sm:$0xff]
      %3197 = vrot.lane.b32.xlu0 %v3133, 64
      %v3198 = vpop.permute.xlu0 %3197
      %3199 = vrot.lane.b32.xlu0 %v3134, 64
      %v3200 = vpop.permute.xlu0 %3199
      %3201 = vrot.lane.b32.xlu0 %v3135, 64
      %v3202 = vpop.permute.xlu0 %3201
      %3203 = vrot.lane.b32.xlu0 %v3136, 64
      %v3204 = vpop.permute.xlu0 %3203
      %3205 = vrot.lane.b32.xlu0 %v3137, 64
      %v3206 = vpop.permute.xlu0 %3205
      %3207 = vrot.lane.b32.xlu0 %v3138, 64
      %v3208 = vpop.permute.xlu0 %3207
      %3209 = vrot.lane.b32.xlu0 %v3139, 64
      %v3210 = vpop.permute.xlu0 %3209
      %3211 = vrot.lane.b32.xlu0 %v3140, 64
      %v3212 = vpop.permute.xlu0 %3211
      %3213 = vrot.lane.b32.xlu0 %v3141, 64
      %v3214 = vpop.permute.xlu0 %3213
      %3215 = vrot.lane.b32.xlu0 %v3142, 64
      %v3216 = vpop.permute.xlu0 %3215
      %3217 = vrot.lane.b32.xlu0 %v3143, 64
      %v3218 = vpop.permute.xlu0 %3217
      %3219 = vrot.lane.b32.xlu0 %v3144, 64
      %v3220 = vpop.permute.xlu0 %3219
      %3221 = vrot.lane.b32.xlu0 %v3145, 64
      %v3222 = vpop.permute.xlu0 %3221
      %3223 = vrot.lane.b32.xlu0 %v3146, 64
      %v3224 = vpop.permute.xlu0 %3223
      %3225 = vrot.lane.b32.xlu0 %v3147, 64
      %v3226 = vpop.permute.xlu0 %3225
      %3227 = vrot.lane.b32.xlu0 %v3148, 64
      %v3228 = vpop.permute.xlu0 %3227
      %3229 = vrot.lane.b32.xlu0 %v3149, 64
      %v3230 = vpop.permute.xlu0 %3229
      %3231 = vrot.lane.b32.xlu0 %v3150, 64
      %v3232 = vpop.permute.xlu0 %3231
      %3233 = vrot.lane.b32.xlu0 %v3151, 64
      %v3234 = vpop.permute.xlu0 %3233
      %3235 = vrot.lane.b32.xlu0 %v3152, 64
      %v3236 = vpop.permute.xlu0 %3235
      %3237 = vrot.lane.b32.xlu0 %v3153, 64
      %v3238 = vpop.permute.xlu0 %3237
      %3239 = vrot.lane.b32.xlu0 %v3154, 64
      %v3240 = vpop.permute.xlu0 %3239
      %3241 = vrot.lane.b32.xlu0 %v3155, 64
      %v3242 = vpop.permute.xlu0 %3241
      %3243 = vrot.lane.b32.xlu0 %v3156, 64
      %v3244 = vpop.permute.xlu0 %3243
      %3245 = vrot.lane.b32.xlu0 %v3157, 64
      %v3246 = vpop.permute.xlu0 %3245
      %3247 = vrot.lane.b32.xlu0 %v3158, 64
      %v3248 = vpop.permute.xlu0 %3247
      %3249 = vrot.lane.b32.xlu0 %v3159, 64
      %v3250 = vpop.permute.xlu0 %3249
      %3251 = vrot.lane.b32.xlu0 %v3160, 64
      %v3252 = vpop.permute.xlu0 %3251
      %3253 = vrot.lane.b32.xlu0 %v3161, 64
      %v3254 = vpop.permute.xlu0 %3253
      %3255 = vrot.lane.b32.xlu0 %v3162, 64
      %v3256 = vpop.permute.xlu0 %3255
      %3257 = vrot.lane.b32.xlu0 %v3163, 64
      %v3258 = vpop.permute.xlu0 %3257
      %3259 = vrot.lane.b32.xlu0 %v3164, 64
      %v3260 = vpop.permute.xlu0 %3259
      %vm3293 = vcmask 556544
      %3294 = vst.msk [vmem:[#allocation2] sm:$0xff] %vm3293, %v3198
      %3295 = vst.msk [vmem:[#allocation2 + $0x8] sm:$0xff] %vm3293, %v3200
      %3296 = vst.msk [vmem:[#allocation2 + $0x10] sm:$0xff] %vm3293, %v3202
      %3297 = vst.msk [vmem:[#allocation2 + $0x18] sm:$0xff] %vm3293, %v3204
      %3298 = vst.msk [vmem:[#allocation2 + $0x20] sm:$0xff] %vm3293, %v3206
      %3299 = vst.msk [vmem:[#allocation2 + $0x28] sm:$0xff] %vm3293, %v3208
      %3300 = vst.msk [vmem:[#allocation2 + $0x30] sm:$0xff] %vm3293, %v3210
      %3301 = vst.msk [vmem:[#allocation2 + $0x38] sm:$0xff] %vm3293, %v3212
      %3302 = vst.msk [vmem:[#allocation2 + $0x40] sm:$0xff] %vm3293, %v3214
      %3303 = vst.msk [vmem:[#allocation2 + $0x48] sm:$0xff] %vm3293, %v3216
      %3304 = vst.msk [vmem:[#allocation2 + $0x50] sm:$0xff] %vm3293, %v3218
      %3305 = vst.msk [vmem:[#allocation2 + $0x58] sm:$0xff] %vm3293, %v3220
      %3306 = vst.msk [vmem:[#allocation2 + $0x60] sm:$0xff] %vm3293, %v3222
      %3307 = vst.msk [vmem:[#allocation2 + $0x68] sm:$0xff] %vm3293, %v3224
      %3308 = vst.msk [vmem:[#allocation2 + $0x70] sm:$0xff] %vm3293, %v3226
      %3309 = vst.msk [vmem:[#allocation2 + $0x78] sm:$0xff] %vm3293, %v3228
      %3310 = vst.msk [vmem:[#allocation2 + $0x80] sm:$0xff] %vm3293, %v3230
      %3311 = vst.msk [vmem:[#allocation2 + $0x88] sm:$0xff] %vm3293, %v3232
      %3312 = vst.msk [vmem:[#allocation2 + $0x90] sm:$0xff] %vm3293, %v3234
      %3313 = vst.msk [vmem:[#allocation2 + $0x98] sm:$0xff] %vm3293, %v3236
      %3314 = vst.msk [vmem:[#allocation2 + $0xa0] sm:$0xff] %vm3293, %v3238
      %3315 = vst.msk [vmem:[#allocation2 + $0xa8] sm:$0xff] %vm3293, %v3240
      %3316 = vst.msk [vmem:[#allocation2 + $0xb0] sm:$0xff] %vm3293, %v3242
      %3317 = vst.msk [vmem:[#allocation2 + $0xb8] sm:$0xff] %vm3293, %v3244
      %3318 = vst.msk [vmem:[#allocation2 + $0xc0] sm:$0xff] %vm3293, %v3246
      %3319 = vst.msk [vmem:[#allocation2 + $0xc8] sm:$0xff] %vm3293, %v3248
      %3320 = vst.msk [vmem:[#allocation2 + $0xd0] sm:$0xff] %vm3293, %v3250
      %3321 = vst.msk [vmem:[#allocation2 + $0xd8] sm:$0xff] %vm3293, %v3252
      %3322 = vst.msk [vmem:[#allocation2 + $0xe0] sm:$0xff] %vm3293, %v3254
      %3323 = vst.msk [vmem:[#allocation2 + $0xe8] sm:$0xff] %vm3293, %v3256
      %3324 = vst.msk [vmem:[#allocation2 + $0xf0] sm:$0xff] %vm3293, %v3258
      %3325 = vst.msk [vmem:[#allocation2 + $0xf8] sm:$0xff] %vm3293, %v3260
      %v3326 = vld [vmem:[%s2939 + $0x3] sm:$0xff]
      %v3327 = vld [vmem:[%s2939 + $0xb] sm:$0xff]
      %v3328 = vld [vmem:[%s2939 + $0x1b] sm:$0xff]
      %v3329 = vld [vmem:[%s2939 + $0x23] sm:$0xff]
      %v3330 = vld [vmem:[%s2939 + $0x33] sm:$0xff]
      %v3331 = vld [vmem:[%s2939 + $0x3b] sm:$0xff]
      %v3332 = vld [vmem:[%s2939 + $0x4b] sm:$0xff]
      %v3333 = vld [vmem:[%s2939 + $0x53] sm:$0xff]
      %v3334 = vld [vmem:[%s2939 + $0x63] sm:$0xff]
      %v3335 = vld [vmem:[%s2939 + $0x6b] sm:$0xff]
      %v3336 = vld [vmem:[%s2939 + $0x7b] sm:$0xff]
      %v3337 = vld [vmem:[%s2939 + $0x83] sm:$0xff]
      %v3338 = vld [vmem:[%s2939 + $0x93] sm:$0xff]
      %v3339 = vld [vmem:[%s2939 + $0x9b] sm:$0xff]
      %v3340 = vld [vmem:[%s2939 + $0xab] sm:$0xff]
      %v3341 = vld [vmem:[%s2939 + $0xb3] sm:$0xff]
      %v3342 = vld [vmem:[%s2939 + $0xc3] sm:$0xff]
      %v3343 = vld [vmem:[%s2939 + $0xcb] sm:$0xff]
      %v3344 = vld [vmem:[%s2939 + $0xdb] sm:$0xff]
      %v3345 = vld [vmem:[%s2939 + $0xe3] sm:$0xff]
      %v3346 = vld [vmem:[%s2939 + $0xf3] sm:$0xff]
      %v3347 = vld [vmem:[%s2939 + $0xfb] sm:$0xff]
      %v3348 = vld [vmem:[%s2939 + $0x10b] sm:$0xff]
      %v3349 = vld [vmem:[%s2939 + $0x113] sm:$0xff]
      %v3350 = vld [vmem:[%s2939 + $0x123] sm:$0xff]
      %v3351 = vld [vmem:[%s2939 + $0x12b] sm:$0xff]
      %v3352 = vld [vmem:[%s2939 + $0x13b] sm:$0xff]
      %v3353 = vld [vmem:[%s2939 + $0x143] sm:$0xff]
      %v3354 = vld [vmem:[%s2939 + $0x153] sm:$0xff]
      %v3355 = vld [vmem:[%s2939 + $0x15b] sm:$0xff]
      %v3356 = vld [vmem:[%s2939 + $0x16b] sm:$0xff]
      %v3357 = vld [vmem:[%s2939 + $0x173] sm:$0xff]
      %3390 = vrot.lane.b32.xlu0 %v3326, 68
      %v3391 = vpop.permute.xlu0 %3390
      %3392 = vrot.lane.b32.xlu0 %v3327, 68
      %v3393 = vpop.permute.xlu0 %3392
      %3394 = vrot.lane.b32.xlu0 %v3328, 68
      %v3395 = vpop.permute.xlu0 %3394
      %3396 = vrot.lane.b32.xlu0 %v3329, 68
      %v3397 = vpop.permute.xlu0 %3396
      %3398 = vrot.lane.b32.xlu0 %v3330, 68
      %v3399 = vpop.permute.xlu0 %3398
      %3400 = vrot.lane.b32.xlu0 %v3331, 68
      %v3401 = vpop.permute.xlu0 %3400
      %3402 = vrot.lane.b32.xlu0 %v3332, 68
      %v3403 = vpop.permute.xlu0 %3402
      %3404 = vrot.lane.b32.xlu0 %v3333, 68
      %v3405 = vpop.permute.xlu0 %3404
      %3406 = vrot.lane.b32.xlu0 %v3334, 68
      %v3407 = vpop.permute.xlu0 %3406
      %3408 = vrot.lane.b32.xlu0 %v3335, 68
      %v3409 = vpop.permute.xlu0 %3408
      %3410 = vrot.lane.b32.xlu0 %v3336, 68
      %v3411 = vpop.permute.xlu0 %3410
      %3412 = vrot.lane.b32.xlu0 %v3337, 68
      %v3413 = vpop.permute.xlu0 %3412
      %3414 = vrot.lane.b32.xlu0 %v3338, 68
      %v3415 = vpop.permute.xlu0 %3414
      %3416 = vrot.lane.b32.xlu0 %v3339, 68
      %v3417 = vpop.permute.xlu0 %3416
      %3418 = vrot.lane.b32.xlu0 %v3340, 68
      %v3419 = vpop.permute.xlu0 %3418
      %3420 = vrot.lane.b32.xlu0 %v3341, 68
      %v3421 = vpop.permute.xlu0 %3420
      %3422 = vrot.lane.b32.xlu0 %v3342, 68
      %v3423 = vpop.permute.xlu0 %3422
      %3424 = vrot.lane.b32.xlu0 %v3343, 68
      %v3425 = vpop.permute.xlu0 %3424
      %3426 = vrot.lane.b32.xlu0 %v3344, 68
      %v3427 = vpop.permute.xlu0 %3426
      %3428 = vrot.lane.b32.xlu0 %v3345, 68
      %v3429 = vpop.permute.xlu0 %3428
      %3430 = vrot.lane.b32.xlu0 %v3346, 68
      %v3431 = vpop.permute.xlu0 %3430
      %3432 = vrot.lane.b32.xlu0 %v3347, 68
      %v3433 = vpop.permute.xlu0 %3432
      %3434 = vrot.lane.b32.xlu0 %v3348, 68
      %v3435 = vpop.permute.xlu0 %3434
      %3436 = vrot.lane.b32.xlu0 %v3349, 68
      %v3437 = vpop.permute.xlu0 %3436
      %3438 = vrot.lane.b32.xlu0 %v3350, 68
      %v3439 = vpop.permute.xlu0 %3438
      %3440 = vrot.lane.b32.xlu0 %v3351, 68
      %v3441 = vpop.permute.xlu0 %3440
      %3442 = vrot.lane.b32.xlu0 %v3352, 68
      %v3443 = vpop.permute.xlu0 %3442
      %3444 = vrot.lane.b32.xlu0 %v3353, 68
      %v3445 = vpop.permute.xlu0 %3444
      %3446 = vrot.lane.b32.xlu0 %v3354, 68
      %v3447 = vpop.permute.xlu0 %3446
      %3448 = vrot.lane.b32.xlu0 %v3355, 68
      %v3449 = vpop.permute.xlu0 %3448
      %3450 = vrot.lane.b32.xlu0 %v3356, 68
      %v3451 = vpop.permute.xlu0 %3450
      %3452 = vrot.lane.b32.xlu0 %v3357, 68
      %v3453 = vpop.permute.xlu0 %3452
      %vm3486 = vcmask 589344
      %3487 = vst.msk [vmem:[#allocation2] sm:$0xff] %vm3486, %v3391
      %3488 = vst.msk [vmem:[#allocation2 + $0x8] sm:$0xff] %vm3486, %v3393
      %3489 = vst.msk [vmem:[#allocation2 + $0x10] sm:$0xff] %vm3486, %v3395
      %3490 = vst.msk [vmem:[#allocation2 + $0x18] sm:$0xff] %vm3486, %v3397
      %3491 = vst.msk [vmem:[#allocation2 + $0x20] sm:$0xff] %vm3486, %v3399
      %3492 = vst.msk [vmem:[#allocation2 + $0x28] sm:$0xff] %vm3486, %v3401
      %3493 = vst.msk [vmem:[#allocation2 + $0x30] sm:$0xff] %vm3486, %v3403
      %3494 = vst.msk [vmem:[#allocation2 + $0x38] sm:$0xff] %vm3486, %v3405
      %3495 = vst.msk [vmem:[#allocation2 + $0x40] sm:$0xff] %vm3486, %v3407
      %3496 = vst.msk [vmem:[#allocation2 + $0x48] sm:$0xff] %vm3486, %v3409
      %3497 = vst.msk [vmem:[#allocation2 + $0x50] sm:$0xff] %vm3486, %v3411
      %3498 = vst.msk [vmem:[#allocation2 + $0x58] sm:$0xff] %vm3486, %v3413
      %3499 = vst.msk [vmem:[#allocation2 + $0x60] sm:$0xff] %vm3486, %v3415
      %3500 = vst.msk [vmem:[#allocation2 + $0x68] sm:$0xff] %vm3486, %v3417
      %3501 = vst.msk [vmem:[#allocation2 + $0x70] sm:$0xff] %vm3486, %v3419
      %3502 = vst.msk [vmem:[#allocation2 + $0x78] sm:$0xff] %vm3486, %v3421
      %3503 = vst.msk [vmem:[#allocation2 + $0x80] sm:$0xff] %vm3486, %v3423
      %3504 = vst.msk [vmem:[#allocation2 + $0x88] sm:$0xff] %vm3486, %v3425
      %3505 = vst.msk [vmem:[#allocation2 + $0x90] sm:$0xff] %vm3486, %v3427
      %3506 = vst.msk [vmem:[#allocation2 + $0x98] sm:$0xff] %vm3486, %v3429
      %3507 = vst.msk [vmem:[#allocation2 + $0xa0] sm:$0xff] %vm3486, %v3431
      %3508 = vst.msk [vmem:[#allocation2 + $0xa8] sm:$0xff] %vm3486, %v3433
      %3509 = vst.msk [vmem:[#allocation2 + $0xb0] sm:$0xff] %vm3486, %v3435
      %3510 = vst.msk [vmem:[#allocation2 + $0xb8] sm:$0xff] %vm3486, %v3437
      %3511 = vst.msk [vmem:[#allocation2 + $0xc0] sm:$0xff] %vm3486, %v3439
      %3512 = vst.msk [vmem:[#allocation2 + $0xc8] sm:$0xff] %vm3486, %v3441
      %3513 = vst.msk [vmem:[#allocation2 + $0xd0] sm:$0xff] %vm3486, %v3443
      %3514 = vst.msk [vmem:[#allocation2 + $0xd8] sm:$0xff] %vm3486, %v3445
      %3515 = vst.msk [vmem:[#allocation2 + $0xe0] sm:$0xff] %vm3486, %v3447
      %3516 = vst.msk [vmem:[#allocation2 + $0xe8] sm:$0xff] %vm3486, %v3449
      %3517 = vst.msk [vmem:[#allocation2 + $0xf0] sm:$0xff] %vm3486, %v3451
      %3518 = vst.msk [vmem:[#allocation2 + $0xf8] sm:$0xff] %vm3486, %v3453
      %v3519 = vld [vmem:[#allocation2] sm:$0xff]
      %v3520 = vld [vmem:[#allocation2 + $0x8] sm:$0xff]
      %v3521 = vld [vmem:[#allocation2 + $0x10] sm:$0xff]
      %v3522 = vld [vmem:[#allocation2 + $0x18] sm:$0xff]
      %v3523 = vld [vmem:[#allocation2 + $0x20] sm:$0xff]
      %v3524 = vld [vmem:[#allocation2 + $0x28] sm:$0xff]
      %v3525 = vld [vmem:[#allocation2 + $0x30] sm:$0xff]
      %v3526 = vld [vmem:[#allocation2 + $0x38] sm:$0xff]
      %v3527 = vld [vmem:[#allocation2 + $0x40] sm:$0xff]
      %v3528 = vld [vmem:[#allocation2 + $0x48] sm:$0xff]
      %v3529 = vld [vmem:[#allocation2 + $0x50] sm:$0xff]
      %v3530 = vld [vmem:[#allocation2 + $0x58] sm:$0xff]
      %v3531 = vld [vmem:[#allocation2 + $0x60] sm:$0xff]
      %v3532 = vld [vmem:[#allocation2 + $0x68] sm:$0xff]
      %v3533 = vld [vmem:[#allocation2 + $0x70] sm:$0xff]
      %v3534 = vld [vmem:[#allocation2 + $0x78] sm:$0xff]
      %v3535 = vld [vmem:[#allocation2 + $0x80] sm:$0xff]
      %v3536 = vld [vmem:[#allocation2 + $0x88] sm:$0xff]
      %v3537 = vld [vmem:[#allocation2 + $0x90] sm:$0xff]
      %v3538 = vld [vmem:[#allocation2 + $0x98] sm:$0xff]
      %v3539 = vld [vmem:[#allocation2 + $0xa0] sm:$0xff]
      %v3540 = vld [vmem:[#allocation2 + $0xa8] sm:$0xff]
      %v3541 = vld [vmem:[#allocation2 + $0xb0] sm:$0xff]
      %v3542 = vld [vmem:[#allocation2 + $0xb8] sm:$0xff]
      %v3543 = vld [vmem:[#allocation2 + $0xc0] sm:$0xff]
      %v3544 = vld [vmem:[#allocation2 + $0xc8] sm:$0xff]
      %v3545 = vld [vmem:[#allocation2 + $0xd0] sm:$0xff]
      %v3546 = vld [vmem:[#allocation2 + $0xd8] sm:$0xff]
      %v3547 = vld [vmem:[#allocation2 + $0xe0] sm:$0xff]
      %v3548 = vld [vmem:[#allocation2 + $0xe8] sm:$0xff]
      %v3549 = vld [vmem:[#allocation2 + $0xf0] sm:$0xff]
      %v3550 = vld [vmem:[#allocation2 + $0xf8] sm:$0xff]
      %v3551 = vld [vmem:[%s1] sm:$0xff]
      %v3552 = vld [vmem:[%s1 + $0x8] sm:$0xff]
      %v3553 = vld [vmem:[%s1 + $0x10] sm:$0xff]
      %v3554 = vld [vmem:[%s1 + $0x18] sm:$0xff]
      %v3555 = vld [vmem:[%s1 + $0x20] sm:$0xff]
      %v3556 = vld [vmem:[%s1 + $0x28] sm:$0xff]
      %v3557 = vld [vmem:[%s1 + $0x30] sm:$0xff]
      %v3558 = vld [vmem:[%s1 + $0x38] sm:$0xff]
      %v3559 = vld [vmem:[%s1 + $0x40] sm:$0xff]
      %v3560 = vld [vmem:[%s2] sm:$0x1]
      %v3562 = vlaneseq
      %v3563 = vshrl.u32 %v3562, 7
      %v3564 = vsub.s32 0, %v3563
      %v3565 = vrot.slane %v3560, %v3564
      %vm3567 = vcmask 588800
      %v3569 = vsel %vm3567, %v3519, 0
      %v3572 = vsel %vm3567, %v3520, 0
      %v3575 = vsel %vm3567, %v3521, 0
      %v3578 = vsel %vm3567, %v3522, 0
      %v3581 = vsel %vm3567, %v3523, 0
      %v3584 = vsel %vm3567, %v3524, 0
      %v3587 = vsel %vm3567, %v3525, 0
      %v3590 = vsel %vm3567, %v3526, 0
      %v3593 = vsel %vm3567, %v3527, 0
      %v3596 = vsel %vm3567, %v3528, 0
      %v3599 = vsel %vm3567, %v3529, 0
      %v3602 = vsel %vm3567, %v3530, 0
      %v3605 = vsel %vm3567, %v3531, 0
      %v3608 = vsel %vm3567, %v3532, 0
      %v3611 = vsel %vm3567, %v3533, 0
      %v3614 = vsel %vm3567, %v3534, 0
      %v3617 = vsel %vm3567, %v3535, 0
      %v3620 = vsel %vm3567, %v3536, 0
      %v3623 = vsel %vm3567, %v3537, 0
      %v3626 = vsel %vm3567, %v3538, 0
      %v3629 = vsel %vm3567, %v3539, 0
      %v3632 = vsel %vm3567, %v3540, 0
      %v3635 = vsel %vm3567, %v3541, 0
      %v3638 = vsel %vm3567, %v3542, 0
      %v3641 = vsel %vm3567, %v3543, 0
      %v3644 = vsel %vm3567, %v3544, 0
      %v3647 = vsel %vm3567, %v3545, 0
      %v3650 = vsel %vm3567, %v3546, 0
      %v3653 = vsel %vm3567, %v3547, 0
      %v3656 = vsel %vm3567, %v3548, 0
      %v3659 = vsel %vm3567, %v3549, 0
      %v3662 = vsel %vm3567, %v3550, 0
      %3664 = vmatprep.subr.mxu0 0.0
      %3665 = vmatpush1.msra.mxu0 %v3551
      %3666 = vmatprep.subr.mxu0 0.0
      %3667 = vmatpush1.msra.mxu0 %v3552
      %3668 = vmatprep.subr.mxu0 0.0
      %3669 = vmatpush1.msra.mxu0 %v3553
      %3670 = vmatprep.subr.mxu0 0.0
      %3671 = vmatpush1.msra.mxu0 %v3554
      %3672 = vmatprep.subr.mxu0 0.0
      %3673 = vmatpush1.msra.mxu0 %v3555
      %3674 = vmatprep.subr.mxu0 0.0
      %3675 = vmatpush1.msra.mxu0 %v3556
      %3676 = vmatprep.subr.mxu0 0.0
      %3677 = vmatpush1.msra.mxu0 %v3557
      %3678 = vmatprep.subr.mxu0 0.0
      %3679 = vmatpush1.msra.mxu0 %v3558
      %3680 = vmatprep.subr.mxu0 0.0
      %3681 = vmatpush1.msra.mxu0 %v3559
      %3682 = vmatprep.subr.mxu0 0.0
      %3683 = vmatpush1.msra.mxu0 0.0
      %3684 = vmatprep.subr.mxu0 0.0
      %3685 = vmatpush1.msra.mxu0 0.0
      %3686 = vmatprep.subr.mxu0 0.0
      %3687 = vmatpush1.msra.mxu0 0.0
      %3688 = vmatprep.subr.mxu0 0.0
      %3689 = vmatpush1.msra.mxu0 0.0
      %3690 = vmatprep.subr.mxu0 0.0
      %3691 = vmatpush1.msra.mxu0 0.0
      %3692 = vmatprep.subr.mxu0 0.0
      %3693 = vmatpush1.msra.mxu0 0.0
      %3694 = vmatprep.subr.mxu0 0.0
      %3695 = vmatpush1.msra.mxu0 0.0
      %3696 = vmatprep.subr.mxu0 0.0
      %3697 = vmatpush1.msra.mxu0 0.0
      %3698 = vmatprep.subr.mxu0 0.0
      %3699 = vmatpush1.msra.mxu0 0.0
      %3700 = vmatprep.subr.mxu0 0.0
      %3701 = vmatpush1.msra.mxu0 0.0
      %3702 = vmatprep.subr.mxu0 0.0
      %3703 = vmatpush1.msra.mxu0 0.0
      %3704 = vmatprep.subr.mxu0 0.0
      %3705 = vmatpush1.msra.mxu0 0.0
      %3706 = vmatprep.subr.mxu0 0.0
      %3707 = vmatpush1.msra.mxu0 0.0
      %3708 = vmatprep.subr.mxu0 0.0
      %3709 = vmatpush1.msra.mxu0 0.0
      %3710 = vmatprep.subr.mxu0 0.0
      %3711 = vmatpush1.msra.mxu0 0.0
      %3712 = vmatprep.subr.mxu0 0.0
      %3713 = vmatpush1.msra.mxu0 0.0
      %3714 = vmatprep.subr.mxu0 0.0
      %3715 = vmatpush1.msra.mxu0 0.0
      %3716 = vmatprep.subr.mxu0 0.0
      %3717 = vmatpush1.msra.mxu0 0.0
      %3718 = vmatprep.subr.mxu0 0.0
      %3719 = vmatpush1.msra.mxu0 0.0
      %3720 = vmatprep.subr.mxu0 0.0
      %3721 = vmatpush1.msra.mxu0 0.0
      %3722 = vmatprep.subr.mxu0 0.0
      %3723 = vmatpush1.msra.mxu0 0.0
      %3724 = vmatprep.subr.mxu0 0.0
      %3725 = vmatpush1.msra.mxu0 0.0
      %3726 = vmatprep.subr.mxu0 0.0
      %3727 = vmatpush1.msra.mxu0 0.0
      %3728 = vmatprep.mubr.f32.mxu0 0.0
      %3729 = vmatmul.mubr.f32.gmra.mrb[0].mxu0 %v3569
      %v3730 = vpop.f32.mrb[0].mxu0
      %v3731 = vadd.f32 %v3565, %v3730
      %v3732 = vpop.f32.mrb[0].mxu0
      %3733 = vmatprep.mubr.f32.mxu0 0.0
      %3734 = vmatmul.mubr.f32.gmra.mrb[0].mxu0 %v3572
      %v3735 = vpop.f32.mrb[0].mxu0
      %v3736 = vadd.f32 %v3565, %v3735
      %v3737 = vpop.f32.mrb[0].mxu0
      %3738 = vmatprep.mubr.f32.mxu0 0.0
      %3739 = vmatmul.mubr.f32.gmra.mrb[0].mxu0 %v3575
      %v3740 = vpop.f32.mrb[0].mxu0
      %v3741 = vadd.f32 %v3565, %v3740
      %v3742 = vpop.f32.mrb[0].mxu0
      %3743 = vmatprep.mubr.f32.mxu0 0.0
      %3744 = vmatmul.mubr.f32.gmra.mrb[0].mxu0 %v3578
      %v3745 = vpop.f32.mrb[0].mxu0
      %v3746 = vadd.f32 %v3565, %v3745
      %v3747 = vpop.f32.mrb[0].mxu0
      %3748 = vmatprep.mubr.f32.mxu0 0.0
      %3749 = vmatmul.mubr.f32.gmra.mrb[0].mxu0 %v3581
      %v3750 = vpop.f32.mrb[0].mxu0
      %v3751 = vadd.f32 %v3565, %v3750
      %v3752 = vpop.f32.mrb[0].mxu0
      %3753 = vmatprep.mubr.f32.mxu0 0.0
      %3754 = vmatmul.mubr.f32.gmra.mrb[0].mxu0 %v3584
      %v3755 = vpop.f32.mrb[0].mxu0
      %v3756 = vadd.f32 %v3565, %v3755
      %v3757 = vpop.f32.mrb[0].mxu0
      %3758 = vmatprep.mubr.f32.mxu0 0.0
      %3759 = vmatmul.mubr.f32.gmra.mrb[0].mxu0 %v3587
      %v3760 = vpop.f32.mrb[0].mxu0
      %v3761 = vadd.f32 %v3565, %v3760
      %v3762 = vpop.f32.mrb[0].mxu0
      %3763 = vmatprep.mubr.f32.mxu0 0.0
      %3764 = vmatmul.mubr.f32.gmra.mrb[0].mxu0 %v3590
      %v3765 = vpop.f32.mrb[0].mxu0
      %v3766 = vadd.f32 %v3565, %v3765
      %v3767 = vpop.f32.mrb[0].mxu0
      %3768 = vmatprep.mubr.f32.mxu0 0.0
      %3769 = vmatmul.mubr.f32.gmra.mrb[0].mxu0 %v3593
      %v3770 = vpop.f32.mrb[0].mxu0
      %v3771 = vadd.f32 %v3565, %v3770
      %v3772 = vpop.f32.mrb[0].mxu0
      %3773 = vmatprep.mubr.f32.mxu0 0.0
      %3774 = vmatmul.mubr.f32.gmra.mrb[0].mxu0 %v3596
      %v3775 = vpop.f32.mrb[0].mxu0
      %v3776 = vadd.f32 %v3565, %v3775
      %v3777 = vpop.f32.mrb[0].mxu0
      %3778 = vmatprep.mubr.f32.mxu0 0.0
      %3779 = vmatmul.mubr.f32.gmra.mrb[0].mxu0 %v3599
      %v3780 = vpop.f32.mrb[0].mxu0
      %v3781 = vadd.f32 %v3565, %v3780
      %v3782 = vpop.f32.mrb[0].mxu0
      %3783 = vmatprep.mubr.f32.mxu0 0.0
      %3784 = vmatmul.mubr.f32.gmra.mrb[0].mxu0 %v3602
      %v3785 = vpop.f32.mrb[0].mxu0
      %v3786 = vadd.f32 %v3565, %v3785
      %v3787 = vpop.f32.mrb[0].mxu0
      %3788 = vmatprep.mubr.f32.mxu0 0.0
      %3789 = vmatmul.mubr.f32.gmra.mrb[0].mxu0 %v3605
      %v3790 = vpop.f32.mrb[0].mxu0
      %v3791 = vadd.f32 %v3565, %v3790
      %v3792 = vpop.f32.mrb[0].mxu0
      %3793 = vmatprep.mubr.f32.mxu0 0.0
      %3794 = vmatmul.mubr.f32.gmra.mrb[0].mxu0 %v3608
      %v3795 = vpop.f32.mrb[0].mxu0
      %v3796 = vadd.f32 %v3565, %v3795
      %v3797 = vpop.f32.mrb[0].mxu0
      %3798 = vmatprep.mubr.f32.mxu0 0.0
      %3799 = vmatmul.mubr.f32.gmra.mrb[0].mxu0 %v3611
      %v3800 = vpop.f32.mrb[0].mxu0
      %v3801 = vadd.f32 %v3565, %v3800
      %v3802 = vpop.f32.mrb[0].mxu0
      %3803 = vmatprep.mubr.f32.mxu0 0.0
      %3804 = vmatmul.mubr.f32.gmra.mrb[0].mxu0 %v3614
      %v3805 = vpop.f32.mrb[0].mxu0
      %v3806 = vadd.f32 %v3565, %v3805
      %v3807 = vpop.f32.mrb[0].mxu0
      %3808 = vmatprep.mubr.f32.mxu0 0.0
      %3809 = vmatmul.mubr.f32.gmra.mrb[0].mxu0 %v3617
      %v3810 = vpop.f32.mrb[0].mxu0
      %v3811 = vadd.f32 %v3565, %v3810
      %v3812 = vpop.f32.mrb[0].mxu0
      %3813 = vmatprep.mubr.f32.mxu0 0.0
      %3814 = vmatmul.mubr.f32.gmra.mrb[0].mxu0 %v3620
      %v3815 = vpop.f32.mrb[0].mxu0
      %v3816 = vadd.f32 %v3565, %v3815
      %v3817 = vpop.f32.mrb[0].mxu0
      %3818 = vmatprep.mubr.f32.mxu0 0.0
      %3819 = vmatmul.mubr.f32.gmra.mrb[0].mxu0 %v3623
      %v3820 = vpop.f32.mrb[0].mxu0
      %v3821 = vadd.f32 %v3565, %v3820
      %v3822 = vpop.f32.mrb[0].mxu0
      %3823 = vmatprep.mubr.f32.mxu0 0.0
      %3824 = vmatmul.mubr.f32.gmra.mrb[0].mxu0 %v3626
      %v3825 = vpop.f32.mrb[0].mxu0
      %v3826 = vadd.f32 %v3565, %v3825
      %v3827 = vpop.f32.mrb[0].mxu0
      %3828 = vmatprep.mubr.f32.mxu0 0.0
      %3829 = vmatmul.mubr.f32.gmra.mrb[0].mxu0 %v3629
      %v3830 = vpop.f32.mrb[0].mxu0
      %v3831 = vadd.f32 %v3565, %v3830
      %v3832 = vpop.f32.mrb[0].mxu0
      %3833 = vmatprep.mubr.f32.mxu0 0.0
      %3834 = vmatmul.mubr.f32.gmra.mrb[0].mxu0 %v3632
      %v3835 = vpop.f32.mrb[0].mxu0
      %v3836 = vadd.f32 %v3565, %v3835
      %v3837 = vpop.f32.mrb[0].mxu0
      %3838 = vmatprep.mubr.f32.mxu0 0.0
      %3839 = vmatmul.mubr.f32.gmra.mrb[0].mxu0 %v3635
      %v3840 = vpop.f32.mrb[0].mxu0
      %v3841 = vadd.f32 %v3565, %v3840
      %v3842 = vpop.f32.mrb[0].mxu0
      %3843 = vmatprep.mubr.f32.mxu0 0.0
      %3844 = vmatmul.mubr.f32.gmra.mrb[0].mxu0 %v3638
      %v3845 = vpop.f32.mrb[0].mxu0
      %v3846 = vadd.f32 %v3565, %v3845
      %v3847 = vpop.f32.mrb[0].mxu0
      %3848 = vmatprep.mubr.f32.mxu0 0.0
      %3849 = vmatmul.mubr.f32.gmra.mrb[0].mxu0 %v3641
      %v3850 = vpop.f32.mrb[0].mxu0
      %v3851 = vadd.f32 %v3565, %v3850
      %v3852 = vpop.f32.mrb[0].mxu0
      %3853 = vmatprep.mubr.f32.mxu0 0.0
      %3854 = vmatmul.mubr.f32.gmra.mrb[0].mxu0 %v3644
      %v3855 = vpop.f32.mrb[0].mxu0
      %v3856 = vadd.f32 %v3565, %v3855
      %v3857 = vpop.f32.mrb[0].mxu0
      %3858 = vmatprep.mubr.f32.mxu0 0.0
      %3859 = vmatmul.mubr.f32.gmra.mrb[0].mxu0 %v3647
      %v3860 = vpop.f32.mrb[0].mxu0
      %v3861 = vadd.f32 %v3565, %v3860
      %v3862 = vpop.f32.mrb[0].mxu0
      %3863 = vmatprep.mubr.f32.mxu0 0.0
      %3864 = vmatmul.mubr.f32.gmra.mrb[0].mxu0 %v3650
      %v3865 = vpop.f32.mrb[0].mxu0
      %v3866 = vadd.f32 %v3565, %v3865
      %v3867 = vpop.f32.mrb[0].mxu0
      %3868 = vmatprep.mubr.f32.mxu0 0.0
      %3869 = vmatmul.mubr.f32.gmra.mrb[0].mxu0 %v3653
      %v3870 = vpop.f32.mrb[0].mxu0
      %v3871 = vadd.f32 %v3565, %v3870
      %v3872 = vpop.f32.mrb[0].mxu0
      %3873 = vmatprep.mubr.f32.mxu0 0.0
      %3874 = vmatmul.mubr.f32.gmra.mrb[0].mxu0 %v3656
      %v3875 = vpop.f32.mrb[0].mxu0
      %v3876 = vadd.f32 %v3565, %v3875
      %v3877 = vpop.f32.mrb[0].mxu0
      %3878 = vmatprep.mubr.f32.mxu0 0.0
      %3879 = vmatmul.mubr.f32.gmra.mrb[0].mxu0 %v3659
      %v3880 = vpop.f32.mrb[0].mxu0
      %v3881 = vadd.f32 %v3565, %v3880
      %v3882 = vpop.f32.mrb[0].mxu0
      %3883 = vmatprep.mubr.f32.mxu0 0.0
      %3884 = vmatmul.mubr.f32.gmra.mrb[0].mxu0 %v3662
      %v3885 = vpop.f32.mrb[0].mxu0
      %v3886 = vadd.f32 %v3565, %v3885
      %v3887 = vpop.f32.mrb[0].mxu0
      %3888 = vdwg.mxu0
      %vm3889 = vcmask 64512
      %v3890 = vsel %vm3889, %v3731, 0.0
      %v3891 = vsel %vm3889, %v3736, 0.0
      %v3892 = vadd.f32 %v3890, %v3891
      %v3893 = vsel %vm3889, %v3741, 0.0
      %v3894 = vadd.f32 %v3892, %v3893
      %v3895 = vsel %vm3889, %v3746, 0.0
      %v3896 = vadd.f32 %v3894, %v3895
      %v3897 = vsel %vm3889, %v3751, 0.0
      %v3898 = vadd.f32 %v3896, %v3897
      %v3899 = vsel %vm3889, %v3756, 0.0
      %v3900 = vadd.f32 %v3898, %v3899
      %v3901 = vsel %vm3889, %v3761, 0.0
      %v3902 = vadd.f32 %v3900, %v3901
      %v3903 = vsel %vm3889, %v3766, 0.0
      %v3904 = vadd.f32 %v3902, %v3903
      %v3905 = vsel %vm3889, %v3771, 0.0
      %v3906 = vadd.f32 %v3904, %v3905
      %v3907 = vsel %vm3889, %v3776, 0.0
      %v3908 = vadd.f32 %v3906, %v3907
      %v3909 = vsel %vm3889, %v3781, 0.0
      %v3910 = vadd.f32 %v3908, %v3909
      %v3911 = vsel %vm3889, %v3786, 0.0
      %v3912 = vadd.f32 %v3910, %v3911
      %v3913 = vsel %vm3889, %v3791, 0.0
      %v3914 = vadd.f32 %v3912, %v3913
      %v3915 = vsel %vm3889, %v3796, 0.0
      %v3916 = vadd.f32 %v3914, %v3915
      %v3917 = vsel %vm3889, %v3801, 0.0
      %v3918 = vadd.f32 %v3916, %v3917
      %v3919 = vsel %vm3889, %v3806, 0.0
      %v3920 = vadd.f32 %v3918, %v3919
      %v3921 = vsel %vm3889, %v3811, 0.0
      %v3922 = vadd.f32 %v3920, %v3921
      %v3923 = vsel %vm3889, %v3816, 0.0
      %v3924 = vadd.f32 %v3922, %v3923
      %v3925 = vsel %vm3889, %v3821, 0.0
      %v3926 = vadd.f32 %v3924, %v3925
      %v3927 = vsel %vm3889, %v3826, 0.0
      %v3928 = vadd.f32 %v3926, %v3927
      %v3929 = vsel %vm3889, %v3831, 0.0
      %v3930 = vadd.f32 %v3928, %v3929
      %v3931 = vsel %vm3889, %v3836, 0.0
      %v3932 = vadd.f32 %v3930, %v3931
      %v3933 = vsel %vm3889, %v3841, 0.0
      %v3934 = vadd.f32 %v3932, %v3933
      %v3935 = vsel %vm3889, %v3846, 0.0
      %v3936 = vadd.f32 %v3934, %v3935
      %v3937 = vsel %vm3889, %v3851, 0.0
      %v3938 = vadd.f32 %v3936, %v3937
      %v3939 = vsel %vm3889, %v3856, 0.0
      %v3940 = vadd.f32 %v3938, %v3939
      %v3941 = vsel %vm3889, %v3861, 0.0
      %v3942 = vadd.f32 %v3940, %v3941
      %v3943 = vsel %vm3889, %v3866, 0.0
      %v3944 = vadd.f32 %v3942, %v3943
      %v3945 = vsel %vm3889, %v3871, 0.0
      %v3946 = vadd.f32 %v3944, %v3945
      %v3947 = vsel %vm3889, %v3876, 0.0
      %v3948 = vadd.f32 %v3946, %v3947
      %v3949 = vsel %vm3889, %v3881, 0.0
      %v3950 = vadd.f32 %v3948, %v3949
      %v3951 = vsel %vm3889, %v3886, 0.0
      %v3952 = vadd.f32 %v3950, %v3951
      %v3953 = vrot.slane %v3952, 4
      %v3954 = vadd.f32 %v3952, %v3953
      %v3955 = vrot.slane %v3954, 2
      %v3956 = vadd.f32 %v3954, %v3955
      %v3957 = vrot.slane %v3956, 1
      %v3958 = vadd.f32 %v3956, %v3957
      %vm3959 = vcmask 57344
      %3960 = vst.msk [vmem:[%s168] sm:$0x1] %vm3959, %v3958
      %v3961 = vmul.f32 %v3731, %v3731
      %v3962 = vmul.f32 %v3736, %v3736
      %v3963 = vmul.f32 %v3741, %v3741
      %v3964 = vmul.f32 %v3746, %v3746
      %v3965 = vmul.f32 %v3751, %v3751
      %v3966 = vmul.f32 %v3756, %v3756
      %v3967 = vmul.f32 %v3761, %v3761
      %v3968 = vmul.f32 %v3766, %v3766
      %v3969 = vmul.f32 %v3771, %v3771
      %v3970 = vmul.f32 %v3776, %v3776
      %v3971 = vmul.f32 %v3781, %v3781
      %v3972 = vmul.f32 %v3786, %v3786
      %v3973 = vmul.f32 %v3791, %v3791
      %v3974 = vmul.f32 %v3796, %v3796
      %v3975 = vmul.f32 %v3801, %v3801
      %v3976 = vmul.f32 %v3806, %v3806
      %v3977 = vmul.f32 %v3811, %v3811
      %v3978 = vmul.f32 %v3816, %v3816
      %v3979 = vmul.f32 %v3821, %v3821
      %v3980 = vmul.f32 %v3826, %v3826
      %v3981 = vmul.f32 %v3831, %v3831
      %v3982 = vmul.f32 %v3836, %v3836
      %v3983 = vmul.f32 %v3841, %v3841
      %v3984 = vmul.f32 %v3846, %v3846
      %v3985 = vmul.f32 %v3851, %v3851
      %v3986 = vmul.f32 %v3856, %v3856
      %v3987 = vmul.f32 %v3861, %v3861
      %v3988 = vmul.f32 %v3866, %v3866
      %v3989 = vmul.f32 %v3871, %v3871
      %v3990 = vmul.f32 %v3876, %v3876
      %v3991 = vmul.f32 %v3881, %v3881
      %v3992 = vmul.f32 %v3886, %v3886
      %v3993 = vsel %vm3889, %v3961, 0.0
      %v3994 = vsel %vm3889, %v3962, 0.0
      %v3995 = vadd.f32 %v3993, %v3994
      %v3996 = vsel %vm3889, %v3963, 0.0
      %v3997 = vadd.f32 %v3995, %v3996
      %v3998 = vsel %vm3889, %v3964, 0.0
      %v3999 = vadd.f32 %v3997, %v3998
      %v4000 = vsel %vm3889, %v3965, 0.0
      %v4001 = vadd.f32 %v3999, %v4000
      %v4002 = vsel %vm3889, %v3966, 0.0
      %v4003 = vadd.f32 %v4001, %v4002
      %v4004 = vsel %vm3889, %v3967, 0.0
      %v4005 = vadd.f32 %v4003, %v4004
      %v4006 = vsel %vm3889, %v3968, 0.0
      %v4007 = vadd.f32 %v4005, %v4006
      %v4008 = vsel %vm3889, %v3969, 0.0
      %v4009 = vadd.f32 %v4007, %v4008
      %v4010 = vsel %vm3889, %v3970, 0.0
      %v4011 = vadd.f32 %v4009, %v4010
      %v4012 = vsel %vm3889, %v3971, 0.0
      %v4013 = vadd.f32 %v4011, %v4012
      %v4014 = vsel %vm3889, %v3972, 0.0
      %v4015 = vadd.f32 %v4013, %v4014
      %v4016 = vsel %vm3889, %v3973, 0.0
      %v4017 = vadd.f32 %v4015, %v4016
      %v4018 = vsel %vm3889, %v3974, 0.0
      %v4019 = vadd.f32 %v4017, %v4018
      %v4020 = vsel %vm3889, %v3975, 0.0
      %v4021 = vadd.f32 %v4019, %v4020
      %v4022 = vsel %vm3889, %v3976, 0.0
      %v4023 = vadd.f32 %v4021, %v4022
      %v4024 = vsel %vm3889, %v3977, 0.0
      %v4025 = vadd.f32 %v4023, %v4024
      %v4026 = vsel %vm3889, %v3978, 0.0
      %v4027 = vadd.f32 %v4025, %v4026
      %v4028 = vsel %vm3889, %v3979, 0.0
      %v4029 = vadd.f32 %v4027, %v4028
      %v4030 = vsel %vm3889, %v3980, 0.0
      %v4031 = vadd.f32 %v4029, %v4030
      %v4032 = vsel %vm3889, %v3981, 0.0
      %v4033 = vadd.f32 %v4031, %v4032
      %v4034 = vsel %vm3889, %v3982, 0.0
      %v4035 = vadd.f32 %v4033, %v4034
      %v4036 = vsel %vm3889, %v3983, 0.0
      %v4037 = vadd.f32 %v4035, %v4036
      %v4038 = vsel %vm3889, %v3984, 0.0
      %v4039 = vadd.f32 %v4037, %v4038
      %v4040 = vsel %vm3889, %v3985, 0.0
      %v4041 = vadd.f32 %v4039, %v4040
      %v4042 = vsel %vm3889, %v3986, 0.0
      %v4043 = vadd.f32 %v4041, %v4042
      %v4044 = vsel %vm3889, %v3987, 0.0
      %v4045 = vadd.f32 %v4043, %v4044
      %v4046 = vsel %vm3889, %v3988, 0.0
      %v4047 = vadd.f32 %v4045, %v4046
      %v4048 = vsel %vm3889, %v3989, 0.0
      %v4049 = vadd.f32 %v4047, %v4048
      %v4050 = vsel %vm3889, %v3990, 0.0
      %v4051 = vadd.f32 %v4049, %v4050
      %v4052 = vsel %vm3889, %v3991, 0.0
      %v4053 = vadd.f32 %v4051, %v4052
      %v4054 = vsel %vm3889, %v3992, 0.0
      %v4055 = vadd.f32 %v4053, %v4054
      %v4056 = vrot.slane %v4055, 4
      %v4057 = vadd.f32 %v4055, %v4056
      %v4058 = vrot.slane %v4057, 2
      %v4059 = vadd.f32 %v4057, %v4058
      %v4060 = vrot.slane %v4059, 1
      %v4061 = vadd.f32 %v4059, %v4060
      %4062 = vst.msk [vmem:[%s168 + $0x1] sm:$0x1] %vm3959, %v4061
      %p4063 = scmp.lt.s32.totalorder %s14, 1
      %s4064 = scalar_select %p4063, %s14, 1
      %s4065 = smul.addr %s4064, 2
      %s4066 = scalar_lea.vmem %s3, %s4065
      // Predicated region
      $region33: #{_lambda_.2} parent=31 // pred_check
        %p4067 = pneg %p100
      $region34: #{_lambda_.2} parent=31 // pred_check_branch
        %4069 = sbr.rel (%p4067) target = $region36
      $region35: #{_lambda_.2} parent=31 // pred_region
        _
      $region36: #{_lambda_.2} parent=31 // pred_fallthru
        _
    $region32: #{_lambda_.2} parent=5 // pred_fallthru
      _
    %p4070 = scmp.le.s32.totalorder 2, %s9
    // Predicated region
    $region37: #{_lambda_.2} parent=5 // pred_check
      %p4071 = pneg %p4070
    $region38: #{_lambda_.2} parent=5 // pred_check_branch
      %4073 = sbr.rel (%p4071) target = $region40
    $region39: #{_lambda_.2} parent=5 // pred_region
      %s4074 = ssub.s32 %s9, 2
      // Predicated region
      $region41: #{_lambda_.2} parent=39 // pred_check
        %p4075 = pneg %p106
      $region42: #{_lambda_.2} parent=39 // pred_check_branch
        %4077 = sbr.rel (%p4075) target = $region44
      $region43: #{_lambda_.2} parent=39 // pred_region
        %p4078 = scmp.lt.s32.totalorder %s15, 1
        %s4079 = scalar_select %p4078, %s15, 1
        %s4080 = smul.addr %s4079, 2
        %s4081 = scalar_lea.vmem %s3, %s4080
      $region44: #{_lambda_.2} parent=39 // pred_fallthru
        _
    $region40: #{_lambda_.2} parent=5 // pred_fallthru
      _
  $region6: #{_lambda_.2} parent=0 // loop_footer
    %s13 = sadd.s32 1, %s9
  $region7: #{_lambda_.2} parent=0 // loop_footer_branch
    %8 = sbr.rel target = $region3
  $region8: #{_lambda_.2} parent=0 // loop_exit
    _

// kernel: _lambda_.3
$region0: #{_lambda_.3}
  #allocation0 [shape = 'u32[]', space=smem, size = 0x4, offset = 0x4, fixed_abs, tag = 'smem constant byte address 0x4 - core index']
  #allocation1 [shape = 'u32[144,128]{1,0:T(1,128)}', space=vmem, size = 0x12000, scoped, tag = 'internal scratch']
  #allocation2 [shape = 'f32[256,72]{1,0:T(8,128)}', space=vmem, size = 0x20000, scoped, tag = 'scratch operand']
  %s0 = inlined_call_operand.vmem [shape: f32[2,20,20,4], index: 0, kind: input, shape index: {}]
  %s1 = inlined_call_operand.vmem [shape: f32[512,4], index: 1, kind: input, shape index: {}]
  %s2 = inlined_call_operand.vmem [shape: f32[72,8], index: 2, kind: input, shape index: {}]
  %s3 = inlined_call_operand.vmem [shape: f32[1,8], index: 3, kind: input, shape index: {}]
  %s4 = inlined_call_operand.vmem [shape: f32[2,8], index: 4, kind: input, shape index: {}]
  %s5 = inlined_call_operand.vmem [shape: f32[8,8], index: 5, kind: input, shape index: {}]
  %s6 = inlined_call_operand.vmem [shape: f32[512,8], index: 6, kind: output, shape index: {}]
  %s7 = sld [smem:[#allocation0]]
  $region57: #{_lambda_.3} parent=0
    _
  %s9 = ssub.s32 1, %s7
  %s10 = scalar_select 0, %s9, %s7
  loop: start=0, step=1, limit=4
  $region2: #{_lambda_.3} parent=0 // loop_pre_header
    _
  $region3: #{_lambda_.3} parent=0 // loop_header
    %s12 = sphi 0, %s16
    %p13 = scmp.ge.s32.totalorder %s12, 4
    %s22 = sphi 0, %s24
    %s25 = sphi 0, %s22
    %s26 = sphi 0, %s25
    %s42 = sphi 0, %s26
    %s48 = sphi 0, %s50
    %s51 = sphi 0, %s48
    %s52 = sphi 0, %s51
    %s68 = sphi 0, %s52
    %s72 = sphi 0, %s72
    %s74 = sphi 0, %s72
    %s75 = sphi 0, %s74
    %s89 = sphi 0, %s75
    %s93 = sphi 0, %s93
    %s95 = sphi 0, %s93
    %s96 = sphi 0, %s95
    %s110 = sphi 0, %s96
    %s114 = sphi 0, %s114
    %s116 = sphi 0, %s114
    %s117 = sphi 0, %s116
    %s131 = sphi 0, %s117
    %s135 = sphi 0, %s135
    %s137 = sphi 0, %s135
    %s138 = sphi 0, %s137
    %s152 = sphi 0, %s138
    %s158 = sphi 0, %s160
    %s161 = sphi 0, %s158
    %s162 = sphi 0, %s161
    %s178 = sphi 0, %s162
  $region4: #{_lambda_.3} parent=0 // loop_header_branch
    %15 = sbr.rel (%p13) target = $region8
  $region5: #{_lambda_.3} parent=0 // loop_body
    %s17 = ssub.s32 %s12, 1
    %s18 = ssub.s32 %s12, 2
    %s19 = sadd.s32 %s12, 1
    %s20 = ssub.s32 %s12, %s19
    %p21 = scmp.eq.s32.totalorder %s20, 0
    %s23 = sadd.s32 %s22, 1
    %s24 = scalar_select %p21, %s22, %s23
    %p27 = pneg %p21
    %p28 = scmp.eq.s32.totalorder %s12, 1
    %p29 = por %p27, %p28
    %p30 = scmp.ne.s32.totalorder %s22, %s25
    %p31 = scmp.eq.s32.totalorder %s12, 0
    %p32 = por %p30, %p31
    %p33 = scmp.ne.s32.totalorder %s22, %s25
    %p34 = scmp.eq.s32.totalorder %s17, 1
    %p35 = por %p33, %p34
    %p36 = scmp.ne.s32.totalorder %s25, %s26
    %p37 = scmp.eq.s32.totalorder %s17, 0
    %p38 = por %p36, %p37
    %p39 = scmp.ne.s32.totalorder %s25, %s26
    %p40 = scmp.eq.s32.totalorder %s18, 1
    %p41 = por %p39, %p40
    %p43 = scmp.ne.s32.totalorder %s26, %s42
    %p44 = scmp.eq.s32.totalorder %s18, 0
    %p45 = por %p43, %p44
    %s46 = ssub.s32 %s12, %s19
    %p47 = scmp.eq.s32.totalorder %s46, 0
    %s49 = sadd.s32 %s48, 1
    %s50 = scalar_select %p47, %s48, %s49
    %p53 = pneg %p47
    %p54 = scmp.eq.s32.totalorder %s12, 1
    %p55 = por %p53, %p54
    %p56 = scmp.ne.s32.totalorder %s48, %s51
    %p57 = scmp.eq.s32.totalorder %s12, 0
    %p58 = por %p56, %p57
    %p59 = scmp.ne.s32.totalorder %s48, %s51
    %p60 = scmp.eq.s32.totalorder %s17, 1
    %p61 = por %p59, %p60
    %p62 = scmp.ne.s32.totalorder %s51, %s52
    %p63 = scmp.eq.s32.totalorder %s17, 0
    %p64 = por %p62, %p63
    %p65 = scmp.ne.s32.totalorder %s51, %s52
    %p66 = scmp.eq.s32.totalorder %s18, 1
    %p67 = por %p65, %p66
    %p69 = scmp.ne.s32.totalorder %s52, %s68
    %p70 = scmp.eq.s32.totalorder %s18, 0
    %p71 = por %p69, %p70
    %s73 = sadd.s32 %s72, 1
    %p76 = scmp.eq.s32.totalorder %s12, 1
    %p77 = scmp.ne.s32.totalorder %s72, %s74
    %p78 = scmp.eq.s32.totalorder %s12, 0
    %p79 = por %p77, %p78
    %p80 = scmp.ne.s32.totalorder %s72, %s74
    %p81 = scmp.eq.s32.totalorder %s17, 1
    %p82 = por %p80, %p81
    %p83 = scmp.ne.s32.totalorder %s74, %s75
    %p84 = scmp.eq.s32.totalorder %s17, 0
    %p85 = por %p83, %p84
    %p86 = scmp.ne.s32.totalorder %s74, %s75
    %p87 = scmp.eq.s32.totalorder %s18, 1
    %p88 = por %p86, %p87
    %p90 = scmp.ne.s32.totalorder %s75, %s89
    %p91 = scmp.eq.s32.totalorder %s18, 0
    %p92 = por %p90, %p91
    %s94 = sadd.s32 %s93, 1
    %p97 = scmp.eq.s32.totalorder %s12, 1
    %p98 = scmp.ne.s32.totalorder %s93, %s95
    %p99 = scmp.eq.s32.totalorder %s12, 0
    %p100 = por %p98, %p99
    %p101 = scmp.ne.s32.totalorder %s93, %s95
    %p102 = scmp.eq.s32.totalorder %s17, 1
    %p103 = por %p101, %p102
    %p104 = scmp.ne.s32.totalorder %s95, %s96
    %p105 = scmp.eq.s32.totalorder %s17, 0
    %p106 = por %p104, %p105
    %p107 = scmp.ne.s32.totalorder %s95, %s96
    %p108 = scmp.eq.s32.totalorder %s18, 1
    %p109 = por %p107, %p108
    %p111 = scmp.ne.s32.totalorder %s96, %s110
    %p112 = scmp.eq.s32.totalorder %s18, 0
    %p113 = por %p111, %p112
    %s115 = sadd.s32 %s114, 1
    %p118 = scmp.eq.s32.totalorder %s12, 1
    %p119 = scmp.ne.s32.totalorder %s114, %s116
    %p120 = scmp.eq.s32.totalorder %s12, 0
    %p121 = por %p119, %p120
    %p122 = scmp.ne.s32.totalorder %s114, %s116
    %p123 = scmp.eq.s32.totalorder %s17, 1
    %p124 = por %p122, %p123
    %p125 = scmp.ne.s32.totalorder %s116, %s117
    %p126 = scmp.eq.s32.totalorder %s17, 0
    %p127 = por %p125, %p126
    %p128 = scmp.ne.s32.totalorder %s116, %s117
    %p129 = scmp.eq.s32.totalorder %s18, 1
    %p130 = por %p128, %p129
    %p132 = scmp.ne.s32.totalorder %s117, %s131
    %p133 = scmp.eq.s32.totalorder %s18, 0
    %p134 = por %p132, %p133
    %s136 = sadd.s32 %s135, 1
    %p139 = scmp.eq.s32.totalorder %s12, 1
    %p140 = scmp.ne.s32.totalorder %s135, %s137
    %p141 = scmp.eq.s32.totalorder %s12, 0
    %p142 = por %p140, %p141
    %p143 = scmp.ne.s32.totalorder %s135, %s137
    %p144 = scmp.eq.s32.totalorder %s17, 1
    %p145 = por %p143, %p144
    %p146 = scmp.ne.s32.totalorder %s137, %s138
    %p147 = scmp.eq.s32.totalorder %s17, 0
    %p148 = por %p146, %p147
    %p149 = scmp.ne.s32.totalorder %s137, %s138
    %p150 = scmp.eq.s32.totalorder %s18, 1
    %p151 = por %p149, %p150
    %p153 = scmp.ne.s32.totalorder %s138, %s152
    %p154 = scmp.eq.s32.totalorder %s18, 0
    %p155 = por %p153, %p154
    %s156 = ssub.s32 %s12, %s19
    %p157 = scmp.eq.s32.totalorder %s156, 0
    %s159 = sadd.s32 %s158, 1
    %s160 = scalar_select %p157, %s158, %s159
    %p163 = pneg %p157
    %p164 = scmp.eq.s32.totalorder %s12, 1
    %p165 = por %p163, %p164
    %p166 = scmp.ne.s32.totalorder %s158, %s161
    %p167 = scmp.eq.s32.totalorder %s12, 0
    %p168 = por %p166, %p167
    %p169 = scmp.ne.s32.totalorder %s158, %s161
    %p170 = scmp.eq.s32.totalorder %s17, 1
    %p171 = por %p169, %p170
    %p172 = scmp.ne.s32.totalorder %s161, %s162
    %p173 = scmp.eq.s32.totalorder %s17, 0
    %p174 = por %p172, %p173
    %p175 = scmp.ne.s32.totalorder %s161, %s162
    %p176 = scmp.eq.s32.totalorder %s18, 1
    %p177 = por %p175, %p176
    %p179 = scmp.ne.s32.totalorder %s162, %s178
    %p180 = scmp.eq.s32.totalorder %s18, 0
    %p181 = por %p179, %p180
    %p182 = scmp.le.s32.totalorder 1, %s12
    %p183 = scmp.lt.s32.totalorder %s12, 3
    %p184 = pnand %p182, %p183
    %p185 = pneg %p184
    // Predicated region
    $region9: #{_lambda_.3} parent=5 // pred_check
      _
    $region10: #{_lambda_.3} parent=5 // pred_check_branch
      %187 = sbr.rel (%p184) target = $region12
    $region11: #{_lambda_.3} parent=5 // pred_region
      %s188 = ssub.s32 %s12, 1
      // Predicated region
      $region13: #{_lambda_.3} parent=11 // pred_check
        %p189 = pneg %p85
      $region14: #{_lambda_.3} parent=11 // pred_check_branch
        %191 = sbr.rel (%p189) target = $region16
      $region15: #{_lambda_.3} parent=11 // pred_region
        _
      $region16: #{_lambda_.3} parent=11 // pred_fallthru
        _
      // Predicated region
      $region17: #{_lambda_.3} parent=11 // pred_check
        %p192 = pneg %p106
      $region18: #{_lambda_.3} parent=11 // pred_check_branch
        %194 = sbr.rel (%p192) target = $region20
      $region19: #{_lambda_.3} parent=11 // pred_region
        _
      $region20: #{_lambda_.3} parent=11 // pred_fallthru
        _
      // Predicated region
      $region21: #{_lambda_.3} parent=11 // pred_check
        %p195 = pneg %p127
      $region22: #{_lambda_.3} parent=11 // pred_check_branch
        %197 = sbr.rel (%p195) target = $region24
      $region23: #{_lambda_.3} parent=11 // pred_region
        _
      $region24: #{_lambda_.3} parent=11 // pred_fallthru
        _
      // Predicated region
      $region25: #{_lambda_.3} parent=11 // pred_check
        %p198 = pneg %p148
      $region26: #{_lambda_.3} parent=11 // pred_check_branch
        %200 = sbr.rel (%p198) target = $region28
      $region27: #{_lambda_.3} parent=11 // pred_region
        _
      $region28: #{_lambda_.3} parent=11 // pred_fallthru
        _
    $region12: #{_lambda_.3} parent=5 // pred_fallthru
      _
    %p201 = scmp.lt.s32.totalorder %s12, 2
    // Predicated region
    $region29: #{_lambda_.3} parent=5 // pred_check
      %p202 = pneg %p201
    $region30: #{_lambda_.3} parent=5 // pred_check_branch
      %204 = sbr.rel (%p202) target = $region32
    $region31: #{_lambda_.3} parent=5 // pred_region
      // Predicated region
      $region33: #{_lambda_.3} parent=31 // pred_check
        %p205 = pneg %p32
      $region34: #{_lambda_.3} parent=31 // pred_check_branch
        %207 = sbr.rel (%p205) target = $region36
      $region35: #{_lambda_.3} parent=31 // pred_region
        %p208 = scmp.lt.s32.totalorder %s12, 1
        %s209 = scalar_select %p208, %s12, 1
        %s210 = smul.addr %s209, 60
        %s211 = smul.addr %s210, 8
        %s212 = scalar_lea.vmem %s0, %s211
      $region36: #{_lambda_.3} parent=31 // pred_fallthru
        _
      // Predicated region
      $region37: #{_lambda_.3} parent=31 // pred_check
        %p213 = pneg %p58
      $region38: #{_lambda_.3} parent=31 // pred_check_branch
        %215 = sbr.rel (%p213) target = $region40
      $region39: #{_lambda_.3} parent=31 // pred_region
        %s216 = smul.u32 32, %s12
        %p217 = scmp.lt.s32.totalorder %s216, 63
        %s218 = scalar_select %p217, %s216, 63
        %s219 = smul.addr %s218, 8
        %s220 = scalar_lea.vmem %s1, %s219
        %s221 = smul.u32 32, %s12
      $region40: #{_lambda_.3} parent=31 // pred_fallthru
        _
    $region32: #{_lambda_.3} parent=5 // pred_fallthru
      _
    %p222 = scmp.le.s32.totalorder 1, %s12
    %p223 = scmp.lt.s32.totalorder %s12, 3
    %p224 = pnand %p222, %p223
    %p225 = pneg %p224
    // Predicated region
    $region41: #{_lambda_.3} parent=5 // pred_check
      _
    $region42: #{_lambda_.3} parent=5 // pred_check_branch
      %227 = sbr.rel (%p224) target = $region44
    $region43: #{_lambda_.3} parent=5 // pred_region
      %s228 = ssub.s32 %s12, 1
      %p229 = scmp.lt.s32.totalorder %s17, 1
      %s230 = scalar_select %p229, %s17, 1
      %s231 = smul.addr %s230, 60
      %s232 = smul.addr %s231, 8
      %s233 = scalar_lea.vmem %s0, %s232
      %p234 = pneg %p38
      %p235 = pneg %p35
      %s236 = smul.u32 32, %s17
      %p237 = scmp.lt.s32.totalorder %s236, 63
      %s238 = scalar_select %p237, %s236, 63
      %s239 = smul.addr %s238, 8
      %s240 = scalar_lea.vmem %s1, %s239
      %p241 = pneg %p64
      %p242 = pneg %p61
      %p243 = pneg %p85
      %p244 = pneg %p82
      %p245 = pneg %p106
      %p246 = pneg %p103
      %p247 = pneg %p127
      %p248 = pneg %p124
      %p249 = pneg %p148
      %p250 = pneg %p145
      %p251 = pneg %p174
      %p252 = pneg %p171
      %s253 = smul.u32 32, %s17
      %p254 = scmp.lt.s32.totalorder %s253, 63
      %s255 = scalar_select %p254, %s253, 63
      %s256 = smul.addr %s255, 8
      %s257 = scalar_lea.vmem %s6, %s256
      %p258 = scmp.lt.s32.totalorder %s17, 1
      %s259 = scalar_select %p258, %s17, 1
      %s260 = smul.addr %s259, 60
      %s261 = smul.addr %s260, 8
      %s262 = scalar_lea.vmem %s0, %s261
      %s263 = smul.u32 32, %s17
      %p264 = scmp.lt.s32.totalorder %s263, 63
      %s265 = scalar_select %p264, %s263, 63
      %s266 = smul.addr %s265, 8
      %s267 = scalar_lea.vmem %s1, %s266
      %s268 = smul.u32 32, %s17
      %s269 = smul.u32 32, %s17
      %p270 = scmp.lt.s32.totalorder %s269, 63
      %s271 = scalar_select %p270, %s269, 63
      %s272 = smul.addr %s271, 8
      %s273 = scalar_lea.vmem %s6, %s272
      %s274 = smul.u32 32, %s17
      %v275 = vld [vmem:[%s262] sm:$0xff]
      %v276 = vld [vmem:[%s262 + $0x8] sm:$0xff]
      %v277 = vld [vmem:[%s262 + $0x18] sm:$0xff]
      %v278 = vld [vmem:[%s262 + $0x20] sm:$0xff]
      %v279 = vld [vmem:[%s262 + $0x30] sm:$0xff]
      %v280 = vld [vmem:[%s262 + $0x38] sm:$0xff]
      %v281 = vld [vmem:[%s262 + $0x48] sm:$0xff]
      %v282 = vld [vmem:[%s262 + $0x50] sm:$0xff]
      %v283 = vld [vmem:[%s262 + $0x60] sm:$0xff]
      %v284 = vld [vmem:[%s262 + $0x68] sm:$0xff]
      %v285 = vld [vmem:[%s262 + $0x78] sm:$0xff]
      %v286 = vld [vmem:[%s262 + $0x80] sm:$0xff]
      %v287 = vld [vmem:[%s262 + $0x90] sm:$0xff]
      %v288 = vld [vmem:[%s262 + $0x98] sm:$0xff]
      %v289 = vld [vmem:[%s262 + $0xa8] sm:$0xff]
      %v290 = vld [vmem:[%s262 + $0xb0] sm:$0xff]
      %v291 = vld [vmem:[%s262 + $0xc0] sm:$0xff]
      %v292 = vld [vmem:[%s262 + $0xc8] sm:$0xff]
      %v293 = vld [vmem:[%s262 + $0xd8] sm:$0xff]
      %v294 = vld [vmem:[%s262 + $0xe0] sm:$0xff]
      %v295 = vld [vmem:[%s262 + $0xf0] sm:$0xff]
      %v296 = vld [vmem:[%s262 + $0xf8] sm:$0xff]
      %v297 = vld [vmem:[%s262 + $0x108] sm:$0xff]
      %v298 = vld [vmem:[%s262 + $0x110] sm:$0xff]
      %v299 = vld [vmem:[%s262 + $0x120] sm:$0xff]
      %v300 = vld [vmem:[%s262 + $0x128] sm:$0xff]
      %v301 = vld [vmem:[%s262 + $0x138] sm:$0xff]
      %v302 = vld [vmem:[%s262 + $0x140] sm:$0xff]
      %v303 = vld [vmem:[%s262 + $0x150] sm:$0xff]
      %v304 = vld [vmem:[%s262 + $0x158] sm:$0xff]
      %v305 = vld [vmem:[%s262 + $0x168] sm:$0xff]
      %v306 = vld [vmem:[%s262 + $0x170] sm:$0xff]
      %vm307 = vcmask 31744
      %308 = vst.msk [vmem:[#allocation2] sm:$0xff] %vm307, %v275
      %309 = vst.msk [vmem:[#allocation2 + $0x8] sm:$0xff] %vm307, %v276
      %310 = vst.msk [vmem:[#allocation2 + $0x10] sm:$0xff] %vm307, %v277
      %311 = vst.msk [vmem:[#allocation2 + $0x18] sm:$0xff] %vm307, %v278
      %312 = vst.msk [vmem:[#allocation2 + $0x20] sm:$0xff] %vm307, %v279
      %313 = vst.msk [vmem:[#allocation2 + $0x28] sm:$0xff] %vm307, %v280
      %314 = vst.msk [vmem:[#allocation2 + $0x30] sm:$0xff] %vm307, %v281
      %315 = vst.msk [vmem:[#allocation2 + $0x38] sm:$0xff] %vm307, %v282
      %316 = vst.msk [vmem:[#allocation2 + $0x40] sm:$0xff] %vm307, %v283
      %317 = vst.msk [vmem:[#allocation2 + $0x48] sm:$0xff] %vm307, %v284
      %318 = vst.msk [vmem:[#allocation2 + $0x50] sm:$0xff] %vm307, %v285
      %319 = vst.msk [vmem:[#allocation2 + $0x58] sm:$0xff] %vm307, %v286
      %320 = vst.msk [vmem:[#allocation2 + $0x60] sm:$0xff] %vm307, %v287
      %321 = vst.msk [vmem:[#allocation2 + $0x68] sm:$0xff] %vm307, %v288
      %322 = vst.msk [vmem:[#allocation2 + $0x70] sm:$0xff] %vm307, %v289
      %323 = vst.msk [vmem:[#allocation2 + $0x78] sm:$0xff] %vm307, %v290
      %324 = vst.msk [vmem:[#allocation2 + $0x80] sm:$0xff] %vm307, %v291
      %325 = vst.msk [vmem:[#allocation2 + $0x88] sm:$0xff] %vm307, %v292
      %326 = vst.msk [vmem:[#allocation2 + $0x90] sm:$0xff] %vm307, %v293
      %327 = vst.msk [vmem:[#allocation2 + $0x98] sm:$0xff] %vm307, %v294
      %328 = vst.msk [vmem:[#allocation2 + $0xa0] sm:$0xff] %vm307, %v295
      %329 = vst.msk [vmem:[#allocation2 + $0xa8] sm:$0xff] %vm307, %v296
      %330 = vst.msk [vmem:[#allocation2 + $0xb0] sm:$0xff] %vm307, %v297
      %331 = vst.msk [vmem:[#allocation2 + $0xb8] sm:$0xff] %vm307, %v298
      %332 = vst.msk [vmem:[#allocation2 + $0xc0] sm:$0xff] %vm307, %v299
      %333 = vst.msk [vmem:[#allocation2 + $0xc8] sm:$0xff] %vm307, %v300
      %334 = vst.msk [vmem:[#allocation2 + $0xd0] sm:$0xff] %vm307, %v301
      %335 = vst.msk [vmem:[#allocation2 + $0xd8] sm:$0xff] %vm307, %v302
      %336 = vst.msk [vmem:[#allocation2 + $0xe0] sm:$0xff] %vm307, %v303
      %337 = vst.msk [vmem:[#allocation2 + $0xe8] sm:$0xff] %vm307, %v304
      %338 = vst.msk [vmem:[#allocation2 + $0xf0] sm:$0xff] %vm307, %v305
      %339 = vst.msk [vmem:[#allocation2 + $0xf8] sm:$0xff] %vm307, %v306
      %v340 = vld [vmem:[%s262 + $0x2] sm:$0xff]
      %v341 = vld [vmem:[%s262 + $0xa] sm:$0xff]
      %v342 = vld [vmem:[%s262 + $0x1a] sm:$0xff]
      %v343 = vld [vmem:[%s262 + $0x22] sm:$0xff]
      %v344 = vld [vmem:[%s262 + $0x32] sm:$0xff]
      %v345 = vld [vmem:[%s262 + $0x3a] sm:$0xff]
      %v346 = vld [vmem:[%s262 + $0x4a] sm:$0xff]
      %v347 = vld [vmem:[%s262 + $0x52] sm:$0xff]
      %v348 = vld [vmem:[%s262 + $0x62] sm:$0xff]
      %v349 = vld [vmem:[%s262 + $0x6a] sm:$0xff]
      %v350 = vld [vmem:[%s262 + $0x7a] sm:$0xff]
      %v351 = vld [vmem:[%s262 + $0x82] sm:$0xff]
      %v352 = vld [vmem:[%s262 + $0x92] sm:$0xff]
      %v353 = vld [vmem:[%s262 + $0x9a] sm:$0xff]
      %v354 = vld [vmem:[%s262 + $0xaa] sm:$0xff]
      %v355 = vld [vmem:[%s262 + $0xb2] sm:$0xff]
      %v356 = vld [vmem:[%s262 + $0xc2] sm:$0xff]
      %v357 = vld [vmem:[%s262 + $0xca] sm:$0xff]
      %v358 = vld [vmem:[%s262 + $0xda] sm:$0xff]
      %v359 = vld [vmem:[%s262 + $0xe2] sm:$0xff]
      %v360 = vld [vmem:[%s262 + $0xf2] sm:$0xff]
      %v361 = vld [vmem:[%s262 + $0xfa] sm:$0xff]
      %v362 = vld [vmem:[%s262 + $0x10a] sm:$0xff]
      %v363 = vld [vmem:[%s262 + $0x112] sm:$0xff]
      %v364 = vld [vmem:[%s262 + $0x122] sm:$0xff]
      %v365 = vld [vmem:[%s262 + $0x12a] sm:$0xff]
      %v366 = vld [vmem:[%s262 + $0x13a] sm:$0xff]
      %v367 = vld [vmem:[%s262 + $0x142] sm:$0xff]
      %v368 = vld [vmem:[%s262 + $0x152] sm:$0xff]
      %v369 = vld [vmem:[%s262 + $0x15a] sm:$0xff]
      %v370 = vld [vmem:[%s262 + $0x16a] sm:$0xff]
      %v371 = vld [vmem:[%s262 + $0x172] sm:$0xff]
      %404 = vrot.lane.b32.xlu0 %v340, 4
      %v405 = vpop.permute.xlu0 %404
      %406 = vrot.lane.b32.xlu0 %v341, 4
      %v407 = vpop.permute.xlu0 %406
      %408 = vrot.lane.b32.xlu0 %v342, 4
      %v409 = vpop.permute.xlu0 %408
      %410 = vrot.lane.b32.xlu0 %v343, 4
      %v411 = vpop.permute.xlu0 %410
      %412 = vrot.lane.b32.xlu0 %v344, 4
      %v413 = vpop.permute.xlu0 %412
      %414 = vrot.lane.b32.xlu0 %v345, 4
      %v415 = vpop.permute.xlu0 %414
      %416 = vrot.lane.b32.xlu0 %v346, 4
      %v417 = vpop.permute.xlu0 %416
      %418 = vrot.lane.b32.xlu0 %v347, 4
      %v419 = vpop.permute.xlu0 %418
      %420 = vrot.lane.b32.xlu0 %v348, 4
      %v421 = vpop.permute.xlu0 %420
      %422 = vrot.lane.b32.xlu0 %v349, 4
      %v423 = vpop.permute.xlu0 %422
      %424 = vrot.lane.b32.xlu0 %v350, 4
      %v425 = vpop.permute.xlu0 %424
      %426 = vrot.lane.b32.xlu0 %v351, 4
      %v427 = vpop.permute.xlu0 %426
      %428 = vrot.lane.b32.xlu0 %v352, 4
      %v429 = vpop.permute.xlu0 %428
      %430 = vrot.lane.b32.xlu0 %v353, 4
      %v431 = vpop.permute.xlu0 %430
      %432 = vrot.lane.b32.xlu0 %v354, 4
      %v433 = vpop.permute.xlu0 %432
      %434 = vrot.lane.b32.xlu0 %v355, 4
      %v435 = vpop.permute.xlu0 %434
      %436 = vrot.lane.b32.xlu0 %v356, 4
      %v437 = vpop.permute.xlu0 %436
      %438 = vrot.lane.b32.xlu0 %v357, 4
      %v439 = vpop.permute.xlu0 %438
      %440 = vrot.lane.b32.xlu0 %v358, 4
      %v441 = vpop.permute.xlu0 %440
      %442 = vrot.lane.b32.xlu0 %v359, 4
      %v443 = vpop.permute.xlu0 %442
      %444 = vrot.lane.b32.xlu0 %v360, 4
      %v445 = vpop.permute.xlu0 %444
      %446 = vrot.lane.b32.xlu0 %v361, 4
      %v447 = vpop.permute.xlu0 %446
      %448 = vrot.lane.b32.xlu0 %v362, 4
      %v449 = vpop.permute.xlu0 %448
      %450 = vrot.lane.b32.xlu0 %v363, 4
      %v451 = vpop.permute.xlu0 %450
      %452 = vrot.lane.b32.xlu0 %v364, 4
      %v453 = vpop.permute.xlu0 %452
      %454 = vrot.lane.b32.xlu0 %v365, 4
      %v455 = vpop.permute.xlu0 %454
      %456 = vrot.lane.b32.xlu0 %v366, 4
      %v457 = vpop.permute.xlu0 %456
      %458 = vrot.lane.b32.xlu0 %v367, 4
      %v459 = vpop.permute.xlu0 %458
      %460 = vrot.lane.b32.xlu0 %v368, 4
      %v461 = vpop.permute.xlu0 %460
      %462 = vrot.lane.b32.xlu0 %v369, 4
      %v463 = vpop.permute.xlu0 %462
      %464 = vrot.lane.b32.xlu0 %v370, 4
      %v465 = vpop.permute.xlu0 %464
      %466 = vrot.lane.b32.xlu0 %v371, 4
      %v467 = vpop.permute.xlu0 %466
      %vm500 = vcmask 64544
      %501 = vst.msk [vmem:[#allocation2] sm:$0xff] %vm500, %v405
      %502 = vst.msk [vmem:[#allocation2 + $0x8] sm:$0xff] %vm500, %v407
      %503 = vst.msk [vmem:[#allocation2 + $0x10] sm:$0xff] %vm500, %v409
      %504 = vst.msk [vmem:[#allocation2 + $0x18] sm:$0xff] %vm500, %v411
      %505 = vst.msk [vmem:[#allocation2 + $0x20] sm:$0xff] %vm500, %v413
      %506 = vst.msk [vmem:[#allocation2 + $0x28] sm:$0xff] %vm500, %v415
      %507 = vst.msk [vmem:[#allocation2 + $0x30] sm:$0xff] %vm500, %v417
      %508 = vst.msk [vmem:[#allocation2 + $0x38] sm:$0xff] %vm500, %v419
      %509 = vst.msk [vmem:[#allocation2 + $0x40] sm:$0xff] %vm500, %v421
      %510 = vst.msk [vmem:[#allocation2 + $0x48] sm:$0xff] %vm500, %v423
      %511 = vst.msk [vmem:[#allocation2 + $0x50] sm:$0xff] %vm500, %v425
      %512 = vst.msk [vmem:[#allocation2 + $0x58] sm:$0xff] %vm500, %v427
      %513 = vst.msk [vmem:[#allocation2 + $0x60] sm:$0xff] %vm500, %v429
      %514 = vst.msk [vmem:[#allocation2 + $0x68] sm:$0xff] %vm500, %v431
      %515 = vst.msk [vmem:[#allocation2 + $0x70] sm:$0xff] %vm500, %v433
      %516 = vst.msk [vmem:[#allocation2 + $0x78] sm:$0xff] %vm500, %v435
      %517 = vst.msk [vmem:[#allocation2 + $0x80] sm:$0xff] %vm500, %v437
      %518 = vst.msk [vmem:[#allocation2 + $0x88] sm:$0xff] %vm500, %v439
      %519 = vst.msk [vmem:[#allocation2 + $0x90] sm:$0xff] %vm500, %v441
      %520 = vst.msk [vmem:[#allocation2 + $0x98] sm:$0xff] %vm500, %v443
      %521 = vst.msk [vmem:[#allocation2 + $0xa0] sm:$0xff] %vm500, %v445
      %522 = vst.msk [vmem:[#allocation2 + $0xa8] sm:$0xff] %vm500, %v447
      %523 = vst.msk [vmem:[#allocation2 + $0xb0] sm:$0xff] %vm500, %v449
      %524 = vst.msk [vmem:[#allocation2 + $0xb8] sm:$0xff] %vm500, %v451
      %525 = vst.msk [vmem:[#allocation2 + $0xc0] sm:$0xff] %vm500, %v453
      %526 = vst.msk [vmem:[#allocation2 + $0xc8] sm:$0xff] %vm500, %v455
      %527 = vst.msk [vmem:[#allocation2 + $0xd0] sm:$0xff] %vm500, %v457
      %528 = vst.msk [vmem:[#allocation2 + $0xd8] sm:$0xff] %vm500, %v459
      %529 = vst.msk [vmem:[#allocation2 + $0xe0] sm:$0xff] %vm500, %v461
      %530 = vst.msk [vmem:[#allocation2 + $0xe8] sm:$0xff] %vm500, %v463
      %531 = vst.msk [vmem:[#allocation2 + $0xf0] sm:$0xff] %vm500, %v465
      %532 = vst.msk [vmem:[#allocation2 + $0xf8] sm:$0xff] %vm500, %v467
      %v533 = vld [vmem:[%s262 + $0x4] sm:$0xff]
      %v534 = vld [vmem:[%s262 + $0xc] sm:$0xff]
      %v535 = vld [vmem:[%s262 + $0x1c] sm:$0xff]
      %v536 = vld [vmem:[%s262 + $0x24] sm:$0xff]
      %v537 = vld [vmem:[%s262 + $0x34] sm:$0xff]
      %v538 = vld [vmem:[%s262 + $0x3c] sm:$0xff]
      %v539 = vld [vmem:[%s262 + $0x4c] sm:$0xff]
      %v540 = vld [vmem:[%s262 + $0x54] sm:$0xff]
      %v541 = vld [vmem:[%s262 + $0x64] sm:$0xff]
      %v542 = vld [vmem:[%s262 + $0x6c] sm:$0xff]
      %v543 = vld [vmem:[%s262 + $0x7c] sm:$0xff]
      %v544 = vld [vmem:[%s262 + $0x84] sm:$0xff]
      %v545 = vld [vmem:[%s262 + $0x94] sm:$0xff]
      %v546 = vld [vmem:[%s262 + $0x9c] sm:$0xff]
      %v547 = vld [vmem:[%s262 + $0xac] sm:$0xff]
      %v548 = vld [vmem:[%s262 + $0xb4] sm:$0xff]
      %v549 = vld [vmem:[%s262 + $0xc4] sm:$0xff]
      %v550 = vld [vmem:[%s262 + $0xcc] sm:$0xff]
      %v551 = vld [vmem:[%s262 + $0xdc] sm:$0xff]
      %v552 = vld [vmem:[%s262 + $0xe4] sm:$0xff]
      %v553 = vld [vmem:[%s262 + $0xf4] sm:$0xff]
      %v554 = vld [vmem:[%s262 + $0xfc] sm:$0xff]
      %v555 = vld [vmem:[%s262 + $0x10c] sm:$0xff]
      %v556 = vld [vmem:[%s262 + $0x114] sm:$0xff]
      %v557 = vld [vmem:[%s262 + $0x124] sm:$0xff]
      %v558 = vld [vmem:[%s262 + $0x12c] sm:$0xff]
      %v559 = vld [vmem:[%s262 + $0x13c] sm:$0xff]
      %v560 = vld [vmem:[%s262 + $0x144] sm:$0xff]
      %v561 = vld [vmem:[%s262 + $0x154] sm:$0xff]
      %v562 = vld [vmem:[%s262 + $0x15c] sm:$0xff]
      %v563 = vld [vmem:[%s262 + $0x16c] sm:$0xff]
      %v564 = vld [vmem:[%s262 + $0x174] sm:$0xff]
      %597 = vrot.lane.b32.xlu0 %v533, 8
      %v598 = vpop.permute.xlu0 %597
      %599 = vrot.lane.b32.xlu0 %v534, 8
      %v600 = vpop.permute.xlu0 %599
      %601 = vrot.lane.b32.xlu0 %v535, 8
      %v602 = vpop.permute.xlu0 %601
      %603 = vrot.lane.b32.xlu0 %v536, 8
      %v604 = vpop.permute.xlu0 %603
      %605 = vrot.lane.b32.xlu0 %v537, 8
      %v606 = vpop.permute.xlu0 %605
      %607 = vrot.lane.b32.xlu0 %v538, 8
      %v608 = vpop.permute.xlu0 %607
      %609 = vrot.lane.b32.xlu0 %v539, 8
      %v610 = vpop.permute.xlu0 %609
      %611 = vrot.lane.b32.xlu0 %v540, 8
      %v612 = vpop.permute.xlu0 %611
      %613 = vrot.lane.b32.xlu0 %v541, 8
      %v614 = vpop.permute.xlu0 %613
      %615 = vrot.lane.b32.xlu0 %v542, 8
      %v616 = vpop.permute.xlu0 %615
      %617 = vrot.lane.b32.xlu0 %v543, 8
      %v618 = vpop.permute.xlu0 %617
      %619 = vrot.lane.b32.xlu0 %v544, 8
      %v620 = vpop.permute.xlu0 %619
      %621 = vrot.lane.b32.xlu0 %v545, 8
      %v622 = vpop.permute.xlu0 %621
      %623 = vrot.lane.b32.xlu0 %v546, 8
      %v624 = vpop.permute.xlu0 %623
      %625 = vrot.lane.b32.xlu0 %v547, 8
      %v626 = vpop.permute.xlu0 %625
      %627 = vrot.lane.b32.xlu0 %v548, 8
      %v628 = vpop.permute.xlu0 %627
      %629 = vrot.lane.b32.xlu0 %v549, 8
      %v630 = vpop.permute.xlu0 %629
      %631 = vrot.lane.b32.xlu0 %v550, 8
      %v632 = vpop.permute.xlu0 %631
      %633 = vrot.lane.b32.xlu0 %v551, 8
      %v634 = vpop.permute.xlu0 %633
      %635 = vrot.lane.b32.xlu0 %v552, 8
      %v636 = vpop.permute.xlu0 %635
      %637 = vrot.lane.b32.xlu0 %v553, 8
      %v638 = vpop.permute.xlu0 %637
      %639 = vrot.lane.b32.xlu0 %v554, 8
      %v640 = vpop.permute.xlu0 %639
      %641 = vrot.lane.b32.xlu0 %v555, 8
      %v642 = vpop.permute.xlu0 %641
      %643 = vrot.lane.b32.xlu0 %v556, 8
      %v644 = vpop.permute.xlu0 %643
      %645 = vrot.lane.b32.xlu0 %v557, 8
      %v646 = vpop.permute.xlu0 %645
      %647 = vrot.lane.b32.xlu0 %v558, 8
      %v648 = vpop.permute.xlu0 %647
      %649 = vrot.lane.b32.xlu0 %v559, 8
      %v650 = vpop.permute.xlu0 %649
      %651 = vrot.lane.b32.xlu0 %v560, 8
      %v652 = vpop.permute.xlu0 %651
      %653 = vrot.lane.b32.xlu0 %v561, 8
      %v654 = vpop.permute.xlu0 %653
      %655 = vrot.lane.b32.xlu0 %v562, 8
      %v656 = vpop.permute.xlu0 %655
      %657 = vrot.lane.b32.xlu0 %v563, 8
      %v658 = vpop.permute.xlu0 %657
      %659 = vrot.lane.b32.xlu0 %v564, 8
      %v660 = vpop.permute.xlu0 %659
      %vm693 = vcmask 97344
      %694 = vst.msk [vmem:[#allocation2] sm:$0xff] %vm693, %v598
      %695 = vst.msk [vmem:[#allocation2 + $0x8] sm:$0xff] %vm693, %v600
      %696 = vst.msk [vmem:[#allocation2 + $0x10] sm:$0xff] %vm693, %v602
      %697 = vst.msk [vmem:[#allocation2 + $0x18] sm:$0xff] %vm693, %v604
      %698 = vst.msk [vmem:[#allocation2 + $0x20] sm:$0xff] %vm693, %v606
      %699 = vst.msk [vmem:[#allocation2 + $0x28] sm:$0xff] %vm693, %v608
      %700 = vst.msk [vmem:[#allocation2 + $0x30] sm:$0xff] %vm693, %v610
      %701 = vst.msk [vmem:[#allocation2 + $0x38] sm:$0xff] %vm693, %v612
      %702 = vst.msk [vmem:[#allocation2 + $0x40] sm:$0xff] %vm693, %v614
      %703 = vst.msk [vmem:[#allocation2 + $0x48] sm:$0xff] %vm693, %v616
      %704 = vst.msk [vmem:[#allocation2 + $0x50] sm:$0xff] %vm693, %v618
      %705 = vst.msk [vmem:[#allocation2 + $0x58] sm:$0xff] %vm693, %v620
      %706 = vst.msk [vmem:[#allocation2 + $0x60] sm:$0xff] %vm693, %v622
      %707 = vst.msk [vmem:[#allocation2 + $0x68] sm:$0xff] %vm693, %v624
      %708 = vst.msk [vmem:[#allocation2 + $0x70] sm:$0xff] %vm693, %v626
      %709 = vst.msk [vmem:[#allocation2 + $0x78] sm:$0xff] %vm693, %v628
      %710 = vst.msk [vmem:[#allocation2 + $0x80] sm:$0xff] %vm693, %v630
      %711 = vst.msk [vmem:[#allocation2 + $0x88] sm:$0xff] %vm693, %v632
      %712 = vst.msk [vmem:[#allocation2 + $0x90] sm:$0xff] %vm693, %v634
      %713 = vst.msk [vmem:[#allocation2 + $0x98] sm:$0xff] %vm693, %v636
      %714 = vst.msk [vmem:[#allocation2 + $0xa0] sm:$0xff] %vm693, %v638
      %715 = vst.msk [vmem:[#allocation2 + $0xa8] sm:$0xff] %vm693, %v640
      %716 = vst.msk [vmem:[#allocation2 + $0xb0] sm:$0xff] %vm693, %v642
      %717 = vst.msk [vmem:[#allocation2 + $0xb8] sm:$0xff] %vm693, %v644
      %718 = vst.msk [vmem:[#allocation2 + $0xc0] sm:$0xff] %vm693, %v646
      %719 = vst.msk [vmem:[#allocation2 + $0xc8] sm:$0xff] %vm693, %v648
      %720 = vst.msk [vmem:[#allocation2 + $0xd0] sm:$0xff] %vm693, %v650
      %721 = vst.msk [vmem:[#allocation2 + $0xd8] sm:$0xff] %vm693, %v652
      %722 = vst.msk [vmem:[#allocation2 + $0xe0] sm:$0xff] %vm693, %v654
      %723 = vst.msk [vmem:[#allocation2 + $0xe8] sm:$0xff] %vm693, %v656
      %724 = vst.msk [vmem:[#allocation2 + $0xf0] sm:$0xff] %vm693, %v658
      %725 = vst.msk [vmem:[#allocation2 + $0xf8] sm:$0xff] %vm693, %v660
      %s726 = scalar_lea.vmem %s262, 48
      %v727 = vld [vmem:[%s726] sm:$0xff]
      %v728 = vld [vmem:[%s726 + $0x8] sm:$0xff]
      %v729 = vld [vmem:[%s726 + $0x18] sm:$0xff]
      %v730 = vld [vmem:[%s726 + $0x20] sm:$0xff]
      %v731 = vld [vmem:[%s726 + $0x30] sm:$0xff]
      %v732 = vld [vmem:[%s726 + $0x38] sm:$0xff]
      %v733 = vld [vmem:[%s726 + $0x48] sm:$0xff]
      %v734 = vld [vmem:[%s726 + $0x50] sm:$0xff]
      %v735 = vld [vmem:[%s726 + $0x60] sm:$0xff]
      %v736 = vld [vmem:[%s726 + $0x68] sm:$0xff]
      %v737 = vld [vmem:[%s726 + $0x78] sm:$0xff]
      %v738 = vld [vmem:[%s726 + $0x80] sm:$0xff]
      %v739 = vld [vmem:[%s726 + $0x90] sm:$0xff]
      %v740 = vld [vmem:[%s726 + $0x98] sm:$0xff]
      %v741 = vld [vmem:[%s726 + $0xa8] sm:$0xff]
      %v742 = vld [vmem:[%s726 + $0xb0] sm:$0xff]
      %v743 = vld [vmem:[%s726 + $0xc0] sm:$0xff]
      %v744 = vld [vmem:[%s726 + $0xc8] sm:$0xff]
      %v745 = vld [vmem:[%s726 + $0xd8] sm:$0xff]
      %v746 = vld [vmem:[%s726 + $0xe0] sm:$0xff]
      %v747 = vld [vmem:[%s726 + $0xf0] sm:$0xff]
      %v748 = vld [vmem:[%s726 + $0xf8] sm:$0xff]
      %v749 = vld [vmem:[%s726 + $0x108] sm:$0xff]
      %v750 = vld [vmem:[%s726 + $0x110] sm:$0xff]
      %v751 = vld [vmem:[%s726 + $0x120] sm:$0xff]
      %v752 = vld [vmem:[%s726 + $0x128] sm:$0xff]
      %v753 = vld [vmem:[%s726 + $0x138] sm:$0xff]
      %v754 = vld [vmem:[%s726 + $0x140] sm:$0xff]
      %v755 = vld [vmem:[%s726 + $0x150] sm:$0xff]
      %v756 = vld [vmem:[%s726 + $0x158] sm:$0xff]
      %v757 = vld [vmem:[%s726 + $0x168] sm:$0xff]
      %v758 = vld [vmem:[%s726 + $0x170] sm:$0xff]
      %791 = vrot.lane.b32.xlu0 %v727, 12
      %v792 = vpop.permute.xlu0 %791
      %793 = vrot.lane.b32.xlu0 %v728, 12
      %v794 = vpop.permute.xlu0 %793
      %795 = vrot.lane.b32.xlu0 %v729, 12
      %v796 = vpop.permute.xlu0 %795
      %797 = vrot.lane.b32.xlu0 %v730, 12
      %v798 = vpop.permute.xlu0 %797
      %799 = vrot.lane.b32.xlu0 %v731, 12
      %v800 = vpop.permute.xlu0 %799
      %801 = vrot.lane.b32.xlu0 %v732, 12
      %v802 = vpop.permute.xlu0 %801
      %803 = vrot.lane.b32.xlu0 %v733, 12
      %v804 = vpop.permute.xlu0 %803
      %805 = vrot.lane.b32.xlu0 %v734, 12
      %v806 = vpop.permute.xlu0 %805
      %807 = vrot.lane.b32.xlu0 %v735, 12
      %v808 = vpop.permute.xlu0 %807
      %809 = vrot.lane.b32.xlu0 %v736, 12
      %v810 = vpop.permute.xlu0 %809
      %811 = vrot.lane.b32.xlu0 %v737, 12
      %v812 = vpop.permute.xlu0 %811
      %813 = vrot.lane.b32.xlu0 %v738, 12
      %v814 = vpop.permute.xlu0 %813
      %815 = vrot.lane.b32.xlu0 %v739, 12
      %v816 = vpop.permute.xlu0 %815
      %817 = vrot.lane.b32.xlu0 %v740, 12
      %v818 = vpop.permute.xlu0 %817
      %819 = vrot.lane.b32.xlu0 %v741, 12
      %v820 = vpop.permute.xlu0 %819
      %821 = vrot.lane.b32.xlu0 %v742, 12
      %v822 = vpop.permute.xlu0 %821
      %823 = vrot.lane.b32.xlu0 %v743, 12
      %v824 = vpop.permute.xlu0 %823
      %825 = vrot.lane.b32.xlu0 %v744, 12
      %v826 = vpop.permute.xlu0 %825
      %827 = vrot.lane.b32.xlu0 %v745, 12
      %v828 = vpop.permute.xlu0 %827
      %829 = vrot.lane.b32.xlu0 %v746, 12
      %v830 = vpop.permute.xlu0 %829
      %831 = vrot.lane.b32.xlu0 %v747, 12
      %v832 = vpop.permute.xlu0 %831
      %833 = vrot.lane.b32.xlu0 %v748, 12
      %v834 = vpop.permute.xlu0 %833
      %835 = vrot.lane.b32.xlu0 %v749, 12
      %v836 = vpop.permute.xlu0 %835
      %837 = vrot.lane.b32.xlu0 %v750, 12
      %v838 = vpop.permute.xlu0 %837
      %839 = vrot.lane.b32.xlu0 %v751, 12
      %v840 = vpop.permute.xlu0 %839
      %841 = vrot.lane.b32.xlu0 %v752, 12
      %v842 = vpop.permute.xlu0 %841
      %843 = vrot.lane.b32.xlu0 %v753, 12
      %v844 = vpop.permute.xlu0 %843
      %845 = vrot.lane.b32.xlu0 %v754, 12
      %v846 = vpop.permute.xlu0 %845
      %847 = vrot.lane.b32.xlu0 %v755, 12
      %v848 = vpop.permute.xlu0 %847
      %849 = vrot.lane.b32.xlu0 %v756, 12
      %v850 = vpop.permute.xlu0 %849
      %851 = vrot.lane.b32.xlu0 %v757, 12
      %v852 = vpop.permute.xlu0 %851
      %853 = vrot.lane.b32.xlu0 %v758, 12
      %v854 = vpop.permute.xlu0 %853
      %vm887 = vcmask 130144
      %888 = vst.msk [vmem:[#allocation2] sm:$0xff] %vm887, %v792
      %889 = vst.msk [vmem:[#allocation2 + $0x8] sm:$0xff] %vm887, %v794
      %890 = vst.msk [vmem:[#allocation2 + $0x10] sm:$0xff] %vm887, %v796
      %891 = vst.msk [vmem:[#allocation2 + $0x18] sm:$0xff] %vm887, %v798
      %892 = vst.msk [vmem:[#allocation2 + $0x20] sm:$0xff] %vm887, %v800
      %893 = vst.msk [vmem:[#allocation2 + $0x28] sm:$0xff] %vm887, %v802
      %894 = vst.msk [vmem:[#allocation2 + $0x30] sm:$0xff] %vm887, %v804
      %895 = vst.msk [vmem:[#allocation2 + $0x38] sm:$0xff] %vm887, %v806
      %896 = vst.msk [vmem:[#allocation2 + $0x40] sm:$0xff] %vm887, %v808
      %897 = vst.msk [vmem:[#allocation2 + $0x48] sm:$0xff] %vm887, %v810
      %898 = vst.msk [vmem:[#allocation2 + $0x50] sm:$0xff] %vm887, %v812
      %899 = vst.msk [vmem:[#allocation2 + $0x58] sm:$0xff] %vm887, %v814
      %900 = vst.msk [vmem:[#allocation2 + $0x60] sm:$0xff] %vm887, %v816
      %901 = vst.msk [vmem:[#allocation2 + $0x68] sm:$0xff] %vm887, %v818
      %902 = vst.msk [vmem:[#allocation2 + $0x70] sm:$0xff] %vm887, %v820
      %903 = vst.msk [vmem:[#allocation2 + $0x78] sm:$0xff] %vm887, %v822
      %904 = vst.msk [vmem:[#allocation2 + $0x80] sm:$0xff] %vm887, %v824
      %905 = vst.msk [vmem:[#allocation2 + $0x88] sm:$0xff] %vm887, %v826
      %906 = vst.msk [vmem:[#allocation2 + $0x90] sm:$0xff] %vm887, %v828
      %907 = vst.msk [vmem:[#allocation2 + $0x98] sm:$0xff] %vm887, %v830
      %908 = vst.msk [vmem:[#allocation2 + $0xa0] sm:$0xff] %vm887, %v832
      %909 = vst.msk [vmem:[#allocation2 + $0xa8] sm:$0xff] %vm887, %v834
      %910 = vst.msk [vmem:[#allocation2 + $0xb0] sm:$0xff] %vm887, %v836
      %911 = vst.msk [vmem:[#allocation2 + $0xb8] sm:$0xff] %vm887, %v838
      %912 = vst.msk [vmem:[#allocation2 + $0xc0] sm:$0xff] %vm887, %v840
      %913 = vst.msk [vmem:[#allocation2 + $0xc8] sm:$0xff] %vm887, %v842
      %914 = vst.msk [vmem:[#allocation2 + $0xd0] sm:$0xff] %vm887, %v844
      %915 = vst.msk [vmem:[#allocation2 + $0xd8] sm:$0xff] %vm887, %v846
      %916 = vst.msk [vmem:[#allocation2 + $0xe0] sm:$0xff] %vm887, %v848
      %917 = vst.msk [vmem:[#allocation2 + $0xe8] sm:$0xff] %vm887, %v850
      %918 = vst.msk [vmem:[#allocation2 + $0xf0] sm:$0xff] %vm887, %v852
      %919 = vst.msk [vmem:[#allocation2 + $0xf8] sm:$0xff] %vm887, %v854
      %v920 = vld [vmem:[%s726 + $0x2] sm:$0xff]
      %v921 = vld [vmem:[%s726 + $0xa] sm:$0xff]
      %v922 = vld [vmem:[%s726 + $0x1a] sm:$0xff]
      %v923 = vld [vmem:[%s726 + $0x22] sm:$0xff]
      %v924 = vld [vmem:[%s726 + $0x32] sm:$0xff]
      %v925 = vld [vmem:[%s726 + $0x3a] sm:$0xff]
      %v926 = vld [vmem:[%s726 + $0x4a] sm:$0xff]
      %v927 = vld [vmem:[%s726 + $0x52] sm:$0xff]
      %v928 = vld [vmem:[%s726 + $0x62] sm:$0xff]
      %v929 = vld [vmem:[%s726 + $0x6a] sm:$0xff]
      %v930 = vld [vmem:[%s726 + $0x7a] sm:$0xff]
      %v931 = vld [vmem:[%s726 + $0x82] sm:$0xff]
      %v932 = vld [vmem:[%s726 + $0x92] sm:$0xff]
      %v933 = vld [vmem:[%s726 + $0x9a] sm:$0xff]
      %v934 = vld [vmem:[%s726 + $0xaa] sm:$0xff]
      %v935 = vld [vmem:[%s726 + $0xb2] sm:$0xff]
      %v936 = vld [vmem:[%s726 + $0xc2] sm:$0xff]
      %v937 = vld [vmem:[%s726 + $0xca] sm:$0xff]
      %v938 = vld [vmem:[%s726 + $0xda] sm:$0xff]
      %v939 = vld [vmem:[%s726 + $0xe2] sm:$0xff]
      %v940 = vld [vmem:[%s726 + $0xf2] sm:$0xff]
      %v941 = vld [vmem:[%s726 + $0xfa] sm:$0xff]
      %v942 = vld [vmem:[%s726 + $0x10a] sm:$0xff]
      %v943 = vld [vmem:[%s726 + $0x112] sm:$0xff]
      %v944 = vld [vmem:[%s726 + $0x122] sm:$0xff]
      %v945 = vld [vmem:[%s726 + $0x12a] sm:$0xff]
      %v946 = vld [vmem:[%s726 + $0x13a] sm:$0xff]
      %v947 = vld [vmem:[%s726 + $0x142] sm:$0xff]
      %v948 = vld [vmem:[%s726 + $0x152] sm:$0xff]
      %v949 = vld [vmem:[%s726 + $0x15a] sm:$0xff]
      %v950 = vld [vmem:[%s726 + $0x16a] sm:$0xff]
      %v951 = vld [vmem:[%s726 + $0x172] sm:$0xff]
      %984 = vrot.lane.b32.xlu0 %v920, 16
      %v985 = vpop.permute.xlu0 %984
      %986 = vrot.lane.b32.xlu0 %v921, 16
      %v987 = vpop.permute.xlu0 %986
      %988 = vrot.lane.b32.xlu0 %v922, 16
      %v989 = vpop.permute.xlu0 %988
      %990 = vrot.lane.b32.xlu0 %v923, 16
      %v991 = vpop.permute.xlu0 %990
      %992 = vrot.lane.b32.xlu0 %v924, 16
      %v993 = vpop.permute.xlu0 %992
      %994 = vrot.lane.b32.xlu0 %v925, 16
      %v995 = vpop.permute.xlu0 %994
      %996 = vrot.lane.b32.xlu0 %v926, 16
      %v997 = vpop.permute.xlu0 %996
      %998 = vrot.lane.b32.xlu0 %v927, 16
      %v999 = vpop.permute.xlu0 %998
      %1000 = vrot.lane.b32.xlu0 %v928, 16
      %v1001 = vpop.permute.xlu0 %1000
      %1002 = vrot.lane.b32.xlu0 %v929, 16
      %v1003 = vpop.permute.xlu0 %1002
      %1004 = vrot.lane.b32.xlu0 %v930, 16
      %v1005 = vpop.permute.xlu0 %1004
      %1006 = vrot.lane.b32.xlu0 %v931, 16
      %v1007 = vpop.permute.xlu0 %1006
      %1008 = vrot.lane.b32.xlu0 %v932, 16
      %v1009 = vpop.permute.xlu0 %1008
      %1010 = vrot.lane.b32.xlu0 %v933, 16
      %v1011 = vpop.permute.xlu0 %1010
      %1012 = vrot.lane.b32.xlu0 %v934, 16
      %v1013 = vpop.permute.xlu0 %1012
      %1014 = vrot.lane.b32.xlu0 %v935, 16
      %v1015 = vpop.permute.xlu0 %1014
      %1016 = vrot.lane.b32.xlu0 %v936, 16
      %v1017 = vpop.permute.xlu0 %1016
      %1018 = vrot.lane.b32.xlu0 %v937, 16
      %v1019 = vpop.permute.xlu0 %1018
      %1020 = vrot.lane.b32.xlu0 %v938, 16
      %v1021 = vpop.permute.xlu0 %1020
      %1022 = vrot.lane.b32.xlu0 %v939, 16
      %v1023 = vpop.permute.xlu0 %1022
      %1024 = vrot.lane.b32.xlu0 %v940, 16
      %v1025 = vpop.permute.xlu0 %1024
      %1026 = vrot.lane.b32.xlu0 %v941, 16
      %v1027 = vpop.permute.xlu0 %1026
      %1028 = vrot.lane.b32.xlu0 %v942, 16
      %v1029 = vpop.permute.xlu0 %1028
      %1030 = vrot.lane.b32.xlu0 %v943, 16
      %v1031 = vpop.permute.xlu0 %1030
      %1032 = vrot.lane.b32.xlu0 %v944, 16
      %v1033 = vpop.permute.xlu0 %1032
      %1034 = vrot.lane.b32.xlu0 %v945, 16
      %v1035 = vpop.permute.xlu0 %1034
      %1036 = vrot.lane.b32.xlu0 %v946, 16
      %v1037 = vpop.permute.xlu0 %1036
      %1038 = vrot.lane.b32.xlu0 %v947, 16
      %v1039 = vpop.permute.xlu0 %1038
      %1040 = vrot.lane.b32.xlu0 %v948, 16
      %v1041 = vpop.permute.xlu0 %1040
      %1042 = vrot.lane.b32.xlu0 %v949, 16
      %v1043 = vpop.permute.xlu0 %1042
      %1044 = vrot.lane.b32.xlu0 %v950, 16
      %v1045 = vpop.permute.xlu0 %1044
      %1046 = vrot.lane.b32.xlu0 %v951, 16
      %v1047 = vpop.permute.xlu0 %1046
      %vm1080 = vcmask 162944
      %1081 = vst.msk [vmem:[#allocation2] sm:$0xff] %vm1080, %v985
      %1082 = vst.msk [vmem:[#allocation2 + $0x8] sm:$0xff] %vm1080, %v987
      %1083 = vst.msk [vmem:[#allocation2 + $0x10] sm:$0xff] %vm1080, %v989
      %1084 = vst.msk [vmem:[#allocation2 + $0x18] sm:$0xff] %vm1080, %v991
      %1085 = vst.msk [vmem:[#allocation2 + $0x20] sm:$0xff] %vm1080, %v993
      %1086 = vst.msk [vmem:[#allocation2 + $0x28] sm:$0xff] %vm1080, %v995
      %1087 = vst.msk [vmem:[#allocation2 + $0x30] sm:$0xff] %vm1080, %v997
      %1088 = vst.msk [vmem:[#allocation2 + $0x38] sm:$0xff] %vm1080, %v999
      %1089 = vst.msk [vmem:[#allocation2 + $0x40] sm:$0xff] %vm1080, %v1001
      %1090 = vst.msk [vmem:[#allocation2 + $0x48] sm:$0xff] %vm1080, %v1003
      %1091 = vst.msk [vmem:[#allocation2 + $0x50] sm:$0xff] %vm1080, %v1005
      %1092 = vst.msk [vmem:[#allocation2 + $0x58] sm:$0xff] %vm1080, %v1007
      %1093 = vst.msk [vmem:[#allocation2 + $0x60] sm:$0xff] %vm1080, %v1009
      %1094 = vst.msk [vmem:[#allocation2 + $0x68] sm:$0xff] %vm1080, %v1011
      %1095 = vst.msk [vmem:[#allocation2 + $0x70] sm:$0xff] %vm1080, %v1013
      %1096 = vst.msk [vmem:[#allocation2 + $0x78] sm:$0xff] %vm1080, %v1015
      %1097 = vst.msk [vmem:[#allocation2 + $0x80] sm:$0xff] %vm1080, %v1017
      %1098 = vst.msk [vmem:[#allocation2 + $0x88] sm:$0xff] %vm1080, %v1019
      %1099 = vst.msk [vmem:[#allocation2 + $0x90] sm:$0xff] %vm1080, %v1021
      %1100 = vst.msk [vmem:[#allocation2 + $0x98] sm:$0xff] %vm1080, %v1023
      %1101 = vst.msk [vmem:[#allocation2 + $0xa0] sm:$0xff] %vm1080, %v1025
      %1102 = vst.msk [vmem:[#allocation2 + $0xa8] sm:$0xff] %vm1080, %v1027
      %1103 = vst.msk [vmem:[#allocation2 + $0xb0] sm:$0xff] %vm1080, %v1029
      %1104 = vst.msk [vmem:[#allocation2 + $0xb8] sm:$0xff] %vm1080, %v1031
      %1105 = vst.msk [vmem:[#allocation2 + $0xc0] sm:$0xff] %vm1080, %v1033
      %1106 = vst.msk [vmem:[#allocation2 + $0xc8] sm:$0xff] %vm1080, %v1035
      %1107 = vst.msk [vmem:[#allocation2 + $0xd0] sm:$0xff] %vm1080, %v1037
      %1108 = vst.msk [vmem:[#allocation2 + $0xd8] sm:$0xff] %vm1080, %v1039
      %1109 = vst.msk [vmem:[#allocation2 + $0xe0] sm:$0xff] %vm1080, %v1041
      %1110 = vst.msk [vmem:[#allocation2 + $0xe8] sm:$0xff] %vm1080, %v1043
      %1111 = vst.msk [vmem:[#allocation2 + $0xf0] sm:$0xff] %vm1080, %v1045
      %1112 = vst.msk [vmem:[#allocation2 + $0xf8] sm:$0xff] %vm1080, %v1047
      %v1113 = vld [vmem:[%s726 + $0x4] sm:$0xff]
      %v1114 = vld [vmem:[%s726 + $0xc] sm:$0xff]
      %v1115 = vld [vmem:[%s726 + $0x1c] sm:$0xff]
      %v1116 = vld [vmem:[%s726 + $0x24] sm:$0xff]
      %v1117 = vld [vmem:[%s726 + $0x34] sm:$0xff]
      %v1118 = vld [vmem:[%s726 + $0x3c] sm:$0xff]
      %v1119 = vld [vmem:[%s726 + $0x4c] sm:$0xff]
      %v1120 = vld [vmem:[%s726 + $0x54] sm:$0xff]
      %v1121 = vld [vmem:[%s726 + $0x64] sm:$0xff]
      %v1122 = vld [vmem:[%s726 + $0x6c] sm:$0xff]
      %v1123 = vld [vmem:[%s726 + $0x7c] sm:$0xff]
      %v1124 = vld [vmem:[%s726 + $0x84] sm:$0xff]
      %v1125 = vld [vmem:[%s726 + $0x94] sm:$0xff]
      %v1126 = vld [vmem:[%s726 + $0x9c] sm:$0xff]
      %v1127 = vld [vmem:[%s726 + $0xac] sm:$0xff]
      %v1128 = vld [vmem:[%s726 + $0xb4] sm:$0xff]
      %v1129 = vld [vmem:[%s726 + $0xc4] sm:$0xff]
      %v1130 = vld [vmem:[%s726 + $0xcc] sm:$0xff]
      %v1131 = vld [vmem:[%s726 + $0xdc] sm:$0xff]
      %v1132 = vld [vmem:[%s726 + $0xe4] sm:$0xff]
      %v1133 = vld [vmem:[%s726 + $0xf4] sm:$0xff]
      %v1134 = vld [vmem:[%s726 + $0xfc] sm:$0xff]
      %v1135 = vld [vmem:[%s726 + $0x10c] sm:$0xff]
      %v1136 = vld [vmem:[%s726 + $0x114] sm:$0xff]
      %v1137 = vld [vmem:[%s726 + $0x124] sm:$0xff]
      %v1138 = vld [vmem:[%s726 + $0x12c] sm:$0xff]
      %v1139 = vld [vmem:[%s726 + $0x13c] sm:$0xff]
      %v1140 = vld [vmem:[%s726 + $0x144] sm:$0xff]
      %v1141 = vld [vmem:[%s726 + $0x154] sm:$0xff]
      %v1142 = vld [vmem:[%s726 + $0x15c] sm:$0xff]
      %v1143 = vld [vmem:[%s726 + $0x16c] sm:$0xff]
      %v1144 = vld [vmem:[%s726 + $0x174] sm:$0xff]
      %1177 = vrot.lane.b32.xlu0 %v1113, 20
      %v1178 = vpop.permute.xlu0 %1177
      %1179 = vrot.lane.b32.xlu0 %v1114, 20
      %v1180 = vpop.permute.xlu0 %1179
      %1181 = vrot.lane.b32.xlu0 %v1115, 20
      %v1182 = vpop.permute.xlu0 %1181
      %1183 = vrot.lane.b32.xlu0 %v1116, 20
      %v1184 = vpop.permute.xlu0 %1183
      %1185 = vrot.lane.b32.xlu0 %v1117, 20
      %v1186 = vpop.permute.xlu0 %1185
      %1187 = vrot.lane.b32.xlu0 %v1118, 20
      %v1188 = vpop.permute.xlu0 %1187
      %1189 = vrot.lane.b32.xlu0 %v1119, 20
      %v1190 = vpop.permute.xlu0 %1189
      %1191 = vrot.lane.b32.xlu0 %v1120, 20
      %v1192 = vpop.permute.xlu0 %1191
      %1193 = vrot.lane.b32.xlu0 %v1121, 20
      %v1194 = vpop.permute.xlu0 %1193
      %1195 = vrot.lane.b32.xlu0 %v1122, 20
      %v1196 = vpop.permute.xlu0 %1195
      %1197 = vrot.lane.b32.xlu0 %v1123, 20
      %v1198 = vpop.permute.xlu0 %1197
      %1199 = vrot.lane.b32.xlu0 %v1124, 20
      %v1200 = vpop.permute.xlu0 %1199
      %1201 = vrot.lane.b32.xlu0 %v1125, 20
      %v1202 = vpop.permute.xlu0 %1201
      %1203 = vrot.lane.b32.xlu0 %v1126, 20
      %v1204 = vpop.permute.xlu0 %1203
      %1205 = vrot.lane.b32.xlu0 %v1127, 20
      %v1206 = vpop.permute.xlu0 %1205
      %1207 = vrot.lane.b32.xlu0 %v1128, 20
      %v1208 = vpop.permute.xlu0 %1207
      %1209 = vrot.lane.b32.xlu0 %v1129, 20
      %v1210 = vpop.permute.xlu0 %1209
      %1211 = vrot.lane.b32.xlu0 %v1130, 20
      %v1212 = vpop.permute.xlu0 %1211
      %1213 = vrot.lane.b32.xlu0 %v1131, 20
      %v1214 = vpop.permute.xlu0 %1213
      %1215 = vrot.lane.b32.xlu0 %v1132, 20
      %v1216 = vpop.permute.xlu0 %1215
      %1217 = vrot.lane.b32.xlu0 %v1133, 20
      %v1218 = vpop.permute.xlu0 %1217
      %1219 = vrot.lane.b32.xlu0 %v1134, 20
      %v1220 = vpop.permute.xlu0 %1219
      %1221 = vrot.lane.b32.xlu0 %v1135, 20
      %v1222 = vpop.permute.xlu0 %1221
      %1223 = vrot.lane.b32.xlu0 %v1136, 20
      %v1224 = vpop.permute.xlu0 %1223
      %1225 = vrot.lane.b32.xlu0 %v1137, 20
      %v1226 = vpop.permute.xlu0 %1225
      %1227 = vrot.lane.b32.xlu0 %v1138, 20
      %v1228 = vpop.permute.xlu0 %1227
      %1229 = vrot.lane.b32.xlu0 %v1139, 20
      %v1230 = vpop.permute.xlu0 %1229
      %1231 = vrot.lane.b32.xlu0 %v1140, 20
      %v1232 = vpop.permute.xlu0 %1231
      %1233 = vrot.lane.b32.xlu0 %v1141, 20
      %v1234 = vpop.permute.xlu0 %1233
      %1235 = vrot.lane.b32.xlu0 %v1142, 20
      %v1236 = vpop.permute.xlu0 %1235
      %1237 = vrot.lane.b32.xlu0 %v1143, 20
      %v1238 = vpop.permute.xlu0 %1237
      %1239 = vrot.lane.b32.xlu0 %v1144, 20
      %v1240 = vpop.permute.xlu0 %1239
      %vm1273 = vcmask 195744
      %1274 = vst.msk [vmem:[#allocation2] sm:$0xff] %vm1273, %v1178
      %1275 = vst.msk [vmem:[#allocation2 + $0x8] sm:$0xff] %vm1273, %v1180
      %1276 = vst.msk [vmem:[#allocation2 + $0x10] sm:$0xff] %vm1273, %v1182
      %1277 = vst.msk [vmem:[#allocation2 + $0x18] sm:$0xff] %vm1273, %v1184
      %1278 = vst.msk [vmem:[#allocation2 + $0x20] sm:$0xff] %vm1273, %v1186
      %1279 = vst.msk [vmem:[#allocation2 + $0x28] sm:$0xff] %vm1273, %v1188
      %1280 = vst.msk [vmem:[#allocation2 + $0x30] sm:$0xff] %vm1273, %v1190
      %1281 = vst.msk [vmem:[#allocation2 + $0x38] sm:$0xff] %vm1273, %v1192
      %1282 = vst.msk [vmem:[#allocation2 + $0x40] sm:$0xff] %vm1273, %v1194
      %1283 = vst.msk [vmem:[#allocation2 + $0x48] sm:$0xff] %vm1273, %v1196
      %1284 = vst.msk [vmem:[#allocation2 + $0x50] sm:$0xff] %vm1273, %v1198
      %1285 = vst.msk [vmem:[#allocation2 + $0x58] sm:$0xff] %vm1273, %v1200
      %1286 = vst.msk [vmem:[#allocation2 + $0x60] sm:$0xff] %vm1273, %v1202
      %1287 = vst.msk [vmem:[#allocation2 + $0x68] sm:$0xff] %vm1273, %v1204
      %1288 = vst.msk [vmem:[#allocation2 + $0x70] sm:$0xff] %vm1273, %v1206
      %1289 = vst.msk [vmem:[#allocation2 + $0x78] sm:$0xff] %vm1273, %v1208
      %1290 = vst.msk [vmem:[#allocation2 + $0x80] sm:$0xff] %vm1273, %v1210
      %1291 = vst.msk [vmem:[#allocation2 + $0x88] sm:$0xff] %vm1273, %v1212
      %1292 = vst.msk [vmem:[#allocation2 + $0x90] sm:$0xff] %vm1273, %v1214
      %1293 = vst.msk [vmem:[#allocation2 + $0x98] sm:$0xff] %vm1273, %v1216
      %1294 = vst.msk [vmem:[#allocation2 + $0xa0] sm:$0xff] %vm1273, %v1218
      %1295 = vst.msk [vmem:[#allocation2 + $0xa8] sm:$0xff] %vm1273, %v1220
      %1296 = vst.msk [vmem:[#allocation2 + $0xb0] sm:$0xff] %vm1273, %v1222
      %1297 = vst.msk [vmem:[#allocation2 + $0xb8] sm:$0xff] %vm1273, %v1224
      %1298 = vst.msk [vmem:[#allocation2 + $0xc0] sm:$0xff] %vm1273, %v1226
      %1299 = vst.msk [vmem:[#allocation2 + $0xc8] sm:$0xff] %vm1273, %v1228
      %1300 = vst.msk [vmem:[#allocation2 + $0xd0] sm:$0xff] %vm1273, %v1230
      %1301 = vst.msk [vmem:[#allocation2 + $0xd8] sm:$0xff] %vm1273, %v1232
      %1302 = vst.msk [vmem:[#allocation2 + $0xe0] sm:$0xff] %vm1273, %v1234
      %1303 = vst.msk [vmem:[#allocation2 + $0xe8] sm:$0xff] %vm1273, %v1236
      %1304 = vst.msk [vmem:[#allocation2 + $0xf0] sm:$0xff] %vm1273, %v1238
      %1305 = vst.msk [vmem:[#allocation2 + $0xf8] sm:$0xff] %vm1273, %v1240
      %s1306 = scalar_lea.vmem %s262, 96
      %v1307 = vld [vmem:[%s1306] sm:$0xff]
      %v1308 = vld [vmem:[%s1306 + $0x8] sm:$0xff]
      %v1309 = vld [vmem:[%s1306 + $0x18] sm:$0xff]
      %v1310 = vld [vmem:[%s1306 + $0x20] sm:$0xff]
      %v1311 = vld [vmem:[%s1306 + $0x30] sm:$0xff]
      %v1312 = vld [vmem:[%s1306 + $0x38] sm:$0xff]
      %v1313 = vld [vmem:[%s1306 + $0x48] sm:$0xff]
      %v1314 = vld [vmem:[%s1306 + $0x50] sm:$0xff]
      %v1315 = vld [vmem:[%s1306 + $0x60] sm:$0xff]
      %v1316 = vld [vmem:[%s1306 + $0x68] sm:$0xff]
      %v1317 = vld [vmem:[%s1306 + $0x78] sm:$0xff]
      %v1318 = vld [vmem:[%s1306 + $0x80] sm:$0xff]
      %v1319 = vld [vmem:[%s1306 + $0x90] sm:$0xff]
      %v1320 = vld [vmem:[%s1306 + $0x98] sm:$0xff]
      %v1321 = vld [vmem:[%s1306 + $0xa8] sm:$0xff]
      %v1322 = vld [vmem:[%s1306 + $0xb0] sm:$0xff]
      %v1323 = vld [vmem:[%s1306 + $0xc0] sm:$0xff]
      %v1324 = vld [vmem:[%s1306 + $0xc8] sm:$0xff]
      %v1325 = vld [vmem:[%s1306 + $0xd8] sm:$0xff]
      %v1326 = vld [vmem:[%s1306 + $0xe0] sm:$0xff]
      %v1327 = vld [vmem:[%s1306 + $0xf0] sm:$0xff]
      %v1328 = vld [vmem:[%s1306 + $0xf8] sm:$0xff]
      %v1329 = vld [vmem:[%s1306 + $0x108] sm:$0xff]
      %v1330 = vld [vmem:[%s1306 + $0x110] sm:$0xff]
      %v1331 = vld [vmem:[%s1306 + $0x120] sm:$0xff]
      %v1332 = vld [vmem:[%s1306 + $0x128] sm:$0xff]
      %v1333 = vld [vmem:[%s1306 + $0x138] sm:$0xff]
      %v1334 = vld [vmem:[%s1306 + $0x140] sm:$0xff]
      %v1335 = vld [vmem:[%s1306 + $0x150] sm:$0xff]
      %v1336 = vld [vmem:[%s1306 + $0x158] sm:$0xff]
      %v1337 = vld [vmem:[%s1306 + $0x168] sm:$0xff]
      %v1338 = vld [vmem:[%s1306 + $0x170] sm:$0xff]
      %1371 = vrot.lane.b32.xlu0 %v1307, 24
      %v1372 = vpop.permute.xlu0 %1371
      %1373 = vrot.lane.b32.xlu0 %v1308, 24
      %v1374 = vpop.permute.xlu0 %1373
      %1375 = vrot.lane.b32.xlu0 %v1309, 24
      %v1376 = vpop.permute.xlu0 %1375
      %1377 = vrot.lane.b32.xlu0 %v1310, 24
      %v1378 = vpop.permute.xlu0 %1377
      %1379 = vrot.lane.b32.xlu0 %v1311, 24
      %v1380 = vpop.permute.xlu0 %1379
      %1381 = vrot.lane.b32.xlu0 %v1312, 24
      %v1382 = vpop.permute.xlu0 %1381
      %1383 = vrot.lane.b32.xlu0 %v1313, 24
      %v1384 = vpop.permute.xlu0 %1383
      %1385 = vrot.lane.b32.xlu0 %v1314, 24
      %v1386 = vpop.permute.xlu0 %1385
      %1387 = vrot.lane.b32.xlu0 %v1315, 24
      %v1388 = vpop.permute.xlu0 %1387
      %1389 = vrot.lane.b32.xlu0 %v1316, 24
      %v1390 = vpop.permute.xlu0 %1389
      %1391 = vrot.lane.b32.xlu0 %v1317, 24
      %v1392 = vpop.permute.xlu0 %1391
      %1393 = vrot.lane.b32.xlu0 %v1318, 24
      %v1394 = vpop.permute.xlu0 %1393
      %1395 = vrot.lane.b32.xlu0 %v1319, 24
      %v1396 = vpop.permute.xlu0 %1395
      %1397 = vrot.lane.b32.xlu0 %v1320, 24
      %v1398 = vpop.permute.xlu0 %1397
      %1399 = vrot.lane.b32.xlu0 %v1321, 24
      %v1400 = vpop.permute.xlu0 %1399
      %1401 = vrot.lane.b32.xlu0 %v1322, 24
      %v1402 = vpop.permute.xlu0 %1401
      %1403 = vrot.lane.b32.xlu0 %v1323, 24
      %v1404 = vpop.permute.xlu0 %1403
      %1405 = vrot.lane.b32.xlu0 %v1324, 24
      %v1406 = vpop.permute.xlu0 %1405
      %1407 = vrot.lane.b32.xlu0 %v1325, 24
      %v1408 = vpop.permute.xlu0 %1407
      %1409 = vrot.lane.b32.xlu0 %v1326, 24
      %v1410 = vpop.permute.xlu0 %1409
      %1411 = vrot.lane.b32.xlu0 %v1327, 24
      %v1412 = vpop.permute.xlu0 %1411
      %1413 = vrot.lane.b32.xlu0 %v1328, 24
      %v1414 = vpop.permute.xlu0 %1413
      %1415 = vrot.lane.b32.xlu0 %v1329, 24
      %v1416 = vpop.permute.xlu0 %1415
      %1417 = vrot.lane.b32.xlu0 %v1330, 24
      %v1418 = vpop.permute.xlu0 %1417
      %1419 = vrot.lane.b32.xlu0 %v1331, 24
      %v1420 = vpop.permute.xlu0 %1419
      %1421 = vrot.lane.b32.xlu0 %v1332, 24
      %v1422 = vpop.permute.xlu0 %1421
      %1423 = vrot.lane.b32.xlu0 %v1333, 24
      %v1424 = vpop.permute.xlu0 %1423
      %1425 = vrot.lane.b32.xlu0 %v1334, 24
      %v1426 = vpop.permute.xlu0 %1425
      %1427 = vrot.lane.b32.xlu0 %v1335, 24
      %v1428 = vpop.permute.xlu0 %1427
      %1429 = vrot.lane.b32.xlu0 %v1336, 24
      %v1430 = vpop.permute.xlu0 %1429
      %1431 = vrot.lane.b32.xlu0 %v1337, 24
      %v1432 = vpop.permute.xlu0 %1431
      %1433 = vrot.lane.b32.xlu0 %v1338, 24
      %v1434 = vpop.permute.xlu0 %1433
      %vm1467 = vcmask 228544
      %1468 = vst.msk [vmem:[#allocation2] sm:$0xff] %vm1467, %v1372
      %1469 = vst.msk [vmem:[#allocation2 + $0x8] sm:$0xff] %vm1467, %v1374
      %1470 = vst.msk [vmem:[#allocation2 + $0x10] sm:$0xff] %vm1467, %v1376
      %1471 = vst.msk [vmem:[#allocation2 + $0x18] sm:$0xff] %vm1467, %v1378
      %1472 = vst.msk [vmem:[#allocation2 + $0x20] sm:$0xff] %vm1467, %v1380
      %1473 = vst.msk [vmem:[#allocation2 + $0x28] sm:$0xff] %vm1467, %v1382
      %1474 = vst.msk [vmem:[#allocation2 + $0x30] sm:$0xff] %vm1467, %v1384
      %1475 = vst.msk [vmem:[#allocation2 + $0x38] sm:$0xff] %vm1467, %v1386
      %1476 = vst.msk [vmem:[#allocation2 + $0x40] sm:$0xff] %vm1467, %v1388
      %1477 = vst.msk [vmem:[#allocation2 + $0x48] sm:$0xff] %vm1467, %v1390
      %1478 = vst.msk [vmem:[#allocation2 + $0x50] sm:$0xff] %vm1467, %v1392
      %1479 = vst.msk [vmem:[#allocation2 + $0x58] sm:$0xff] %vm1467, %v1394
      %1480 = vst.msk [vmem:[#allocation2 + $0x60] sm:$0xff] %vm1467, %v1396
      %1481 = vst.msk [vmem:[#allocation2 + $0x68] sm:$0xff] %vm1467, %v1398
      %1482 = vst.msk [vmem:[#allocation2 + $0x70] sm:$0xff] %vm1467, %v1400
      %1483 = vst.msk [vmem:[#allocation2 + $0x78] sm:$0xff] %vm1467, %v1402
      %1484 = vst.msk [vmem:[#allocation2 + $0x80] sm:$0xff] %vm1467, %v1404
      %1485 = vst.msk [vmem:[#allocation2 + $0x88] sm:$0xff] %vm1467, %v1406
      %1486 = vst.msk [vmem:[#allocation2 + $0x90] sm:$0xff] %vm1467, %v1408
      %1487 = vst.msk [vmem:[#allocation2 + $0x98] sm:$0xff] %vm1467, %v1410
      %1488 = vst.msk [vmem:[#allocation2 + $0xa0] sm:$0xff] %vm1467, %v1412
      %1489 = vst.msk [vmem:[#allocation2 + $0xa8] sm:$0xff] %vm1467, %v1414
      %1490 = vst.msk [vmem:[#allocation2 + $0xb0] sm:$0xff] %vm1467, %v1416
      %1491 = vst.msk [vmem:[#allocation2 + $0xb8] sm:$0xff] %vm1467, %v1418
      %1492 = vst.msk [vmem:[#allocation2 + $0xc0] sm:$0xff] %vm1467, %v1420
      %1493 = vst.msk [vmem:[#allocation2 + $0xc8] sm:$0xff] %vm1467, %v1422
      %1494 = vst.msk [vmem:[#allocation2 + $0xd0] sm:$0xff] %vm1467, %v1424
      %1495 = vst.msk [vmem:[#allocation2 + $0xd8] sm:$0xff] %vm1467, %v1426
      %1496 = vst.msk [vmem:[#allocation2 + $0xe0] sm:$0xff] %vm1467, %v1428
      %1497 = vst.msk [vmem:[#allocation2 + $0xe8] sm:$0xff] %vm1467, %v1430
      %1498 = vst.msk [vmem:[#allocation2 + $0xf0] sm:$0xff] %vm1467, %v1432
      %1499 = vst.msk [vmem:[#allocation2 + $0xf8] sm:$0xff] %vm1467, %v1434
      %v1500 = vld [vmem:[%s1306 + $0x2] sm:$0xff]
      %v1501 = vld [vmem:[%s1306 + $0xa] sm:$0xff]
      %v1502 = vld [vmem:[%s1306 + $0x1a] sm:$0xff]
      %v1503 = vld [vmem:[%s1306 + $0x22] sm:$0xff]
      %v1504 = vld [vmem:[%s1306 + $0x32] sm:$0xff]
      %v1505 = vld [vmem:[%s1306 + $0x3a] sm:$0xff]
      %v1506 = vld [vmem:[%s1306 + $0x4a] sm:$0xff]
      %v1507 = vld [vmem:[%s1306 + $0x52] sm:$0xff]
      %v1508 = vld [vmem:[%s1306 + $0x62] sm:$0xff]
      %v1509 = vld [vmem:[%s1306 + $0x6a] sm:$0xff]
      %v1510 = vld [vmem:[%s1306 + $0x7a] sm:$0xff]
      %v1511 = vld [vmem:[%s1306 + $0x82] sm:$0xff]
      %v1512 = vld [vmem:[%s1306 + $0x92] sm:$0xff]
      %v1513 = vld [vmem:[%s1306 + $0x9a] sm:$0xff]
      %v1514 = vld [vmem:[%s1306 + $0xaa] sm:$0xff]
      %v1515 = vld [vmem:[%s1306 + $0xb2] sm:$0xff]
      %v1516 = vld [vmem:[%s1306 + $0xc2] sm:$0xff]
      %v1517 = vld [vmem:[%s1306 + $0xca] sm:$0xff]
      %v1518 = vld [vmem:[%s1306 + $0xda] sm:$0xff]
      %v1519 = vld [vmem:[%s1306 + $0xe2] sm:$0xff]
      %v1520 = vld [vmem:[%s1306 + $0xf2] sm:$0xff]
      %v1521 = vld [vmem:[%s1306 + $0xfa] sm:$0xff]
      %v1522 = vld [vmem:[%s1306 + $0x10a] sm:$0xff]
      %v1523 = vld [vmem:[%s1306 + $0x112] sm:$0xff]
      %v1524 = vld [vmem:[%s1306 + $0x122] sm:$0xff]
      %v1525 = vld [vmem:[%s1306 + $0x12a] sm:$0xff]
      %v1526 = vld [vmem:[%s1306 + $0x13a] sm:$0xff]
      %v1527 = vld [vmem:[%s1306 + $0x142] sm:$0xff]
      %v1528 = vld [vmem:[%s1306 + $0x152] sm:$0xff]
      %v1529 = vld [vmem:[%s1306 + $0x15a] sm:$0xff]
      %v1530 = vld [vmem:[%s1306 + $0x16a] sm:$0xff]
      %v1531 = vld [vmem:[%s1306 + $0x172] sm:$0xff]
      %1564 = vrot.lane.b32.xlu0 %v1500, 28
      %v1565 = vpop.permute.xlu0 %1564
      %1566 = vrot.lane.b32.xlu0 %v1501, 28
      %v1567 = vpop.permute.xlu0 %1566
      %1568 = vrot.lane.b32.xlu0 %v1502, 28
      %v1569 = vpop.permute.xlu0 %1568
      %1570 = vrot.lane.b32.xlu0 %v1503, 28
      %v1571 = vpop.permute.xlu0 %1570
      %1572 = vrot.lane.b32.xlu0 %v1504, 28
      %v1573 = vpop.permute.xlu0 %1572
      %1574 = vrot.lane.b32.xlu0 %v1505, 28
      %v1575 = vpop.permute.xlu0 %1574
      %1576 = vrot.lane.b32.xlu0 %v1506, 28
      %v1577 = vpop.permute.xlu0 %1576
      %1578 = vrot.lane.b32.xlu0 %v1507, 28
      %v1579 = vpop.permute.xlu0 %1578
      %1580 = vrot.lane.b32.xlu0 %v1508, 28
      %v1581 = vpop.permute.xlu0 %1580
      %1582 = vrot.lane.b32.xlu0 %v1509, 28
      %v1583 = vpop.permute.xlu0 %1582
      %1584 = vrot.lane.b32.xlu0 %v1510, 28
      %v1585 = vpop.permute.xlu0 %1584
      %1586 = vrot.lane.b32.xlu0 %v1511, 28
      %v1587 = vpop.permute.xlu0 %1586
      %1588 = vrot.lane.b32.xlu0 %v1512, 28
      %v1589 = vpop.permute.xlu0 %1588
      %1590 = vrot.lane.b32.xlu0 %v1513, 28
      %v1591 = vpop.permute.xlu0 %1590
      %1592 = vrot.lane.b32.xlu0 %v1514, 28
      %v1593 = vpop.permute.xlu0 %1592
      %1594 = vrot.lane.b32.xlu0 %v1515, 28
      %v1595 = vpop.permute.xlu0 %1594
      %1596 = vrot.lane.b32.xlu0 %v1516, 28
      %v1597 = vpop.permute.xlu0 %1596
      %1598 = vrot.lane.b32.xlu0 %v1517, 28
      %v1599 = vpop.permute.xlu0 %1598
      %1600 = vrot.lane.b32.xlu0 %v1518, 28
      %v1601 = vpop.permute.xlu0 %1600
      %1602 = vrot.lane.b32.xlu0 %v1519, 28
      %v1603 = vpop.permute.xlu0 %1602
      %1604 = vrot.lane.b32.xlu0 %v1520, 28
      %v1605 = vpop.permute.xlu0 %1604
      %1606 = vrot.lane.b32.xlu0 %v1521, 28
      %v1607 = vpop.permute.xlu0 %1606
      %1608 = vrot.lane.b32.xlu0 %v1522, 28
      %v1609 = vpop.permute.xlu0 %1608
      %1610 = vrot.lane.b32.xlu0 %v1523, 28
      %v1611 = vpop.permute.xlu0 %1610
      %1612 = vrot.lane.b32.xlu0 %v1524, 28
      %v1613 = vpop.permute.xlu0 %1612
      %1614 = vrot.lane.b32.xlu0 %v1525, 28
      %v1615 = vpop.permute.xlu0 %1614
      %1616 = vrot.lane.b32.xlu0 %v1526, 28
      %v1617 = vpop.permute.xlu0 %1616
      %1618 = vrot.lane.b32.xlu0 %v1527, 28
      %v1619 = vpop.permute.xlu0 %1618
      %1620 = vrot.lane.b32.xlu0 %v1528, 28
      %v1621 = vpop.permute.xlu0 %1620
      %1622 = vrot.lane.b32.xlu0 %v1529, 28
      %v1623 = vpop.permute.xlu0 %1622
      %1624 = vrot.lane.b32.xlu0 %v1530, 28
      %v1625 = vpop.permute.xlu0 %1624
      %1626 = vrot.lane.b32.xlu0 %v1531, 28
      %v1627 = vpop.permute.xlu0 %1626
      %vm1660 = vcmask 261344
      %1661 = vst.msk [vmem:[#allocation2] sm:$0xff] %vm1660, %v1565
      %1662 = vst.msk [vmem:[#allocation2 + $0x8] sm:$0xff] %vm1660, %v1567
      %1663 = vst.msk [vmem:[#allocation2 + $0x10] sm:$0xff] %vm1660, %v1569
      %1664 = vst.msk [vmem:[#allocation2 + $0x18] sm:$0xff] %vm1660, %v1571
      %1665 = vst.msk [vmem:[#allocation2 + $0x20] sm:$0xff] %vm1660, %v1573
      %1666 = vst.msk [vmem:[#allocation2 + $0x28] sm:$0xff] %vm1660, %v1575
      %1667 = vst.msk [vmem:[#allocation2 + $0x30] sm:$0xff] %vm1660, %v1577
      %1668 = vst.msk [vmem:[#allocation2 + $0x38] sm:$0xff] %vm1660, %v1579
      %1669 = vst.msk [vmem:[#allocation2 + $0x40] sm:$0xff] %vm1660, %v1581
      %1670 = vst.msk [vmem:[#allocation2 + $0x48] sm:$0xff] %vm1660, %v1583
      %1671 = vst.msk [vmem:[#allocation2 + $0x50] sm:$0xff] %vm1660, %v1585
      %1672 = vst.msk [vmem:[#allocation2 + $0x58] sm:$0xff] %vm1660, %v1587
      %1673 = vst.msk [vmem:[#allocation2 + $0x60] sm:$0xff] %vm1660, %v1589
      %1674 = vst.msk [vmem:[#allocation2 + $0x68] sm:$0xff] %vm1660, %v1591
      %1675 = vst.msk [vmem:[#allocation2 + $0x70] sm:$0xff] %vm1660, %v1593
      %1676 = vst.msk [vmem:[#allocation2 + $0x78] sm:$0xff] %vm1660, %v1595
      %1677 = vst.msk [vmem:[#allocation2 + $0x80] sm:$0xff] %vm1660, %v1597
      %1678 = vst.msk [vmem:[#allocation2 + $0x88] sm:$0xff] %vm1660, %v1599
      %1679 = vst.msk [vmem:[#allocation2 + $0x90] sm:$0xff] %vm1660, %v1601
      %1680 = vst.msk [vmem:[#allocation2 + $0x98] sm:$0xff] %vm1660, %v1603
      %1681 = vst.msk [vmem:[#allocation2 + $0xa0] sm:$0xff] %vm1660, %v1605
      %1682 = vst.msk [vmem:[#allocation2 + $0xa8] sm:$0xff] %vm1660, %v1607
      %1683 = vst.msk [vmem:[#allocation2 + $0xb0] sm:$0xff] %vm1660, %v1609
      %1684 = vst.msk [vmem:[#allocation2 + $0xb8] sm:$0xff] %vm1660, %v1611
      %1685 = vst.msk [vmem:[#allocation2 + $0xc0] sm:$0xff] %vm1660, %v1613
      %1686 = vst.msk [vmem:[#allocation2 + $0xc8] sm:$0xff] %vm1660, %v1615
      %1687 = vst.msk [vmem:[#allocation2 + $0xd0] sm:$0xff] %vm1660, %v1617
      %1688 = vst.msk [vmem:[#allocation2 + $0xd8] sm:$0xff] %vm1660, %v1619
      %1689 = vst.msk [vmem:[#allocation2 + $0xe0] sm:$0xff] %vm1660, %v1621
      %1690 = vst.msk [vmem:[#allocation2 + $0xe8] sm:$0xff] %vm1660, %v1623
      %1691 = vst.msk [vmem:[#allocation2 + $0xf0] sm:$0xff] %vm1660, %v1625
      %1692 = vst.msk [vmem:[#allocation2 + $0xf8] sm:$0xff] %vm1660, %v1627
      %v1693 = vld [vmem:[%s1306 + $0x4] sm:$0xff]
      %v1694 = vld [vmem:[%s1306 + $0xc] sm:$0xff]
      %v1695 = vld [vmem:[%s1306 + $0x1c] sm:$0xff]
      %v1696 = vld [vmem:[%s1306 + $0x24] sm:$0xff]
      %v1697 = vld [vmem:[%s1306 + $0x34] sm:$0xff]
      %v1698 = vld [vmem:[%s1306 + $0x3c] sm:$0xff]
      %v1699 = vld [vmem:[%s1306 + $0x4c] sm:$0xff]
      %v1700 = vld [vmem:[%s1306 + $0x54] sm:$0xff]
      %v1701 = vld [vmem:[%s1306 + $0x64] sm:$0xff]
      %v1702 = vld [vmem:[%s1306 + $0x6c] sm:$0xff]
      %v1703 = vld [vmem:[%s1306 + $0x7c] sm:$0xff]
      %v1704 = vld [vmem:[%s1306 + $0x84] sm:$0xff]
      %v1705 = vld [vmem:[%s1306 + $0x94] sm:$0xff]
      %v1706 = vld [vmem:[%s1306 + $0x9c] sm:$0xff]
      %v1707 = vld [vmem:[%s1306 + $0xac] sm:$0xff]
      %v1708 = vld [vmem:[%s1306 + $0xb4] sm:$0xff]
      %v1709 = vld [vmem:[%s1306 + $0xc4] sm:$0xff]
      %v1710 = vld [vmem:[%s1306 + $0xcc] sm:$0xff]
      %v1711 = vld [vmem:[%s1306 + $0xdc] sm:$0xff]
      %v1712 = vld [vmem:[%s1306 + $0xe4] sm:$0xff]
      %v1713 = vld [vmem:[%s1306 + $0xf4] sm:$0xff]
      %v1714 = vld [vmem:[%s1306 + $0xfc] sm:$0xff]
      %v1715 = vld [vmem:[%s1306 + $0x10c] sm:$0xff]
      %v1716 = vld [vmem:[%s1306 + $0x114] sm:$0xff]
      %v1717 = vld [vmem:[%s1306 + $0x124] sm:$0xff]
      %v1718 = vld [vmem:[%s1306 + $0x12c] sm:$0xff]
      %v1719 = vld [vmem:[%s1306 + $0x13c] sm:$0xff]
      %v1720 = vld [vmem:[%s1306 + $0x144] sm:$0xff]
      %v1721 = vld [vmem:[%s1306 + $0x154] sm:$0xff]
      %v1722 = vld [vmem:[%s1306 + $0x15c] sm:$0xff]
      %v1723 = vld [vmem:[%s1306 + $0x16c] sm:$0xff]
      %v1724 = vld [vmem:[%s1306 + $0x174] sm:$0xff]
      %1757 = vrot.lane.b32.xlu0 %v1693, 32
      %v1758 = vpop.permute.xlu0 %1757
      %1759 = vrot.lane.b32.xlu0 %v1694, 32
      %v1760 = vpop.permute.xlu0 %1759
      %1761 = vrot.lane.b32.xlu0 %v1695, 32
      %v1762 = vpop.permute.xlu0 %1761
      %1763 = vrot.lane.b32.xlu0 %v1696, 32
      %v1764 = vpop.permute.xlu0 %1763
      %1765 = vrot.lane.b32.xlu0 %v1697, 32
      %v1766 = vpop.permute.xlu0 %1765
      %1767 = vrot.lane.b32.xlu0 %v1698, 32
      %v1768 = vpop.permute.xlu0 %1767
      %1769 = vrot.lane.b32.xlu0 %v1699, 32
      %v1770 = vpop.permute.xlu0 %1769
      %1771 = vrot.lane.b32.xlu0 %v1700, 32
      %v1772 = vpop.permute.xlu0 %1771
      %1773 = vrot.lane.b32.xlu0 %v1701, 32
      %v1774 = vpop.permute.xlu0 %1773
      %1775 = vrot.lane.b32.xlu0 %v1702, 32
      %v1776 = vpop.permute.xlu0 %1775
      %1777 = vrot.lane.b32.xlu0 %v1703, 32
      %v1778 = vpop.permute.xlu0 %1777
      %1779 = vrot.lane.b32.xlu0 %v1704, 32
      %v1780 = vpop.permute.xlu0 %1779
      %1781 = vrot.lane.b32.xlu0 %v1705, 32
      %v1782 = vpop.permute.xlu0 %1781
      %1783 = vrot.lane.b32.xlu0 %v1706, 32
      %v1784 = vpop.permute.xlu0 %1783
      %1785 = vrot.lane.b32.xlu0 %v1707, 32
      %v1786 = vpop.permute.xlu0 %1785
      %1787 = vrot.lane.b32.xlu0 %v1708, 32
      %v1788 = vpop.permute.xlu0 %1787
      %1789 = vrot.lane.b32.xlu0 %v1709, 32
      %v1790 = vpop.permute.xlu0 %1789
      %1791 = vrot.lane.b32.xlu0 %v1710, 32
      %v1792 = vpop.permute.xlu0 %1791
      %1793 = vrot.lane.b32.xlu0 %v1711, 32
      %v1794 = vpop.permute.xlu0 %1793
      %1795 = vrot.lane.b32.xlu0 %v1712, 32
      %v1796 = vpop.permute.xlu0 %1795
      %1797 = vrot.lane.b32.xlu0 %v1713, 32
      %v1798 = vpop.permute.xlu0 %1797
      %1799 = vrot.lane.b32.xlu0 %v1714, 32
      %v1800 = vpop.permute.xlu0 %1799
      %1801 = vrot.lane.b32.xlu0 %v1715, 32
      %v1802 = vpop.permute.xlu0 %1801
      %1803 = vrot.lane.b32.xlu0 %v1716, 32
      %v1804 = vpop.permute.xlu0 %1803
      %1805 = vrot.lane.b32.xlu0 %v1717, 32
      %v1806 = vpop.permute.xlu0 %1805
      %1807 = vrot.lane.b32.xlu0 %v1718, 32
      %v1808 = vpop.permute.xlu0 %1807
      %1809 = vrot.lane.b32.xlu0 %v1719, 32
      %v1810 = vpop.permute.xlu0 %1809
      %1811 = vrot.lane.b32.xlu0 %v1720, 32
      %v1812 = vpop.permute.xlu0 %1811
      %1813 = vrot.lane.b32.xlu0 %v1721, 32
      %v1814 = vpop.permute.xlu0 %1813
      %1815 = vrot.lane.b32.xlu0 %v1722, 32
      %v1816 = vpop.permute.xlu0 %1815
      %1817 = vrot.lane.b32.xlu0 %v1723, 32
      %v1818 = vpop.permute.xlu0 %1817
      %1819 = vrot.lane.b32.xlu0 %v1724, 32
      %v1820 = vpop.permute.xlu0 %1819
      %vm1853 = vcmask 294144
      %1854 = vst.msk [vmem:[#allocation2] sm:$0xff] %vm1853, %v1758
      %1855 = vst.msk [vmem:[#allocation2 + $0x8] sm:$0xff] %vm1853, %v1760
      %1856 = vst.msk [vmem:[#allocation2 + $0x10] sm:$0xff] %vm1853, %v1762
      %1857 = vst.msk [vmem:[#allocation2 + $0x18] sm:$0xff] %vm1853, %v1764
      %1858 = vst.msk [vmem:[#allocation2 + $0x20] sm:$0xff] %vm1853, %v1766
      %1859 = vst.msk [vmem:[#allocation2 + $0x28] sm:$0xff] %vm1853, %v1768
      %1860 = vst.msk [vmem:[#allocation2 + $0x30] sm:$0xff] %vm1853, %v1770
      %1861 = vst.msk [vmem:[#allocation2 + $0x38] sm:$0xff] %vm1853, %v1772
      %1862 = vst.msk [vmem:[#allocation2 + $0x40] sm:$0xff] %vm1853, %v1774
      %1863 = vst.msk [vmem:[#allocation2 + $0x48] sm:$0xff] %vm1853, %v1776
      %1864 = vst.msk [vmem:[#allocation2 + $0x50] sm:$0xff] %vm1853, %v1778
      %1865 = vst.msk [vmem:[#allocation2 + $0x58] sm:$0xff] %vm1853, %v1780
      %1866 = vst.msk [vmem:[#allocation2 + $0x60] sm:$0xff] %vm1853, %v1782
      %1867 = vst.msk [vmem:[#allocation2 + $0x68] sm:$0xff] %vm1853, %v1784
      %1868 = vst.msk [vmem:[#allocation2 + $0x70] sm:$0xff] %vm1853, %v1786
      %1869 = vst.msk [vmem:[#allocation2 + $0x78] sm:$0xff] %vm1853, %v1788
      %1870 = vst.msk [vmem:[#allocation2 + $0x80] sm:$0xff] %vm1853, %v1790
      %1871 = vst.msk [vmem:[#allocation2 + $0x88] sm:$0xff] %vm1853, %v1792
      %1872 = vst.msk [vmem:[#allocation2 + $0x90] sm:$0xff] %vm1853, %v1794
      %1873 = vst.msk [vmem:[#allocation2 + $0x98] sm:$0xff] %vm1853, %v1796
      %1874 = vst.msk [vmem:[#allocation2 + $0xa0] sm:$0xff] %vm1853, %v1798
      %1875 = vst.msk [vmem:[#allocation2 + $0xa8] sm:$0xff] %vm1853, %v1800
      %1876 = vst.msk [vmem:[#allocation2 + $0xb0] sm:$0xff] %vm1853, %v1802
      %1877 = vst.msk [vmem:[#allocation2 + $0xb8] sm:$0xff] %vm1853, %v1804
      %1878 = vst.msk [vmem:[#allocation2 + $0xc0] sm:$0xff] %vm1853, %v1806
      %1879 = vst.msk [vmem:[#allocation2 + $0xc8] sm:$0xff] %vm1853, %v1808
      %1880 = vst.msk [vmem:[#allocation2 + $0xd0] sm:$0xff] %vm1853, %v1810
      %1881 = vst.msk [vmem:[#allocation2 + $0xd8] sm:$0xff] %vm1853, %v1812
      %1882 = vst.msk [vmem:[#allocation2 + $0xe0] sm:$0xff] %vm1853, %v1814
      %1883 = vst.msk [vmem:[#allocation2 + $0xe8] sm:$0xff] %vm1853, %v1816
      %1884 = vst.msk [vmem:[#allocation2 + $0xf0] sm:$0xff] %vm1853, %v1818
      %1885 = vst.msk [vmem:[#allocation2 + $0xf8] sm:$0xff] %vm1853, %v1820
      %s1886 = scalar_lea.vmem %s262, 24
      %v1887 = vld [vmem:[%s1886 + $0x1] sm:$0xff]
      %v1888 = vld [vmem:[%s1886 + $0x9] sm:$0xff]
      %v1889 = vld [vmem:[%s1886 + $0x19] sm:$0xff]
      %v1890 = vld [vmem:[%s1886 + $0x21] sm:$0xff]
      %v1891 = vld [vmem:[%s1886 + $0x31] sm:$0xff]
      %v1892 = vld [vmem:[%s1886 + $0x39] sm:$0xff]
      %v1893 = vld [vmem:[%s1886 + $0x49] sm:$0xff]
      %v1894 = vld [vmem:[%s1886 + $0x51] sm:$0xff]
      %v1895 = vld [vmem:[%s1886 + $0x61] sm:$0xff]
      %v1896 = vld [vmem:[%s1886 + $0x69] sm:$0xff]
      %v1897 = vld [vmem:[%s1886 + $0x79] sm:$0xff]
      %v1898 = vld [vmem:[%s1886 + $0x81] sm:$0xff]
      %v1899 = vld [vmem:[%s1886 + $0x91] sm:$0xff]
      %v1900 = vld [vmem:[%s1886 + $0x99] sm:$0xff]
      %v1901 = vld [vmem:[%s1886 + $0xa9] sm:$0xff]
      %v1902 = vld [vmem:[%s1886 + $0xb1] sm:$0xff]
      %v1903 = vld [vmem:[%s1886 + $0xc1] sm:$0xff]
      %v1904 = vld [vmem:[%s1886 + $0xc9] sm:$0xff]
      %v1905 = vld [vmem:[%s1886 + $0xd9] sm:$0xff]
      %v1906 = vld [vmem:[%s1886 + $0xe1] sm:$0xff]
      %v1907 = vld [vmem:[%s1886 + $0xf1] sm:$0xff]
      %v1908 = vld [vmem:[%s1886 + $0xf9] sm:$0xff]
      %v1909 = vld [vmem:[%s1886 + $0x109] sm:$0xff]
      %v1910 = vld [vmem:[%s1886 + $0x111] sm:$0xff]
      %v1911 = vld [vmem:[%s1886 + $0x121] sm:$0xff]
      %v1912 = vld [vmem:[%s1886 + $0x129] sm:$0xff]
      %v1913 = vld [vmem:[%s1886 + $0x139] sm:$0xff]
      %v1914 = vld [vmem:[%s1886 + $0x141] sm:$0xff]
      %v1915 = vld [vmem:[%s1886 + $0x151] sm:$0xff]
      %v1916 = vld [vmem:[%s1886 + $0x159] sm:$0xff]
      %v1917 = vld [vmem:[%s1886 + $0x169] sm:$0xff]
      %v1918 = vld [vmem:[%s1886 + $0x171] sm:$0xff]
      %1951 = vrot.lane.b32.xlu0 %v1887, 36
      %v1952 = vpop.permute.xlu0 %1951
      %1953 = vrot.lane.b32.xlu0 %v1888, 36
      %v1954 = vpop.permute.xlu0 %1953
      %1955 = vrot.lane.b32.xlu0 %v1889, 36
      %v1956 = vpop.permute.xlu0 %1955
      %1957 = vrot.lane.b32.xlu0 %v1890, 36
      %v1958 = vpop.permute.xlu0 %1957
      %1959 = vrot.lane.b32.xlu0 %v1891, 36
      %v1960 = vpop.permute.xlu0 %1959
      %1961 = vrot.lane.b32.xlu0 %v1892, 36
      %v1962 = vpop.permute.xlu0 %1961
      %1963 = vrot.lane.b32.xlu0 %v1893, 36
      %v1964 = vpop.permute.xlu0 %1963
      %1965 = vrot.lane.b32.xlu0 %v1894, 36
      %v1966 = vpop.permute.xlu0 %1965
      %1967 = vrot.lane.b32.xlu0 %v1895, 36
      %v1968 = vpop.permute.xlu0 %1967
      %1969 = vrot.lane.b32.xlu0 %v1896, 36
      %v1970 = vpop.permute.xlu0 %1969
      %1971 = vrot.lane.b32.xlu0 %v1897, 36
      %v1972 = vpop.permute.xlu0 %1971
      %1973 = vrot.lane.b32.xlu0 %v1898, 36
      %v1974 = vpop.permute.xlu0 %1973
      %1975 = vrot.lane.b32.xlu0 %v1899, 36
      %v1976 = vpop.permute.xlu0 %1975
      %1977 = vrot.lane.b32.xlu0 %v1900, 36
      %v1978 = vpop.permute.xlu0 %1977
      %1979 = vrot.lane.b32.xlu0 %v1901, 36
      %v1980 = vpop.permute.xlu0 %1979
      %1981 = vrot.lane.b32.xlu0 %v1902, 36
      %v1982 = vpop.permute.xlu0 %1981
      %1983 = vrot.lane.b32.xlu0 %v1903, 36
      %v1984 = vpop.permute.xlu0 %1983
      %1985 = vrot.lane.b32.xlu0 %v1904, 36
      %v1986 = vpop.permute.xlu0 %1985
      %1987 = vrot.lane.b32.xlu0 %v1905, 36
      %v1988 = vpop.permute.xlu0 %1987
      %1989 = vrot.lane.b32.xlu0 %v1906, 36
      %v1990 = vpop.permute.xlu0 %1989
      %1991 = vrot.lane.b32.xlu0 %v1907, 36
      %v1992 = vpop.permute.xlu0 %1991
      %1993 = vrot.lane.b32.xlu0 %v1908, 36
      %v1994 = vpop.permute.xlu0 %1993
      %1995 = vrot.lane.b32.xlu0 %v1909, 36
      %v1996 = vpop.permute.xlu0 %1995
      %1997 = vrot.lane.b32.xlu0 %v1910, 36
      %v1998 = vpop.permute.xlu0 %1997
      %1999 = vrot.lane.b32.xlu0 %v1911, 36
      %v2000 = vpop.permute.xlu0 %1999
      %2001 = vrot.lane.b32.xlu0 %v1912, 36
      %v2002 = vpop.permute.xlu0 %2001
      %2003 = vrot.lane.b32.xlu0 %v1913, 36
      %v2004 = vpop.permute.xlu0 %2003
      %2005 = vrot.lane.b32.xlu0 %v1914, 36
      %v2006 = vpop.permute.xlu0 %2005
      %2007 = vrot.lane.b32.xlu0 %v1915, 36
      %v2008 = vpop.permute.xlu0 %2007
      %2009 = vrot.lane.b32.xlu0 %v1916, 36
      %v2010 = vpop.permute.xlu0 %2009
      %2011 = vrot.lane.b32.xlu0 %v1917, 36
      %v2012 = vpop.permute.xlu0 %2011
      %2013 = vrot.lane.b32.xlu0 %v1918, 36
      %v2014 = vpop.permute.xlu0 %2013
      %vm2047 = vcmask 326944
      %2048 = vst.msk [vmem:[#allocation2] sm:$0xff] %vm2047, %v1952
      %2049 = vst.msk [vmem:[#allocation2 + $0x8] sm:$0xff] %vm2047, %v1954
      %2050 = vst.msk [vmem:[#allocation2 + $0x10] sm:$0xff] %vm2047, %v1956
      %2051 = vst.msk [vmem:[#allocation2 + $0x18] sm:$0xff] %vm2047, %v1958
      %2052 = vst.msk [vmem:[#allocation2 + $0x20] sm:$0xff] %vm2047, %v1960
      %2053 = vst.msk [vmem:[#allocation2 + $0x28] sm:$0xff] %vm2047, %v1962
      %2054 = vst.msk [vmem:[#allocation2 + $0x30] sm:$0xff] %vm2047, %v1964
      %2055 = vst.msk [vmem:[#allocation2 + $0x38] sm:$0xff] %vm2047, %v1966
      %2056 = vst.msk [vmem:[#allocation2 + $0x40] sm:$0xff] %vm2047, %v1968
      %2057 = vst.msk [vmem:[#allocation2 + $0x48] sm:$0xff] %vm2047, %v1970
      %2058 = vst.msk [vmem:[#allocation2 + $0x50] sm:$0xff] %vm2047, %v1972
      %2059 = vst.msk [vmem:[#allocation2 + $0x58] sm:$0xff] %vm2047, %v1974
      %2060 = vst.msk [vmem:[#allocation2 + $0x60] sm:$0xff] %vm2047, %v1976
      %2061 = vst.msk [vmem:[#allocation2 + $0x68] sm:$0xff] %vm2047, %v1978
      %2062 = vst.msk [vmem:[#allocation2 + $0x70] sm:$0xff] %vm2047, %v1980
      %2063 = vst.msk [vmem:[#allocation2 + $0x78] sm:$0xff] %vm2047, %v1982
      %2064 = vst.msk [vmem:[#allocation2 + $0x80] sm:$0xff] %vm2047, %v1984
      %2065 = vst.msk [vmem:[#allocation2 + $0x88] sm:$0xff] %vm2047, %v1986
      %2066 = vst.msk [vmem:[#allocation2 + $0x90] sm:$0xff] %vm2047, %v1988
      %2067 = vst.msk [vmem:[#allocation2 + $0x98] sm:$0xff] %vm2047, %v1990
      %2068 = vst.msk [vmem:[#allocation2 + $0xa0] sm:$0xff] %vm2047, %v1992
      %2069 = vst.msk [vmem:[#allocation2 + $0xa8] sm:$0xff] %vm2047, %v1994
      %2070 = vst.msk [vmem:[#allocation2 + $0xb0] sm:$0xff] %vm2047, %v1996
      %2071 = vst.msk [vmem:[#allocation2 + $0xb8] sm:$0xff] %vm2047, %v1998
      %2072 = vst.msk [vmem:[#allocation2 + $0xc0] sm:$0xff] %vm2047, %v2000
      %2073 = vst.msk [vmem:[#allocation2 + $0xc8] sm:$0xff] %vm2047, %v2002
      %2074 = vst.msk [vmem:[#allocation2 + $0xd0] sm:$0xff] %vm2047, %v2004
      %2075 = vst.msk [vmem:[#allocation2 + $0xd8] sm:$0xff] %vm2047, %v2006
      %2076 = vst.msk [vmem:[#allocation2 + $0xe0] sm:$0xff] %vm2047, %v2008
      %2077 = vst.msk [vmem:[#allocation2 + $0xe8] sm:$0xff] %vm2047, %v2010
      %2078 = vst.msk [vmem:[#allocation2 + $0xf0] sm:$0xff] %vm2047, %v2012
      %2079 = vst.msk [vmem:[#allocation2 + $0xf8] sm:$0xff] %vm2047, %v2014
      %v2080 = vld [vmem:[%s1886 + $0x2] sm:$0xff]
      %v2081 = vld [vmem:[%s1886 + $0xa] sm:$0xff]
      %v2082 = vld [vmem:[%s1886 + $0x1a] sm:$0xff]
      %v2083 = vld [vmem:[%s1886 + $0x22] sm:$0xff]
      %v2084 = vld [vmem:[%s1886 + $0x32] sm:$0xff]
      %v2085 = vld [vmem:[%s1886 + $0x3a] sm:$0xff]
      %v2086 = vld [vmem:[%s1886 + $0x4a] sm:$0xff]
      %v2087 = vld [vmem:[%s1886 + $0x52] sm:$0xff]
      %v2088 = vld [vmem:[%s1886 + $0x62] sm:$0xff]
      %v2089 = vld [vmem:[%s1886 + $0x6a] sm:$0xff]
      %v2090 = vld [vmem:[%s1886 + $0x7a] sm:$0xff]
      %v2091 = vld [vmem:[%s1886 + $0x82] sm:$0xff]
      %v2092 = vld [vmem:[%s1886 + $0x92] sm:$0xff]
      %v2093 = vld [vmem:[%s1886 + $0x9a] sm:$0xff]
      %v2094 = vld [vmem:[%s1886 + $0xaa] sm:$0xff]
      %v2095 = vld [vmem:[%s1886 + $0xb2] sm:$0xff]
      %v2096 = vld [vmem:[%s1886 + $0xc2] sm:$0xff]
      %v2097 = vld [vmem:[%s1886 + $0xca] sm:$0xff]
      %v2098 = vld [vmem:[%s1886 + $0xda] sm:$0xff]
      %v2099 = vld [vmem:[%s1886 + $0xe2] sm:$0xff]
      %v2100 = vld [vmem:[%s1886 + $0xf2] sm:$0xff]
      %v2101 = vld [vmem:[%s1886 + $0xfa] sm:$0xff]
      %v2102 = vld [vmem:[%s1886 + $0x10a] sm:$0xff]
      %v2103 = vld [vmem:[%s1886 + $0x112] sm:$0xff]
      %v2104 = vld [vmem:[%s1886 + $0x122] sm:$0xff]
      %v2105 = vld [vmem:[%s1886 + $0x12a] sm:$0xff]
      %v2106 = vld [vmem:[%s1886 + $0x13a] sm:$0xff]
      %v2107 = vld [vmem:[%s1886 + $0x142] sm:$0xff]
      %v2108 = vld [vmem:[%s1886 + $0x152] sm:$0xff]
      %v2109 = vld [vmem:[%s1886 + $0x15a] sm:$0xff]
      %v2110 = vld [vmem:[%s1886 + $0x16a] sm:$0xff]
      %v2111 = vld [vmem:[%s1886 + $0x172] sm:$0xff]
      %2144 = vrot.lane.b32.xlu0 %v2080, 40
      %v2145 = vpop.permute.xlu0 %2144
      %2146 = vrot.lane.b32.xlu0 %v2081, 40
      %v2147 = vpop.permute.xlu0 %2146
      %2148 = vrot.lane.b32.xlu0 %v2082, 40
      %v2149 = vpop.permute.xlu0 %2148
      %2150 = vrot.lane.b32.xlu0 %v2083, 40
      %v2151 = vpop.permute.xlu0 %2150
      %2152 = vrot.lane.b32.xlu0 %v2084, 40
      %v2153 = vpop.permute.xlu0 %2152
      %2154 = vrot.lane.b32.xlu0 %v2085, 40
      %v2155 = vpop.permute.xlu0 %2154
      %2156 = vrot.lane.b32.xlu0 %v2086, 40
      %v2157 = vpop.permute.xlu0 %2156
      %2158 = vrot.lane.b32.xlu0 %v2087, 40
      %v2159 = vpop.permute.xlu0 %2158
      %2160 = vrot.lane.b32.xlu0 %v2088, 40
      %v2161 = vpop.permute.xlu0 %2160
      %2162 = vrot.lane.b32.xlu0 %v2089, 40
      %v2163 = vpop.permute.xlu0 %2162
      %2164 = vrot.lane.b32.xlu0 %v2090, 40
      %v2165 = vpop.permute.xlu0 %2164
      %2166 = vrot.lane.b32.xlu0 %v2091, 40
      %v2167 = vpop.permute.xlu0 %2166
      %2168 = vrot.lane.b32.xlu0 %v2092, 40
      %v2169 = vpop.permute.xlu0 %2168
      %2170 = vrot.lane.b32.xlu0 %v2093, 40
      %v2171 = vpop.permute.xlu0 %2170
      %2172 = vrot.lane.b32.xlu0 %v2094, 40
      %v2173 = vpop.permute.xlu0 %2172
      %2174 = vrot.lane.b32.xlu0 %v2095, 40
      %v2175 = vpop.permute.xlu0 %2174
      %2176 = vrot.lane.b32.xlu0 %v2096, 40
      %v2177 = vpop.permute.xlu0 %2176
      %2178 = vrot.lane.b32.xlu0 %v2097, 40
      %v2179 = vpop.permute.xlu0 %2178
      %2180 = vrot.lane.b32.xlu0 %v2098, 40
      %v2181 = vpop.permute.xlu0 %2180
      %2182 = vrot.lane.b32.xlu0 %v2099, 40
      %v2183 = vpop.permute.xlu0 %2182
      %2184 = vrot.lane.b32.xlu0 %v2100, 40
      %v2185 = vpop.permute.xlu0 %2184
      %2186 = vrot.lane.b32.xlu0 %v2101, 40
      %v2187 = vpop.permute.xlu0 %2186
      %2188 = vrot.lane.b32.xlu0 %v2102, 40
      %v2189 = vpop.permute.xlu0 %2188
      %2190 = vrot.lane.b32.xlu0 %v2103, 40
      %v2191 = vpop.permute.xlu0 %2190
      %2192 = vrot.lane.b32.xlu0 %v2104, 40
      %v2193 = vpop.permute.xlu0 %2192
      %2194 = vrot.lane.b32.xlu0 %v2105, 40
      %v2195 = vpop.permute.xlu0 %2194
      %2196 = vrot.lane.b32.xlu0 %v2106, 40
      %v2197 = vpop.permute.xlu0 %2196
      %2198 = vrot.lane.b32.xlu0 %v2107, 40
      %v2199 = vpop.permute.xlu0 %2198
      %2200 = vrot.lane.b32.xlu0 %v2108, 40
      %v2201 = vpop.permute.xlu0 %2200
      %2202 = vrot.lane.b32.xlu0 %v2109, 40
      %v2203 = vpop.permute.xlu0 %2202
      %2204 = vrot.lane.b32.xlu0 %v2110, 40
      %v2205 = vpop.permute.xlu0 %2204
      %2206 = vrot.lane.b32.xlu0 %v2111, 40
      %v2207 = vpop.permute.xlu0 %2206
      %vm2240 = vcmask 359744
      %2241 = vst.msk [vmem:[#allocation2] sm:$0xff] %vm2240, %v2145
      %2242 = vst.msk [vmem:[#allocation2 + $0x8] sm:$0xff] %vm2240, %v2147
      %2243 = vst.msk [vmem:[#allocation2 + $0x10] sm:$0xff] %vm2240, %v2149
      %2244 = vst.msk [vmem:[#allocation2 + $0x18] sm:$0xff] %vm2240, %v2151
      %2245 = vst.msk [vmem:[#allocation2 + $0x20] sm:$0xff] %vm2240, %v2153
      %2246 = vst.msk [vmem:[#allocation2 + $0x28] sm:$0xff] %vm2240, %v2155
      %2247 = vst.msk [vmem:[#allocation2 + $0x30] sm:$0xff] %vm2240, %v2157
      %2248 = vst.msk [vmem:[#allocation2 + $0x38] sm:$0xff] %vm2240, %v2159
      %2249 = vst.msk [vmem:[#allocation2 + $0x40] sm:$0xff] %vm2240, %v2161
      %2250 = vst.msk [vmem:[#allocation2 + $0x48] sm:$0xff] %vm2240, %v2163
      %2251 = vst.msk [vmem:[#allocation2 + $0x50] sm:$0xff] %vm2240, %v2165
      %2252 = vst.msk [vmem:[#allocation2 + $0x58] sm:$0xff] %vm2240, %v2167
      %2253 = vst.msk [vmem:[#allocation2 + $0x60] sm:$0xff] %vm2240, %v2169
      %2254 = vst.msk [vmem:[#allocation2 + $0x68] sm:$0xff] %vm2240, %v2171
      %2255 = vst.msk [vmem:[#allocation2 + $0x70] sm:$0xff] %vm2240, %v2173
      %2256 = vst.msk [vmem:[#allocation2 + $0x78] sm:$0xff] %vm2240, %v2175
      %2257 = vst.msk [vmem:[#allocation2 + $0x80] sm:$0xff] %vm2240, %v2177
      %2258 = vst.msk [vmem:[#allocation2 + $0x88] sm:$0xff] %vm2240, %v2179
      %2259 = vst.msk [vmem:[#allocation2 + $0x90] sm:$0xff] %vm2240, %v2181
      %2260 = vst.msk [vmem:[#allocation2 + $0x98] sm:$0xff] %vm2240, %v2183
      %2261 = vst.msk [vmem:[#allocation2 + $0xa0] sm:$0xff] %vm2240, %v2185
      %2262 = vst.msk [vmem:[#allocation2 + $0xa8] sm:$0xff] %vm2240, %v2187
      %2263 = vst.msk [vmem:[#allocation2 + $0xb0] sm:$0xff] %vm2240, %v2189
      %2264 = vst.msk [vmem:[#allocation2 + $0xb8] sm:$0xff] %vm2240, %v2191
      %2265 = vst.msk [vmem:[#allocation2 + $0xc0] sm:$0xff] %vm2240, %v2193
      %2266 = vst.msk [vmem:[#allocation2 + $0xc8] sm:$0xff] %vm2240, %v2195
      %2267 = vst.msk [vmem:[#allocation2 + $0xd0] sm:$0xff] %vm2240, %v2197
      %2268 = vst.msk [vmem:[#allocation2 + $0xd8] sm:$0xff] %vm2240, %v2199
      %2269 = vst.msk [vmem:[#allocation2 + $0xe0] sm:$0xff] %vm2240, %v2201
      %2270 = vst.msk [vmem:[#allocation2 + $0xe8] sm:$0xff] %vm2240, %v2203
      %2271 = vst.msk [vmem:[#allocation2 + $0xf0] sm:$0xff] %vm2240, %v2205
      %2272 = vst.msk [vmem:[#allocation2 + $0xf8] sm:$0xff] %vm2240, %v2207
      %v2273 = vld [vmem:[%s1886 + $0x3] sm:$0xff]
      %v2274 = vld [vmem:[%s1886 + $0xb] sm:$0xff]
      %v2275 = vld [vmem:[%s1886 + $0x1b] sm:$0xff]
      %v2276 = vld [vmem:[%s1886 + $0x23] sm:$0xff]
      %v2277 = vld [vmem:[%s1886 + $0x33] sm:$0xff]
      %v2278 = vld [vmem:[%s1886 + $0x3b] sm:$0xff]
      %v2279 = vld [vmem:[%s1886 + $0x4b] sm:$0xff]
      %v2280 = vld [vmem:[%s1886 + $0x53] sm:$0xff]
      %v2281 = vld [vmem:[%s1886 + $0x63] sm:$0xff]
      %v2282 = vld [vmem:[%s1886 + $0x6b] sm:$0xff]
      %v2283 = vld [vmem:[%s1886 + $0x7b] sm:$0xff]
      %v2284 = vld [vmem:[%s1886 + $0x83] sm:$0xff]
      %v2285 = vld [vmem:[%s1886 + $0x93] sm:$0xff]
      %v2286 = vld [vmem:[%s1886 + $0x9b] sm:$0xff]
      %v2287 = vld [vmem:[%s1886 + $0xab] sm:$0xff]
      %v2288 = vld [vmem:[%s1886 + $0xb3] sm:$0xff]
      %v2289 = vld [vmem:[%s1886 + $0xc3] sm:$0xff]
      %v2290 = vld [vmem:[%s1886 + $0xcb] sm:$0xff]
      %v2291 = vld [vmem:[%s1886 + $0xdb] sm:$0xff]
      %v2292 = vld [vmem:[%s1886 + $0xe3] sm:$0xff]
      %v2293 = vld [vmem:[%s1886 + $0xf3] sm:$0xff]
      %v2294 = vld [vmem:[%s1886 + $0xfb] sm:$0xff]
      %v2295 = vld [vmem:[%s1886 + $0x10b] sm:$0xff]
      %v2296 = vld [vmem:[%s1886 + $0x113] sm:$0xff]
      %v2297 = vld [vmem:[%s1886 + $0x123] sm:$0xff]
      %v2298 = vld [vmem:[%s1886 + $0x12b] sm:$0xff]
      %v2299 = vld [vmem:[%s1886 + $0x13b] sm:$0xff]
      %v2300 = vld [vmem:[%s1886 + $0x143] sm:$0xff]
      %v2301 = vld [vmem:[%s1886 + $0x153] sm:$0xff]
      %v2302 = vld [vmem:[%s1886 + $0x15b] sm:$0xff]
      %v2303 = vld [vmem:[%s1886 + $0x16b] sm:$0xff]
      %v2304 = vld [vmem:[%s1886 + $0x173] sm:$0xff]
      %2337 = vrot.lane.b32.xlu0 %v2273, 44
      %v2338 = vpop.permute.xlu0 %2337
      %2339 = vrot.lane.b32.xlu0 %v2274, 44
      %v2340 = vpop.permute.xlu0 %2339
      %2341 = vrot.lane.b32.xlu0 %v2275, 44
      %v2342 = vpop.permute.xlu0 %2341
      %2343 = vrot.lane.b32.xlu0 %v2276, 44
      %v2344 = vpop.permute.xlu0 %2343
      %2345 = vrot.lane.b32.xlu0 %v2277, 44
      %v2346 = vpop.permute.xlu0 %2345
      %2347 = vrot.lane.b32.xlu0 %v2278, 44
      %v2348 = vpop.permute.xlu0 %2347
      %2349 = vrot.lane.b32.xlu0 %v2279, 44
      %v2350 = vpop.permute.xlu0 %2349
      %2351 = vrot.lane.b32.xlu0 %v2280, 44
      %v2352 = vpop.permute.xlu0 %2351
      %2353 = vrot.lane.b32.xlu0 %v2281, 44
      %v2354 = vpop.permute.xlu0 %2353
      %2355 = vrot.lane.b32.xlu0 %v2282, 44
      %v2356 = vpop.permute.xlu0 %2355
      %2357 = vrot.lane.b32.xlu0 %v2283, 44
      %v2358 = vpop.permute.xlu0 %2357
      %2359 = vrot.lane.b32.xlu0 %v2284, 44
      %v2360 = vpop.permute.xlu0 %2359
      %2361 = vrot.lane.b32.xlu0 %v2285, 44
      %v2362 = vpop.permute.xlu0 %2361
      %2363 = vrot.lane.b32.xlu0 %v2286, 44
      %v2364 = vpop.permute.xlu0 %2363
      %2365 = vrot.lane.b32.xlu0 %v2287, 44
      %v2366 = vpop.permute.xlu0 %2365
      %2367 = vrot.lane.b32.xlu0 %v2288, 44
      %v2368 = vpop.permute.xlu0 %2367
      %2369 = vrot.lane.b32.xlu0 %v2289, 44
      %v2370 = vpop.permute.xlu0 %2369
      %2371 = vrot.lane.b32.xlu0 %v2290, 44
      %v2372 = vpop.permute.xlu0 %2371
      %2373 = vrot.lane.b32.xlu0 %v2291, 44
      %v2374 = vpop.permute.xlu0 %2373
      %2375 = vrot.lane.b32.xlu0 %v2292, 44
      %v2376 = vpop.permute.xlu0 %2375
      %2377 = vrot.lane.b32.xlu0 %v2293, 44
      %v2378 = vpop.permute.xlu0 %2377
      %2379 = vrot.lane.b32.xlu0 %v2294, 44
      %v2380 = vpop.permute.xlu0 %2379
      %2381 = vrot.lane.b32.xlu0 %v2295, 44
      %v2382 = vpop.permute.xlu0 %2381
      %2383 = vrot.lane.b32.xlu0 %v2296, 44
      %v2384 = vpop.permute.xlu0 %2383
      %2385 = vrot.lane.b32.xlu0 %v2297, 44
      %v2386 = vpop.permute.xlu0 %2385
      %2387 = vrot.lane.b32.xlu0 %v2298, 44
      %v2388 = vpop.permute.xlu0 %2387
      %2389 = vrot.lane.b32.xlu0 %v2299, 44
      %v2390 = vpop.permute.xlu0 %2389
      %2391 = vrot.lane.b32.xlu0 %v2300, 44
      %v2392 = vpop.permute.xlu0 %2391
      %2393 = vrot.lane.b32.xlu0 %v2301, 44
      %v2394 = vpop.permute.xlu0 %2393
      %2395 = vrot.lane.b32.xlu0 %v2302, 44
      %v2396 = vpop.permute.xlu0 %2395
      %2397 = vrot.lane.b32.xlu0 %v2303, 44
      %v2398 = vpop.permute.xlu0 %2397
      %2399 = vrot.lane.b32.xlu0 %v2304, 44
      %v2400 = vpop.permute.xlu0 %2399
      %vm2433 = vcmask 392544
      %2434 = vst.msk [vmem:[#allocation2] sm:$0xff] %vm2433, %v2338
      %2435 = vst.msk [vmem:[#allocation2 + $0x8] sm:$0xff] %vm2433, %v2340
      %2436 = vst.msk [vmem:[#allocation2 + $0x10] sm:$0xff] %vm2433, %v2342
      %2437 = vst.msk [vmem:[#allocation2 + $0x18] sm:$0xff] %vm2433, %v2344
      %2438 = vst.msk [vmem:[#allocation2 + $0x20] sm:$0xff] %vm2433, %v2346
      %2439 = vst.msk [vmem:[#allocation2 + $0x28] sm:$0xff] %vm2433, %v2348
      %2440 = vst.msk [vmem:[#allocation2 + $0x30] sm:$0xff] %vm2433, %v2350
      %2441 = vst.msk [vmem:[#allocation2 + $0x38] sm:$0xff] %vm2433, %v2352
      %2442 = vst.msk [vmem:[#allocation2 + $0x40] sm:$0xff] %vm2433, %v2354
      %2443 = vst.msk [vmem:[#allocation2 + $0x48] sm:$0xff] %vm2433, %v2356
      %2444 = vst.msk [vmem:[#allocation2 + $0x50] sm:$0xff] %vm2433, %v2358
      %2445 = vst.msk [vmem:[#allocation2 + $0x58] sm:$0xff] %vm2433, %v2360
      %2446 = vst.msk [vmem:[#allocation2 + $0x60] sm:$0xff] %vm2433, %v2362
      %2447 = vst.msk [vmem:[#allocation2 + $0x68] sm:$0xff] %vm2433, %v2364
      %2448 = vst.msk [vmem:[#allocation2 + $0x70] sm:$0xff] %vm2433, %v2366
      %2449 = vst.msk [vmem:[#allocation2 + $0x78] sm:$0xff] %vm2433, %v2368
      %2450 = vst.msk [vmem:[#allocation2 + $0x80] sm:$0xff] %vm2433, %v2370
      %2451 = vst.msk [vmem:[#allocation2 + $0x88] sm:$0xff] %vm2433, %v2372
      %2452 = vst.msk [vmem:[#allocation2 + $0x90] sm:$0xff] %vm2433, %v2374
      %2453 = vst.msk [vmem:[#allocation2 + $0x98] sm:$0xff] %vm2433, %v2376
      %2454 = vst.msk [vmem:[#allocation2 + $0xa0] sm:$0xff] %vm2433, %v2378
      %2455 = vst.msk [vmem:[#allocation2 + $0xa8] sm:$0xff] %vm2433, %v2380
      %2456 = vst.msk [vmem:[#allocation2 + $0xb0] sm:$0xff] %vm2433, %v2382
      %2457 = vst.msk [vmem:[#allocation2 + $0xb8] sm:$0xff] %vm2433, %v2384
      %2458 = vst.msk [vmem:[#allocation2 + $0xc0] sm:$0xff] %vm2433, %v2386
      %2459 = vst.msk [vmem:[#allocation2 + $0xc8] sm:$0xff] %vm2433, %v2388
      %2460 = vst.msk [vmem:[#allocation2 + $0xd0] sm:$0xff] %vm2433, %v2390
      %2461 = vst.msk [vmem:[#allocation2 + $0xd8] sm:$0xff] %vm2433, %v2392
      %2462 = vst.msk [vmem:[#allocation2 + $0xe0] sm:$0xff] %vm2433, %v2394
      %2463 = vst.msk [vmem:[#allocation2 + $0xe8] sm:$0xff] %vm2433, %v2396
      %2464 = vst.msk [vmem:[#allocation2 + $0xf0] sm:$0xff] %vm2433, %v2398
      %2465 = vst.msk [vmem:[#allocation2 + $0xf8] sm:$0xff] %vm2433, %v2400
      %v2466 = vld [vmem:[%s726 + $0x1] sm:$0xff]
      %v2467 = vld [vmem:[%s726 + $0x9] sm:$0xff]
      %v2468 = vld [vmem:[%s726 + $0x19] sm:$0xff]
      %v2469 = vld [vmem:[%s726 + $0x21] sm:$0xff]
      %v2470 = vld [vmem:[%s726 + $0x31] sm:$0xff]
      %v2471 = vld [vmem:[%s726 + $0x39] sm:$0xff]
      %v2472 = vld [vmem:[%s726 + $0x49] sm:$0xff]
      %v2473 = vld [vmem:[%s726 + $0x51] sm:$0xff]
      %v2474 = vld [vmem:[%s726 + $0x61] sm:$0xff]
      %v2475 = vld [vmem:[%s726 + $0x69] sm:$0xff]
      %v2476 = vld [vmem:[%s726 + $0x79] sm:$0xff]
      %v2477 = vld [vmem:[%s726 + $0x81] sm:$0xff]
      %v2478 = vld [vmem:[%s726 + $0x91] sm:$0xff]
      %v2479 = vld [vmem:[%s726 + $0x99] sm:$0xff]
      %v2480 = vld [vmem:[%s726 + $0xa9] sm:$0xff]
      %v2481 = vld [vmem:[%s726 + $0xb1] sm:$0xff]
      %v2482 = vld [vmem:[%s726 + $0xc1] sm:$0xff]
      %v2483 = vld [vmem:[%s726 + $0xc9] sm:$0xff]
      %v2484 = vld [vmem:[%s726 + $0xd9] sm:$0xff]
      %v2485 = vld [vmem:[%s726 + $0xe1] sm:$0xff]
      %v2486 = vld [vmem:[%s726 + $0xf1] sm:$0xff]
      %v2487 = vld [vmem:[%s726 + $0xf9] sm:$0xff]
      %v2488 = vld [vmem:[%s726 + $0x109] sm:$0xff]
      %v2489 = vld [vmem:[%s726 + $0x111] sm:$0xff]
      %v2490 = vld [vmem:[%s726 + $0x121] sm:$0xff]
      %v2491 = vld [vmem:[%s726 + $0x129] sm:$0xff]
      %v2492 = vld [vmem:[%s726 + $0x139] sm:$0xff]
      %v2493 = vld [vmem:[%s726 + $0x141] sm:$0xff]
      %v2494 = vld [vmem:[%s726 + $0x151] sm:$0xff]
      %v2495 = vld [vmem:[%s726 + $0x159] sm:$0xff]
      %v2496 = vld [vmem:[%s726 + $0x169] sm:$0xff]
      %v2497 = vld [vmem:[%s726 + $0x171] sm:$0xff]
      %2530 = vrot.lane.b32.xlu0 %v2466, 48
      %v2531 = vpop.permute.xlu0 %2530
      %2532 = vrot.lane.b32.xlu0 %v2467, 48
      %v2533 = vpop.permute.xlu0 %2532
      %2534 = vrot.lane.b32.xlu0 %v2468, 48
      %v2535 = vpop.permute.xlu0 %2534
      %2536 = vrot.lane.b32.xlu0 %v2469, 48
      %v2537 = vpop.permute.xlu0 %2536
      %2538 = vrot.lane.b32.xlu0 %v2470, 48
      %v2539 = vpop.permute.xlu0 %2538
      %2540 = vrot.lane.b32.xlu0 %v2471, 48
      %v2541 = vpop.permute.xlu0 %2540
      %2542 = vrot.lane.b32.xlu0 %v2472, 48
      %v2543 = vpop.permute.xlu0 %2542
      %2544 = vrot.lane.b32.xlu0 %v2473, 48
      %v2545 = vpop.permute.xlu0 %2544
      %2546 = vrot.lane.b32.xlu0 %v2474, 48
      %v2547 = vpop.permute.xlu0 %2546
      %2548 = vrot.lane.b32.xlu0 %v2475, 48
      %v2549 = vpop.permute.xlu0 %2548
      %2550 = vrot.lane.b32.xlu0 %v2476, 48
      %v2551 = vpop.permute.xlu0 %2550
      %2552 = vrot.lane.b32.xlu0 %v2477, 48
      %v2553 = vpop.permute.xlu0 %2552
      %2554 = vrot.lane.b32.xlu0 %v2478, 48
      %v2555 = vpop.permute.xlu0 %2554
      %2556 = vrot.lane.b32.xlu0 %v2479, 48
      %v2557 = vpop.permute.xlu0 %2556
      %2558 = vrot.lane.b32.xlu0 %v2480, 48
      %v2559 = vpop.permute.xlu0 %2558
      %2560 = vrot.lane.b32.xlu0 %v2481, 48
      %v2561 = vpop.permute.xlu0 %2560
      %2562 = vrot.lane.b32.xlu0 %v2482, 48
      %v2563 = vpop.permute.xlu0 %2562
      %2564 = vrot.lane.b32.xlu0 %v2483, 48
      %v2565 = vpop.permute.xlu0 %2564
      %2566 = vrot.lane.b32.xlu0 %v2484, 48
      %v2567 = vpop.permute.xlu0 %2566
      %2568 = vrot.lane.b32.xlu0 %v2485, 48
      %v2569 = vpop.permute.xlu0 %2568
      %2570 = vrot.lane.b32.xlu0 %v2486, 48
      %v2571 = vpop.permute.xlu0 %2570
      %2572 = vrot.lane.b32.xlu0 %v2487, 48
      %v2573 = vpop.permute.xlu0 %2572
      %2574 = vrot.lane.b32.xlu0 %v2488, 48
      %v2575 = vpop.permute.xlu0 %2574
      %2576 = vrot.lane.b32.xlu0 %v2489, 48
      %v2577 = vpop.permute.xlu0 %2576
      %2578 = vrot.lane.b32.xlu0 %v2490, 48
      %v2579 = vpop.permute.xlu0 %2578
      %2580 = vrot.lane.b32.xlu0 %v2491, 48
      %v2581 = vpop.permute.xlu0 %2580
      %2582 = vrot.lane.b32.xlu0 %v2492, 48
      %v2583 = vpop.permute.xlu0 %2582
      %2584 = vrot.lane.b32.xlu0 %v2493, 48
      %v2585 = vpop.permute.xlu0 %2584
      %2586 = vrot.lane.b32.xlu0 %v2494, 48
      %v2587 = vpop.permute.xlu0 %2586
      %2588 = vrot.lane.b32.xlu0 %v2495, 48
      %v2589 = vpop.permute.xlu0 %2588
      %2590 = vrot.lane.b32.xlu0 %v2496, 48
      %v2591 = vpop.permute.xlu0 %2590
      %2592 = vrot.lane.b32.xlu0 %v2497, 48
      %v2593 = vpop.permute.xlu0 %2592
      %vm2626 = vcmask 425344
      %2627 = vst.msk [vmem:[#allocation2] sm:$0xff] %vm2626, %v2531
      %2628 = vst.msk [vmem:[#allocation2 + $0x8] sm:$0xff] %vm2626, %v2533
      %2629 = vst.msk [vmem:[#allocation2 + $0x10] sm:$0xff] %vm2626, %v2535
      %2630 = vst.msk [vmem:[#allocation2 + $0x18] sm:$0xff] %vm2626, %v2537
      %2631 = vst.msk [vmem:[#allocation2 + $0x20] sm:$0xff] %vm2626, %v2539
      %2632 = vst.msk [vmem:[#allocation2 + $0x28] sm:$0xff] %vm2626, %v2541
      %2633 = vst.msk [vmem:[#allocation2 + $0x30] sm:$0xff] %vm2626, %v2543
      %2634 = vst.msk [vmem:[#allocation2 + $0x38] sm:$0xff] %vm2626, %v2545
      %2635 = vst.msk [vmem:[#allocation2 + $0x40] sm:$0xff] %vm2626, %v2547
      %2636 = vst.msk [vmem:[#allocation2 + $0x48] sm:$0xff] %vm2626, %v2549
      %2637 = vst.msk [vmem:[#allocation2 + $0x50] sm:$0xff] %vm2626, %v2551
      %2638 = vst.msk [vmem:[#allocation2 + $0x58] sm:$0xff] %vm2626, %v2553
      %2639 = vst.msk [vmem:[#allocation2 + $0x60] sm:$0xff] %vm2626, %v2555
      %2640 = vst.msk [vmem:[#allocation2 + $0x68] sm:$0xff] %vm2626, %v2557
      %2641 = vst.msk [vmem:[#allocation2 + $0x70] sm:$0xff] %vm2626, %v2559
      %2642 = vst.msk [vmem:[#allocation2 + $0x78] sm:$0xff] %vm2626, %v2561
      %2643 = vst.msk [vmem:[#allocation2 + $0x80] sm:$0xff] %vm2626, %v2563
      %2644 = vst.msk [vmem:[#allocation2 + $0x88] sm:$0xff] %vm2626, %v2565
      %2645 = vst.msk [vmem:[#allocation2 + $0x90] sm:$0xff] %vm2626, %v2567
      %2646 = vst.msk [vmem:[#allocation2 + $0x98] sm:$0xff] %vm2626, %v2569
      %2647 = vst.msk [vmem:[#allocation2 + $0xa0] sm:$0xff] %vm2626, %v2571
      %2648 = vst.msk [vmem:[#allocation2 + $0xa8] sm:$0xff] %vm2626, %v2573
      %2649 = vst.msk [vmem:[#allocation2 + $0xb0] sm:$0xff] %vm2626, %v2575
      %2650 = vst.msk [vmem:[#allocation2 + $0xb8] sm:$0xff] %vm2626, %v2577
      %2651 = vst.msk [vmem:[#allocation2 + $0xc0] sm:$0xff] %vm2626, %v2579
      %2652 = vst.msk [vmem:[#allocation2 + $0xc8] sm:$0xff] %vm2626, %v2581
      %2653 = vst.msk [vmem:[#allocation2 + $0xd0] sm:$0xff] %vm2626, %v2583
      %2654 = vst.msk [vmem:[#allocation2 + $0xd8] sm:$0xff] %vm2626, %v2585
      %2655 = vst.msk [vmem:[#allocation2 + $0xe0] sm:$0xff] %vm2626, %v2587
      %2656 = vst.msk [vmem:[#allocation2 + $0xe8] sm:$0xff] %vm2626, %v2589
      %2657 = vst.msk [vmem:[#allocation2 + $0xf0] sm:$0xff] %vm2626, %v2591
      %2658 = vst.msk [vmem:[#allocation2 + $0xf8] sm:$0xff] %vm2626, %v2593
      %v2659 = vld [vmem:[%s726 + $0x2] sm:$0xff]
      %v2660 = vld [vmem:[%s726 + $0xa] sm:$0xff]
      %v2661 = vld [vmem:[%s726 + $0x1a] sm:$0xff]
      %v2662 = vld [vmem:[%s726 + $0x22] sm:$0xff]
      %v2663 = vld [vmem:[%s726 + $0x32] sm:$0xff]
      %v2664 = vld [vmem:[%s726 + $0x3a] sm:$0xff]
      %v2665 = vld [vmem:[%s726 + $0x4a] sm:$0xff]
      %v2666 = vld [vmem:[%s726 + $0x52] sm:$0xff]
      %v2667 = vld [vmem:[%s726 + $0x62] sm:$0xff]
      %v2668 = vld [vmem:[%s726 + $0x6a] sm:$0xff]
      %v2669 = vld [vmem:[%s726 + $0x7a] sm:$0xff]
      %v2670 = vld [vmem:[%s726 + $0x82] sm:$0xff]
      %v2671 = vld [vmem:[%s726 + $0x92] sm:$0xff]
      %v2672 = vld [vmem:[%s726 + $0x9a] sm:$0xff]
      %v2673 = vld [vmem:[%s726 + $0xaa] sm:$0xff]
      %v2674 = vld [vmem:[%s726 + $0xb2] sm:$0xff]
      %v2675 = vld [vmem:[%s726 + $0xc2] sm:$0xff]
      %v2676 = vld [vmem:[%s726 + $0xca] sm:$0xff]
      %v2677 = vld [vmem:[%s726 + $0xda] sm:$0xff]
      %v2678 = vld [vmem:[%s726 + $0xe2] sm:$0xff]
      %v2679 = vld [vmem:[%s726 + $0xf2] sm:$0xff]
      %v2680 = vld [vmem:[%s726 + $0xfa] sm:$0xff]
      %v2681 = vld [vmem:[%s726 + $0x10a] sm:$0xff]
      %v2682 = vld [vmem:[%s726 + $0x112] sm:$0xff]
      %v2683 = vld [vmem:[%s726 + $0x122] sm:$0xff]
      %v2684 = vld [vmem:[%s726 + $0x12a] sm:$0xff]
      %v2685 = vld [vmem:[%s726 + $0x13a] sm:$0xff]
      %v2686 = vld [vmem:[%s726 + $0x142] sm:$0xff]
      %v2687 = vld [vmem:[%s726 + $0x152] sm:$0xff]
      %v2688 = vld [vmem:[%s726 + $0x15a] sm:$0xff]
      %v2689 = vld [vmem:[%s726 + $0x16a] sm:$0xff]
      %v2690 = vld [vmem:[%s726 + $0x172] sm:$0xff]
      %2723 = vrot.lane.b32.xlu0 %v2659, 52
      %v2724 = vpop.permute.xlu0 %2723
      %2725 = vrot.lane.b32.xlu0 %v2660, 52
      %v2726 = vpop.permute.xlu0 %2725
      %2727 = vrot.lane.b32.xlu0 %v2661, 52
      %v2728 = vpop.permute.xlu0 %2727
      %2729 = vrot.lane.b32.xlu0 %v2662, 52
      %v2730 = vpop.permute.xlu0 %2729
      %2731 = vrot.lane.b32.xlu0 %v2663, 52
      %v2732 = vpop.permute.xlu0 %2731
      %2733 = vrot.lane.b32.xlu0 %v2664, 52
      %v2734 = vpop.permute.xlu0 %2733
      %2735 = vrot.lane.b32.xlu0 %v2665, 52
      %v2736 = vpop.permute.xlu0 %2735
      %2737 = vrot.lane.b32.xlu0 %v2666, 52
      %v2738 = vpop.permute.xlu0 %2737
      %2739 = vrot.lane.b32.xlu0 %v2667, 52
      %v2740 = vpop.permute.xlu0 %2739
      %2741 = vrot.lane.b32.xlu0 %v2668, 52
      %v2742 = vpop.permute.xlu0 %2741
      %2743 = vrot.lane.b32.xlu0 %v2669, 52
      %v2744 = vpop.permute.xlu0 %2743
      %2745 = vrot.lane.b32.xlu0 %v2670, 52
      %v2746 = vpop.permute.xlu0 %2745
      %2747 = vrot.lane.b32.xlu0 %v2671, 52
      %v2748 = vpop.permute.xlu0 %2747
      %2749 = vrot.lane.b32.xlu0 %v2672, 52
      %v2750 = vpop.permute.xlu0 %2749
      %2751 = vrot.lane.b32.xlu0 %v2673, 52
      %v2752 = vpop.permute.xlu0 %2751
      %2753 = vrot.lane.b32.xlu0 %v2674, 52
      %v2754 = vpop.permute.xlu0 %2753
      %2755 = vrot.lane.b32.xlu0 %v2675, 52
      %v2756 = vpop.permute.xlu0 %2755
      %2757 = vrot.lane.b32.xlu0 %v2676, 52
      %v2758 = vpop.permute.xlu0 %2757
      %2759 = vrot.lane.b32.xlu0 %v2677, 52
      %v2760 = vpop.permute.xlu0 %2759
      %2761 = vrot.lane.b32.xlu0 %v2678, 52
      %v2762 = vpop.permute.xlu0 %2761
      %2763 = vrot.lane.b32.xlu0 %v2679, 52
      %v2764 = vpop.permute.xlu0 %2763
      %2765 = vrot.lane.b32.xlu0 %v2680, 52
      %v2766 = vpop.permute.xlu0 %2765
      %2767 = vrot.lane.b32.xlu0 %v2681, 52
      %v2768 = vpop.permute.xlu0 %2767
      %2769 = vrot.lane.b32.xlu0 %v2682, 52
      %v2770 = vpop.permute.xlu0 %2769
      %2771 = vrot.lane.b32.xlu0 %v2683, 52
      %v2772 = vpop.permute.xlu0 %2771
      %2773 = vrot.lane.b32.xlu0 %v2684, 52
      %v2774 = vpop.permute.xlu0 %2773
      %2775 = vrot.lane.b32.xlu0 %v2685, 52
      %v2776 = vpop.permute.xlu0 %2775
      %2777 = vrot.lane.b32.xlu0 %v2686, 52
      %v2778 = vpop.permute.xlu0 %2777
      %2779 = vrot.lane.b32.xlu0 %v2687, 52
      %v2780 = vpop.permute.xlu0 %2779
      %2781 = vrot.lane.b32.xlu0 %v2688, 52
      %v2782 = vpop.permute.xlu0 %2781
      %2783 = vrot.lane.b32.xlu0 %v2689, 52
      %v2784 = vpop.permute.xlu0 %2783
      %2785 = vrot.lane.b32.xlu0 %v2690, 52
      %v2786 = vpop.permute.xlu0 %2785
      %vm2819 = vcmask 458144
      %2820 = vst.msk [vmem:[#allocation2] sm:$0xff] %vm2819, %v2724
      %2821 = vst.msk [vmem:[#allocation2 + $0x8] sm:$0xff] %vm2819, %v2726
      %2822 = vst.msk [vmem:[#allocation2 + $0x10] sm:$0xff] %vm2819, %v2728
      %2823 = vst.msk [vmem:[#allocation2 + $0x18] sm:$0xff] %vm2819, %v2730
      %2824 = vst.msk [vmem:[#allocation2 + $0x20] sm:$0xff] %vm2819, %v2732
      %2825 = vst.msk [vmem:[#allocation2 + $0x28] sm:$0xff] %vm2819, %v2734
      %2826 = vst.msk [vmem:[#allocation2 + $0x30] sm:$0xff] %vm2819, %v2736
      %2827 = vst.msk [vmem:[#allocation2 + $0x38] sm:$0xff] %vm2819, %v2738
      %2828 = vst.msk [vmem:[#allocation2 + $0x40] sm:$0xff] %vm2819, %v2740
      %2829 = vst.msk [vmem:[#allocation2 + $0x48] sm:$0xff] %vm2819, %v2742
      %2830 = vst.msk [vmem:[#allocation2 + $0x50] sm:$0xff] %vm2819, %v2744
      %2831 = vst.msk [vmem:[#allocation2 + $0x58] sm:$0xff] %vm2819, %v2746
      %2832 = vst.msk [vmem:[#allocation2 + $0x60] sm:$0xff] %vm2819, %v2748
      %2833 = vst.msk [vmem:[#allocation2 + $0x68] sm:$0xff] %vm2819, %v2750
      %2834 = vst.msk [vmem:[#allocation2 + $0x70] sm:$0xff] %vm2819, %v2752
      %2835 = vst.msk [vmem:[#allocation2 + $0x78] sm:$0xff] %vm2819, %v2754
      %2836 = vst.msk [vmem:[#allocation2 + $0x80] sm:$0xff] %vm2819, %v2756
      %2837 = vst.msk [vmem:[#allocation2 + $0x88] sm:$0xff] %vm2819, %v2758
      %2838 = vst.msk [vmem:[#allocation2 + $0x90] sm:$0xff] %vm2819, %v2760
      %2839 = vst.msk [vmem:[#allocation2 + $0x98] sm:$0xff] %vm2819, %v2762
      %2840 = vst.msk [vmem:[#allocation2 + $0xa0] sm:$0xff] %vm2819, %v2764
      %2841 = vst.msk [vmem:[#allocation2 + $0xa8] sm:$0xff] %vm2819, %v2766
      %2842 = vst.msk [vmem:[#allocation2 + $0xb0] sm:$0xff] %vm2819, %v2768
      %2843 = vst.msk [vmem:[#allocation2 + $0xb8] sm:$0xff] %vm2819, %v2770
      %2844 = vst.msk [vmem:[#allocation2 + $0xc0] sm:$0xff] %vm2819, %v2772
      %2845 = vst.msk [vmem:[#allocation2 + $0xc8] sm:$0xff] %vm2819, %v2774
      %2846 = vst.msk [vmem:[#allocation2 + $0xd0] sm:$0xff] %vm2819, %v2776
      %2847 = vst.msk [vmem:[#allocation2 + $0xd8] sm:$0xff] %vm2819, %v2778
      %2848 = vst.msk [vmem:[#allocation2 + $0xe0] sm:$0xff] %vm2819, %v2780
      %2849 = vst.msk [vmem:[#allocation2 + $0xe8] sm:$0xff] %vm2819, %v2782
      %2850 = vst.msk [vmem:[#allocation2 + $0xf0] sm:$0xff] %vm2819, %v2784
      %2851 = vst.msk [vmem:[#allocation2 + $0xf8] sm:$0xff] %vm2819, %v2786
      %v2852 = vld [vmem:[%s726 + $0x3] sm:$0xff]
      %v2853 = vld [vmem:[%s726 + $0xb] sm:$0xff]
      %v2854 = vld [vmem:[%s726 + $0x1b] sm:$0xff]
      %v2855 = vld [vmem:[%s726 + $0x23] sm:$0xff]
      %v2856 = vld [vmem:[%s726 + $0x33] sm:$0xff]
      %v2857 = vld [vmem:[%s726 + $0x3b] sm:$0xff]
      %v2858 = vld [vmem:[%s726 + $0x4b] sm:$0xff]
      %v2859 = vld [vmem:[%s726 + $0x53] sm:$0xff]
      %v2860 = vld [vmem:[%s726 + $0x63] sm:$0xff]
      %v2861 = vld [vmem:[%s726 + $0x6b] sm:$0xff]
      %v2862 = vld [vmem:[%s726 + $0x7b] sm:$0xff]
      %v2863 = vld [vmem:[%s726 + $0x83] sm:$0xff]
      %v2864 = vld [vmem:[%s726 + $0x93] sm:$0xff]
      %v2865 = vld [vmem:[%s726 + $0x9b] sm:$0xff]
      %v2866 = vld [vmem:[%s726 + $0xab] sm:$0xff]
      %v2867 = vld [vmem:[%s726 + $0xb3] sm:$0xff]
      %v2868 = vld [vmem:[%s726 + $0xc3] sm:$0xff]
      %v2869 = vld [vmem:[%s726 + $0xcb] sm:$0xff]
      %v2870 = vld [vmem:[%s726 + $0xdb] sm:$0xff]
      %v2871 = vld [vmem:[%s726 + $0xe3] sm:$0xff]
      %v2872 = vld [vmem:[%s726 + $0xf3] sm:$0xff]
      %v2873 = vld [vmem:[%s726 + $0xfb] sm:$0xff]
      %v2874 = vld [vmem:[%s726 + $0x10b] sm:$0xff]
      %v2875 = vld [vmem:[%s726 + $0x113] sm:$0xff]
      %v2876 = vld [vmem:[%s726 + $0x123] sm:$0xff]
      %v2877 = vld [vmem:[%s726 + $0x12b] sm:$0xff]
      %v2878 = vld [vmem:[%s726 + $0x13b] sm:$0xff]
      %v2879 = vld [vmem:[%s726 + $0x143] sm:$0xff]
      %v2880 = vld [vmem:[%s726 + $0x153] sm:$0xff]
      %v2881 = vld [vmem:[%s726 + $0x15b] sm:$0xff]
      %v2882 = vld [vmem:[%s726 + $0x16b] sm:$0xff]
      %v2883 = vld [vmem:[%s726 + $0x173] sm:$0xff]
      %2916 = vrot.lane.b32.xlu0 %v2852, 56
      %v2917 = vpop.permute.xlu0 %2916
      %2918 = vrot.lane.b32.xlu0 %v2853, 56
      %v2919 = vpop.permute.xlu0 %2918
      %2920 = vrot.lane.b32.xlu0 %v2854, 56
      %v2921 = vpop.permute.xlu0 %2920
      %2922 = vrot.lane.b32.xlu0 %v2855, 56
      %v2923 = vpop.permute.xlu0 %2922
      %2924 = vrot.lane.b32.xlu0 %v2856, 56
      %v2925 = vpop.permute.xlu0 %2924
      %2926 = vrot.lane.b32.xlu0 %v2857, 56
      %v2927 = vpop.permute.xlu0 %2926
      %2928 = vrot.lane.b32.xlu0 %v2858, 56
      %v2929 = vpop.permute.xlu0 %2928
      %2930 = vrot.lane.b32.xlu0 %v2859, 56
      %v2931 = vpop.permute.xlu0 %2930
      %2932 = vrot.lane.b32.xlu0 %v2860, 56
      %v2933 = vpop.permute.xlu0 %2932
      %2934 = vrot.lane.b32.xlu0 %v2861, 56
      %v2935 = vpop.permute.xlu0 %2934
      %2936 = vrot.lane.b32.xlu0 %v2862, 56
      %v2937 = vpop.permute.xlu0 %2936
      %2938 = vrot.lane.b32.xlu0 %v2863, 56
      %v2939 = vpop.permute.xlu0 %2938
      %2940 = vrot.lane.b32.xlu0 %v2864, 56
      %v2941 = vpop.permute.xlu0 %2940
      %2942 = vrot.lane.b32.xlu0 %v2865, 56
      %v2943 = vpop.permute.xlu0 %2942
      %2944 = vrot.lane.b32.xlu0 %v2866, 56
      %v2945 = vpop.permute.xlu0 %2944
      %2946 = vrot.lane.b32.xlu0 %v2867, 56
      %v2947 = vpop.permute.xlu0 %2946
      %2948 = vrot.lane.b32.xlu0 %v2868, 56
      %v2949 = vpop.permute.xlu0 %2948
      %2950 = vrot.lane.b32.xlu0 %v2869, 56
      %v2951 = vpop.permute.xlu0 %2950
      %2952 = vrot.lane.b32.xlu0 %v2870, 56
      %v2953 = vpop.permute.xlu0 %2952
      %2954 = vrot.lane.b32.xlu0 %v2871, 56
      %v2955 = vpop.permute.xlu0 %2954
      %2956 = vrot.lane.b32.xlu0 %v2872, 56
      %v2957 = vpop.permute.xlu0 %2956
      %2958 = vrot.lane.b32.xlu0 %v2873, 56
      %v2959 = vpop.permute.xlu0 %2958
      %2960 = vrot.lane.b32.xlu0 %v2874, 56
      %v2961 = vpop.permute.xlu0 %2960
      %2962 = vrot.lane.b32.xlu0 %v2875, 56
      %v2963 = vpop.permute.xlu0 %2962
      %2964 = vrot.lane.b32.xlu0 %v2876, 56
      %v2965 = vpop.permute.xlu0 %2964
      %2966 = vrot.lane.b32.xlu0 %v2877, 56
      %v2967 = vpop.permute.xlu0 %2966
      %2968 = vrot.lane.b32.xlu0 %v2878, 56
      %v2969 = vpop.permute.xlu0 %2968
      %2970 = vrot.lane.b32.xlu0 %v2879, 56
      %v2971 = vpop.permute.xlu0 %2970
      %2972 = vrot.lane.b32.xlu0 %v2880, 56
      %v2973 = vpop.permute.xlu0 %2972
      %2974 = vrot.lane.b32.xlu0 %v2881, 56
      %v2975 = vpop.permute.xlu0 %2974
      %2976 = vrot.lane.b32.xlu0 %v2882, 56
      %v2977 = vpop.permute.xlu0 %2976
      %2978 = vrot.lane.b32.xlu0 %v2883, 56
      %v2979 = vpop.permute.xlu0 %2978
      %vm3012 = vcmask 490944
      %3013 = vst.msk [vmem:[#allocation2] sm:$0xff] %vm3012, %v2917
      %3014 = vst.msk [vmem:[#allocation2 + $0x8] sm:$0xff] %vm3012, %v2919
      %3015 = vst.msk [vmem:[#allocation2 + $0x10] sm:$0xff] %vm3012, %v2921
      %3016 = vst.msk [vmem:[#allocation2 + $0x18] sm:$0xff] %vm3012, %v2923
      %3017 = vst.msk [vmem:[#allocation2 + $0x20] sm:$0xff] %vm3012, %v2925
      %3018 = vst.msk [vmem:[#allocation2 + $0x28] sm:$0xff] %vm3012, %v2927
      %3019 = vst.msk [vmem:[#allocation2 + $0x30] sm:$0xff] %vm3012, %v2929
      %3020 = vst.msk [vmem:[#allocation2 + $0x38] sm:$0xff] %vm3012, %v2931
      %3021 = vst.msk [vmem:[#allocation2 + $0x40] sm:$0xff] %vm3012, %v2933
      %3022 = vst.msk [vmem:[#allocation2 + $0x48] sm:$0xff] %vm3012, %v2935
      %3023 = vst.msk [vmem:[#allocation2 + $0x50] sm:$0xff] %vm3012, %v2937
      %3024 = vst.msk [vmem:[#allocation2 + $0x58] sm:$0xff] %vm3012, %v2939
      %3025 = vst.msk [vmem:[#allocation2 + $0x60] sm:$0xff] %vm3012, %v2941
      %3026 = vst.msk [vmem:[#allocation2 + $0x68] sm:$0xff] %vm3012, %v2943
      %3027 = vst.msk [vmem:[#allocation2 + $0x70] sm:$0xff] %vm3012, %v2945
      %3028 = vst.msk [vmem:[#allocation2 + $0x78] sm:$0xff] %vm3012, %v2947
      %3029 = vst.msk [vmem:[#allocation2 + $0x80] sm:$0xff] %vm3012, %v2949
      %3030 = vst.msk [vmem:[#allocation2 + $0x88] sm:$0xff] %vm3012, %v2951
      %3031 = vst.msk [vmem:[#allocation2 + $0x90] sm:$0xff] %vm3012, %v2953
      %3032 = vst.msk [vmem:[#allocation2 + $0x98] sm:$0xff] %vm3012, %v2955
      %3033 = vst.msk [vmem:[#allocation2 + $0xa0] sm:$0xff] %vm3012, %v2957
      %3034 = vst.msk [vmem:[#allocation2 + $0xa8] sm:$0xff] %vm3012, %v2959
      %3035 = vst.msk [vmem:[#allocation2 + $0xb0] sm:$0xff] %vm3012, %v2961
      %3036 = vst.msk [vmem:[#allocation2 + $0xb8] sm:$0xff] %vm3012, %v2963
      %3037 = vst.msk [vmem:[#allocation2 + $0xc0] sm:$0xff] %vm3012, %v2965
      %3038 = vst.msk [vmem:[#allocation2 + $0xc8] sm:$0xff] %vm3012, %v2967
      %3039 = vst.msk [vmem:[#allocation2 + $0xd0] sm:$0xff] %vm3012, %v2969
      %3040 = vst.msk [vmem:[#allocation2 + $0xd8] sm:$0xff] %vm3012, %v2971
      %3041 = vst.msk [vmem:[#allocation2 + $0xe0] sm:$0xff] %vm3012, %v2973
      %3042 = vst.msk [vmem:[#allocation2 + $0xe8] sm:$0xff] %vm3012, %v2975
      %3043 = vst.msk [vmem:[#allocation2 + $0xf0] sm:$0xff] %vm3012, %v2977
      %3044 = vst.msk [vmem:[#allocation2 + $0xf8] sm:$0xff] %vm3012, %v2979
      %s3045 = scalar_lea.vmem %s262, 72
      %v3046 = vld [vmem:[%s3045 + $0x1] sm:$0xff]
      %v3047 = vld [vmem:[%s3045 + $0x9] sm:$0xff]
      %v3048 = vld [vmem:[%s3045 + $0x19] sm:$0xff]
      %v3049 = vld [vmem:[%s3045 + $0x21] sm:$0xff]
      %v3050 = vld [vmem:[%s3045 + $0x31] sm:$0xff]
      %v3051 = vld [vmem:[%s3045 + $0x39] sm:$0xff]
      %v3052 = vld [vmem:[%s3045 + $0x49] sm:$0xff]
      %v3053 = vld [vmem:[%s3045 + $0x51] sm:$0xff]
      %v3054 = vld [vmem:[%s3045 + $0x61] sm:$0xff]
      %v3055 = vld [vmem:[%s3045 + $0x69] sm:$0xff]
      %v3056 = vld [vmem:[%s3045 + $0x79] sm:$0xff]
      %v3057 = vld [vmem:[%s3045 + $0x81] sm:$0xff]
      %v3058 = vld [vmem:[%s3045 + $0x91] sm:$0xff]
      %v3059 = vld [vmem:[%s3045 + $0x99] sm:$0xff]
      %v3060 = vld [vmem:[%s3045 + $0xa9] sm:$0xff]
      %v3061 = vld [vmem:[%s3045 + $0xb1] sm:$0xff]
      %v3062 = vld [vmem:[%s3045 + $0xc1] sm:$0xff]
      %v3063 = vld [vmem:[%s3045 + $0xc9] sm:$0xff]
      %v3064 = vld [vmem:[%s3045 + $0xd9] sm:$0xff]
      %v3065 = vld [vmem:[%s3045 + $0xe1] sm:$0xff]
      %v3066 = vld [vmem:[%s3045 + $0xf1] sm:$0xff]
      %v3067 = vld [vmem:[%s3045 + $0xf9] sm:$0xff]
      %v3068 = vld [vmem:[%s3045 + $0x109] sm:$0xff]
      %v3069 = vld [vmem:[%s3045 + $0x111] sm:$0xff]
      %v3070 = vld [vmem:[%s3045 + $0x121] sm:$0xff]
      %v3071 = vld [vmem:[%s3045 + $0x129] sm:$0xff]
      %v3072 = vld [vmem:[%s3045 + $0x139] sm:$0xff]
      %v3073 = vld [vmem:[%s3045 + $0x141] sm:$0xff]
      %v3074 = vld [vmem:[%s3045 + $0x151] sm:$0xff]
      %v3075 = vld [vmem:[%s3045 + $0x159] sm:$0xff]
      %v3076 = vld [vmem:[%s3045 + $0x169] sm:$0xff]
      %v3077 = vld [vmem:[%s3045 + $0x171] sm:$0xff]
      %3110 = vrot.lane.b32.xlu0 %v3046, 60
      %v3111 = vpop.permute.xlu0 %3110
      %3112 = vrot.lane.b32.xlu0 %v3047, 60
      %v3113 = vpop.permute.xlu0 %3112
      %3114 = vrot.lane.b32.xlu0 %v3048, 60
      %v3115 = vpop.permute.xlu0 %3114
      %3116 = vrot.lane.b32.xlu0 %v3049, 60
      %v3117 = vpop.permute.xlu0 %3116
      %3118 = vrot.lane.b32.xlu0 %v3050, 60
      %v3119 = vpop.permute.xlu0 %3118
      %3120 = vrot.lane.b32.xlu0 %v3051, 60
      %v3121 = vpop.permute.xlu0 %3120
      %3122 = vrot.lane.b32.xlu0 %v3052, 60
      %v3123 = vpop.permute.xlu0 %3122
      %3124 = vrot.lane.b32.xlu0 %v3053, 60
      %v3125 = vpop.permute.xlu0 %3124
      %3126 = vrot.lane.b32.xlu0 %v3054, 60
      %v3127 = vpop.permute.xlu0 %3126
      %3128 = vrot.lane.b32.xlu0 %v3055, 60
      %v3129 = vpop.permute.xlu0 %3128
      %3130 = vrot.lane.b32.xlu0 %v3056, 60
      %v3131 = vpop.permute.xlu0 %3130
      %3132 = vrot.lane.b32.xlu0 %v3057, 60
      %v3133 = vpop.permute.xlu0 %3132
      %3134 = vrot.lane.b32.xlu0 %v3058, 60
      %v3135 = vpop.permute.xlu0 %3134
      %3136 = vrot.lane.b32.xlu0 %v3059, 60
      %v3137 = vpop.permute.xlu0 %3136
      %3138 = vrot.lane.b32.xlu0 %v3060, 60
      %v3139 = vpop.permute.xlu0 %3138
      %3140 = vrot.lane.b32.xlu0 %v3061, 60
      %v3141 = vpop.permute.xlu0 %3140
      %3142 = vrot.lane.b32.xlu0 %v3062, 60
      %v3143 = vpop.permute.xlu0 %3142
      %3144 = vrot.lane.b32.xlu0 %v3063, 60
      %v3145 = vpop.permute.xlu0 %3144
      %3146 = vrot.lane.b32.xlu0 %v3064, 60
      %v3147 = vpop.permute.xlu0 %3146
      %3148 = vrot.lane.b32.xlu0 %v3065, 60
      %v3149 = vpop.permute.xlu0 %3148
      %3150 = vrot.lane.b32.xlu0 %v3066, 60
      %v3151 = vpop.permute.xlu0 %3150
      %3152 = vrot.lane.b32.xlu0 %v3067, 60
      %v3153 = vpop.permute.xlu0 %3152
      %3154 = vrot.lane.b32.xlu0 %v3068, 60
      %v3155 = vpop.permute.xlu0 %3154
      %3156 = vrot.lane.b32.xlu0 %v3069, 60
      %v3157 = vpop.permute.xlu0 %3156
      %3158 = vrot.lane.b32.xlu0 %v3070, 60
      %v3159 = vpop.permute.xlu0 %3158
      %3160 = vrot.lane.b32.xlu0 %v3071, 60
      %v3161 = vpop.permute.xlu0 %3160
      %3162 = vrot.lane.b32.xlu0 %v3072, 60
      %v3163 = vpop.permute.xlu0 %3162
      %3164 = vrot.lane.b32.xlu0 %v3073, 60
      %v3165 = vpop.permute.xlu0 %3164
      %3166 = vrot.lane.b32.xlu0 %v3074, 60
      %v3167 = vpop.permute.xlu0 %3166
      %3168 = vrot.lane.b32.xlu0 %v3075, 60
      %v3169 = vpop.permute.xlu0 %3168
      %3170 = vrot.lane.b32.xlu0 %v3076, 60
      %v3171 = vpop.permute.xlu0 %3170
      %3172 = vrot.lane.b32.xlu0 %v3077, 60
      %v3173 = vpop.permute.xlu0 %3172
      %vm3206 = vcmask 523744
      %3207 = vst.msk [vmem:[#allocation2] sm:$0xff] %vm3206, %v3111
      %3208 = vst.msk [vmem:[#allocation2 + $0x8] sm:$0xff] %vm3206, %v3113
      %3209 = vst.msk [vmem:[#allocation2 + $0x10] sm:$0xff] %vm3206, %v3115
      %3210 = vst.msk [vmem:[#allocation2 + $0x18] sm:$0xff] %vm3206, %v3117
      %3211 = vst.msk [vmem:[#allocation2 + $0x20] sm:$0xff] %vm3206, %v3119
      %3212 = vst.msk [vmem:[#allocation2 + $0x28] sm:$0xff] %vm3206, %v3121
      %3213 = vst.msk [vmem:[#allocation2 + $0x30] sm:$0xff] %vm3206, %v3123
      %3214 = vst.msk [vmem:[#allocation2 + $0x38] sm:$0xff] %vm3206, %v3125
      %3215 = vst.msk [vmem:[#allocation2 + $0x40] sm:$0xff] %vm3206, %v3127
      %3216 = vst.msk [vmem:[#allocation2 + $0x48] sm:$0xff] %vm3206, %v3129
      %3217 = vst.msk [vmem:[#allocation2 + $0x50] sm:$0xff] %vm3206, %v3131
      %3218 = vst.msk [vmem:[#allocation2 + $0x58] sm:$0xff] %vm3206, %v3133
      %3219 = vst.msk [vmem:[#allocation2 + $0x60] sm:$0xff] %vm3206, %v3135
      %3220 = vst.msk [vmem:[#allocation2 + $0x68] sm:$0xff] %vm3206, %v3137
      %3221 = vst.msk [vmem:[#allocation2 + $0x70] sm:$0xff] %vm3206, %v3139
      %3222 = vst.msk [vmem:[#allocation2 + $0x78] sm:$0xff] %vm3206, %v3141
      %3223 = vst.msk [vmem:[#allocation2 + $0x80] sm:$0xff] %vm3206, %v3143
      %3224 = vst.msk [vmem:[#allocation2 + $0x88] sm:$0xff] %vm3206, %v3145
      %3225 = vst.msk [vmem:[#allocation2 + $0x90] sm:$0xff] %vm3206, %v3147
      %3226 = vst.msk [vmem:[#allocation2 + $0x98] sm:$0xff] %vm3206, %v3149
      %3227 = vst.msk [vmem:[#allocation2 + $0xa0] sm:$0xff] %vm3206, %v3151
      %3228 = vst.msk [vmem:[#allocation2 + $0xa8] sm:$0xff] %vm3206, %v3153
      %3229 = vst.msk [vmem:[#allocation2 + $0xb0] sm:$0xff] %vm3206, %v3155
      %3230 = vst.msk [vmem:[#allocation2 + $0xb8] sm:$0xff] %vm3206, %v3157
      %3231 = vst.msk [vmem:[#allocation2 + $0xc0] sm:$0xff] %vm3206, %v3159
      %3232 = vst.msk [vmem:[#allocation2 + $0xc8] sm:$0xff] %vm3206, %v3161
      %3233 = vst.msk [vmem:[#allocation2 + $0xd0] sm:$0xff] %vm3206, %v3163
      %3234 = vst.msk [vmem:[#allocation2 + $0xd8] sm:$0xff] %vm3206, %v3165
      %3235 = vst.msk [vmem:[#allocation2 + $0xe0] sm:$0xff] %vm3206, %v3167
      %3236 = vst.msk [vmem:[#allocation2 + $0xe8] sm:$0xff] %vm3206, %v3169
      %3237 = vst.msk [vmem:[#allocation2 + $0xf0] sm:$0xff] %vm3206, %v3171
      %3238 = vst.msk [vmem:[#allocation2 + $0xf8] sm:$0xff] %vm3206, %v3173
      %v3239 = vld [vmem:[%s3045 + $0x2] sm:$0xff]
      %v3240 = vld [vmem:[%s3045 + $0xa] sm:$0xff]
      %v3241 = vld [vmem:[%s3045 + $0x1a] sm:$0xff]
      %v3242 = vld [vmem:[%s3045 + $0x22] sm:$0xff]
      %v3243 = vld [vmem:[%s3045 + $0x32] sm:$0xff]
      %v3244 = vld [vmem:[%s3045 + $0x3a] sm:$0xff]
      %v3245 = vld [vmem:[%s3045 + $0x4a] sm:$0xff]
      %v3246 = vld [vmem:[%s3045 + $0x52] sm:$0xff]
      %v3247 = vld [vmem:[%s3045 + $0x62] sm:$0xff]
      %v3248 = vld [vmem:[%s3045 + $0x6a] sm:$0xff]
      %v3249 = vld [vmem:[%s3045 + $0x7a] sm:$0xff]
      %v3250 = vld [vmem:[%s3045 + $0x82] sm:$0xff]
      %v3251 = vld [vmem:[%s3045 + $0x92] sm:$0xff]
      %v3252 = vld [vmem:[%s3045 + $0x9a] sm:$0xff]
      %v3253 = vld [vmem:[%s3045 + $0xaa] sm:$0xff]
      %v3254 = vld [vmem:[%s3045 + $0xb2] sm:$0xff]
      %v3255 = vld [vmem:[%s3045 + $0xc2] sm:$0xff]
      %v3256 = vld [vmem:[%s3045 + $0xca] sm:$0xff]
      %v3257 = vld [vmem:[%s3045 + $0xda] sm:$0xff]
      %v3258 = vld [vmem:[%s3045 + $0xe2] sm:$0xff]
      %v3259 = vld [vmem:[%s3045 + $0xf2] sm:$0xff]
      %v3260 = vld [vmem:[%s3045 + $0xfa] sm:$0xff]
      %v3261 = vld [vmem:[%s3045 + $0x10a] sm:$0xff]
      %v3262 = vld [vmem:[%s3045 + $0x112] sm:$0xff]
      %v3263 = vld [vmem:[%s3045 + $0x122] sm:$0xff]
      %v3264 = vld [vmem:[%s3045 + $0x12a] sm:$0xff]
      %v3265 = vld [vmem:[%s3045 + $0x13a] sm:$0xff]
      %v3266 = vld [vmem:[%s3045 + $0x142] sm:$0xff]
      %v3267 = vld [vmem:[%s3045 + $0x152] sm:$0xff]
      %v3268 = vld [vmem:[%s3045 + $0x15a] sm:$0xff]
      %v3269 = vld [vmem:[%s3045 + $0x16a] sm:$0xff]
      %v3270 = vld [vmem:[%s3045 + $0x172] sm:$0xff]
      %3303 = vrot.lane.b32.xlu0 %v3239, 64
      %v3304 = vpop.permute.xlu0 %3303
      %3305 = vrot.lane.b32.xlu0 %v3240, 64
      %v3306 = vpop.permute.xlu0 %3305
      %3307 = vrot.lane.b32.xlu0 %v3241, 64
      %v3308 = vpop.permute.xlu0 %3307
      %3309 = vrot.lane.b32.xlu0 %v3242, 64
      %v3310 = vpop.permute.xlu0 %3309
      %3311 = vrot.lane.b32.xlu0 %v3243, 64
      %v3312 = vpop.permute.xlu0 %3311
      %3313 = vrot.lane.b32.xlu0 %v3244, 64
      %v3314 = vpop.permute.xlu0 %3313
      %3315 = vrot.lane.b32.xlu0 %v3245, 64
      %v3316 = vpop.permute.xlu0 %3315
      %3317 = vrot.lane.b32.xlu0 %v3246, 64
      %v3318 = vpop.permute.xlu0 %3317
      %3319 = vrot.lane.b32.xlu0 %v3247, 64
      %v3320 = vpop.permute.xlu0 %3319
      %3321 = vrot.lane.b32.xlu0 %v3248, 64
      %v3322 = vpop.permute.xlu0 %3321
      %3323 = vrot.lane.b32.xlu0 %v3249, 64
      %v3324 = vpop.permute.xlu0 %3323
      %3325 = vrot.lane.b32.xlu0 %v3250, 64
      %v3326 = vpop.permute.xlu0 %3325
      %3327 = vrot.lane.b32.xlu0 %v3251, 64
      %v3328 = vpop.permute.xlu0 %3327
      %3329 = vrot.lane.b32.xlu0 %v3252, 64
      %v3330 = vpop.permute.xlu0 %3329
      %3331 = vrot.lane.b32.xlu0 %v3253, 64
      %v3332 = vpop.permute.xlu0 %3331
      %3333 = vrot.lane.b32.xlu0 %v3254, 64
      %v3334 = vpop.permute.xlu0 %3333
      %3335 = vrot.lane.b32.xlu0 %v3255, 64
      %v3336 = vpop.permute.xlu0 %3335
      %3337 = vrot.lane.b32.xlu0 %v3256, 64
      %v3338 = vpop.permute.xlu0 %3337
      %3339 = vrot.lane.b32.xlu0 %v3257, 64
      %v3340 = vpop.permute.xlu0 %3339
      %3341 = vrot.lane.b32.xlu0 %v3258, 64
      %v3342 = vpop.permute.xlu0 %3341
      %3343 = vrot.lane.b32.xlu0 %v3259, 64
      %v3344 = vpop.permute.xlu0 %3343
      %3345 = vrot.lane.b32.xlu0 %v3260, 64
      %v3346 = vpop.permute.xlu0 %3345
      %3347 = vrot.lane.b32.xlu0 %v3261, 64
      %v3348 = vpop.permute.xlu0 %3347
      %3349 = vrot.lane.b32.xlu0 %v3262, 64
      %v3350 = vpop.permute.xlu0 %3349
      %3351 = vrot.lane.b32.xlu0 %v3263, 64
      %v3352 = vpop.permute.xlu0 %3351
      %3353 = vrot.lane.b32.xlu0 %v3264, 64
      %v3354 = vpop.permute.xlu0 %3353
      %3355 = vrot.lane.b32.xlu0 %v3265, 64
      %v3356 = vpop.permute.xlu0 %3355
      %3357 = vrot.lane.b32.xlu0 %v3266, 64
      %v3358 = vpop.permute.xlu0 %3357
      %3359 = vrot.lane.b32.xlu0 %v3267, 64
      %v3360 = vpop.permute.xlu0 %3359
      %3361 = vrot.lane.b32.xlu0 %v3268, 64
      %v3362 = vpop.permute.xlu0 %3361
      %3363 = vrot.lane.b32.xlu0 %v3269, 64
      %v3364 = vpop.permute.xlu0 %3363
      %3365 = vrot.lane.b32.xlu0 %v3270, 64
      %v3366 = vpop.permute.xlu0 %3365
      %vm3399 = vcmask 556544
      %3400 = vst.msk [vmem:[#allocation2] sm:$0xff] %vm3399, %v3304
      %3401 = vst.msk [vmem:[#allocation2 + $0x8] sm:$0xff] %vm3399, %v3306
      %3402 = vst.msk [vmem:[#allocation2 + $0x10] sm:$0xff] %vm3399, %v3308
      %3403 = vst.msk [vmem:[#allocation2 + $0x18] sm:$0xff] %vm3399, %v3310
      %3404 = vst.msk [vmem:[#allocation2 + $0x20] sm:$0xff] %vm3399, %v3312
      %3405 = vst.msk [vmem:[#allocation2 + $0x28] sm:$0xff] %vm3399, %v3314
      %3406 = vst.msk [vmem:[#allocation2 + $0x30] sm:$0xff] %vm3399, %v3316
      %3407 = vst.msk [vmem:[#allocation2 + $0x38] sm:$0xff] %vm3399, %v3318
      %3408 = vst.msk [vmem:[#allocation2 + $0x40] sm:$0xff] %vm3399, %v3320
      %3409 = vst.msk [vmem:[#allocation2 + $0x48] sm:$0xff] %vm3399, %v3322
      %3410 = vst.msk [vmem:[#allocation2 + $0x50] sm:$0xff] %vm3399, %v3324
      %3411 = vst.msk [vmem:[#allocation2 + $0x58] sm:$0xff] %vm3399, %v3326
      %3412 = vst.msk [vmem:[#allocation2 + $0x60] sm:$0xff] %vm3399, %v3328
      %3413 = vst.msk [vmem:[#allocation2 + $0x68] sm:$0xff] %vm3399, %v3330
      %3414 = vst.msk [vmem:[#allocation2 + $0x70] sm:$0xff] %vm3399, %v3332
      %3415 = vst.msk [vmem:[#allocation2 + $0x78] sm:$0xff] %vm3399, %v3334
      %3416 = vst.msk [vmem:[#allocation2 + $0x80] sm:$0xff] %vm3399, %v3336
      %3417 = vst.msk [vmem:[#allocation2 + $0x88] sm:$0xff] %vm3399, %v3338
      %3418 = vst.msk [vmem:[#allocation2 + $0x90] sm:$0xff] %vm3399, %v3340
      %3419 = vst.msk [vmem:[#allocation2 + $0x98] sm:$0xff] %vm3399, %v3342
      %3420 = vst.msk [vmem:[#allocation2 + $0xa0] sm:$0xff] %vm3399, %v3344
      %3421 = vst.msk [vmem:[#allocation2 + $0xa8] sm:$0xff] %vm3399, %v3346
      %3422 = vst.msk [vmem:[#allocation2 + $0xb0] sm:$0xff] %vm3399, %v3348
      %3423 = vst.msk [vmem:[#allocation2 + $0xb8] sm:$0xff] %vm3399, %v3350
      %3424 = vst.msk [vmem:[#allocation2 + $0xc0] sm:$0xff] %vm3399, %v3352
      %3425 = vst.msk [vmem:[#allocation2 + $0xc8] sm:$0xff] %vm3399, %v3354
      %3426 = vst.msk [vmem:[#allocation2 + $0xd0] sm:$0xff] %vm3399, %v3356
      %3427 = vst.msk [vmem:[#allocation2 + $0xd8] sm:$0xff] %vm3399, %v3358
      %3428 = vst.msk [vmem:[#allocation2 + $0xe0] sm:$0xff] %vm3399, %v3360
      %3429 = vst.msk [vmem:[#allocation2 + $0xe8] sm:$0xff] %vm3399, %v3362
      %3430 = vst.msk [vmem:[#allocation2 + $0xf0] sm:$0xff] %vm3399, %v3364
      %3431 = vst.msk [vmem:[#allocation2 + $0xf8] sm:$0xff] %vm3399, %v3366
      %v3432 = vld [vmem:[%s3045 + $0x3] sm:$0xff]
      %v3433 = vld [vmem:[%s3045 + $0xb] sm:$0xff]
      %v3434 = vld [vmem:[%s3045 + $0x1b] sm:$0xff]
      %v3435 = vld [vmem:[%s3045 + $0x23] sm:$0xff]
      %v3436 = vld [vmem:[%s3045 + $0x33] sm:$0xff]
      %v3437 = vld [vmem:[%s3045 + $0x3b] sm:$0xff]
      %v3438 = vld [vmem:[%s3045 + $0x4b] sm:$0xff]
      %v3439 = vld [vmem:[%s3045 + $0x53] sm:$0xff]
      %v3440 = vld [vmem:[%s3045 + $0x63] sm:$0xff]
      %v3441 = vld [vmem:[%s3045 + $0x6b] sm:$0xff]
      %v3442 = vld [vmem:[%s3045 + $0x7b] sm:$0xff]
      %v3443 = vld [vmem:[%s3045 + $0x83] sm:$0xff]
      %v3444 = vld [vmem:[%s3045 + $0x93] sm:$0xff]
      %v3445 = vld [vmem:[%s3045 + $0x9b] sm:$0xff]
      %v3446 = vld [vmem:[%s3045 + $0xab] sm:$0xff]
      %v3447 = vld [vmem:[%s3045 + $0xb3] sm:$0xff]
      %v3448 = vld [vmem:[%s3045 + $0xc3] sm:$0xff]
      %v3449 = vld [vmem:[%s3045 + $0xcb] sm:$0xff]
      %v3450 = vld [vmem:[%s3045 + $0xdb] sm:$0xff]
      %v3451 = vld [vmem:[%s3045 + $0xe3] sm:$0xff]
      %v3452 = vld [vmem:[%s3045 + $0xf3] sm:$0xff]
      %v3453 = vld [vmem:[%s3045 + $0xfb] sm:$0xff]
      %v3454 = vld [vmem:[%s3045 + $0x10b] sm:$0xff]
      %v3455 = vld [vmem:[%s3045 + $0x113] sm:$0xff]
      %v3456 = vld [vmem:[%s3045 + $0x123] sm:$0xff]
      %v3457 = vld [vmem:[%s3045 + $0x12b] sm:$0xff]
      %v3458 = vld [vmem:[%s3045 + $0x13b] sm:$0xff]
      %v3459 = vld [vmem:[%s3045 + $0x143] sm:$0xff]
      %v3460 = vld [vmem:[%s3045 + $0x153] sm:$0xff]
      %v3461 = vld [vmem:[%s3045 + $0x15b] sm:$0xff]
      %v3462 = vld [vmem:[%s3045 + $0x16b] sm:$0xff]
      %v3463 = vld [vmem:[%s3045 + $0x173] sm:$0xff]
      %3496 = vrot.lane.b32.xlu0 %v3432, 68
      %v3497 = vpop.permute.xlu0 %3496
      %3498 = vrot.lane.b32.xlu0 %v3433, 68
      %v3499 = vpop.permute.xlu0 %3498
      %3500 = vrot.lane.b32.xlu0 %v3434, 68
      %v3501 = vpop.permute.xlu0 %3500
      %3502 = vrot.lane.b32.xlu0 %v3435, 68
      %v3503 = vpop.permute.xlu0 %3502
      %3504 = vrot.lane.b32.xlu0 %v3436, 68
      %v3505 = vpop.permute.xlu0 %3504
      %3506 = vrot.lane.b32.xlu0 %v3437, 68
      %v3507 = vpop.permute.xlu0 %3506
      %3508 = vrot.lane.b32.xlu0 %v3438, 68
      %v3509 = vpop.permute.xlu0 %3508
      %3510 = vrot.lane.b32.xlu0 %v3439, 68
      %v3511 = vpop.permute.xlu0 %3510
      %3512 = vrot.lane.b32.xlu0 %v3440, 68
      %v3513 = vpop.permute.xlu0 %3512
      %3514 = vrot.lane.b32.xlu0 %v3441, 68
      %v3515 = vpop.permute.xlu0 %3514
      %3516 = vrot.lane.b32.xlu0 %v3442, 68
      %v3517 = vpop.permute.xlu0 %3516
      %3518 = vrot.lane.b32.xlu0 %v3443, 68
      %v3519 = vpop.permute.xlu0 %3518
      %3520 = vrot.lane.b32.xlu0 %v3444, 68
      %v3521 = vpop.permute.xlu0 %3520
      %3522 = vrot.lane.b32.xlu0 %v3445, 68
      %v3523 = vpop.permute.xlu0 %3522
      %3524 = vrot.lane.b32.xlu0 %v3446, 68
      %v3525 = vpop.permute.xlu0 %3524
      %3526 = vrot.lane.b32.xlu0 %v3447, 68
      %v3527 = vpop.permute.xlu0 %3526
      %3528 = vrot.lane.b32.xlu0 %v3448, 68
      %v3529 = vpop.permute.xlu0 %3528
      %3530 = vrot.lane.b32.xlu0 %v3449, 68
      %v3531 = vpop.permute.xlu0 %3530
      %3532 = vrot.lane.b32.xlu0 %v3450, 68
      %v3533 = vpop.permute.xlu0 %3532
      %3534 = vrot.lane.b32.xlu0 %v3451, 68
      %v3535 = vpop.permute.xlu0 %3534
      %3536 = vrot.lane.b32.xlu0 %v3452, 68
      %v3537 = vpop.permute.xlu0 %3536
      %3538 = vrot.lane.b32.xlu0 %v3453, 68
      %v3539 = vpop.permute.xlu0 %3538
      %3540 = vrot.lane.b32.xlu0 %v3454, 68
      %v3541 = vpop.permute.xlu0 %3540
      %3542 = vrot.lane.b32.xlu0 %v3455, 68
      %v3543 = vpop.permute.xlu0 %3542
      %3544 = vrot.lane.b32.xlu0 %v3456, 68
      %v3545 = vpop.permute.xlu0 %3544
      %3546 = vrot.lane.b32.xlu0 %v3457, 68
      %v3547 = vpop.permute.xlu0 %3546
      %3548 = vrot.lane.b32.xlu0 %v3458, 68
      %v3549 = vpop.permute.xlu0 %3548
      %3550 = vrot.lane.b32.xlu0 %v3459, 68
      %v3551 = vpop.permute.xlu0 %3550
      %3552 = vrot.lane.b32.xlu0 %v3460, 68
      %v3553 = vpop.permute.xlu0 %3552
      %3554 = vrot.lane.b32.xlu0 %v3461, 68
      %v3555 = vpop.permute.xlu0 %3554
      %3556 = vrot.lane.b32.xlu0 %v3462, 68
      %v3557 = vpop.permute.xlu0 %3556
      %3558 = vrot.lane.b32.xlu0 %v3463, 68
      %v3559 = vpop.permute.xlu0 %3558
      %vm3592 = vcmask 589344
      %3593 = vst.msk [vmem:[#allocation2] sm:$0xff] %vm3592, %v3497
      %3594 = vst.msk [vmem:[#allocation2 + $0x8] sm:$0xff] %vm3592, %v3499
      %3595 = vst.msk [vmem:[#allocation2 + $0x10] sm:$0xff] %vm3592, %v3501
      %3596 = vst.msk [vmem:[#allocation2 + $0x18] sm:$0xff] %vm3592, %v3503
      %3597 = vst.msk [vmem:[#allocation2 + $0x20] sm:$0xff] %vm3592, %v3505
      %3598 = vst.msk [vmem:[#allocation2 + $0x28] sm:$0xff] %vm3592, %v3507
      %3599 = vst.msk [vmem:[#allocation2 + $0x30] sm:$0xff] %vm3592, %v3509
      %3600 = vst.msk [vmem:[#allocation2 + $0x38] sm:$0xff] %vm3592, %v3511
      %3601 = vst.msk [vmem:[#allocation2 + $0x40] sm:$0xff] %vm3592, %v3513
      %3602 = vst.msk [vmem:[#allocation2 + $0x48] sm:$0xff] %vm3592, %v3515
      %3603 = vst.msk [vmem:[#allocation2 + $0x50] sm:$0xff] %vm3592, %v3517
      %3604 = vst.msk [vmem:[#allocation2 + $0x58] sm:$0xff] %vm3592, %v3519
      %3605 = vst.msk [vmem:[#allocation2 + $0x60] sm:$0xff] %vm3592, %v3521
      %3606 = vst.msk [vmem:[#allocation2 + $0x68] sm:$0xff] %vm3592, %v3523
      %3607 = vst.msk [vmem:[#allocation2 + $0x70] sm:$0xff] %vm3592, %v3525
      %3608 = vst.msk [vmem:[#allocation2 + $0x78] sm:$0xff] %vm3592, %v3527
      %3609 = vst.msk [vmem:[#allocation2 + $0x80] sm:$0xff] %vm3592, %v3529
      %3610 = vst.msk [vmem:[#allocation2 + $0x88] sm:$0xff] %vm3592, %v3531
      %3611 = vst.msk [vmem:[#allocation2 + $0x90] sm:$0xff] %vm3592, %v3533
      %3612 = vst.msk [vmem:[#allocation2 + $0x98] sm:$0xff] %vm3592, %v3535
      %3613 = vst.msk [vmem:[#allocation2 + $0xa0] sm:$0xff] %vm3592, %v3537
      %3614 = vst.msk [vmem:[#allocation2 + $0xa8] sm:$0xff] %vm3592, %v3539
      %3615 = vst.msk [vmem:[#allocation2 + $0xb0] sm:$0xff] %vm3592, %v3541
      %3616 = vst.msk [vmem:[#allocation2 + $0xb8] sm:$0xff] %vm3592, %v3543
      %3617 = vst.msk [vmem:[#allocation2 + $0xc0] sm:$0xff] %vm3592, %v3545
      %3618 = vst.msk [vmem:[#allocation2 + $0xc8] sm:$0xff] %vm3592, %v3547
      %3619 = vst.msk [vmem:[#allocation2 + $0xd0] sm:$0xff] %vm3592, %v3549
      %3620 = vst.msk [vmem:[#allocation2 + $0xd8] sm:$0xff] %vm3592, %v3551
      %3621 = vst.msk [vmem:[#allocation2 + $0xe0] sm:$0xff] %vm3592, %v3553
      %3622 = vst.msk [vmem:[#allocation2 + $0xe8] sm:$0xff] %vm3592, %v3555
      %3623 = vst.msk [vmem:[#allocation2 + $0xf0] sm:$0xff] %vm3592, %v3557
      %3624 = vst.msk [vmem:[#allocation2 + $0xf8] sm:$0xff] %vm3592, %v3559
      %v3625 = vld [vmem:[#allocation2] sm:$0xff]
      %v3626 = vld [vmem:[#allocation2 + $0x8] sm:$0xff]
      %v3627 = vld [vmem:[#allocation2 + $0x10] sm:$0xff]
      %v3628 = vld [vmem:[#allocation2 + $0x18] sm:$0xff]
      %v3629 = vld [vmem:[#allocation2 + $0x20] sm:$0xff]
      %v3630 = vld [vmem:[#allocation2 + $0x28] sm:$0xff]
      %v3631 = vld [vmem:[#allocation2 + $0x30] sm:$0xff]
      %v3632 = vld [vmem:[#allocation2 + $0x38] sm:$0xff]
      %v3633 = vld [vmem:[#allocation2 + $0x40] sm:$0xff]
      %v3634 = vld [vmem:[#allocation2 + $0x48] sm:$0xff]
      %v3635 = vld [vmem:[#allocation2 + $0x50] sm:$0xff]
      %v3636 = vld [vmem:[#allocation2 + $0x58] sm:$0xff]
      %v3637 = vld [vmem:[#allocation2 + $0x60] sm:$0xff]
      %v3638 = vld [vmem:[#allocation2 + $0x68] sm:$0xff]
      %v3639 = vld [vmem:[#allocation2 + $0x70] sm:$0xff]
      %v3640 = vld [vmem:[#allocation2 + $0x78] sm:$0xff]
      %v3641 = vld [vmem:[#allocation2 + $0x80] sm:$0xff]
      %v3642 = vld [vmem:[#allocation2 + $0x88] sm:$0xff]
      %v3643 = vld [vmem:[#allocation2 + $0x90] sm:$0xff]
      %v3644 = vld [vmem:[#allocation2 + $0x98] sm:$0xff]
      %v3645 = vld [vmem:[#allocation2 + $0xa0] sm:$0xff]
      %v3646 = vld [vmem:[#allocation2 + $0xa8] sm:$0xff]
      %v3647 = vld [vmem:[#allocation2 + $0xb0] sm:$0xff]
      %v3648 = vld [vmem:[#allocation2 + $0xb8] sm:$0xff]
      %v3649 = vld [vmem:[#allocation2 + $0xc0] sm:$0xff]
      %v3650 = vld [vmem:[#allocation2 + $0xc8] sm:$0xff]
      %v3651 = vld [vmem:[#allocation2 + $0xd0] sm:$0xff]
      %v3652 = vld [vmem:[#allocation2 + $0xd8] sm:$0xff]
      %v3653 = vld [vmem:[#allocation2 + $0xe0] sm:$0xff]
      %v3654 = vld [vmem:[#allocation2 + $0xe8] sm:$0xff]
      %v3655 = vld [vmem:[#allocation2 + $0xf0] sm:$0xff]
      %v3656 = vld [vmem:[#allocation2 + $0xf8] sm:$0xff]
      %v3657 = vld [vmem:[%s2] sm:$0xff]
      %v3658 = vld [vmem:[%s2 + $0x8] sm:$0xff]
      %v3659 = vld [vmem:[%s2 + $0x10] sm:$0xff]
      %v3660 = vld [vmem:[%s2 + $0x18] sm:$0xff]
      %v3661 = vld [vmem:[%s2 + $0x20] sm:$0xff]
      %v3662 = vld [vmem:[%s2 + $0x28] sm:$0xff]
      %v3663 = vld [vmem:[%s2 + $0x30] sm:$0xff]
      %v3664 = vld [vmem:[%s2 + $0x38] sm:$0xff]
      %v3665 = vld [vmem:[%s2 + $0x40] sm:$0xff]
      %v3666 = vld [vmem:[%s3] sm:$0x1]
      %v3668 = vlaneseq
      %v3669 = vshrl.u32 %v3668, 7
      %v3670 = vsub.s32 0, %v3669
      %v3671 = vrot.slane %v3666, %v3670
      %vm3673 = vcmask 588800
      %v3675 = vsel %vm3673, %v3625, 0
      %v3678 = vsel %vm3673, %v3626, 0
      %v3681 = vsel %vm3673, %v3627, 0
      %v3684 = vsel %vm3673, %v3628, 0
      %v3687 = vsel %vm3673, %v3629, 0
      %v3690 = vsel %vm3673, %v3630, 0
      %v3693 = vsel %vm3673, %v3631, 0
      %v3696 = vsel %vm3673, %v3632, 0
      %v3699 = vsel %vm3673, %v3633, 0
      %v3702 = vsel %vm3673, %v3634, 0
      %v3705 = vsel %vm3673, %v3635, 0
      %v3708 = vsel %vm3673, %v3636, 0
      %v3711 = vsel %vm3673, %v3637, 0
      %v3714 = vsel %vm3673, %v3638, 0
      %v3717 = vsel %vm3673, %v3639, 0
      %v3720 = vsel %vm3673, %v3640, 0
      %v3723 = vsel %vm3673, %v3641, 0
      %v3726 = vsel %vm3673, %v3642, 0
      %v3729 = vsel %vm3673, %v3643, 0
      %v3732 = vsel %vm3673, %v3644, 0
      %v3735 = vsel %vm3673, %v3645, 0
      %v3738 = vsel %vm3673, %v3646, 0
      %v3741 = vsel %vm3673, %v3647, 0
      %v3744 = vsel %vm3673, %v3648, 0
      %v3747 = vsel %vm3673, %v3649, 0
      %v3750 = vsel %vm3673, %v3650, 0
      %v3753 = vsel %vm3673, %v3651, 0
      %v3756 = vsel %vm3673, %v3652, 0
      %v3759 = vsel %vm3673, %v3653, 0
      %v3762 = vsel %vm3673, %v3654, 0
      %v3765 = vsel %vm3673, %v3655, 0
      %v3768 = vsel %vm3673, %v3656, 0
      %3770 = vmatprep.subr.mxu0 0.0
      %3771 = vmatpush1.msra.mxu0 %v3657
      %3772 = vmatprep.subr.mxu0 0.0
      %3773 = vmatpush1.msra.mxu0 %v3658
      %3774 = vmatprep.subr.mxu0 0.0
      %3775 = vmatpush1.msra.mxu0 %v3659
      %3776 = vmatprep.subr.mxu0 0.0
      %3777 = vmatpush1.msra.mxu0 %v3660
      %3778 = vmatprep.subr.mxu0 0.0
      %3779 = vmatpush1.msra.mxu0 %v3661
      %3780 = vmatprep.subr.mxu0 0.0
      %3781 = vmatpush1.msra.mxu0 %v3662
      %3782 = vmatprep.subr.mxu0 0.0
      %3783 = vmatpush1.msra.mxu0 %v3663
      %3784 = vmatprep.subr.mxu0 0.0
      %3785 = vmatpush1.msra.mxu0 %v3664
      %3786 = vmatprep.subr.mxu0 0.0
      %3787 = vmatpush1.msra.mxu0 %v3665
      %3788 = vmatprep.subr.mxu0 0.0
      %3789 = vmatpush1.msra.mxu0 0.0
      %3790 = vmatprep.subr.mxu0 0.0
      %3791 = vmatpush1.msra.mxu0 0.0
      %3792 = vmatprep.subr.mxu0 0.0
      %3793 = vmatpush1.msra.mxu0 0.0
      %3794 = vmatprep.subr.mxu0 0.0
      %3795 = vmatpush1.msra.mxu0 0.0
      %3796 = vmatprep.subr.mxu0 0.0
      %3797 = vmatpush1.msra.mxu0 0.0
      %3798 = vmatprep.subr.mxu0 0.0
      %3799 = vmatpush1.msra.mxu0 0.0
      %3800 = vmatprep.subr.mxu0 0.0
      %3801 = vmatpush1.msra.mxu0 0.0
      %3802 = vmatprep.subr.mxu0 0.0
      %3803 = vmatpush1.msra.mxu0 0.0
      %3804 = vmatprep.subr.mxu0 0.0
      %3805 = vmatpush1.msra.mxu0 0.0
      %3806 = vmatprep.subr.mxu0 0.0
      %3807 = vmatpush1.msra.mxu0 0.0
      %3808 = vmatprep.subr.mxu0 0.0
      %3809 = vmatpush1.msra.mxu0 0.0
      %3810 = vmatprep.subr.mxu0 0.0
      %3811 = vmatpush1.msra.mxu0 0.0
      %3812 = vmatprep.subr.mxu0 0.0
      %3813 = vmatpush1.msra.mxu0 0.0
      %3814 = vmatprep.subr.mxu0 0.0
      %3815 = vmatpush1.msra.mxu0 0.0
      %3816 = vmatprep.subr.mxu0 0.0
      %3817 = vmatpush1.msra.mxu0 0.0
      %3818 = vmatprep.subr.mxu0 0.0
      %3819 = vmatpush1.msra.mxu0 0.0
      %3820 = vmatprep.subr.mxu0 0.0
      %3821 = vmatpush1.msra.mxu0 0.0
      %3822 = vmatprep.subr.mxu0 0.0
      %3823 = vmatpush1.msra.mxu0 0.0
      %3824 = vmatprep.subr.mxu0 0.0
      %3825 = vmatpush1.msra.mxu0 0.0
      %3826 = vmatprep.subr.mxu0 0.0
      %3827 = vmatpush1.msra.mxu0 0.0
      %3828 = vmatprep.subr.mxu0 0.0
      %3829 = vmatpush1.msra.mxu0 0.0
      %3830 = vmatprep.subr.mxu0 0.0
      %3831 = vmatpush1.msra.mxu0 0.0
      %3832 = vmatprep.subr.mxu0 0.0
      %3833 = vmatpush1.msra.mxu0 0.0
      %3834 = vmatprep.mubr.f32.mxu0 0.0
      %3835 = vmatmul.mubr.f32.gmra.mrb[0].mxu0 %v3675
      %v3836 = vpop.f32.mrb[0].mxu0
      %v3837 = vadd.f32 %v3671, %v3836
      %v3838 = vpop.f32.mrb[0].mxu0
      %3839 = vmatprep.mubr.f32.mxu0 0.0
      %3840 = vmatmul.mubr.f32.gmra.mrb[0].mxu0 %v3678
      %v3841 = vpop.f32.mrb[0].mxu0
      %v3842 = vadd.f32 %v3671, %v3841
      %v3843 = vpop.f32.mrb[0].mxu0
      %3844 = vmatprep.mubr.f32.mxu0 0.0
      %3845 = vmatmul.mubr.f32.gmra.mrb[0].mxu0 %v3681
      %v3846 = vpop.f32.mrb[0].mxu0
      %v3847 = vadd.f32 %v3671, %v3846
      %v3848 = vpop.f32.mrb[0].mxu0
      %3849 = vmatprep.mubr.f32.mxu0 0.0
      %3850 = vmatmul.mubr.f32.gmra.mrb[0].mxu0 %v3684
      %v3851 = vpop.f32.mrb[0].mxu0
      %v3852 = vadd.f32 %v3671, %v3851
      %v3853 = vpop.f32.mrb[0].mxu0
      %3854 = vmatprep.mubr.f32.mxu0 0.0
      %3855 = vmatmul.mubr.f32.gmra.mrb[0].mxu0 %v3687
      %v3856 = vpop.f32.mrb[0].mxu0
      %v3857 = vadd.f32 %v3671, %v3856
      %v3858 = vpop.f32.mrb[0].mxu0
      %3859 = vmatprep.mubr.f32.mxu0 0.0
      %3860 = vmatmul.mubr.f32.gmra.mrb[0].mxu0 %v3690
      %v3861 = vpop.f32.mrb[0].mxu0
      %v3862 = vadd.f32 %v3671, %v3861
      %v3863 = vpop.f32.mrb[0].mxu0
      %3864 = vmatprep.mubr.f32.mxu0 0.0
      %3865 = vmatmul.mubr.f32.gmra.mrb[0].mxu0 %v3693
      %v3866 = vpop.f32.mrb[0].mxu0
      %v3867 = vadd.f32 %v3671, %v3866
      %v3868 = vpop.f32.mrb[0].mxu0
      %3869 = vmatprep.mubr.f32.mxu0 0.0
      %3870 = vmatmul.mubr.f32.gmra.mrb[0].mxu0 %v3696
      %v3871 = vpop.f32.mrb[0].mxu0
      %v3872 = vadd.f32 %v3671, %v3871
      %v3873 = vpop.f32.mrb[0].mxu0
      %3874 = vmatprep.mubr.f32.mxu0 0.0
      %3875 = vmatmul.mubr.f32.gmra.mrb[0].mxu0 %v3699
      %v3876 = vpop.f32.mrb[0].mxu0
      %v3877 = vadd.f32 %v3671, %v3876
      %v3878 = vpop.f32.mrb[0].mxu0
      %3879 = vmatprep.mubr.f32.mxu0 0.0
      %3880 = vmatmul.mubr.f32.gmra.mrb[0].mxu0 %v3702
      %v3881 = vpop.f32.mrb[0].mxu0
      %v3882 = vadd.f32 %v3671, %v3881
      %v3883 = vpop.f32.mrb[0].mxu0
      %3884 = vmatprep.mubr.f32.mxu0 0.0
      %3885 = vmatmul.mubr.f32.gmra.mrb[0].mxu0 %v3705
      %v3886 = vpop.f32.mrb[0].mxu0
      %v3887 = vadd.f32 %v3671, %v3886
      %v3888 = vpop.f32.mrb[0].mxu0
      %3889 = vmatprep.mubr.f32.mxu0 0.0
      %3890 = vmatmul.mubr.f32.gmra.mrb[0].mxu0 %v3708
      %v3891 = vpop.f32.mrb[0].mxu0
      %v3892 = vadd.f32 %v3671, %v3891
      %v3893 = vpop.f32.mrb[0].mxu0
      %3894 = vmatprep.mubr.f32.mxu0 0.0
      %3895 = vmatmul.mubr.f32.gmra.mrb[0].mxu0 %v3711
      %v3896 = vpop.f32.mrb[0].mxu0
      %v3897 = vadd.f32 %v3671, %v3896
      %v3898 = vpop.f32.mrb[0].mxu0
      %3899 = vmatprep.mubr.f32.mxu0 0.0
      %3900 = vmatmul.mubr.f32.gmra.mrb[0].mxu0 %v3714
      %v3901 = vpop.f32.mrb[0].mxu0
      %v3902 = vadd.f32 %v3671, %v3901
      %v3903 = vpop.f32.mrb[0].mxu0
      %3904 = vmatprep.mubr.f32.mxu0 0.0
      %3905 = vmatmul.mubr.f32.gmra.mrb[0].mxu0 %v3717
      %v3906 = vpop.f32.mrb[0].mxu0
      %v3907 = vadd.f32 %v3671, %v3906
      %v3908 = vpop.f32.mrb[0].mxu0
      %3909 = vmatprep.mubr.f32.mxu0 0.0
      %3910 = vmatmul.mubr.f32.gmra.mrb[0].mxu0 %v3720
      %v3911 = vpop.f32.mrb[0].mxu0
      %v3912 = vadd.f32 %v3671, %v3911
      %v3913 = vpop.f32.mrb[0].mxu0
      %3914 = vmatprep.mubr.f32.mxu0 0.0
      %3915 = vmatmul.mubr.f32.gmra.mrb[0].mxu0 %v3723
      %v3916 = vpop.f32.mrb[0].mxu0
      %v3917 = vadd.f32 %v3671, %v3916
      %v3918 = vpop.f32.mrb[0].mxu0
      %3919 = vmatprep.mubr.f32.mxu0 0.0
      %3920 = vmatmul.mubr.f32.gmra.mrb[0].mxu0 %v3726
      %v3921 = vpop.f32.mrb[0].mxu0
      %v3922 = vadd.f32 %v3671, %v3921
      %v3923 = vpop.f32.mrb[0].mxu0
      %3924 = vmatprep.mubr.f32.mxu0 0.0
      %3925 = vmatmul.mubr.f32.gmra.mrb[0].mxu0 %v3729
      %v3926 = vpop.f32.mrb[0].mxu0
      %v3927 = vadd.f32 %v3671, %v3926
      %v3928 = vpop.f32.mrb[0].mxu0
      %3929 = vmatprep.mubr.f32.mxu0 0.0
      %3930 = vmatmul.mubr.f32.gmra.mrb[0].mxu0 %v3732
      %v3931 = vpop.f32.mrb[0].mxu0
      %v3932 = vadd.f32 %v3671, %v3931
      %v3933 = vpop.f32.mrb[0].mxu0
      %3934 = vmatprep.mubr.f32.mxu0 0.0
      %3935 = vmatmul.mubr.f32.gmra.mrb[0].mxu0 %v3735
      %v3936 = vpop.f32.mrb[0].mxu0
      %v3937 = vadd.f32 %v3671, %v3936
      %v3938 = vpop.f32.mrb[0].mxu0
      %3939 = vmatprep.mubr.f32.mxu0 0.0
      %3940 = vmatmul.mubr.f32.gmra.mrb[0].mxu0 %v3738
      %v3941 = vpop.f32.mrb[0].mxu0
      %v3942 = vadd.f32 %v3671, %v3941
      %v3943 = vpop.f32.mrb[0].mxu0
      %3944 = vmatprep.mubr.f32.mxu0 0.0
      %3945 = vmatmul.mubr.f32.gmra.mrb[0].mxu0 %v3741
      %v3946 = vpop.f32.mrb[0].mxu0
      %v3947 = vadd.f32 %v3671, %v3946
      %v3948 = vpop.f32.mrb[0].mxu0
      %3949 = vmatprep.mubr.f32.mxu0 0.0
      %3950 = vmatmul.mubr.f32.gmra.mrb[0].mxu0 %v3744
      %v3951 = vpop.f32.mrb[0].mxu0
      %v3952 = vadd.f32 %v3671, %v3951
      %v3953 = vpop.f32.mrb[0].mxu0
      %3954 = vmatprep.mubr.f32.mxu0 0.0
      %3955 = vmatmul.mubr.f32.gmra.mrb[0].mxu0 %v3747
      %v3956 = vpop.f32.mrb[0].mxu0
      %v3957 = vadd.f32 %v3671, %v3956
      %v3958 = vpop.f32.mrb[0].mxu0
      %3959 = vmatprep.mubr.f32.mxu0 0.0
      %3960 = vmatmul.mubr.f32.gmra.mrb[0].mxu0 %v3750
      %v3961 = vpop.f32.mrb[0].mxu0
      %v3962 = vadd.f32 %v3671, %v3961
      %v3963 = vpop.f32.mrb[0].mxu0
      %3964 = vmatprep.mubr.f32.mxu0 0.0
      %3965 = vmatmul.mubr.f32.gmra.mrb[0].mxu0 %v3753
      %v3966 = vpop.f32.mrb[0].mxu0
      %v3967 = vadd.f32 %v3671, %v3966
      %v3968 = vpop.f32.mrb[0].mxu0
      %3969 = vmatprep.mubr.f32.mxu0 0.0
      %3970 = vmatmul.mubr.f32.gmra.mrb[0].mxu0 %v3756
      %v3971 = vpop.f32.mrb[0].mxu0
      %v3972 = vadd.f32 %v3671, %v3971
      %v3973 = vpop.f32.mrb[0].mxu0
      %3974 = vmatprep.mubr.f32.mxu0 0.0
      %3975 = vmatmul.mubr.f32.gmra.mrb[0].mxu0 %v3759
      %v3976 = vpop.f32.mrb[0].mxu0
      %v3977 = vadd.f32 %v3671, %v3976
      %v3978 = vpop.f32.mrb[0].mxu0
      %3979 = vmatprep.mubr.f32.mxu0 0.0
      %3980 = vmatmul.mubr.f32.gmra.mrb[0].mxu0 %v3762
      %v3981 = vpop.f32.mrb[0].mxu0
      %v3982 = vadd.f32 %v3671, %v3981
      %v3983 = vpop.f32.mrb[0].mxu0
      %3984 = vmatprep.mubr.f32.mxu0 0.0
      %3985 = vmatmul.mubr.f32.gmra.mrb[0].mxu0 %v3765
      %v3986 = vpop.f32.mrb[0].mxu0
      %v3987 = vadd.f32 %v3671, %v3986
      %v3988 = vpop.f32.mrb[0].mxu0
      %3989 = vmatprep.mubr.f32.mxu0 0.0
      %3990 = vmatmul.mubr.f32.gmra.mrb[0].mxu0 %v3768
      %v3991 = vpop.f32.mrb[0].mxu0
      %v3992 = vadd.f32 %v3671, %v3991
      %v3993 = vpop.f32.mrb[0].mxu0
      %3994 = vdwg.mxu0
      %v3995 = vld [vmem:[%s4] sm:$0x3]
      %v3996 = vlaneseq
      %v3997 = vshrl.u32 %v3996, 7
      %v3998 = vsub.s32 0, %v3997
      %v3999 = vrot.slane %v3995, %v3998
      %v4000 = vmul.f32 %v3837, %v3999
      %v4001 = vmul.f32 %v3842, %v3999
      %v4002 = vmul.f32 %v3847, %v3999
      %v4003 = vmul.f32 %v3852, %v3999
      %v4004 = vmul.f32 %v3857, %v3999
      %v4005 = vmul.f32 %v3862, %v3999
      %v4006 = vmul.f32 %v3867, %v3999
      %v4007 = vmul.f32 %v3872, %v3999
      %v4008 = vmul.f32 %v3877, %v3999
      %v4009 = vmul.f32 %v3882, %v3999
      %v4010 = vmul.f32 %v3887, %v3999
      %v4011 = vmul.f32 %v3892, %v3999
      %v4012 = vmul.f32 %v3897, %v3999
      %v4013 = vmul.f32 %v3902, %v3999
      %v4014 = vmul.f32 %v3907, %v3999
      %v4015 = vmul.f32 %v3912, %v3999
      %v4016 = vmul.f32 %v3917, %v3999
      %v4017 = vmul.f32 %v3922, %v3999
      %v4018 = vmul.f32 %v3927, %v3999
      %v4019 = vmul.f32 %v3932, %v3999
      %v4020 = vmul.f32 %v3937, %v3999
      %v4021 = vmul.f32 %v3942, %v3999
      %v4022 = vmul.f32 %v3947, %v3999
      %v4023 = vmul.f32 %v3952, %v3999
      %v4024 = vmul.f32 %v3957, %v3999
      %v4025 = vmul.f32 %v3962, %v3999
      %v4026 = vmul.f32 %v3967, %v3999
      %v4027 = vmul.f32 %v3972, %v3999
      %v4028 = vmul.f32 %v3977, %v3999
      %v4029 = vmul.f32 %v3982, %v3999
      %v4030 = vmul.f32 %v3987, %v3999
      %v4031 = vmul.f32 %v3992, %v3999
      %v4032 = vlaneseq
      %v4033 = vshrl.u32 %v4032, 7
      %v4034 = vsub.s32 1, %v4033
      %v4035 = vrot.slane %v3995, %v4034
      %v4036 = vadd.f32 %v4000, %v4035
      %v4037 = vadd.f32 %v4001, %v4035
      %v4038 = vadd.f32 %v4002, %v4035
      %v4039 = vadd.f32 %v4003, %v4035
      %v4040 = vadd.f32 %v4004, %v4035
      %v4041 = vadd.f32 %v4005, %v4035
      %v4042 = vadd.f32 %v4006, %v4035
      %v4043 = vadd.f32 %v4007, %v4035
      %v4044 = vadd.f32 %v4008, %v4035
      %v4045 = vadd.f32 %v4009, %v4035
      %v4046 = vadd.f32 %v4010, %v4035
      %v4047 = vadd.f32 %v4011, %v4035
      %v4048 = vadd.f32 %v4012, %v4035
      %v4049 = vadd.f32 %v4013, %v4035
      %v4050 = vadd.f32 %v4014, %v4035
      %v4051 = vadd.f32 %v4015, %v4035
      %v4052 = vadd.f32 %v4016, %v4035
      %v4053 = vadd.f32 %v4017, %v4035
      %v4054 = vadd.f32 %v4018, %v4035
      %v4055 = vadd.f32 %v4019, %v4035
      %v4056 = vadd.f32 %v4020, %v4035
      %v4057 = vadd.f32 %v4021, %v4035
      %v4058 = vadd.f32 %v4022, %v4035
      %v4059 = vadd.f32 %v4023, %v4035
      %v4060 = vadd.f32 %v4024, %v4035
      %v4061 = vadd.f32 %v4025, %v4035
      %v4062 = vadd.f32 %v4026, %v4035
      %v4063 = vadd.f32 %v4027, %v4035
      %v4064 = vadd.f32 %v4028, %v4035
      %v4065 = vadd.f32 %v4029, %v4035
      %v4066 = vadd.f32 %v4030, %v4035
      %v4067 = vadd.f32 %v4031, %v4035
      %vm4068 = vcmp.gt.f32.partialorder %v4036, 0.0
      %vm4069 = vcmp.gt.f32.partialorder %v4037, 0.0
      %vm4070 = vcmp.gt.f32.partialorder %v4038, 0.0
      %vm4071 = vcmp.gt.f32.partialorder %v4039, 0.0
      %vm4072 = vcmp.gt.f32.partialorder %v4040, 0.0
      %vm4073 = vcmp.gt.f32.partialorder %v4041, 0.0
      %vm4074 = vcmp.gt.f32.partialorder %v4042, 0.0
      %vm4075 = vcmp.gt.f32.partialorder %v4043, 0.0
      %vm4076 = vcmp.gt.f32.partialorder %v4044, 0.0
      %vm4077 = vcmp.gt.f32.partialorder %v4045, 0.0
      %vm4078 = vcmp.gt.f32.partialorder %v4046, 0.0
      %vm4079 = vcmp.gt.f32.partialorder %v4047, 0.0
      %vm4080 = vcmp.gt.f32.partialorder %v4048, 0.0
      %vm4081 = vcmp.gt.f32.partialorder %v4049, 0.0
      %vm4082 = vcmp.gt.f32.partialorder %v4050, 0.0
      %vm4083 = vcmp.gt.f32.partialorder %v4051, 0.0
      %vm4084 = vcmp.gt.f32.partialorder %v4052, 0.0
      %vm4085 = vcmp.gt.f32.partialorder %v4053, 0.0
      %vm4086 = vcmp.gt.f32.partialorder %v4054, 0.0
      %vm4087 = vcmp.gt.f32.partialorder %v4055, 0.0
      %vm4088 = vcmp.gt.f32.partialorder %v4056, 0.0
      %vm4089 = vcmp.gt.f32.partialorder %v4057, 0.0
      %vm4090 = vcmp.gt.f32.partialorder %v4058, 0.0
      %vm4091 = vcmp.gt.f32.partialorder %v4059, 0.0
      %vm4092 = vcmp.gt.f32.partialorder %v4060, 0.0
      %vm4093 = vcmp.gt.f32.partialorder %v4061, 0.0
      %vm4094 = vcmp.gt.f32.partialorder %v4062, 0.0
      %vm4095 = vcmp.gt.f32.partialorder %v4063, 0.0
      %vm4096 = vcmp.gt.f32.partialorder %v4064, 0.0
      %vm4097 = vcmp.gt.f32.partialorder %v4065, 0.0
      %vm4098 = vcmp.gt.f32.partialorder %v4066, 0.0
      %vm4099 = vcmp.gt.f32.partialorder %v4067, 0.0
      %v4100 = vmul.f32 %v4036, 0.2
      %v4101 = vmul.f32 %v4037, 0.2
      %v4102 = vmul.f32 %v4038, 0.2
      %v4103 = vmul.f32 %v4039, 0.2
      %v4104 = vmul.f32 %v4040, 0.2
      %v4105 = vmul.f32 %v4041, 0.2
      %v4106 = vmul.f32 %v4042, 0.2
      %v4107 = vmul.f32 %v4043, 0.2
      %v4108 = vmul.f32 %v4044, 0.2
      %v4109 = vmul.f32 %v4045, 0.2
      %v4110 = vmul.f32 %v4046, 0.2
      %v4111 = vmul.f32 %v4047, 0.2
      %v4112 = vmul.f32 %v4048, 0.2
      %v4113 = vmul.f32 %v4049, 0.2
      %v4114 = vmul.f32 %v4050, 0.2
      %v4115 = vmul.f32 %v4051, 0.2
      %v4116 = vmul.f32 %v4052, 0.2
      %v4117 = vmul.f32 %v4053, 0.2
      %v4118 = vmul.f32 %v4054, 0.2
      %v4119 = vmul.f32 %v4055, 0.2
      %v4120 = vmul.f32 %v4056, 0.2
      %v4121 = vmul.f32 %v4057, 0.2
      %v4122 = vmul.f32 %v4058, 0.2
      %v4123 = vmul.f32 %v4059, 0.2
      %v4124 = vmul.f32 %v4060, 0.2
      %v4125 = vmul.f32 %v4061, 0.2
      %v4126 = vmul.f32 %v4062, 0.2
      %v4127 = vmul.f32 %v4063, 0.2
      %v4128 = vmul.f32 %v4064, 0.2
      %v4129 = vmul.f32 %v4065, 0.2
      %v4130 = vmul.f32 %v4066, 0.2
      %v4131 = vmul.f32 %v4067, 0.2
      %v4132 = vsel %vm4068, %v4036, %v4100
      %v4133 = vsel %vm4069, %v4037, %v4101
      %v4134 = vsel %vm4070, %v4038, %v4102
      %v4135 = vsel %vm4071, %v4039, %v4103
      %v4136 = vsel %vm4072, %v4040, %v4104
      %v4137 = vsel %vm4073, %v4041, %v4105
      %v4138 = vsel %vm4074, %v4042, %v4106
      %v4139 = vsel %vm4075, %v4043, %v4107
      %v4140 = vsel %vm4076, %v4044, %v4108
      %v4141 = vsel %vm4077, %v4045, %v4109
      %v4142 = vsel %vm4078, %v4046, %v4110
      %v4143 = vsel %vm4079, %v4047, %v4111
      %v4144 = vsel %vm4080, %v4048, %v4112
      %v4145 = vsel %vm4081, %v4049, %v4113
      %v4146 = vsel %vm4082, %v4050, %v4114
      %v4147 = vsel %vm4083, %v4051, %v4115
      %v4148 = vsel %vm4084, %v4052, %v4116
      %v4149 = vsel %vm4085, %v4053, %v4117
      %v4150 = vsel %vm4086, %v4054, %v4118
      %v4151 = vsel %vm4087, %v4055, %v4119
      %v4152 = vsel %vm4088, %v4056, %v4120
      %v4153 = vsel %vm4089, %v4057, %v4121
      %v4154 = vsel %vm4090, %v4058, %v4122
      %v4155 = vsel %vm4091, %v4059, %v4123
      %v4156 = vsel %vm4092, %v4060, %v4124
      %v4157 = vsel %vm4093, %v4061, %v4125
      %v4158 = vsel %vm4094, %v4062, %v4126
      %v4159 = vsel %vm4095, %v4063, %v4127
      %v4160 = vsel %vm4096, %v4064, %v4128
      %v4161 = vsel %vm4097, %v4065, %v4129
      %v4162 = vsel %vm4098, %v4066, %v4130
      %v4163 = vsel %vm4099, %v4067, %v4131
      %4196 = vrot.lane.b32.xlu0 %v4132, 52
      %v4197 = vpop.permute.xlu0 %4196
      %4198 = vrot.lane.b32.xlu0 %v4133, 52
      %v4199 = vpop.permute.xlu0 %4198
      %4200 = vrot.lane.b32.xlu0 %v4134, 52
      %v4201 = vpop.permute.xlu0 %4200
      %4202 = vrot.lane.b32.xlu0 %v4135, 52
      %v4203 = vpop.permute.xlu0 %4202
      %4204 = vrot.lane.b32.xlu0 %v4136, 52
      %v4205 = vpop.permute.xlu0 %4204
      %4206 = vrot.lane.b32.xlu0 %v4137, 52
      %v4207 = vpop.permute.xlu0 %4206
      %4208 = vrot.lane.b32.xlu0 %v4138, 52
      %v4209 = vpop.permute.xlu0 %4208
      %4210 = vrot.lane.b32.xlu0 %v4139, 52
      %v4211 = vpop.permute.xlu0 %4210
      %4212 = vrot.lane.b32.xlu0 %v4140, 52
      %v4213 = vpop.permute.xlu0 %4212
      %4214 = vrot.lane.b32.xlu0 %v4141, 52
      %v4215 = vpop.permute.xlu0 %4214
      %4216 = vrot.lane.b32.xlu0 %v4142, 52
      %v4217 = vpop.permute.xlu0 %4216
      %4218 = vrot.lane.b32.xlu0 %v4143, 52
      %v4219 = vpop.permute.xlu0 %4218
      %4220 = vrot.lane.b32.xlu0 %v4144, 52
      %v4221 = vpop.permute.xlu0 %4220
      %4222 = vrot.lane.b32.xlu0 %v4145, 52
      %v4223 = vpop.permute.xlu0 %4222
      %4224 = vrot.lane.b32.xlu0 %v4146, 52
      %v4225 = vpop.permute.xlu0 %4224
      %4226 = vrot.lane.b32.xlu0 %v4147, 52
      %v4227 = vpop.permute.xlu0 %4226
      %4228 = vrot.lane.b32.xlu0 %v4148, 52
      %v4229 = vpop.permute.xlu0 %4228
      %4230 = vrot.lane.b32.xlu0 %v4149, 52
      %v4231 = vpop.permute.xlu0 %4230
      %4232 = vrot.lane.b32.xlu0 %v4150, 52
      %v4233 = vpop.permute.xlu0 %4232
      %4234 = vrot.lane.b32.xlu0 %v4151, 52
      %v4235 = vpop.permute.xlu0 %4234
      %4236 = vrot.lane.b32.xlu0 %v4152, 52
      %v4237 = vpop.permute.xlu0 %4236
      %4238 = vrot.lane.b32.xlu0 %v4153, 52
      %v4239 = vpop.permute.xlu0 %4238
      %4240 = vrot.lane.b32.xlu0 %v4154, 52
      %v4241 = vpop.permute.xlu0 %4240
      %4242 = vrot.lane.b32.xlu0 %v4155, 52
      %v4243 = vpop.permute.xlu0 %4242
      %4244 = vrot.lane.b32.xlu0 %v4156, 52
      %v4245 = vpop.permute.xlu0 %4244
      %4246 = vrot.lane.b32.xlu0 %v4157, 52
      %v4247 = vpop.permute.xlu0 %4246
      %4248 = vrot.lane.b32.xlu0 %v4158, 52
      %v4249 = vpop.permute.xlu0 %4248
      %4250 = vrot.lane.b32.xlu0 %v4159, 52
      %v4251 = vpop.permute.xlu0 %4250
      %4252 = vrot.lane.b32.xlu0 %v4160, 52
      %v4253 = vpop.permute.xlu0 %4252
      %4254 = vrot.lane.b32.xlu0 %v4161, 52
      %v4255 = vpop.permute.xlu0 %4254
      %4256 = vrot.lane.b32.xlu0 %v4162, 52
      %v4257 = vpop.permute.xlu0 %4256
      %4258 = vrot.lane.b32.xlu0 %v4163, 52
      %v4259 = vpop.permute.xlu0 %4258
      %v4292 = vadd.f32 %v3625, %v4197
      %v4293 = vadd.f32 %v3626, %v4199
      %v4294 = vadd.f32 %v3627, %v4201
      %v4295 = vadd.f32 %v3628, %v4203
      %v4296 = vadd.f32 %v3629, %v4205
      %v4297 = vadd.f32 %v3630, %v4207
      %v4298 = vadd.f32 %v3631, %v4209
      %v4299 = vadd.f32 %v3632, %v4211
      %v4300 = vadd.f32 %v3633, %v4213
      %v4301 = vadd.f32 %v3634, %v4215
      %v4302 = vadd.f32 %v3635, %v4217
      %v4303 = vadd.f32 %v3636, %v4219
      %v4304 = vadd.f32 %v3637, %v4221
      %v4305 = vadd.f32 %v3638, %v4223
      %v4306 = vadd.f32 %v3639, %v4225
      %v4307 = vadd.f32 %v3640, %v4227
      %v4308 = vadd.f32 %v3641, %v4229
      %v4309 = vadd.f32 %v3642, %v4231
      %v4310 = vadd.f32 %v3643, %v4233
      %v4311 = vadd.f32 %v3644, %v4235
      %v4312 = vadd.f32 %v3645, %v4237
      %v4313 = vadd.f32 %v3646, %v4239
      %v4314 = vadd.f32 %v3647, %v4241
      %v4315 = vadd.f32 %v3648, %v4243
      %v4316 = vadd.f32 %v3649, %v4245
      %v4317 = vadd.f32 %v3650, %v4247
      %v4318 = vadd.f32 %v3651, %v4249
      %v4319 = vadd.f32 %v3652, %v4251
      %v4320 = vadd.f32 %v3653, %v4253
      %v4321 = vadd.f32 %v3654, %v4255
      %v4322 = vadd.f32 %v3655, %v4257
      %v4323 = vadd.f32 %v3656, %v4259
      %4324 = vrot.lane.b32.xlu0 %v4132, 48
      %v4325 = vpop.permute.xlu0 %4324
      %4326 = vrot.lane.b32.xlu0 %v4133, 48
      %v4327 = vpop.permute.xlu0 %4326
      %4328 = vrot.lane.b32.xlu0 %v4134, 48
      %v4329 = vpop.permute.xlu0 %4328
      %4330 = vrot.lane.b32.xlu0 %v4135, 48
      %v4331 = vpop.permute.xlu0 %4330
      %4332 = vrot.lane.b32.xlu0 %v4136, 48
      %v4333 = vpop.permute.xlu0 %4332
      %4334 = vrot.lane.b32.xlu0 %v4137, 48
      %v4335 = vpop.permute.xlu0 %4334
      %4336 = vrot.lane.b32.xlu0 %v4138, 48
      %v4337 = vpop.permute.xlu0 %4336
      %4338 = vrot.lane.b32.xlu0 %v4139, 48
      %v4339 = vpop.permute.xlu0 %4338
      %4340 = vrot.lane.b32.xlu0 %v4140, 48
      %v4341 = vpop.permute.xlu0 %4340
      %4342 = vrot.lane.b32.xlu0 %v4141, 48
      %v4343 = vpop.permute.xlu0 %4342
      %4344 = vrot.lane.b32.xlu0 %v4142, 48
      %v4345 = vpop.permute.xlu0 %4344
      %4346 = vrot.lane.b32.xlu0 %v4143, 48
      %v4347 = vpop.permute.xlu0 %4346
      %4348 = vrot.lane.b32.xlu0 %v4144, 48
      %v4349 = vpop.permute.xlu0 %4348
      %4350 = vrot.lane.b32.xlu0 %v4145, 48
      %v4351 = vpop.permute.xlu0 %4350
      %4352 = vrot.lane.b32.xlu0 %v4146, 48
      %v4353 = vpop.permute.xlu0 %4352
      %4354 = vrot.lane.b32.xlu0 %v4147, 48
      %v4355 = vpop.permute.xlu0 %4354
      %4356 = vrot.lane.b32.xlu0 %v4148, 48
      %v4357 = vpop.permute.xlu0 %4356
      %4358 = vrot.lane.b32.xlu0 %v4149, 48
      %v4359 = vpop.permute.xlu0 %4358
      %4360 = vrot.lane.b32.xlu0 %v4150, 48
      %v4361 = vpop.permute.xlu0 %4360
      %4362 = vrot.lane.b32.xlu0 %v4151, 48
      %v4363 = vpop.permute.xlu0 %4362
      %4364 = vrot.lane.b32.xlu0 %v4152, 48
      %v4365 = vpop.permute.xlu0 %4364
      %4366 = vrot.lane.b32.xlu0 %v4153, 48
      %v4367 = vpop.permute.xlu0 %4366
      %4368 = vrot.lane.b32.xlu0 %v4154, 48
      %v4369 = vpop.permute.xlu0 %4368
      %4370 = vrot.lane.b32.xlu0 %v4155, 48
      %v4371 = vpop.permute.xlu0 %4370
      %4372 = vrot.lane.b32.xlu0 %v4156, 48
      %v4373 = vpop.permute.xlu0 %4372
      %4374 = vrot.lane.b32.xlu0 %v4157, 48
      %v4375 = vpop.permute.xlu0 %4374
      %4376 = vrot.lane.b32.xlu0 %v4158, 48
      %v4377 = vpop.permute.xlu0 %4376
      %4378 = vrot.lane.b32.xlu0 %v4159, 48
      %v4379 = vpop.permute.xlu0 %4378
      %4380 = vrot.lane.b32.xlu0 %v4160, 48
      %v4381 = vpop.permute.xlu0 %4380
      %4382 = vrot.lane.b32.xlu0 %v4161, 48
      %v4383 = vpop.permute.xlu0 %4382
      %4384 = vrot.lane.b32.xlu0 %v4162, 48
      %v4385 = vpop.permute.xlu0 %4384
      %4386 = vrot.lane.b32.xlu0 %v4163, 48
      %v4387 = vpop.permute.xlu0 %4386
      %v4420 = vadd.f32 %v4292, %v4325
      %v4421 = vadd.f32 %v4293, %v4327
      %v4422 = vadd.f32 %v4294, %v4329
      %v4423 = vadd.f32 %v4295, %v4331
      %v4424 = vadd.f32 %v4296, %v4333
      %v4425 = vadd.f32 %v4297, %v4335
      %v4426 = vadd.f32 %v4298, %v4337
      %v4427 = vadd.f32 %v4299, %v4339
      %v4428 = vadd.f32 %v4300, %v4341
      %v4429 = vadd.f32 %v4301, %v4343
      %v4430 = vadd.f32 %v4302, %v4345
      %v4431 = vadd.f32 %v4303, %v4347
      %v4432 = vadd.f32 %v4304, %v4349
      %v4433 = vadd.f32 %v4305, %v4351
      %v4434 = vadd.f32 %v4306, %v4353
      %v4435 = vadd.f32 %v4307, %v4355
      %v4436 = vadd.f32 %v4308, %v4357
      %v4437 = vadd.f32 %v4309, %v4359
      %v4438 = vadd.f32 %v4310, %v4361
      %v4439 = vadd.f32 %v4311, %v4363
      %v4440 = vadd.f32 %v4312, %v4365
      %v4441 = vadd.f32 %v4313, %v4367
      %v4442 = vadd.f32 %v4314, %v4369
      %v4443 = vadd.f32 %v4315, %v4371
      %v4444 = vadd.f32 %v4316, %v4373
      %v4445 = vadd.f32 %v4317, %v4375
      %v4446 = vadd.f32 %v4318, %v4377
      %v4447 = vadd.f32 %v4319, %v4379
      %v4448 = vadd.f32 %v4320, %v4381
      %v4449 = vadd.f32 %v4321, %v4383
      %v4450 = vadd.f32 %v4322, %v4385
      %v4451 = vadd.f32 %v4323, %v4387
      %v4452 = vld [vmem:[%s5] sm:$0xff]
      %v4453 = vld [vmem:[%s267] sm:$0xff]
      %v4454 = vld [vmem:[%s267 + $0x8] sm:$0xff]
      %v4455 = vld [vmem:[%s267 + $0x10] sm:$0xff]
      %v4456 = vld [vmem:[%s267 + $0x18] sm:$0xff]
      %v4457 = vld [vmem:[%s267 + $0x20] sm:$0xff]
      %v4458 = vld [vmem:[%s267 + $0x28] sm:$0xff]
      %v4459 = vld [vmem:[%s267 + $0x30] sm:$0xff]
      %v4460 = vld [vmem:[%s267 + $0x38] sm:$0xff]
      %v4461 = vld [vmem:[%s267 + $0x40] sm:$0xff]
      %v4462 = vld [vmem:[%s267 + $0x48] sm:$0xff]
      %v4463 = vld [vmem:[%s267 + $0x50] sm:$0xff]
      %v4464 = vld [vmem:[%s267 + $0x58] sm:$0xff]
      %v4465 = vld [vmem:[%s267 + $0x60] sm:$0xff]
      %v4466 = vld [vmem:[%s267 + $0x68] sm:$0xff]
      %v4467 = vld [vmem:[%s267 + $0x70] sm:$0xff]
      %v4468 = vld [vmem:[%s267 + $0x78] sm:$0xff]
      %v4469 = vld [vmem:[%s267 + $0x80] sm:$0xff]
      %v4470 = vld [vmem:[%s267 + $0x88] sm:$0xff]
      %v4471 = vld [vmem:[%s267 + $0x90] sm:$0xff]
      %v4472 = vld [vmem:[%s267 + $0x98] sm:$0xff]
      %v4473 = vld [vmem:[%s267 + $0xa0] sm:$0xff]
      %v4474 = vld [vmem:[%s267 + $0xa8] sm:$0xff]
      %v4475 = vld [vmem:[%s267 + $0xb0] sm:$0xff]
      %v4476 = vld [vmem:[%s267 + $0xb8] sm:$0xff]
      %v4477 = vld [vmem:[%s267 + $0xc0] sm:$0xff]
      %v4478 = vld [vmem:[%s267 + $0xc8] sm:$0xff]
      %v4479 = vld [vmem:[%s267 + $0xd0] sm:$0xff]
      %v4480 = vld [vmem:[%s267 + $0xd8] sm:$0xff]
      %v4481 = vld [vmem:[%s267 + $0xe0] sm:$0xff]
      %v4482 = vld [vmem:[%s267 + $0xe8] sm:$0xff]
      %v4483 = vld [vmem:[%s267 + $0xf0] sm:$0xff]
      %v4484 = vld [vmem:[%s267 + $0xf8] sm:$0xff]
      %4517 = vrot.lane.b32.xlu0 %v4420, 76
      %v4518 = vpop.permute.xlu0 %4517
      %4519 = vrot.lane.b32.xlu0 %v4421, 76
      %v4520 = vpop.permute.xlu0 %4519
      %4521 = vrot.lane.b32.xlu0 %v4422, 76
      %v4522 = vpop.permute.xlu0 %4521
      %4523 = vrot.lane.b32.xlu0 %v4423, 76
      %v4524 = vpop.permute.xlu0 %4523
      %4525 = vrot.lane.b32.xlu0 %v4424, 76
      %v4526 = vpop.permute.xlu0 %4525
      %4527 = vrot.lane.b32.xlu0 %v4425, 76
      %v4528 = vpop.permute.xlu0 %4527
      %4529 = vrot.lane.b32.xlu0 %v4426, 76
      %v4530 = vpop.permute.xlu0 %4529
      %4531 = vrot.lane.b32.xlu0 %v4427, 76
      %v4532 = vpop.permute.xlu0 %4531
      %4533 = vrot.lane.b32.xlu0 %v4428, 76
      %v4534 = vpop.permute.xlu0 %4533
      %4535 = vrot.lane.b32.xlu0 %v4429, 76
      %v4536 = vpop.permute.xlu0 %4535
      %4537 = vrot.lane.b32.xlu0 %v4430, 76
      %v4538 = vpop.permute.xlu0 %4537
      %4539 = vrot.lane.b32.xlu0 %v4431, 76
      %v4540 = vpop.permute.xlu0 %4539
      %4541 = vrot.lane.b32.xlu0 %v4432, 76
      %v4542 = vpop.permute.xlu0 %4541
      %4543 = vrot.lane.b32.xlu0 %v4433, 76
      %v4544 = vpop.permute.xlu0 %4543
      %4545 = vrot.lane.b32.xlu0 %v4434, 76
      %v4546 = vpop.permute.xlu0 %4545
      %4547 = vrot.lane.b32.xlu0 %v4435, 76
      %v4548 = vpop.permute.xlu0 %4547
      %4549 = vrot.lane.b32.xlu0 %v4436, 76
      %v4550 = vpop.permute.xlu0 %4549
      %4551 = vrot.lane.b32.xlu0 %v4437, 76
      %v4552 = vpop.permute.xlu0 %4551
      %4553 = vrot.lane.b32.xlu0 %v4438, 76
      %v4554 = vpop.permute.xlu0 %4553
      %4555 = vrot.lane.b32.xlu0 %v4439, 76
      %v4556 = vpop.permute.xlu0 %4555
      %4557 = vrot.lane.b32.xlu0 %v4440, 76
      %v4558 = vpop.permute.xlu0 %4557
      %4559 = vrot.lane.b32.xlu0 %v4441, 76
      %v4560 = vpop.permute.xlu0 %4559
      %4561 = vrot.lane.b32.xlu0 %v4442, 76
      %v4562 = vpop.permute.xlu0 %4561
      %4563 = vrot.lane.b32.xlu0 %v4443, 76
      %v4564 = vpop.permute.xlu0 %4563
      %4565 = vrot.lane.b32.xlu0 %v4444, 76
      %v4566 = vpop.permute.xlu0 %4565
      %4567 = vrot.lane.b32.xlu0 %v4445, 76
      %v4568 = vpop.permute.xlu0 %4567
      %4569 = vrot.lane.b32.xlu0 %v4446, 76
      %v4570 = vpop.permute.xlu0 %4569
      %4571 = vrot.lane.b32.xlu0 %v4447, 76
      %v4572 = vpop.permute.xlu0 %4571
      %4573 = vrot.lane.b32.xlu0 %v4448, 76
      %v4574 = vpop.permute.xlu0 %4573
      %4575 = vrot.lane.b32.xlu0 %v4449, 76
      %v4576 = vpop.permute.xlu0 %4575
      %4577 = vrot.lane.b32.xlu0 %v4450, 76
      %v4578 = vpop.permute.xlu0 %4577
      %4579 = vrot.lane.b32.xlu0 %v4451, 76
      %v4580 = vpop.permute.xlu0 %4579
      %v4582 = vrot.slane %v4452, 4
      %v4583 = vsel %vm307, %v4518, 0
      %v4585 = vsel %vm307, %v4520, 0
      %v4587 = vsel %vm307, %v4522, 0
      %v4589 = vsel %vm307, %v4524, 0
      %v4591 = vsel %vm307, %v4526, 0
      %v4593 = vsel %vm307, %v4528, 0
      %v4595 = vsel %vm307, %v4530, 0
      %v4597 = vsel %vm307, %v4532, 0
      %v4599 = vsel %vm307, %v4534, 0
      %v4601 = vsel %vm307, %v4536, 0
      %v4603 = vsel %vm307, %v4538, 0
      %v4605 = vsel %vm307, %v4540, 0
      %v4607 = vsel %vm307, %v4542, 0
      %v4609 = vsel %vm307, %v4544, 0
      %v4611 = vsel %vm307, %v4546, 0
      %v4613 = vsel %vm307, %v4548, 0
      %v4615 = vsel %vm307, %v4550, 0
      %v4617 = vsel %vm307, %v4552, 0
      %v4619 = vsel %vm307, %v4554, 0
      %v4621 = vsel %vm307, %v4556, 0
      %v4623 = vsel %vm307, %v4558, 0
      %v4625 = vsel %vm307, %v4560, 0
      %v4627 = vsel %vm307, %v4562, 0
      %v4629 = vsel %vm307, %v4564, 0
      %v4631 = vsel %vm307, %v4566, 0
      %v4633 = vsel %vm307, %v4568, 0
      %v4635 = vsel %vm307, %v4570, 0
      %v4637 = vsel %vm307, %v4572, 0
      %v4639 = vsel %vm307, %v4574, 0
      %v4641 = vsel %vm307, %v4576, 0
      %v4643 = vsel %vm307, %v4578, 0
      %v4645 = vsel %vm307, %v4580, 0
      %vm4647 = vcmask 1043456
      %v4648 = vsel %vm4647, %v4582, 0
      %4650 = vmatprep.subr.mxu0 0.0
      %4651 = vmatpush1.msra.mxu0 %v4648
      %4652 = vmatprep.subr.mxu0 0.0
      %4653 = vmatpush1.msra.mxu0 0.0
      %4654 = vmatprep.subr.mxu0 0.0
      %4655 = vmatpush1.msra.mxu0 0.0
      %4656 = vmatprep.subr.mxu0 0.0
      %4657 = vmatpush1.msra.mxu0 0.0
      %4658 = vmatprep.subr.mxu0 0.0
      %4659 = vmatpush1.msra.mxu0 0.0
      %4660 = vmatprep.subr.mxu0 0.0
      %4661 = vmatpush1.msra.mxu0 0.0
      %4662 = vmatprep.subr.mxu0 0.0
      %4663 = vmatpush1.msra.mxu0 0.0
      %4664 = vmatprep.subr.mxu0 0.0
      %4665 = vmatpush1.msra.mxu0 0.0
      %4666 = vmatprep.subr.mxu0 0.0
      %4667 = vmatpush1.msra.mxu0 0.0
      %4668 = vmatprep.subr.mxu0 0.0
      %4669 = vmatpush1.msra.mxu0 0.0
      %4670 = vmatprep.subr.mxu0 0.0
      %4671 = vmatpush1.msra.mxu0 0.0
      %4672 = vmatprep.subr.mxu0 0.0
      %4673 = vmatpush1.msra.mxu0 0.0
      %4674 = vmatprep.subr.mxu0 0.0
      %4675 = vmatpush1.msra.mxu0 0.0
      %4676 = vmatprep.subr.mxu0 0.0
      %4677 = vmatpush1.msra.mxu0 0.0
      %4678 = vmatprep.subr.mxu0 0.0
      %4679 = vmatpush1.msra.mxu0 0.0
      %4680 = vmatprep.subr.mxu0 0.0
      %4681 = vmatpush1.msra.mxu0 0.0
      %4682 = vmatprep.subr.mxu0 0.0
      %4683 = vmatpush1.msra.mxu0 0.0
      %4684 = vmatprep.subr.mxu0 0.0
      %4685 = vmatpush1.msra.mxu0 0.0
      %4686 = vmatprep.subr.mxu0 0.0
      %4687 = vmatpush1.msra.mxu0 0.0
      %4688 = vmatprep.subr.mxu0 0.0
      %4689 = vmatpush1.msra.mxu0 0.0
      %4690 = vmatprep.subr.mxu0 0.0
      %4691 = vmatpush1.msra.mxu0 0.0
      %4692 = vmatprep.subr.mxu0 0.0
      %4693 = vmatpush1.msra.mxu0 0.0
      %4694 = vmatprep.subr.mxu0 0.0
      %4695 = vmatpush1.msra.mxu0 0.0
      %4696 = vmatprep.subr.mxu0 0.0
      %4697 = vmatpush1.msra.mxu0 0.0
      %4698 = vmatprep.subr.mxu0 0.0
      %4699 = vmatpush1.msra.mxu0 0.0
      %4700 = vmatprep.subr.mxu0 0.0
      %4701 = vmatpush1.msra.mxu0 0.0
      %4702 = vmatprep.subr.mxu0 0.0
      %4703 = vmatpush1.msra.mxu0 0.0
      %4704 = vmatprep.subr.mxu0 0.0
      %4705 = vmatpush1.msra.mxu0 0.0
      %4706 = vmatprep.subr.mxu0 0.0
      %4707 = vmatpush1.msra.mxu0 0.0
      %4708 = vmatprep.subr.mxu0 0.0
      %4709 = vmatpush1.msra.mxu0 0.0
      %4710 = vmatprep.subr.mxu0 0.0
      %4711 = vmatpush1.msra.mxu0 0.0
      %4712 = vmatprep.subr.mxu0 0.0
      %4713 = vmatpush1.msra.mxu0 0.0
      %4714 = vmatprep.mubr.f32.mxu0 0.0
      %4715 = vmatmul.mubr.f32.gmra.mrb[0].mxu0 %v4583
      %v4716 = vpop.f32.mrb[0].mxu0
      %v4717 = vadd.f32 0.0, %v4716
      %v4718 = vpop.f32.mrb[0].mxu0
      %4719 = vmatprep.mubr.f32.mxu0 0.0
      %4720 = vmatmul.mubr.f32.gmra.mrb[0].mxu0 %v4585
      %v4721 = vpop.f32.mrb[0].mxu0
      %v4722 = vadd.f32 0.0, %v4721
      %v4723 = vpop.f32.mrb[0].mxu0
      %4724 = vmatprep.mubr.f32.mxu0 0.0
      %4725 = vmatmul.mubr.f32.gmra.mrb[0].mxu0 %v4587
      %v4726 = vpop.f32.mrb[0].mxu0
      %v4727 = vadd.f32 0.0, %v4726
      %v4728 = vpop.f32.mrb[0].mxu0
      %4729 = vmatprep.mubr.f32.mxu0 0.0
      %4730 = vmatmul.mubr.f32.gmra.mrb[0].mxu0 %v4589
      %v4731 = vpop.f32.mrb[0].mxu0
      %v4732 = vadd.f32 0.0, %v4731
      %v4733 = vpop.f32.mrb[0].mxu0
      %4734 = vmatprep.mubr.f32.mxu0 0.0
      %4735 = vmatmul.mubr.f32.gmra.mrb[0].mxu0 %v4591
      %v4736 = vpop.f32.mrb[0].mxu0
      %v4737 = vadd.f32 0.0, %v4736
      %v4738 = vpop.f32.mrb[0].mxu0
      %4739 = vmatprep.mubr.f32.mxu0 0.0
      %4740 = vmatmul.mubr.f32.gmra.mrb[0].mxu0 %v4593
      %v4741 = vpop.f32.mrb[0].mxu0
      %v4742 = vadd.f32 0.0, %v4741
      %v4743 = vpop.f32.mrb[0].mxu0
      %4744 = vmatprep.mubr.f32.mxu0 0.0
      %4745 = vmatmul.mubr.f32.gmra.mrb[0].mxu0 %v4595
      %v4746 = vpop.f32.mrb[0].mxu0
      %v4747 = vadd.f32 0.0, %v4746
      %v4748 = vpop.f32.mrb[0].mxu0
      %4749 = vmatprep.mubr.f32.mxu0 0.0
      %4750 = vmatmul.mubr.f32.gmra.mrb[0].mxu0 %v4597
      %v4751 = vpop.f32.mrb[0].mxu0
      %v4752 = vadd.f32 0.0, %v4751
      %v4753 = vpop.f32.mrb[0].mxu0
      %4754 = vmatprep.mubr.f32.mxu0 0.0
      %4755 = vmatmul.mubr.f32.gmra.mrb[0].mxu0 %v4599
      %v4756 = vpop.f32.mrb[0].mxu0
      %v4757 = vadd.f32 0.0, %v4756
      %v4758 = vpop.f32.mrb[0].mxu0
      %4759 = vmatprep.mubr.f32.mxu0 0.0
      %4760 = vmatmul.mubr.f32.gmra.mrb[0].mxu0 %v4601
      %v4761 = vpop.f32.mrb[0].mxu0
      %v4762 = vadd.f32 0.0, %v4761
      %v4763 = vpop.f32.mrb[0].mxu0
      %4764 = vmatprep.mubr.f32.mxu0 0.0
      %4765 = vmatmul.mubr.f32.gmra.mrb[0].mxu0 %v4603
      %v4766 = vpop.f32.mrb[0].mxu0
      %v4767 = vadd.f32 0.0, %v4766
      %v4768 = vpop.f32.mrb[0].mxu0
      %4769 = vmatprep.mubr.f32.mxu0 0.0
      %4770 = vmatmul.mubr.f32.gmra.mrb[0].mxu0 %v4605
      %v4771 = vpop.f32.mrb[0].mxu0
      %v4772 = vadd.f32 0.0, %v4771
      %v4773 = vpop.f32.mrb[0].mxu0
      %4774 = vmatprep.mubr.f32.mxu0 0.0
      %4775 = vmatmul.mubr.f32.gmra.mrb[0].mxu0 %v4607
      %v4776 = vpop.f32.mrb[0].mxu0
      %v4777 = vadd.f32 0.0, %v4776
      %v4778 = vpop.f32.mrb[0].mxu0
      %4779 = vmatprep.mubr.f32.mxu0 0.0
      %4780 = vmatmul.mubr.f32.gmra.mrb[0].mxu0 %v4609
      %v4781 = vpop.f32.mrb[0].mxu0
      %v4782 = vadd.f32 0.0, %v4781
      %v4783 = vpop.f32.mrb[0].mxu0
      %4784 = vmatprep.mubr.f32.mxu0 0.0
      %4785 = vmatmul.mubr.f32.gmra.mrb[0].mxu0 %v4611
      %v4786 = vpop.f32.mrb[0].mxu0
      %v4787 = vadd.f32 0.0, %v4786
      %v4788 = vpop.f32.mrb[0].mxu0
      %4789 = vmatprep.mubr.f32.mxu0 0.0
      %4790 = vmatmul.mubr.f32.gmra.mrb[0].mxu0 %v4613
      %v4791 = vpop.f32.mrb[0].mxu0
      %v4792 = vadd.f32 0.0, %v4791
      %v4793 = vpop.f32.mrb[0].mxu0
      %4794 = vmatprep.mubr.f32.mxu0 0.0
      %4795 = vmatmul.mubr.f32.gmra.mrb[0].mxu0 %v4615
      %v4796 = vpop.f32.mrb[0].mxu0
      %v4797 = vadd.f32 0.0, %v4796
      %v4798 = vpop.f32.mrb[0].mxu0
      %4799 = vmatprep.mubr.f32.mxu0 0.0
      %4800 = vmatmul.mubr.f32.gmra.mrb[0].mxu0 %v4617
      %v4801 = vpop.f32.mrb[0].mxu0
      %v4802 = vadd.f32 0.0, %v4801
      %v4803 = vpop.f32.mrb[0].mxu0
      %4804 = vmatprep.mubr.f32.mxu0 0.0
      %4805 = vmatmul.mubr.f32.gmra.mrb[0].mxu0 %v4619
      %v4806 = vpop.f32.mrb[0].mxu0
      %v4807 = vadd.f32 0.0, %v4806
      %v4808 = vpop.f32.mrb[0].mxu0
      %4809 = vmatprep.mubr.f32.mxu0 0.0
      %4810 = vmatmul.mubr.f32.gmra.mrb[0].mxu0 %v4621
      %v4811 = vpop.f32.mrb[0].mxu0
      %v4812 = vadd.f32 0.0, %v4811
      %v4813 = vpop.f32.mrb[0].mxu0
      %4814 = vmatprep.mubr.f32.mxu0 0.0
      %4815 = vmatmul.mubr.f32.gmra.mrb[0].mxu0 %v4623
      %v4816 = vpop.f32.mrb[0].mxu0
      %v4817 = vadd.f32 0.0, %v4816
      %v4818 = vpop.f32.mrb[0].mxu0
      %4819 = vmatprep.mubr.f32.mxu0 0.0
      %4820 = vmatmul.mubr.f32.gmra.mrb[0].mxu0 %v4625
      %v4821 = vpop.f32.mrb[0].mxu0
      %v4822 = vadd.f32 0.0, %v4821
      %v4823 = vpop.f32.mrb[0].mxu0
      %4824 = vmatprep.mubr.f32.mxu0 0.0
      %4825 = vmatmul.mubr.f32.gmra.mrb[0].mxu0 %v4627
      %v4826 = vpop.f32.mrb[0].mxu0
      %v4827 = vadd.f32 0.0, %v4826
      %v4828 = vpop.f32.mrb[0].mxu0
      %4829 = vmatprep.mubr.f32.mxu0 0.0
      %4830 = vmatmul.mubr.f32.gmra.mrb[0].mxu0 %v4629
      %v4831 = vpop.f32.mrb[0].mxu0
      %v4832 = vadd.f32 0.0, %v4831
      %v4833 = vpop.f32.mrb[0].mxu0
      %4834 = vmatprep.mubr.f32.mxu0 0.0
      %4835 = vmatmul.mubr.f32.gmra.mrb[0].mxu0 %v4631
      %v4836 = vpop.f32.mrb[0].mxu0
      %v4837 = vadd.f32 0.0, %v4836
      %v4838 = vpop.f32.mrb[0].mxu0
      %4839 = vmatprep.mubr.f32.mxu0 0.0
      %4840 = vmatmul.mubr.f32.gmra.mrb[0].mxu0 %v4633
      %v4841 = vpop.f32.mrb[0].mxu0
      %v4842 = vadd.f32 0.0, %v4841
      %v4843 = vpop.f32.mrb[0].mxu0
      %4844 = vmatprep.mubr.f32.mxu0 0.0
      %4845 = vmatmul.mubr.f32.gmra.mrb[0].mxu0 %v4635
      %v4846 = vpop.f32.mrb[0].mxu0
      %v4847 = vadd.f32 0.0, %v4846
      %v4848 = vpop.f32.mrb[0].mxu0
      %4849 = vmatprep.mubr.f32.mxu0 0.0
      %4850 = vmatmul.mubr.f32.gmra.mrb[0].mxu0 %v4637
      %v4851 = vpop.f32.mrb[0].mxu0
      %v4852 = vadd.f32 0.0, %v4851
      %v4853 = vpop.f32.mrb[0].mxu0
      %4854 = vmatprep.mubr.f32.mxu0 0.0
      %4855 = vmatmul.mubr.f32.gmra.mrb[0].mxu0 %v4639
      %v4856 = vpop.f32.mrb[0].mxu0
      %v4857 = vadd.f32 0.0, %v4856
      %v4858 = vpop.f32.mrb[0].mxu0
      %4859 = vmatprep.mubr.f32.mxu0 0.0
      %4860 = vmatmul.mubr.f32.gmra.mrb[0].mxu0 %v4641
      %v4861 = vpop.f32.mrb[0].mxu0
      %v4862 = vadd.f32 0.0, %v4861
      %v4863 = vpop.f32.mrb[0].mxu0
      %4864 = vmatprep.mubr.f32.mxu0 0.0
      %4865 = vmatmul.mubr.f32.gmra.mrb[0].mxu0 %v4643
      %v4866 = vpop.f32.mrb[0].mxu0
      %v4867 = vadd.f32 0.0, %v4866
      %v4868 = vpop.f32.mrb[0].mxu0
      %4869 = vmatprep.mubr.f32.mxu0 0.0
      %4870 = vmatmul.mubr.f32.gmra.mrb[0].mxu0 %v4645
      %v4871 = vpop.f32.mrb[0].mxu0
      %v4872 = vadd.f32 0.0, %v4871
      %v4873 = vpop.f32.mrb[0].mxu0
      %4874 = vdwg.mxu0
      %v4876 = vsel %vm307, %v4453, 0
      %v4879 = vsel %vm307, %v4454, 0
      %v4882 = vsel %vm307, %v4455, 0
      %v4885 = vsel %vm307, %v4456, 0
      %v4888 = vsel %vm307, %v4457, 0
      %v4891 = vsel %vm307, %v4458, 0
      %v4894 = vsel %vm307, %v4459, 0
      %v4897 = vsel %vm307, %v4460, 0
      %v4900 = vsel %vm307, %v4461, 0
      %v4903 = vsel %vm307, %v4462, 0
      %v4906 = vsel %vm307, %v4463, 0
      %v4909 = vsel %vm307, %v4464, 0
      %v4912 = vsel %vm307, %v4465, 0
      %v4915 = vsel %vm307, %v4466, 0
      %v4918 = vsel %vm307, %v4467, 0
      %v4921 = vsel %vm307, %v4468, 0
      %v4924 = vsel %vm307, %v4469, 0
      %v4927 = vsel %vm307, %v4470, 0
      %v4930 = vsel %vm307, %v4471, 0
      %v4933 = vsel %vm307, %v4472, 0
      %v4936 = vsel %vm307, %v4473, 0
      %v4939 = vsel %vm307, %v4474, 0
      %v4942 = vsel %vm307, %v4475, 0
      %v4945 = vsel %vm307, %v4476, 0
      %v4948 = vsel %vm307, %v4477, 0
      %v4951 = vsel %vm307, %v4478, 0
      %v4954 = vsel %vm307, %v4479, 0
      %v4957 = vsel %vm307, %v4480, 0
      %v4960 = vsel %vm307, %v4481, 0
      %v4963 = vsel %vm307, %v4482, 0
      %v4966 = vsel %vm307, %v4483, 0
      %v4969 = vsel %vm307, %v4484, 0
      %v4971 = vsel %vm4647, %v4452, 0
      %4973 = vmatprep.subr.mxu0 0.0
      %4974 = vmatpush1.msra.mxu0 %v4971
      %4975 = vmatprep.subr.mxu0 0.0
      %4976 = vmatpush1.msra.mxu0 0.0
      %4977 = vmatprep.subr.mxu0 0.0
      %4978 = vmatpush1.msra.mxu0 0.0
      %4979 = vmatprep.subr.mxu0 0.0
      %4980 = vmatpush1.msra.mxu0 0.0
      %4981 = vmatprep.subr.mxu0 0.0
      %4982 = vmatpush1.msra.mxu0 0.0
      %4983 = vmatprep.subr.mxu0 0.0
      %4984 = vmatpush1.msra.mxu0 0.0
      %4985 = vmatprep.subr.mxu0 0.0
      %4986 = vmatpush1.msra.mxu0 0.0
      %4987 = vmatprep.subr.mxu0 0.0
      %4988 = vmatpush1.msra.mxu0 0.0
      %4989 = vmatprep.subr.mxu0 0.0
      %4990 = vmatpush1.msra.mxu0 0.0
      %4991 = vmatprep.subr.mxu0 0.0
      %4992 = vmatpush1.msra.mxu0 0.0
      %4993 = vmatprep.subr.mxu0 0.0
      %4994 = vmatpush1.msra.mxu0 0.0
      %4995 = vmatprep.subr.mxu0 0.0
      %4996 = vmatpush1.msra.mxu0 0.0
      %4997 = vmatprep.subr.mxu0 0.0
      %4998 = vmatpush1.msra.mxu0 0.0
      %4999 = vmatprep.subr.mxu0 0.0
      %5000 = vmatpush1.msra.mxu0 0.0
      %5001 = vmatprep.subr.mxu0 0.0
      %5002 = vmatpush1.msra.mxu0 0.0
      %5003 = vmatprep.subr.mxu0 0.0
      %5004 = vmatpush1.msra.mxu0 0.0
      %5005 = vmatprep.subr.mxu0 0.0
      %5006 = vmatpush1.msra.mxu0 0.0
      %5007 = vmatprep.subr.mxu0 0.0
      %5008 = vmatpush1.msra.mxu0 0.0
      %5009 = vmatprep.subr.mxu0 0.0
      %5010 = vmatpush1.msra.mxu0 0.0
      %5011 = vmatprep.subr.mxu0 0.0
      %5012 = vmatpush1.msra.mxu0 0.0
      %5013 = vmatprep.subr.mxu0 0.0
      %5014 = vmatpush1.msra.mxu0 0.0
      %5015 = vmatprep.subr.mxu0 0.0
      %5016 = vmatpush1.msra.mxu0 0.0
      %5017 = vmatprep.subr.mxu0 0.0
      %5018 = vmatpush1.msra.mxu0 0.0
      %5019 = vmatprep.subr.mxu0 0.0
      %5020 = vmatpush1.msra.mxu0 0.0
      %5021 = vmatprep.subr.mxu0 0.0
      %5022 = vmatpush1.msra.mxu0 0.0
      %5023 = vmatprep.subr.mxu0 0.0
      %5024 = vmatpush1.msra.mxu0 0.0
      %5025 = vmatprep.subr.mxu0 0.0
      %5026 = vmatpush1.msra.mxu0 0.0
      %5027 = vmatprep.subr.mxu0 0.0
      %5028 = vmatpush1.msra.mxu0 0.0
      %5029 = vmatprep.subr.mxu0 0.0
      %5030 = vmatpush1.msra.mxu0 0.0
      %5031 = vmatprep.subr.mxu0 0.0
      %5032 = vmatpush1.msra.mxu0 0.0
      %5033 = vmatprep.subr.mxu0 0.0
      %5034 = vmatpush1.msra.mxu0 0.0
      %5035 = vmatprep.subr.mxu0 0.0
      %5036 = vmatpush1.msra.mxu0 0.0
      %5037 = vmatprep.mubr.f32.mxu0 0.0
      %5038 = vmatmul.mubr.f32.gmra.mrb[0].mxu0 %v4876
      %v5039 = vpop.f32.mrb[0].mxu0
      %v5040 = vadd.f32 %v4717, %v5039
      %v5041 = vpop.f32.mrb[0].mxu0
      %5042 = vmatprep.mubr.f32.mxu0 0.0
      %5043 = vmatmul.mubr.f32.gmra.mrb[0].mxu0 %v4879
      %v5044 = vpop.f32.mrb[0].mxu0
      %v5045 = vadd.f32 %v4722, %v5044
      %v5046 = vpop.f32.mrb[0].mxu0
      %5047 = vmatprep.mubr.f32.mxu0 0.0
      %5048 = vmatmul.mubr.f32.gmra.mrb[0].mxu0 %v4882
      %v5049 = vpop.f32.mrb[0].mxu0
      %v5050 = vadd.f32 %v4727, %v5049
      %v5051 = vpop.f32.mrb[0].mxu0
      %5052 = vmatprep.mubr.f32.mxu0 0.0
      %5053 = vmatmul.mubr.f32.gmra.mrb[0].mxu0 %v4885
      %v5054 = vpop.f32.mrb[0].mxu0
      %v5055 = vadd.f32 %v4732, %v5054
      %v5056 = vpop.f32.mrb[0].mxu0
      %5057 = vmatprep.mubr.f32.mxu0 0.0
      %5058 = vmatmul.mubr.f32.gmra.mrb[0].mxu0 %v4888
      %v5059 = vpop.f32.mrb[0].mxu0
      %v5060 = vadd.f32 %v4737, %v5059
      %v5061 = vpop.f32.mrb[0].mxu0
      %5062 = vmatprep.mubr.f32.mxu0 0.0
      %5063 = vmatmul.mubr.f32.gmra.mrb[0].mxu0 %v4891
      %v5064 = vpop.f32.mrb[0].mxu0
      %v5065 = vadd.f32 %v4742, %v5064
      %v5066 = vpop.f32.mrb[0].mxu0
      %5067 = vmatprep.mubr.f32.mxu0 0.0
      %5068 = vmatmul.mubr.f32.gmra.mrb[0].mxu0 %v4894
      %v5069 = vpop.f32.mrb[0].mxu0
      %v5070 = vadd.f32 %v4747, %v5069
      %v5071 = vpop.f32.mrb[0].mxu0
      %5072 = vmatprep.mubr.f32.mxu0 0.0
      %5073 = vmatmul.mubr.f32.gmra.mrb[0].mxu0 %v4897
      %v5074 = vpop.f32.mrb[0].mxu0
      %v5075 = vadd.f32 %v4752, %v5074
      %v5076 = vpop.f32.mrb[0].mxu0
      %5077 = vmatprep.mubr.f32.mxu0 0.0
      %5078 = vmatmul.mubr.f32.gmra.mrb[0].mxu0 %v4900
      %v5079 = vpop.f32.mrb[0].mxu0
      %v5080 = vadd.f32 %v4757, %v5079
      %v5081 = vpop.f32.mrb[0].mxu0
      %5082 = vmatprep.mubr.f32.mxu0 0.0
      %5083 = vmatmul.mubr.f32.gmra.mrb[0].mxu0 %v4903
      %v5084 = vpop.f32.mrb[0].mxu0
      %v5085 = vadd.f32 %v4762, %v5084
      %v5086 = vpop.f32.mrb[0].mxu0
      %5087 = vmatprep.mubr.f32.mxu0 0.0
      %5088 = vmatmul.mubr.f32.gmra.mrb[0].mxu0 %v4906
      %v5089 = vpop.f32.mrb[0].mxu0
      %v5090 = vadd.f32 %v4767, %v5089
      %v5091 = vpop.f32.mrb[0].mxu0
      %5092 = vmatprep.mubr.f32.mxu0 0.0
      %5093 = vmatmul.mubr.f32.gmra.mrb[0].mxu0 %v4909
      %v5094 = vpop.f32.mrb[0].mxu0
      %v5095 = vadd.f32 %v4772, %v5094
      %v5096 = vpop.f32.mrb[0].mxu0
      %5097 = vmatprep.mubr.f32.mxu0 0.0
      %5098 = vmatmul.mubr.f32.gmra.mrb[0].mxu0 %v4912
      %v5099 = vpop.f32.mrb[0].mxu0
      %v5100 = vadd.f32 %v4777, %v5099
      %v5101 = vpop.f32.mrb[0].mxu0
      %5102 = vmatprep.mubr.f32.mxu0 0.0
      %5103 = vmatmul.mubr.f32.gmra.mrb[0].mxu0 %v4915
      %v5104 = vpop.f32.mrb[0].mxu0
      %v5105 = vadd.f32 %v4782, %v5104
      %v5106 = vpop.f32.mrb[0].mxu0
      %5107 = vmatprep.mubr.f32.mxu0 0.0
      %5108 = vmatmul.mubr.f32.gmra.mrb[0].mxu0 %v4918
      %v5109 = vpop.f32.mrb[0].mxu0
      %v5110 = vadd.f32 %v4787, %v5109
      %v5111 = vpop.f32.mrb[0].mxu0
      %5112 = vmatprep.mubr.f32.mxu0 0.0
      %5113 = vmatmul.mubr.f32.gmra.mrb[0].mxu0 %v4921
      %v5114 = vpop.f32.mrb[0].mxu0
      %v5115 = vadd.f32 %v4792, %v5114
      %v5116 = vpop.f32.mrb[0].mxu0
      %5117 = vmatprep.mubr.f32.mxu0 0.0
      %5118 = vmatmul.mubr.f32.gmra.mrb[0].mxu0 %v4924
      %v5119 = vpop.f32.mrb[0].mxu0
      %v5120 = vadd.f32 %v4797, %v5119
      %v5121 = vpop.f32.mrb[0].mxu0
      %5122 = vmatprep.mubr.f32.mxu0 0.0
      %5123 = vmatmul.mubr.f32.gmra.mrb[0].mxu0 %v4927
      %v5124 = vpop.f32.mrb[0].mxu0
      %v5125 = vadd.f32 %v4802, %v5124
      %v5126 = vpop.f32.mrb[0].mxu0
      %5127 = vmatprep.mubr.f32.mxu0 0.0
      %5128 = vmatmul.mubr.f32.gmra.mrb[0].mxu0 %v4930
      %v5129 = vpop.f32.mrb[0].mxu0
      %v5130 = vadd.f32 %v4807, %v5129
      %v5131 = vpop.f32.mrb[0].mxu0
      %5132 = vmatprep.mubr.f32.mxu0 0.0
      %5133 = vmatmul.mubr.f32.gmra.mrb[0].mxu0 %v4933
      %v5134 = vpop.f32.mrb[0].mxu0
      %v5135 = vadd.f32 %v4812, %v5134
      %v5136 = vpop.f32.mrb[0].mxu0
      %5137 = vmatprep.mubr.f32.mxu0 0.0
      %5138 = vmatmul.mubr.f32.gmra.mrb[0].mxu0 %v4936
      %v5139 = vpop.f32.mrb[0].mxu0
      %v5140 = vadd.f32 %v4817, %v5139
      %v5141 = vpop.f32.mrb[0].mxu0
      %5142 = vmatprep.mubr.f32.mxu0 0.0
      %5143 = vmatmul.mubr.f32.gmra.mrb[0].mxu0 %v4939
      %v5144 = vpop.f32.mrb[0].mxu0
      %v5145 = vadd.f32 %v4822, %v5144
      %v5146 = vpop.f32.mrb[0].mxu0
      %5147 = vmatprep.mubr.f32.mxu0 0.0
      %5148 = vmatmul.mubr.f32.gmra.mrb[0].mxu0 %v4942
      %v5149 = vpop.f32.mrb[0].mxu0
      %v5150 = vadd.f32 %v4827, %v5149
      %v5151 = vpop.f32.mrb[0].mxu0
      %5152 = vmatprep.mubr.f32.mxu0 0.0
      %5153 = vmatmul.mubr.f32.gmra.mrb[0].mxu0 %v4945
      %v5154 = vpop.f32.mrb[0].mxu0
      %v5155 = vadd.f32 %v4832, %v5154
      %v5156 = vpop.f32.mrb[0].mxu0
      %5157 = vmatprep.mubr.f32.mxu0 0.0
      %5158 = vmatmul.mubr.f32.gmra.mrb[0].mxu0 %v4948
      %v5159 = vpop.f32.mrb[0].mxu0
      %v5160 = vadd.f32 %v4837, %v5159
      %v5161 = vpop.f32.mrb[0].mxu0
      %5162 = vmatprep.mubr.f32.mxu0 0.0
      %5163 = vmatmul.mubr.f32.gmra.mrb[0].mxu0 %v4951
      %v5164 = vpop.f32.mrb[0].mxu0
      %v5165 = vadd.f32 %v4842, %v5164
      %v5166 = vpop.f32.mrb[0].mxu0
      %5167 = vmatprep.mubr.f32.mxu0 0.0
      %5168 = vmatmul.mubr.f32.gmra.mrb[0].mxu0 %v4954
      %v5169 = vpop.f32.mrb[0].mxu0
      %v5170 = vadd.f32 %v4847, %v5169
      %v5171 = vpop.f32.mrb[0].mxu0
      %5172 = vmatprep.mubr.f32.mxu0 0.0
      %5173 = vmatmul.mubr.f32.gmra.mrb[0].mxu0 %v4957
      %v5174 = vpop.f32.mrb[0].mxu0
      %v5175 = vadd.f32 %v4852, %v5174
      %v5176 = vpop.f32.mrb[0].mxu0
      %5177 = vmatprep.mubr.f32.mxu0 0.0
      %5178 = vmatmul.mubr.f32.gmra.mrb[0].mxu0 %v4960
      %v5179 = vpop.f32.mrb[0].mxu0
      %v5180 = vadd.f32 %v4857, %v5179
      %v5181 = vpop.f32.mrb[0].mxu0
      %5182 = vmatprep.mubr.f32.mxu0 0.0
      %5183 = vmatmul.mubr.f32.gmra.mrb[0].mxu0 %v4963
      %v5184 = vpop.f32.mrb[0].mxu0
      %v5185 = vadd.f32 %v4862, %v5184
      %v5186 = vpop.f32.mrb[0].mxu0
      %5187 = vmatprep.mubr.f32.mxu0 0.0
      %5188 = vmatmul.mubr.f32.gmra.mrb[0].mxu0 %v4966
      %v5189 = vpop.f32.mrb[0].mxu0
      %v5190 = vadd.f32 %v4867, %v5189
      %v5191 = vpop.f32.mrb[0].mxu0
      %5192 = vmatprep.mubr.f32.mxu0 0.0
      %5193 = vmatmul.mubr.f32.gmra.mrb[0].mxu0 %v4969
      %v5194 = vpop.f32.mrb[0].mxu0
      %v5195 = vadd.f32 %v4872, %v5194
      %v5196 = vpop.f32.mrb[0].mxu0
      %5197 = vdwg.mxu0
      %vm5198 = vcmask 64512
      %5199 = vst.msk [vmem:[%s273] sm:$0xff] %vm5198, %v5040
      %5200 = vst.msk [vmem:[%s273 + $0x8] sm:$0xff] %vm5198, %v5045
      %5201 = vst.msk [vmem:[%s273 + $0x10] sm:$0xff] %vm5198, %v5050
      %5202 = vst.msk [vmem:[%s273 + $0x18] sm:$0xff] %vm5198, %v5055
      %5203 = vst.msk [vmem:[%s273 + $0x20] sm:$0xff] %vm5198, %v5060
      %5204 = vst.msk [vmem:[%s273 + $0x28] sm:$0xff] %vm5198, %v5065
      %5205 = vst.msk [vmem:[%s273 + $0x30] sm:$0xff] %vm5198, %v5070
      %5206 = vst.msk [vmem:[%s273 + $0x38] sm:$0xff] %vm5198, %v5075
      %5207 = vst.msk [vmem:[%s273 + $0x40] sm:$0xff] %vm5198, %v5080
      %5208 = vst.msk [vmem:[%s273 + $0x48] sm:$0xff] %vm5198, %v5085
      %5209 = vst.msk [vmem:[%s273 + $0x50] sm:$0xff] %vm5198, %v5090
      %5210 = vst.msk [vmem:[%s273 + $0x58] sm:$0xff] %vm5198, %v5095
      %5211 = vst.msk [vmem:[%s273 + $0x60] sm:$0xff] %vm5198, %v5100
      %5212 = vst.msk [vmem:[%s273 + $0x68] sm:$0xff] %vm5198, %v5105
      %5213 = vst.msk [vmem:[%s273 + $0x70] sm:$0xff] %vm5198, %v5110
      %5214 = vst.msk [vmem:[%s273 + $0x78] sm:$0xff] %vm5198, %v5115
      %5215 = vst.msk [vmem:[%s273 + $0x80] sm:$0xff] %vm5198, %v5120
      %5216 = vst.msk [vmem:[%s273 + $0x88] sm:$0xff] %vm5198, %v5125
      %5217 = vst.msk [vmem:[%s273 + $0x90] sm:$0xff] %vm5198, %v5130
      %5218 = vst.msk [vmem:[%s273 + $0x98] sm:$0xff] %vm5198, %v5135
      %5219 = vst.msk [vmem:[%s273 + $0xa0] sm:$0xff] %vm5198, %v5140
      %5220 = vst.msk [vmem:[%s273 + $0xa8] sm:$0xff] %vm5198, %v5145
      %5221 = vst.msk [vmem:[%s273 + $0xb0] sm:$0xff] %vm5198, %v5150
      %5222 = vst.msk [vmem:[%s273 + $0xb8] sm:$0xff] %vm5198, %v5155
      %5223 = vst.msk [vmem:[%s273 + $0xc0] sm:$0xff] %vm5198, %v5160
      %5224 = vst.msk [vmem:[%s273 + $0xc8] sm:$0xff] %vm5198, %v5165
      %5225 = vst.msk [vmem:[%s273 + $0xd0] sm:$0xff] %vm5198, %v5170
      %5226 = vst.msk [vmem:[%s273 + $0xd8] sm:$0xff] %vm5198, %v5175
      %5227 = vst.msk [vmem:[%s273 + $0xe0] sm:$0xff] %vm5198, %v5180
      %5228 = vst.msk [vmem:[%s273 + $0xe8] sm:$0xff] %vm5198, %v5185
      %5229 = vst.msk [vmem:[%s273 + $0xf0] sm:$0xff] %vm5198, %v5190
      %5230 = vst.msk [vmem:[%s273 + $0xf8] sm:$0xff] %vm5198, %v5195
      %s5231 = smul.u32 32, %s17
      %p5232 = scmp.lt.s32.totalorder %s5231, 63
      %s5233 = scalar_select %p5232, %s5231, 63
      %s5234 = smul.addr %s5233, 8
      %s5235 = scalar_lea.vmem %s6, %s5234
      // Predicated region
      $region45: #{_lambda_.3} parent=43 // pred_check
        %p5236 = pneg %p171
      $region46: #{_lambda_.3} parent=43 // pred_check_branch
        %5238 = sbr.rel (%p5236) target = $region48
      $region47: #{_lambda_.3} parent=43 // pred_region
        %s5239 = smul.u32 32, %s17
      $region48: #{_lambda_.3} parent=43 // pred_fallthru
        _
    $region44: #{_lambda_.3} parent=5 // pred_fallthru
      _
    %p5240 = scmp.le.s32.totalorder 2, %s12
    // Predicated region
    $region49: #{_lambda_.3} parent=5 // pred_check
      %p5241 = pneg %p5240
    $region50: #{_lambda_.3} parent=5 // pred_check_branch
      %5243 = sbr.rel (%p5241) target = $region52
    $region51: #{_lambda_.3} parent=5 // pred_region
      %s5244 = ssub.s32 %s12, 2
      // Predicated region
      $region53: #{_lambda_.3} parent=51 // pred_check
        %p5245 = pneg %p177
      $region54: #{_lambda_.3} parent=51 // pred_check_branch
        %5247 = sbr.rel (%p5245) target = $region56
      $region55: #{_lambda_.3} parent=51 // pred_region
        %s5248 = smul.u32 32, %s18
        %p5249 = scmp.lt.s32.totalorder %s5248, 63
        %s5250 = scalar_select %p5249, %s5248, 63
        %s5251 = smul.addr %s5250, 8
        %s5252 = scalar_lea.vmem %s6, %s5251
      $region56: #{_lambda_.3} parent=51 // pred_fallthru
        _
    $region52: #{_lambda_.3} parent=5 // pred_fallthru
      _
  $region6: #{_lambda_.3} parent=0 // loop_footer
    %s16 = sadd.s32 1, %s12
  $region7: #{_lambda_.3} parent=0 // loop_footer_branch
    %11 = sbr.rel target = $region3
  $region8: #{_lambda_.3} parent=0 // loop_exit
    _

</llo_original>
